<compile_context>
chip_gen: v5e
topology: v5e:2x2
jax: 0.10.0
libtpu: 0.0.40
codegen_flags: <defaults>
</compile_context>

<pallas_src>
import math
import jax
import jax.numpy as jnp
from jax.experimental import pallas as pl
from jax.experimental.pallas import tpu as pltpu

# ---------------- config (small, consistent with the module) ----------------
IMG, PATCH, CIN = 16, 8, 3
EMBED, HEADS, FF, LAYERS, CLASSES = 128, 4, 256, 2, 10
HEAD_DIM = EMBED // HEADS              # 32
NPATCH = (IMG // PATCH) ** 2           # 4
SEQ = NPATCH + 1                       # 5 real tokens
SEQ_PAD = 8                            # padded to a full sublane tile
PATCH_DIM = CIN * PATCH * PATCH        # 192
PATCH_PAD = 256                        # 192 -> 256: aligned 128-lane tiles
LANE = 128                             # lane-dense logits slab width
EPS = 1e-5
SCALE = 1.0 / math.sqrt(HEAD_DIM)
DEFAULT_B_TILE = 32                    # 32*8 = 256 rows (fills v6e/v7x MXU)


def _round_up(v, m):
    return (v + m - 1) // m * m


# ---------------------------- in-kernel helpers ------------------------------
def _layernorm(x, g, b):
    mu = jnp.mean(x, axis=-1, keepdims=True)
    var = jnp.mean((x - mu) ** 2, axis=-1, keepdims=True)
    return (x - mu) * jax.lax.rsqrt(var + EPS) * g + b


def _gelu(x):
    # tanh-approx GELU (runs on the otherwise-idle EUP slot).  PyTorch's
    # nn.GELU default is exact erf; the difference (<~1e-3) is below the
    # bf16-matmul noise floor.  Swap back to lax.erf for bit-tight compares.
    c = math.sqrt(2.0 / math.pi)
    return 0.5 * x * (1.0 + jnp.tanh(c * (x + 0.044715 * x * x * x)))


def _mm(a, w_bf16):
    # bf16 MXU matmul, f32 accumulation
    return jnp.dot(a.astype(jnp.bfloat16), w_bf16,
                   preferred_element_type=jnp.float32)


# ------------------------------ fused kernel ----------------------------------
def vit_fused_kernel(p_ref, pw_ref, pb_ref, pos_ref,
                     g1_ref, b1_ref, win_ref, bin_ref, wo_ref, bo_ref,
                     g2_ref, b2_ref, w1_ref, bf1_ref, w2_ref, bf2_ref,
                     ng_ref, nb_ref, hw_ref, hb_ref, o_ref):
    bt = o_ref.shape[0]                 # batch elements per grid step (static)
    rows = bt * SEQ_PAD                 # token-slab rows (>=128)

    # ---- patch embedding on a (bt*NPATCH, 256) slab --------------------------
    pz = p_ref[...].reshape(bt * NPATCH, PATCH_PAD)
    pe = _mm(pz, pw_ref[...]) + pb_ref[...]                 # (bt*4, D) f32
    pe = pe.reshape(bt, NPATCH, EMBED)

    # ---- assemble padded token slab: [cls(=0, folded into pos), patches, pad] -
    zero1 = jnp.zeros((bt, 1, EMBED), jnp.float32)
    zpad = jnp.zeros((bt, SEQ_PAD - SEQ, EMBED), jnp.float32)
    x = (jnp.concatenate([zero1, pe, zpad], axis=1) + pos_ref[...])  # (bt,8,D)
    x = x.reshape(rows, EMBED)                               # (rows, D) f32

    # additive key-padding mask (pad key columns -> -1e30), hoisted out of loops
    kidx = jax.lax.broadcasted_iota(jnp.int32, (1, 1, SEQ_PAD), 2)
    attn_bias = jnp.where(kidx < SEQ, 0.0, -1e30).astype(jnp.float32)

    for l in range(LAYERS):
        # -------- LayerNorm 1 + multi-head self-attention + residual ---------
        xn = _layernorm(x, g1_ref[l], b1_ref[l])
        qkv = _mm(xn, win_ref[l]) + bin_ref[l]               # (rows, 3D) f32

        # per-element attention, batched over bt per head; out-projection is
        # accumulated per head (no stack / no concat relayouts).
        attn = jnp.zeros((rows, EMBED), jnp.float32)
        for h in range(HEADS):
            qs = qkv[:, h * HEAD_DIM:(h + 1) * HEAD_DIM] * SCALE
            ks = qkv[:, EMBED + h * HEAD_DIM:EMBED + (h + 1) * HEAD_DIM]
            vs = qkv[:, 2 * EMBED + h * HEAD_DIM:2 * EMBED + (h + 1) * HEAD_DIM]
            qh = qs.reshape(bt, SEQ_PAD, HEAD_DIM).astype(jnp.bfloat16)
            kh = ks.reshape(bt, SEQ_PAD, HEAD_DIM).astype(jnp.bfloat16)
            vh = vs.reshape(bt, SEQ_PAD, HEAD_DIM).astype(jnp.bfloat16)

            s = jnp.einsum('bqd,bkd->bqk', qh, kh,
                           preferred_element_type=jnp.float32) + attn_bias
            m = jnp.max(s, axis=-1, keepdims=True)
            e = jnp.exp(s - m)
            p = e * pl.reciprocal(jnp.sum(e, axis=-1, keepdims=True), approx=True)
            oh = jnp.einsum('bqk,bkd->bqd', p.astype(jnp.bfloat16), vh,
                            preferred_element_type=jnp.float32)   # (bt,8,32)
            # concat(heads) @ W_out  ==  sum_h  oh_h @ W_out[h]
            attn = attn + _mm(oh.reshape(rows, HEAD_DIM), wo_ref[l, h])
        x = x + attn + bo_ref[l]                             # residual

        # -------------- LayerNorm 2 + feed-forward + residual ----------------
        xn = _layernorm(x, g2_ref[l], b2_ref[l])
        h1 = _gelu(_mm(xn, w1_ref[l]) + bf1_ref[l])          # (rows, FF)
        x = x + _mm(h1, w2_ref[l]) + bf2_ref[l]              # residual

    # ---- final LayerNorm on cls rows + classifier head (dense (bt,128) store)
    xc = x.reshape(bt, SEQ_PAD, EMBED)[:, 0, :]              # (bt, D) cls rows
    xc = _layernorm(xc, ng_ref[...], nb_ref[...])
    o_ref[...] = _mm(xc, hw_ref[...]) + hb_ref[...]          # (bt, 128)


# -------------------------------- wrapper --------------------------------------
def vit_pallas(patches, kp, b_tile=DEFAULT_B_TILE):
    B = patches.shape[0]

    # Batch tiling: bt*8 rows per slab.  >=16 fills the v5e MXU row dim,
    # 32 fills v6e/v7x.  Prefer >=2 grid steps when B allows (v7x: 2 TCs).
    bt = min(b_tile, max(8, _round_up(B, 8)))
    if B >= 32 and pl.cdiv(B, bt) < 2:
        bt = max(16, _round_up(pl.cdiv(B, 2), 8))
    b_pad = _round_up(B, bt)
    n_steps = b_pad // bt

    # pad batch to a multiple of bt and PATCH_DIM 192 -> 256 (aligned tiles)
    patches = jnp.pad(patches,
                      ((0, b_pad - B), (0, 0), (0, PATCH_PAD - PATCH_DIM)))

    args = [patches,
            kp['patch_w'], kp['patch_b'], kp['pos'],
            kp['g1'], kp['b1'], kp['w_in'], kp['b_in'], kp['w_out'], kp['b_out'],
            kp['g2'], kp['b2'], kp['w_ff1'], kp['b_ff1'], kp['w_ff2'], kp['b_ff2'],
            kp['norm_g'], kp['norm_b'], kp['head_w'], kp['head_b']]

    def wspec(a):
        nd = a.ndim
        return pl.BlockSpec(a.shape, lambda i, _nd=nd: (0,) * _nd)

    in_specs = [pl.BlockSpec((bt, NPATCH, PATCH_PAD), lambda i: (i, 0, 0))]
    in_specs += [wspec(a) for a in args[1:]]

    # advisory cost estimate so XLA schedules the call sensibly
    flops_elem = (2 * NPATCH * PATCH_PAD * EMBED
                  + LAYERS * (2 * SEQ_PAD * EMBED * (3 * EMBED)
                              + 2 * 2 * HEADS * SEQ_PAD * SEQ_PAD * HEAD_DIM
                              + 2 * SEQ_PAD * EMBED * EMBED
                              + 2 * 2 * SEQ_PAD * EMBED * FF)
                  + 2 * EMBED * LANE)
    transc_elem = LAYERS * (HEADS * SEQ_PAD * SEQ_PAD + SEQ_PAD * FF)
    weight_bytes = sum(int(a.size) * a.dtype.itemsize for a in args[1:])
    cost = pl.CostEstimate(
        flops=int(b_pad * flops_elem),
        transcendentals=int(b_pad * transc_elem),
        bytes_accessed=int(patches.size) * patches.dtype.itemsize
                       + weight_bytes + b_pad * LANE * 4)

    out = pl.pallas_call(
        vit_fused_kernel,
        out_shape=jax.ShapeDtypeStruct((b_pad, LANE), jnp.float32),
        grid=(n_steps,),
        in_specs=in_specs,
        out_specs=pl.BlockSpec((bt, LANE), lambda i: (i, 0)),
        compiler_params=pltpu.CompilerParams(
            dimension_semantics=("parallel",)),
        cost_estimate=cost,
    )(*args)
    return out[:B, :CLASSES]


# --------------------------------- glue ----------------------------------------
def extract_patches(x):
    # (B, C, H, W) NCHW -> (B, n_patches, C*P*P), flattening order (c, ph, pw)
    # exactly matching Conv2d(kernel=stride=P) as a matmul.
    B, C, H, W = x.shape
    P = PATCH
    x = x.reshape(B, C, H // P, P, W // P, P)
    x = x.transpose(0, 2, 4, 1, 3, 5)            # (B, H', W', C, P, P)
    return x.reshape(B, NPATCH, C * P * P)


def init_params(key):
    keys = iter(jax.random.split(key, 64))

    def nrm(shape, scale=0.02):
        return (scale * jax.random.normal(next(keys), shape)).astype(jnp.float32)

    params = {
        'patch_w': nrm((PATCH_DIM, EMBED)),
        'patch_b': nrm((1, EMBED)),
        'cls': jnp.zeros((1, 1, EMBED), jnp.float32),        # torch.zeros param
        'pos': jax.random.normal(next(keys), (1, SEQ, EMBED), jnp.float32),
        'norm_g': jnp.ones((1, EMBED), jnp.float32),
        'norm_b': jnp.zeros((1, EMBED), jnp.float32),
        'head_w': nrm((EMBED, CLASSES)),
        'head_b': nrm((1, CLASSES)),
    }
    layers = []
    for _ in range(LAYERS):
        layers.append(dict(
            g1=jnp.ones((1, EMBED), jnp.float32),
            b1=jnp.zeros((1, EMBED), jnp.float32),
            w_in=nrm((EMBED, 3 * EMBED)),
            b_in=nrm((1, 3 * EMBED)),
            w_out=nrm((EMBED, EMBED)),
            b_out=nrm((1, EMBED)),
            g2=jnp.ones((1, EMBED), jnp.float32),
            b2=jnp.zeros((1, EMBED), jnp.float32),
            w_ff1=nrm((EMBED, FF)),
            b_ff1=nrm((1, FF)),
            w_ff2=nrm((FF, EMBED)),
            b_ff2=nrm((1, EMBED)),
        ))
    params['layers'] = layers
    return params


def prepare_kernel_params(params):
    """f32 module params -> kernel-ready arrays.  Runs once, outside the hot
    path: stacks per-layer weights, casts matmul weights to bf16, folds the
    cls token into pos[0], pads patch_w to 256 rows, pads the head to 128
    lanes and pre-splits W_out per head for the accumulate-style merge."""
    bf = lambda a: a.astype(jnp.bfloat16)
    L = params['layers']
    stack = lambda name: jnp.stack([lp[name] for lp in L], axis=0)

    # cls token is a constant added to pos[0] (x_row0 = cls + pos[0])
    pos_fold = params['pos'].at[:, 0, :].add(params['cls'][:, 0, :])
    pos_pad = jnp.zeros((1, SEQ_PAD, EMBED), jnp.float32).at[:, :SEQ].set(pos_fold)
    patch_w_pad = (jnp.zeros((PATCH_PAD, EMBED), jnp.float32)
                   .at[:PATCH_DIM].set(params['patch_w']))
    head_w_pad = jnp.zeros((EMBED, LANE), jnp.float32).at[:, :CLASSES].set(params['head_w'])
    head_b_pad = jnp.zeros((1, LANE), jnp.float32).at[:, :CLASSES].set(params['head_b'])
    # (LAYERS, E, E) -> (LAYERS, HEADS, HEAD_DIM, E): per-head out-proj blocks
    w_out_h = stack('w_out').reshape(LAYERS, HEADS, HEAD_DIM, EMBED)

    return dict(
        patch_w=bf(patch_w_pad), patch_b=params['patch_b'], pos=pos_pad,
        g1=stack('g1'), b1=stack('b1'),
        w_in=bf(stack('w_in')), b_in=stack('b_in'),
        w_out=bf(w_out_h), b_out=stack('b_out'),
        g2=stack('g2'), b2=stack('b2'),
        w_ff1=bf(stack('w_ff1')), b_ff1=stack('b_ff1'),
        w_ff2=bf(stack('w_ff2')), b_ff2=stack('b_ff2'),
        norm_g=params['norm_g'], norm_b=params['norm_b'],
        head_w=bf(head_w_pad), head_b=head_b_pad,
    )


@jax.jit
def vit_forward(x, kernel_params):
    patches = extract_patches(x)               # pure reshape/transpose glue
    return vit_pallas(patches, kernel_params)  # everything else is one kernel


if __name__ == "__main__":
    key = jax.random.PRNGKey(0)
    kx, kp = jax.random.split(key)
    x = jax.random.normal(kx, (2, CIN, IMG, IMG), jnp.float32)
    params = init_params(kp)
    kernel_params = prepare_kernel_params(params)
    out = vit_forward(x, kernel_params)
    jax.block_until_ready(out)
    assert out.shape == (2, CLASSES) and out.dtype == jnp.float32
    assert bool(jnp.all(jnp.isfinite(out)))
    print("KERNEL_OK")
</pallas_src>

<mosaic_0001>
module attributes {stable_mosaic.version = 11 : i64} {
  func.func @vit_fused_kernel(%arg0: i32, %arg1: memref<8x4x256xf32, #tpu.memory_space<vmem>>, %arg2: memref<256x128xbf16, #tpu.memory_space<vmem>>, %arg3: memref<1x128xf32, #tpu.memory_space<vmem>>, %arg4: memref<1x8x128xf32, #tpu.memory_space<vmem>>, %arg5: memref<2x1x128xf32, #tpu.memory_space<vmem>>, %arg6: memref<2x1x128xf32, #tpu.memory_space<vmem>>, %arg7: memref<2x128x384xbf16, #tpu.memory_space<vmem>>, %arg8: memref<2x1x384xf32, #tpu.memory_space<vmem>>, %arg9: memref<2x4x32x128xbf16, #tpu.memory_space<vmem>>, %arg10: memref<2x1x128xf32, #tpu.memory_space<vmem>>, %arg11: memref<2x1x128xf32, #tpu.memory_space<vmem>>, %arg12: memref<2x1x128xf32, #tpu.memory_space<vmem>>, %arg13: memref<2x128x256xbf16, #tpu.memory_space<vmem>>, %arg14: memref<2x1x256xf32, #tpu.memory_space<vmem>>, %arg15: memref<2x256x128xbf16, #tpu.memory_space<vmem>>, %arg16: memref<2x1x128xf32, #tpu.memory_space<vmem>>, %arg17: memref<1x128xf32, #tpu.memory_space<vmem>>, %arg18: memref<1x128xf32, #tpu.memory_space<vmem>>, %arg19: memref<128x128xbf16, #tpu.memory_space<vmem>>, %arg20: memref<1x128xf32, #tpu.memory_space<vmem>>, %arg21: memref<8x128xf32, #tpu.memory_space<vmem>>) attributes {dimension_semantics = [#tpu.dimension_semantics<parallel>], iteration_bounds = array<i64: 1>, scalar_prefetch = 0 : i64, scratch_operands = 0 : i64, tpu.core_type = #tpu.core_type<tc>, window_params = [{transform_indices = @transform_0, window_bounds = array<i64: 8, 4, 256>}, {pipeline_mode = #tpu.pipeline_mode<synchronous>, transform_indices = @transform_1, window_bounds = array<i64: 256, 128>}, {pipeline_mode = #tpu.pipeline_mode<synchronous>, transform_indices = @transform_2, window_bounds = array<i64: 1, 128>}, {pipeline_mode = #tpu.pipeline_mode<synchronous>, transform_indices = @transform_3, window_bounds = array<i64: 1, 8, 128>}, {pipeline_mode = #tpu.pipeline_mode<synchronous>, transform_indices = @transform_4, window_bounds = array<i64: 2, 1, 128>}, {pipeline_mode = #tpu.pipeline_mode<synchronous>, transform_indices = @transform_5, window_bounds = array<i64: 2, 1, 128>}, {pipeline_mode = #tpu.pipeline_mode<synchronous>, transform_indices = @transform_6, window_bounds = array<i64: 2, 128, 384>}, {pipeline_mode = #tpu.pipeline_mode<synchronous>, transform_indices = @transform_7, window_bounds = array<i64: 2, 1, 384>}, {pipeline_mode = #tpu.pipeline_mode<synchronous>, transform_indices = @transform_8, window_bounds = array<i64: 2, 4, 32, 128>}, {pipeline_mode = #tpu.pipeline_mode<synchronous>, transform_indices = @transform_9, window_bounds = array<i64: 2, 1, 128>}, {pipeline_mode = #tpu.pipeline_mode<synchronous>, transform_indices = @transform_10, window_bounds = array<i64: 2, 1, 128>}, {pipeline_mode = #tpu.pipeline_mode<synchronous>, transform_indices = @transform_11, window_bounds = array<i64: 2, 1, 128>}, {pipeline_mode = #tpu.pipeline_mode<synchronous>, transform_indices = @transform_12, window_bounds = array<i64: 2, 128, 256>}, {pipeline_mode = #tpu.pipeline_mode<synchronous>, transform_indices = @transform_13, window_bounds = array<i64: 2, 1, 256>}, {pipeline_mode = #tpu.pipeline_mode<synchronous>, transform_indices = @transform_14, window_bounds = array<i64: 2, 256, 128>}, {pipeline_mode = #tpu.pipeline_mode<synchronous>, transform_indices = @transform_15, window_bounds = array<i64: 2, 1, 128>}, {pipeline_mode = #tpu.pipeline_mode<synchronous>, transform_indices = @transform_16, window_bounds = array<i64: 1, 128>}, {pipeline_mode = #tpu.pipeline_mode<synchronous>, transform_indices = @transform_17, window_bounds = array<i64: 1, 128>}, {pipeline_mode = #tpu.pipeline_mode<synchronous>, transform_indices = @transform_18, window_bounds = array<i64: 128, 128>}, {pipeline_mode = #tpu.pipeline_mode<synchronous>, transform_indices = @transform_19, window_bounds = array<i64: 1, 128>}, {transform_indices = @transform_20, window_bounds = array<i64: 8, 128>}]} {
    %c0 = arith.constant 0 : index
    %c0_0 = arith.constant 0 : index
    %c0_1 = arith.constant 0 : index
    %0 = vector.load %arg1[%c0, %c0_0, %c0_1] : memref<8x4x256xf32, #tpu.memory_space<vmem>>, vector<8x4x256xf32>
    %1 = vector.shape_cast %0 : vector<8x4x256xf32> to vector<32x256xf32>
    %c0_2 = arith.constant 0 : index
    %c0_3 = arith.constant 0 : index
    %2 = vector.load %arg2[%c0_2, %c0_3] : memref<256x128xbf16, #tpu.memory_space<vmem>>, vector<256x128xbf16>
    %3 = arith.truncf %1 : vector<32x256xf32> to vector<32x256xbf16>
    %cst = arith.constant dense<0.000000e+00> : vector<32x128xf32>
    %4 = tpu.matmul %3, %2, %cst {dimension_numbers = #tpu.dot_dimension_numbers<[1], [0], [0], [1], [0, 0, 1, 1], [], []>} : vector<32x256xbf16>, vector<256x128xbf16>, vector<32x128xf32> -> vector<32x128xf32>
    %c0_4 = arith.constant 0 : index
    %c0_5 = arith.constant 0 : index
    %5 = vector.load %arg3[%c0_4, %c0_5] : memref<1x128xf32, #tpu.memory_space<vmem>>, vector<1x128xf32>
    %6 = vector.broadcast %5 : vector<1x128xf32> to vector<32x128xf32>
    %7 = arith.addf %4, %6 : vector<32x128xf32>
    %8 = vector.shape_cast %7 : vector<32x128xf32> to vector<8x4x128xf32>
    %cst_6 = arith.constant 0.000000e+00 : f32
    %9 = vector.broadcast %cst_6 : f32 to vector<8x1x128xf32>
    %cst_7 = arith.constant 0.000000e+00 : f32
    %10 = vector.broadcast %cst_7 : f32 to vector<8x3x128xf32>
    %11 = tpu.concatenate %9, %8, %10 in 1 : vector<8x1x128xf32>, vector<8x4x128xf32>, vector<8x3x128xf32> -> vector<8x8x128xf32>
    %c0_8 = arith.constant 0 : index
    %c0_9 = arith.constant 0 : index
    %c0_10 = arith.constant 0 : index
    %12 = vector.load %arg4[%c0_8, %c0_9, %c0_10] : memref<1x8x128xf32, #tpu.memory_space<vmem>>, vector<1x8x128xf32>
    %13 = vector.broadcast %12 : vector<1x8x128xf32> to vector<8x8x128xf32>
    %14 = arith.addf %11, %13 : vector<8x8x128xf32>
    %15 = vector.shape_cast %14 : vector<8x8x128xf32> to vector<64x128xf32>
    %16 = tpu.iota {dimensions = array<i32: 2>} : vector<1x1x8xi32>
    %c5_i32 = arith.constant 5 : i32
    %17 = vector.broadcast %c5_i32 : i32 to vector<1x1x8xi32>
    %18 = arith.cmpi slt, %16, %17 : vector<1x1x8xi32>
    %cst_11 = arith.constant 0.000000e+00 : f32
    %cst_12 = arith.constant -1.000000e+30 : f32
    %19 = vector.broadcast %cst_11 : f32 to vector<1x1x8xf32>
    %20 = vector.broadcast %cst_12 : f32 to vector<1x1x8xf32>
    %21 = arith.select %18, %19, %20 : vector<1x1x8xi1>, vector<1x1x8xf32>
    %c0_13 = arith.constant 0 : index
    %c0_14 = arith.constant 0 : index
    %c0_15 = arith.constant 0 : index
    %22 = vector.load %arg5[%c0_13, %c0_14, %c0_15] : memref<2x1x128xf32, #tpu.memory_space<vmem>>, vector<1x1x128xf32>
    %23 = vector.shape_cast %22 : vector<1x1x128xf32> to vector<1x128xf32>
    %c0_16 = arith.constant 0 : index
    %c0_17 = arith.constant 0 : index
    %c0_18 = arith.constant 0 : index
    %24 = vector.load %arg6[%c0_16, %c0_17, %c0_18] : memref<2x1x128xf32, #tpu.memory_space<vmem>>, vector<1x1x128xf32>
    %25 = vector.shape_cast %24 : vector<1x1x128xf32> to vector<1x128xf32>
    %cst_19 = arith.constant dense<0.000000e+00> : vector<64xf32>
    %26 = vector.multi_reduction <add>, %15, %cst_19 [1] : vector<64x128xf32> to vector<64xf32>
    %27 = vector.shape_cast %26 : vector<64xf32> to vector<64x1xf32>
    %cst_20 = arith.constant 1.280000e+02 : f32
    %28 = vector.broadcast %cst_20 : f32 to vector<64x1xf32>
    %29 = arith.divf %27, %28 : vector<64x1xf32>
    %30 = vector.broadcast %29 : vector<64x1xf32> to vector<64x128xf32>
    %31 = arith.subf %15, %30 : vector<64x128xf32>
    %32 = arith.mulf %31, %31 : vector<64x128xf32>
    %cst_21 = arith.constant dense<0.000000e+00> : vector<64xf32>
    %33 = vector.multi_reduction <add>, %32, %cst_21 [1] : vector<64x128xf32> to vector<64xf32>
    %34 = vector.shape_cast %33 : vector<64xf32> to vector<64x1xf32>
    %cst_22 = arith.constant 1.280000e+02 : f32
    %35 = vector.broadcast %cst_22 : f32 to vector<64x1xf32>
    %36 = arith.divf %34, %35 : vector<64x1xf32>
    %37 = vector.broadcast %29 : vector<64x1xf32> to vector<64x128xf32>
    %38 = arith.subf %15, %37 : vector<64x128xf32>
    %cst_23 = arith.constant 9.99999974E-6 : f32
    %39 = vector.broadcast %cst_23 : f32 to vector<64x1xf32>
    %40 = arith.addf %36, %39 : vector<64x1xf32>
    %41 = math.rsqrt %40 : vector<64x1xf32>
    %42 = vector.broadcast %41 : vector<64x1xf32> to vector<64x128xf32>
    %43 = arith.mulf %38, %42 : vector<64x128xf32>
    %44 = vector.broadcast %23 : vector<1x128xf32> to vector<64x128xf32>
    %45 = arith.mulf %43, %44 : vector<64x128xf32>
    %46 = vector.broadcast %25 : vector<1x128xf32> to vector<64x128xf32>
    %47 = arith.addf %45, %46 : vector<64x128xf32>
    %c0_24 = arith.constant 0 : index
    %c0_25 = arith.constant 0 : index
    %c0_26 = arith.constant 0 : index
    %48 = vector.load %arg7[%c0_24, %c0_25, %c0_26] : memref<2x128x384xbf16, #tpu.memory_space<vmem>>, vector<1x128x384xbf16>
    %49 = vector.shape_cast %48 : vector<1x128x384xbf16> to vector<128x384xbf16>
    %50 = arith.truncf %47 : vector<64x128xf32> to vector<64x128xbf16>
    %cst_27 = arith.constant dense<0.000000e+00> : vector<64x384xf32>
    %51 = tpu.matmul %50, %49, %cst_27 {dimension_numbers = #tpu.dot_dimension_numbers<[1], [0], [0], [1], [0, 0, 1, 1], [], []>} : vector<64x128xbf16>, vector<128x384xbf16>, vector<64x384xf32> -> vector<64x384xf32>
    %c0_28 = arith.constant 0 : index
    %c0_29 = arith.constant 0 : index
    %c0_30 = arith.constant 0 : index
    %52 = vector.load %arg8[%c0_28, %c0_29, %c0_30] : memref<2x1x384xf32, #tpu.memory_space<vmem>>, vector<1x1x384xf32>
    %53 = vector.shape_cast %52 : vector<1x1x384xf32> to vector<1x384xf32>
    %54 = vector.broadcast %53 : vector<1x384xf32> to vector<64x384xf32>
    %55 = arith.addf %51, %54 : vector<64x384xf32>
    %cst_31 = arith.constant 0.000000e+00 : f32
    %56 = vector.broadcast %cst_31 : f32 to vector<64x128xf32>
    %57 = vector.extract_strided_slice %55 {offsets = [0, 0], sizes = [64, 32], strides = [1, 1]} : vector<64x384xf32> to vector<64x32xf32>
    %cst_32 = arith.constant 0.176776692 : f32
    %58 = vector.broadcast %cst_32 : f32 to vector<64x32xf32>
    %59 = arith.mulf %57, %58 : vector<64x32xf32>
    %60 = vector.extract_strided_slice %55 {offsets = [0, 128], sizes = [64, 32], strides = [1, 1]} : vector<64x384xf32> to vector<64x32xf32>
    %61 = vector.extract_strided_slice %55 {offsets = [0, 256], sizes = [64, 32], strides = [1, 1]} : vector<64x384xf32> to vector<64x32xf32>
    %62 = vector.shape_cast %59 : vector<64x32xf32> to vector<8x8x32xf32>
    %63 = arith.truncf %62 : vector<8x8x32xf32> to vector<8x8x32xbf16>
    %64 = vector.shape_cast %60 : vector<64x32xf32> to vector<8x8x32xf32>
    %65 = arith.truncf %64 : vector<8x8x32xf32> to vector<8x8x32xbf16>
    %66 = vector.shape_cast %61 : vector<64x32xf32> to vector<8x8x32xf32>
    %67 = arith.truncf %66 : vector<8x8x32xf32> to vector<8x8x32xbf16>
    "tpu.trace_start"() <{level = 10 : i32, message = "bqd,bkd->bqk"}> : () -> ()
    %cst_33 = arith.constant dense<0.000000e+00> : vector<8x8x8xf32>
    %68 = tpu.matmul %63, %65, %cst_33 {dimension_numbers = #tpu.dot_dimension_numbers<[2], [2], [1], [1], [0, 0, 0, 1, 1, 1], [0], [0]>} : vector<8x8x32xbf16>, vector<8x8x32xbf16>, vector<8x8x8xf32> -> vector<8x8x8xf32>
    "tpu.trace_stop"() : () -> ()
    %69 = vector.broadcast %21 : vector<1x1x8xf32> to vector<8x8x8xf32>
    %70 = arith.addf %68, %69 : vector<8x8x8xf32>
    %cst_34 = arith.constant dense<0xFF800000> : vector<8x8xf32>
    %71 = vector.multi_reduction <maximumf>, %70, %cst_34 [2] : vector<8x8x8xf32> to vector<8x8xf32>
    %72 = vector.shape_cast %71 : vector<8x8xf32> to vector<8x8x1xf32>
    %73 = vector.broadcast %72 : vector<8x8x1xf32> to vector<8x8x8xf32>
    %74 = arith.subf %70, %73 : vector<8x8x8xf32>
    %75 = math.exp %74 : vector<8x8x8xf32>
    %cst_35 = arith.constant dense<0.000000e+00> : vector<8x8xf32>
    %76 = vector.multi_reduction <add>, %75, %cst_35 [2] : vector<8x8x8xf32> to vector<8x8xf32>
    %77 = vector.shape_cast %76 : vector<8x8xf32> to vector<8x8x1xf32>
    %78 = tpu.reciprocal %77 {approx = true} : vector<8x8x1xf32> -> vector<8x8x1xf32>
    %79 = vector.broadcast %78 : vector<8x8x1xf32> to vector<8x8x8xf32>
    %80 = arith.mulf %75, %79 : vector<8x8x8xf32>
    %81 = arith.truncf %80 : vector<8x8x8xf32> to vector<8x8x8xbf16>
    "tpu.trace_start"() <{level = 10 : i32, message = "bqk,bkd->bqd"}> : () -> ()
    %cst_36 = arith.constant dense<0.000000e+00> : vector<8x8x32xf32>
    %82 = tpu.matmul %81, %67, %cst_36 {dimension_numbers = #tpu.dot_dimension_numbers<[2], [1], [1], [2], [0, 0, 0, 1, 1, 2], [0], [0]>} : vector<8x8x8xbf16>, vector<8x8x32xbf16>, vector<8x8x32xf32> -> vector<8x8x32xf32>
    "tpu.trace_stop"() : () -> ()
    %83 = vector.shape_cast %82 : vector<8x8x32xf32> to vector<64x32xf32>
    %c0_37 = arith.constant 0 : index
    %c0_38 = arith.constant 0 : index
    %c0_39 = arith.constant 0 : index
    %c0_40 = arith.constant 0 : index
    %84 = vector.load %arg9[%c0_37, %c0_38, %c0_39, %c0_40] : memref<2x4x32x128xbf16, #tpu.memory_space<vmem>>, vector<1x1x32x128xbf16>
    %85 = vector.shape_cast %84 : vector<1x1x32x128xbf16> to vector<32x128xbf16>
    %86 = arith.truncf %83 : vector<64x32xf32> to vector<64x32xbf16>
    %cst_41 = arith.constant dense<0.000000e+00> : vector<64x128xf32>
    %87 = tpu.matmul %86, %85, %cst_41 {dimension_numbers = #tpu.dot_dimension_numbers<[1], [0], [0], [1], [0, 0, 1, 1], [], []>} : vector<64x32xbf16>, vector<32x128xbf16>, vector<64x128xf32> -> vector<64x128xf32>
    %88 = arith.addf %56, %87 : vector<64x128xf32>
    %89 = vector.extract_strided_slice %55 {offsets = [0, 32], sizes = [64, 32], strides = [1, 1]} : vector<64x384xf32> to vector<64x32xf32>
    %cst_42 = arith.constant 0.176776692 : f32
    %90 = vector.broadcast %cst_42 : f32 to vector<64x32xf32>
    %91 = arith.mulf %89, %90 : vector<64x32xf32>
    %92 = vector.extract_strided_slice %55 {offsets = [0, 160], sizes = [64, 32], strides = [1, 1]} : vector<64x384xf32> to vector<64x32xf32>
    %93 = vector.extract_strided_slice %55 {offsets = [0, 288], sizes = [64, 32], strides = [1, 1]} : vector<64x384xf32> to vector<64x32xf32>
    %94 = vector.shape_cast %91 : vector<64x32xf32> to vector<8x8x32xf32>
    %95 = arith.truncf %94 : vector<8x8x32xf32> to vector<8x8x32xbf16>
    %96 = vector.shape_cast %92 : vector<64x32xf32> to vector<8x8x32xf32>
    %97 = arith.truncf %96 : vector<8x8x32xf32> to vector<8x8x32xbf16>
    %98 = vector.shape_cast %93 : vector<64x32xf32> to vector<8x8x32xf32>
    %99 = arith.truncf %98 : vector<8x8x32xf32> to vector<8x8x32xbf16>
    "tpu.trace_start"() <{level = 10 : i32, message = "bqd,bkd->bqk"}> : () -> ()
    %cst_43 = arith.constant dense<0.000000e+00> : vector<8x8x8xf32>
    %100 = tpu.matmul %95, %97, %cst_43 {dimension_numbers = #tpu.dot_dimension_numbers<[2], [2], [1], [1], [0, 0, 0, 1, 1, 1], [0], [0]>} : vector<8x8x32xbf16>, vector<8x8x32xbf16>, vector<8x8x8xf32> -> vector<8x8x8xf32>
    "tpu.trace_stop"() : () -> ()
    %101 = vector.broadcast %21 : vector<1x1x8xf32> to vector<8x8x8xf32>
    %102 = arith.addf %100, %101 : vector<8x8x8xf32>
    %cst_44 = arith.constant dense<0xFF800000> : vector<8x8xf32>
    %103 = vector.multi_reduction <maximumf>, %102, %cst_44 [2] : vector<8x8x8xf32> to vector<8x8xf32>
    %104 = vector.shape_cast %103 : vector<8x8xf32> to vector<8x8x1xf32>
    %105 = vector.broadcast %104 : vector<8x8x1xf32> to vector<8x8x8xf32>
    %106 = arith.subf %102, %105 : vector<8x8x8xf32>
    %107 = math.exp %106 : vector<8x8x8xf32>
    %cst_45 = arith.constant dense<0.000000e+00> : vector<8x8xf32>
    %108 = vector.multi_reduction <add>, %107, %cst_45 [2] : vector<8x8x8xf32> to vector<8x8xf32>
    %109 = vector.shape_cast %108 : vector<8x8xf32> to vector<8x8x1xf32>
    %110 = tpu.reciprocal %109 {approx = true} : vector<8x8x1xf32> -> vector<8x8x1xf32>
    %111 = vector.broadcast %110 : vector<8x8x1xf32> to vector<8x8x8xf32>
    %112 = arith.mulf %107, %111 : vector<8x8x8xf32>
    %113 = arith.truncf %112 : vector<8x8x8xf32> to vector<8x8x8xbf16>
    "tpu.trace_start"() <{level = 10 : i32, message = "bqk,bkd->bqd"}> : () -> ()
    %cst_46 = arith.constant dense<0.000000e+00> : vector<8x8x32xf32>
    %114 = tpu.matmul %113, %99, %cst_46 {dimension_numbers = #tpu.dot_dimension_numbers<[2], [1], [1], [2], [0, 0, 0, 1, 1, 2], [0], [0]>} : vector<8x8x8xbf16>, vector<8x8x32xbf16>, vector<8x8x32xf32> -> vector<8x8x32xf32>
    "tpu.trace_stop"() : () -> ()
    %115 = vector.shape_cast %114 : vector<8x8x32xf32> to vector<64x32xf32>
    %c0_47 = arith.constant 0 : index
    %c1 = arith.constant 1 : index
    %c0_48 = arith.constant 0 : index
    %c0_49 = arith.constant 0 : index
    %116 = vector.load %arg9[%c0_47, %c1, %c0_48, %c0_49] : memref<2x4x32x128xbf16, #tpu.memory_space<vmem>>, vector<1x1x32x128xbf16>
    %117 = vector.shape_cast %116 : vector<1x1x32x128xbf16> to vector<32x128xbf16>
    %118 = arith.truncf %115 : vector<64x32xf32> to vector<64x32xbf16>
    %cst_50 = arith.constant dense<0.000000e+00> : vector<64x128xf32>
    %119 = tpu.matmul %118, %117, %cst_50 {dimension_numbers = #tpu.dot_dimension_numbers<[1], [0], [0], [1], [0, 0, 1, 1], [], []>} : vector<64x32xbf16>, vector<32x128xbf16>, vector<64x128xf32> -> vector<64x128xf32>
    %120 = arith.addf %88, %119 : vector<64x128xf32>
    %121 = vector.extract_strided_slice %55 {offsets = [0, 64], sizes = [64, 32], strides = [1, 1]} : vector<64x384xf32> to vector<64x32xf32>
    %cst_51 = arith.constant 0.176776692 : f32
    %122 = vector.broadcast %cst_51 : f32 to vector<64x32xf32>
    %123 = arith.mulf %121, %122 : vector<64x32xf32>
    %124 = vector.extract_strided_slice %55 {offsets = [0, 192], sizes = [64, 32], strides = [1, 1]} : vector<64x384xf32> to vector<64x32xf32>
    %125 = vector.extract_strided_slice %55 {offsets = [0, 320], sizes = [64, 32], strides = [1, 1]} : vector<64x384xf32> to vector<64x32xf32>
    %126 = vector.shape_cast %123 : vector<64x32xf32> to vector<8x8x32xf32>
    %127 = arith.truncf %126 : vector<8x8x32xf32> to vector<8x8x32xbf16>
    %128 = vector.shape_cast %124 : vector<64x32xf32> to vector<8x8x32xf32>
    %129 = arith.truncf %128 : vector<8x8x32xf32> to vector<8x8x32xbf16>
    %130 = vector.shape_cast %125 : vector<64x32xf32> to vector<8x8x32xf32>
    %131 = arith.truncf %130 : vector<8x8x32xf32> to vector<8x8x32xbf16>
    "tpu.trace_start"() <{level = 10 : i32, message = "bqd,bkd->bqk"}> : () -> ()
    %cst_52 = arith.constant dense<0.000000e+00> : vector<8x8x8xf32>
    %132 = tpu.matmul %127, %129, %cst_52 {dimension_numbers = #tpu.dot_dimension_numbers<[2], [2], [1], [1], [0, 0, 0, 1, 1, 1], [0], [0]>} : vector<8x8x32xbf16>, vector<8x8x32xbf16>, vector<8x8x8xf32> -> vector<8x8x8xf32>
    "tpu.trace_stop"() : () -> ()
    %133 = vector.broadcast %21 : vector<1x1x8xf32> to vector<8x8x8xf32>
    %134 = arith.addf %132, %133 : vector<8x8x8xf32>
    %cst_53 = arith.constant dense<0xFF800000> : vector<8x8xf32>
    %135 = vector.multi_reduction <maximumf>, %134, %cst_53 [2] : vector<8x8x8xf32> to vector<8x8xf32>
    %136 = vector.shape_cast %135 : vector<8x8xf32> to vector<8x8x1xf32>
    %137 = vector.broadcast %136 : vector<8x8x1xf32> to vector<8x8x8xf32>
    %138 = arith.subf %134, %137 : vector<8x8x8xf32>
    %139 = math.exp %138 : vector<8x8x8xf32>
    %cst_54 = arith.constant dense<0.000000e+00> : vector<8x8xf32>
    %140 = vector.multi_reduction <add>, %139, %cst_54 [2] : vector<8x8x8xf32> to vector<8x8xf32>
    %141 = vector.shape_cast %140 : vector<8x8xf32> to vector<8x8x1xf32>
    %142 = tpu.reciprocal %141 {approx = true} : vector<8x8x1xf32> -> vector<8x8x1xf32>
    %143 = vector.broadcast %142 : vector<8x8x1xf32> to vector<8x8x8xf32>
    %144 = arith.mulf %139, %143 : vector<8x8x8xf32>
    %145 = arith.truncf %144 : vector<8x8x8xf32> to vector<8x8x8xbf16>
    "tpu.trace_start"() <{level = 10 : i32, message = "bqk,bkd->bqd"}> : () -> ()
    %cst_55 = arith.constant dense<0.000000e+00> : vector<8x8x32xf32>
    %146 = tpu.matmul %145, %131, %cst_55 {dimension_numbers = #tpu.dot_dimension_numbers<[2], [1], [1], [2], [0, 0, 0, 1, 1, 2], [0], [0]>} : vector<8x8x8xbf16>, vector<8x8x32xbf16>, vector<8x8x32xf32> -> vector<8x8x32xf32>
    "tpu.trace_stop"() : () -> ()
    %147 = vector.shape_cast %146 : vector<8x8x32xf32> to vector<64x32xf32>
    %c0_56 = arith.constant 0 : index
    %c2 = arith.constant 2 : index
    %c0_57 = arith.constant 0 : index
    %c0_58 = arith.constant 0 : index
    %148 = vector.load %arg9[%c0_56, %c2, %c0_57, %c0_58] : memref<2x4x32x128xbf16, #tpu.memory_space<vmem>>, vector<1x1x32x128xbf16>
    %149 = vector.shape_cast %148 : vector<1x1x32x128xbf16> to vector<32x128xbf16>
    %150 = arith.truncf %147 : vector<64x32xf32> to vector<64x32xbf16>
    %cst_59 = arith.constant dense<0.000000e+00> : vector<64x128xf32>
    %151 = tpu.matmul %150, %149, %cst_59 {dimension_numbers = #tpu.dot_dimension_numbers<[1], [0], [0], [1], [0, 0, 1, 1], [], []>} : vector<64x32xbf16>, vector<32x128xbf16>, vector<64x128xf32> -> vector<64x128xf32>
    %152 = arith.addf %120, %151 : vector<64x128xf32>
    %153 = vector.extract_strided_slice %55 {offsets = [0, 96], sizes = [64, 32], strides = [1, 1]} : vector<64x384xf32> to vector<64x32xf32>
    %cst_60 = arith.constant 0.176776692 : f32
    %154 = vector.broadcast %cst_60 : f32 to vector<64x32xf32>
    %155 = arith.mulf %153, %154 : vector<64x32xf32>
    %156 = vector.extract_strided_slice %55 {offsets = [0, 224], sizes = [64, 32], strides = [1, 1]} : vector<64x384xf32> to vector<64x32xf32>
    %157 = vector.extract_strided_slice %55 {offsets = [0, 352], sizes = [64, 32], strides = [1, 1]} : vector<64x384xf32> to vector<64x32xf32>
    %158 = vector.shape_cast %155 : vector<64x32xf32> to vector<8x8x32xf32>
    %159 = arith.truncf %158 : vector<8x8x32xf32> to vector<8x8x32xbf16>
    %160 = vector.shape_cast %156 : vector<64x32xf32> to vector<8x8x32xf32>
    %161 = arith.truncf %160 : vector<8x8x32xf32> to vector<8x8x32xbf16>
    %162 = vector.shape_cast %157 : vector<64x32xf32> to vector<8x8x32xf32>
    %163 = arith.truncf %162 : vector<8x8x32xf32> to vector<8x8x32xbf16>
    "tpu.trace_start"() <{level = 10 : i32, message = "bqd,bkd->bqk"}> : () -> ()
    %cst_61 = arith.constant dense<0.000000e+00> : vector<8x8x8xf32>
    %164 = tpu.matmul %159, %161, %cst_61 {dimension_numbers = #tpu.dot_dimension_numbers<[2], [2], [1], [1], [0, 0, 0, 1, 1, 1], [0], [0]>} : vector<8x8x32xbf16>, vector<8x8x32xbf16>, vector<8x8x8xf32> -> vector<8x8x8xf32>
    "tpu.trace_stop"() : () -> ()
    %165 = vector.broadcast %21 : vector<1x1x8xf32> to vector<8x8x8xf32>
    %166 = arith.addf %164, %165 : vector<8x8x8xf32>
    %cst_62 = arith.constant dense<0xFF800000> : vector<8x8xf32>
    %167 = vector.multi_reduction <maximumf>, %166, %cst_62 [2] : vector<8x8x8xf32> to vector<8x8xf32>
    %168 = vector.shape_cast %167 : vector<8x8xf32> to vector<8x8x1xf32>
    %169 = vector.broadcast %168 : vector<8x8x1xf32> to vector<8x8x8xf32>
    %170 = arith.subf %166, %169 : vector<8x8x8xf32>
    %171 = math.exp %170 : vector<8x8x8xf32>
    %cst_63 = arith.constant dense<0.000000e+00> : vector<8x8xf32>
    %172 = vector.multi_reduction <add>, %171, %cst_63 [2] : vector<8x8x8xf32> to vector<8x8xf32>
    %173 = vector.shape_cast %172 : vector<8x8xf32> to vector<8x8x1xf32>
    %174 = tpu.reciprocal %173 {approx = true} : vector<8x8x1xf32> -> vector<8x8x1xf32>
    %175 = vector.broadcast %174 : vector<8x8x1xf32> to vector<8x8x8xf32>
    %176 = arith.mulf %171, %175 : vector<8x8x8xf32>
    %177 = arith.truncf %176 : vector<8x8x8xf32> to vector<8x8x8xbf16>
    "tpu.trace_start"() <{level = 10 : i32, message = "bqk,bkd->bqd"}> : () -> ()
    %cst_64 = arith.constant dense<0.000000e+00> : vector<8x8x32xf32>
    %178 = tpu.matmul %177, %163, %cst_64 {dimension_numbers = #tpu.dot_dimension_numbers<[2], [1], [1], [2], [0, 0, 0, 1, 1, 2], [0], [0]>} : vector<8x8x8xbf16>, vector<8x8x32xbf16>, vector<8x8x32xf32> -> vector<8x8x32xf32>
    "tpu.trace_stop"() : () -> ()
    %179 = vector.shape_cast %178 : vector<8x8x32xf32> to vector<64x32xf32>
    %c0_65 = arith.constant 0 : index
    %c3 = arith.constant 3 : index
    %c0_66 = arith.constant 0 : index
    %c0_67 = arith.constant 0 : index
    %180 = vector.load %arg9[%c0_65, %c3, %c0_66, %c0_67] : memref<2x4x32x128xbf16, #tpu.memory_space<vmem>>, vector<1x1x32x128xbf16>
    %181 = vector.shape_cast %180 : vector<1x1x32x128xbf16> to vector<32x128xbf16>
    %182 = arith.truncf %179 : vector<64x32xf32> to vector<64x32xbf16>
    %cst_68 = arith.constant dense<0.000000e+00> : vector<64x128xf32>
    %183 = tpu.matmul %182, %181, %cst_68 {dimension_numbers = #tpu.dot_dimension_numbers<[1], [0], [0], [1], [0, 0, 1, 1], [], []>} : vector<64x32xbf16>, vector<32x128xbf16>, vector<64x128xf32> -> vector<64x128xf32>
    %184 = arith.addf %152, %183 : vector<64x128xf32>
    %185 = arith.addf %15, %184 : vector<64x128xf32>
    %c0_69 = arith.constant 0 : index
    %c0_70 = arith.constant 0 : index
    %c0_71 = arith.constant 0 : index
    %186 = vector.load %arg10[%c0_69, %c0_70, %c0_71] : memref<2x1x128xf32, #tpu.memory_space<vmem>>, vector<1x1x128xf32>
    %187 = vector.shape_cast %186 : vector<1x1x128xf32> to vector<1x128xf32>
    %188 = vector.broadcast %187 : vector<1x128xf32> to vector<64x128xf32>
    %189 = arith.addf %185, %188 : vector<64x128xf32>
    %c0_72 = arith.constant 0 : index
    %c0_73 = arith.constant 0 : index
    %c0_74 = arith.constant 0 : index
    %190 = vector.load %arg11[%c0_72, %c0_73, %c0_74] : memref<2x1x128xf32, #tpu.memory_space<vmem>>, vector<1x1x128xf32>
    %191 = vector.shape_cast %190 : vector<1x1x128xf32> to vector<1x128xf32>
    %c0_75 = arith.constant 0 : index
    %c0_76 = arith.constant 0 : index
    %c0_77 = arith.constant 0 : index
    %192 = vector.load %arg12[%c0_75, %c0_76, %c0_77] : memref<2x1x128xf32, #tpu.memory_space<vmem>>, vector<1x1x128xf32>
    %193 = vector.shape_cast %192 : vector<1x1x128xf32> to vector<1x128xf32>
    %cst_78 = arith.constant dense<0.000000e+00> : vector<64xf32>
    %194 = vector.multi_reduction <add>, %189, %cst_78 [1] : vector<64x128xf32> to vector<64xf32>
    %195 = vector.shape_cast %194 : vector<64xf32> to vector<64x1xf32>
    %cst_79 = arith.constant 1.280000e+02 : f32
    %196 = vector.broadcast %cst_79 : f32 to vector<64x1xf32>
    %197 = arith.divf %195, %196 : vector<64x1xf32>
    %198 = vector.broadcast %197 : vector<64x1xf32> to vector<64x128xf32>
    %199 = arith.subf %189, %198 : vector<64x128xf32>
    %200 = arith.mulf %199, %199 : vector<64x128xf32>
    %cst_80 = arith.constant dense<0.000000e+00> : vector<64xf32>
    %201 = vector.multi_reduction <add>, %200, %cst_80 [1] : vector<64x128xf32> to vector<64xf32>
    %202 = vector.shape_cast %201 : vector<64xf32> to vector<64x1xf32>
    %cst_81 = arith.constant 1.280000e+02 : f32
    %203 = vector.broadcast %cst_81 : f32 to vector<64x1xf32>
    %204 = arith.divf %202, %203 : vector<64x1xf32>
    %205 = vector.broadcast %197 : vector<64x1xf32> to vector<64x128xf32>
    %206 = arith.subf %189, %205 : vector<64x128xf32>
    %cst_82 = arith.constant 9.99999974E-6 : f32
    %207 = vector.broadcast %cst_82 : f32 to vector<64x1xf32>
    %208 = arith.addf %204, %207 : vector<64x1xf32>
    %209 = math.rsqrt %208 : vector<64x1xf32>
    %210 = vector.broadcast %209 : vector<64x1xf32> to vector<64x128xf32>
    %211 = arith.mulf %206, %210 : vector<64x128xf32>
    %212 = vector.broadcast %191 : vector<1x128xf32> to vector<64x128xf32>
    %213 = arith.mulf %211, %212 : vector<64x128xf32>
    %214 = vector.broadcast %193 : vector<1x128xf32> to vector<64x128xf32>
    %215 = arith.addf %213, %214 : vector<64x128xf32>
    %c0_83 = arith.constant 0 : index
    %c0_84 = arith.constant 0 : index
    %c0_85 = arith.constant 0 : index
    %216 = vector.load %arg13[%c0_83, %c0_84, %c0_85] : memref<2x128x256xbf16, #tpu.memory_space<vmem>>, vector<1x128x256xbf16>
    %217 = vector.shape_cast %216 : vector<1x128x256xbf16> to vector<128x256xbf16>
    %218 = arith.truncf %215 : vector<64x128xf32> to vector<64x128xbf16>
    %cst_86 = arith.constant dense<0.000000e+00> : vector<64x256xf32>
    %219 = tpu.matmul %218, %217, %cst_86 {dimension_numbers = #tpu.dot_dimension_numbers<[1], [0], [0], [1], [0, 0, 1, 1], [], []>} : vector<64x128xbf16>, vector<128x256xbf16>, vector<64x256xf32> -> vector<64x256xf32>
    %c0_87 = arith.constant 0 : index
    %c0_88 = arith.constant 0 : index
    %c0_89 = arith.constant 0 : index
    %220 = vector.load %arg14[%c0_87, %c0_88, %c0_89] : memref<2x1x256xf32, #tpu.memory_space<vmem>>, vector<1x1x256xf32>
    %221 = vector.shape_cast %220 : vector<1x1x256xf32> to vector<1x256xf32>
    %222 = vector.broadcast %221 : vector<1x256xf32> to vector<64x256xf32>
    %223 = arith.addf %219, %222 : vector<64x256xf32>
    %cst_90 = arith.constant 5.000000e-01 : f32
    %224 = vector.broadcast %cst_90 : f32 to vector<64x256xf32>
    %225 = arith.mulf %224, %223 : vector<64x256xf32>
    %cst_91 = arith.constant 4.471500e-02 : f32
    %226 = vector.broadcast %cst_91 : f32 to vector<64x256xf32>
    %227 = arith.mulf %226, %223 : vector<64x256xf32>
    %228 = arith.mulf %227, %223 : vector<64x256xf32>
    %229 = arith.mulf %228, %223 : vector<64x256xf32>
    %230 = arith.addf %223, %229 : vector<64x256xf32>
    %cst_92 = arith.constant 0.797884583 : f32
    %231 = vector.broadcast %cst_92 : f32 to vector<64x256xf32>
    %232 = arith.mulf %231, %230 : vector<64x256xf32>
    %233 = math.tanh %232 : vector<64x256xf32>
    %cst_93 = arith.constant 1.000000e+00 : f32
    %234 = vector.broadcast %cst_93 : f32 to vector<64x256xf32>
    %235 = arith.addf %234, %233 : vector<64x256xf32>
    %236 = arith.mulf %225, %235 : vector<64x256xf32>
    %c0_94 = arith.constant 0 : index
    %c0_95 = arith.constant 0 : index
    %c0_96 = arith.constant 0 : index
    %237 = vector.load %arg15[%c0_94, %c0_95, %c0_96] : memref<2x256x128xbf16, #tpu.memory_space<vmem>>, vector<1x256x128xbf16>
    %238 = vector.shape_cast %237 : vector<1x256x128xbf16> to vector<256x128xbf16>
    %239 = arith.truncf %236 : vector<64x256xf32> to vector<64x256xbf16>
    %cst_97 = arith.constant dense<0.000000e+00> : vector<64x128xf32>
    %240 = tpu.matmul %239, %238, %cst_97 {dimension_numbers = #tpu.dot_dimension_numbers<[1], [0], [0], [1], [0, 0, 1, 1], [], []>} : vector<64x256xbf16>, vector<256x128xbf16>, vector<64x128xf32> -> vector<64x128xf32>
    %241 = arith.addf %189, %240 : vector<64x128xf32>
    %c0_98 = arith.constant 0 : index
    %c0_99 = arith.constant 0 : index
    %c0_100 = arith.constant 0 : index
    %242 = vector.load %arg16[%c0_98, %c0_99, %c0_100] : memref<2x1x128xf32, #tpu.memory_space<vmem>>, vector<1x1x128xf32>
    %243 = vector.shape_cast %242 : vector<1x1x128xf32> to vector<1x128xf32>
    %244 = vector.broadcast %243 : vector<1x128xf32> to vector<64x128xf32>
    %245 = arith.addf %241, %244 : vector<64x128xf32>
    %c1_101 = arith.constant 1 : index
    %c0_102 = arith.constant 0 : index
    %c0_103 = arith.constant 0 : index
    %246 = vector.load %arg5[%c1_101, %c0_102, %c0_103] : memref<2x1x128xf32, #tpu.memory_space<vmem>>, vector<1x1x128xf32>
    %247 = vector.shape_cast %246 : vector<1x1x128xf32> to vector<1x128xf32>
    %c1_104 = arith.constant 1 : index
    %c0_105 = arith.constant 0 : index
    %c0_106 = arith.constant 0 : index
    %248 = vector.load %arg6[%c1_104, %c0_105, %c0_106] : memref<2x1x128xf32, #tpu.memory_space<vmem>>, vector<1x1x128xf32>
    %249 = vector.shape_cast %248 : vector<1x1x128xf32> to vector<1x128xf32>
    %cst_107 = arith.constant dense<0.000000e+00> : vector<64xf32>
    %250 = vector.multi_reduction <add>, %245, %cst_107 [1] : vector<64x128xf32> to vector<64xf32>
    %251 = vector.shape_cast %250 : vector<64xf32> to vector<64x1xf32>
    %cst_108 = arith.constant 1.280000e+02 : f32
    %252 = vector.broadcast %cst_108 : f32 to vector<64x1xf32>
    %253 = arith.divf %251, %252 : vector<64x1xf32>
    %254 = vector.broadcast %253 : vector<64x1xf32> to vector<64x128xf32>
    %255 = arith.subf %245, %254 : vector<64x128xf32>
    %256 = arith.mulf %255, %255 : vector<64x128xf32>
    %cst_109 = arith.constant dense<0.000000e+00> : vector<64xf32>
    %257 = vector.multi_reduction <add>, %256, %cst_109 [1] : vector<64x128xf32> to vector<64xf32>
    %258 = vector.shape_cast %257 : vector<64xf32> to vector<64x1xf32>
    %cst_110 = arith.constant 1.280000e+02 : f32
    %259 = vector.broadcast %cst_110 : f32 to vector<64x1xf32>
    %260 = arith.divf %258, %259 : vector<64x1xf32>
    %261 = vector.broadcast %253 : vector<64x1xf32> to vector<64x128xf32>
    %262 = arith.subf %245, %261 : vector<64x128xf32>
    %cst_111 = arith.constant 9.99999974E-6 : f32
    %263 = vector.broadcast %cst_111 : f32 to vector<64x1xf32>
    %264 = arith.addf %260, %263 : vector<64x1xf32>
    %265 = math.rsqrt %264 : vector<64x1xf32>
    %266 = vector.broadcast %265 : vector<64x1xf32> to vector<64x128xf32>
    %267 = arith.mulf %262, %266 : vector<64x128xf32>
    %268 = vector.broadcast %247 : vector<1x128xf32> to vector<64x128xf32>
    %269 = arith.mulf %267, %268 : vector<64x128xf32>
    %270 = vector.broadcast %249 : vector<1x128xf32> to vector<64x128xf32>
    %271 = arith.addf %269, %270 : vector<64x128xf32>
    %c1_112 = arith.constant 1 : index
    %c0_113 = arith.constant 0 : index
    %c0_114 = arith.constant 0 : index
    %272 = vector.load %arg7[%c1_112, %c0_113, %c0_114] : memref<2x128x384xbf16, #tpu.memory_space<vmem>>, vector<1x128x384xbf16>
    %273 = vector.shape_cast %272 : vector<1x128x384xbf16> to vector<128x384xbf16>
    %274 = arith.truncf %271 : vector<64x128xf32> to vector<64x128xbf16>
    %cst_115 = arith.constant dense<0.000000e+00> : vector<64x384xf32>
    %275 = tpu.matmul %274, %273, %cst_115 {dimension_numbers = #tpu.dot_dimension_numbers<[1], [0], [0], [1], [0, 0, 1, 1], [], []>} : vector<64x128xbf16>, vector<128x384xbf16>, vector<64x384xf32> -> vector<64x384xf32>
    %c1_116 = arith.constant 1 : index
    %c0_117 = arith.constant 0 : index
    %c0_118 = arith.constant 0 : index
    %276 = vector.load %arg8[%c1_116, %c0_117, %c0_118] : memref<2x1x384xf32, #tpu.memory_space<vmem>>, vector<1x1x384xf32>
    %277 = vector.shape_cast %276 : vector<1x1x384xf32> to vector<1x384xf32>
    %278 = vector.broadcast %277 : vector<1x384xf32> to vector<64x384xf32>
    %279 = arith.addf %275, %278 : vector<64x384xf32>
    %cst_119 = arith.constant 0.000000e+00 : f32
    %280 = vector.broadcast %cst_119 : f32 to vector<64x128xf32>
    %281 = vector.extract_strided_slice %279 {offsets = [0, 0], sizes = [64, 32], strides = [1, 1]} : vector<64x384xf32> to vector<64x32xf32>
    %cst_120 = arith.constant 0.176776692 : f32
    %282 = vector.broadcast %cst_120 : f32 to vector<64x32xf32>
    %283 = arith.mulf %281, %282 : vector<64x32xf32>
    %284 = vector.extract_strided_slice %279 {offsets = [0, 128], sizes = [64, 32], strides = [1, 1]} : vector<64x384xf32> to vector<64x32xf32>
    %285 = vector.extract_strided_slice %279 {offsets = [0, 256], sizes = [64, 32], strides = [1, 1]} : vector<64x384xf32> to vector<64x32xf32>
    %286 = vector.shape_cast %283 : vector<64x32xf32> to vector<8x8x32xf32>
    %287 = arith.truncf %286 : vector<8x8x32xf32> to vector<8x8x32xbf16>
    %288 = vector.shape_cast %284 : vector<64x32xf32> to vector<8x8x32xf32>
    %289 = arith.truncf %288 : vector<8x8x32xf32> to vector<8x8x32xbf16>
    %290 = vector.shape_cast %285 : vector<64x32xf32> to vector<8x8x32xf32>
    %291 = arith.truncf %290 : vector<8x8x32xf32> to vector<8x8x32xbf16>
    "tpu.trace_start"() <{level = 10 : i32, message = "bqd,bkd->bqk"}> : () -> ()
    %cst_121 = arith.constant dense<0.000000e+00> : vector<8x8x8xf32>
    %292 = tpu.matmul %287, %289, %cst_121 {dimension_numbers = #tpu.dot_dimension_numbers<[2], [2], [1], [1], [0, 0, 0, 1, 1, 1], [0], [0]>} : vector<8x8x32xbf16>, vector<8x8x32xbf16>, vector<8x8x8xf32> -> vector<8x8x8xf32>
    "tpu.trace_stop"() : () -> ()
    %293 = vector.broadcast %21 : vector<1x1x8xf32> to vector<8x8x8xf32>
    %294 = arith.addf %292, %293 : vector<8x8x8xf32>
    %cst_122 = arith.constant dense<0xFF800000> : vector<8x8xf32>
    %295 = vector.multi_reduction <maximumf>, %294, %cst_122 [2] : vector<8x8x8xf32> to vector<8x8xf32>
    %296 = vector.shape_cast %295 : vector<8x8xf32> to vector<8x8x1xf32>
    %297 = vector.broadcast %296 : vector<8x8x1xf32> to vector<8x8x8xf32>
    %298 = arith.subf %294, %297 : vector<8x8x8xf32>
    %299 = math.exp %298 : vector<8x8x8xf32>
    %cst_123 = arith.constant dense<0.000000e+00> : vector<8x8xf32>
    %300 = vector.multi_reduction <add>, %299, %cst_123 [2] : vector<8x8x8xf32> to vector<8x8xf32>
    %301 = vector.shape_cast %300 : vector<8x8xf32> to vector<8x8x1xf32>
    %302 = tpu.reciprocal %301 {approx = true} : vector<8x8x1xf32> -> vector<8x8x1xf32>
    %303 = vector.broadcast %302 : vector<8x8x1xf32> to vector<8x8x8xf32>
    %304 = arith.mulf %299, %303 : vector<8x8x8xf32>
    %305 = arith.truncf %304 : vector<8x8x8xf32> to vector<8x8x8xbf16>
    "tpu.trace_start"() <{level = 10 : i32, message = "bqk,bkd->bqd"}> : () -> ()
    %cst_124 = arith.constant dense<0.000000e+00> : vector<8x8x32xf32>
    %306 = tpu.matmul %305, %291, %cst_124 {dimension_numbers = #tpu.dot_dimension_numbers<[2], [1], [1], [2], [0, 0, 0, 1, 1, 2], [0], [0]>} : vector<8x8x8xbf16>, vector<8x8x32xbf16>, vector<8x8x32xf32> -> vector<8x8x32xf32>
    "tpu.trace_stop"() : () -> ()
    %307 = vector.shape_cast %306 : vector<8x8x32xf32> to vector<64x32xf32>
    %c1_125 = arith.constant 1 : index
    %c0_126 = arith.constant 0 : index
    %c0_127 = arith.constant 0 : index
    %c0_128 = arith.constant 0 : index
    %308 = vector.load %arg9[%c1_125, %c0_126, %c0_127, %c0_128] : memref<2x4x32x128xbf16, #tpu.memory_space<vmem>>, vector<1x1x32x128xbf16>
    %309 = vector.shape_cast %308 : vector<1x1x32x128xbf16> to vector<32x128xbf16>
    %310 = arith.truncf %307 : vector<64x32xf32> to vector<64x32xbf16>
    %cst_129 = arith.constant dense<0.000000e+00> : vector<64x128xf32>
    %311 = tpu.matmul %310, %309, %cst_129 {dimension_numbers = #tpu.dot_dimension_numbers<[1], [0], [0], [1], [0, 0, 1, 1], [], []>} : vector<64x32xbf16>, vector<32x128xbf16>, vector<64x128xf32> -> vector<64x128xf32>
    %312 = arith.addf %280, %311 : vector<64x128xf32>
    %313 = vector.extract_strided_slice %279 {offsets = [0, 32], sizes = [64, 32], strides = [1, 1]} : vector<64x384xf32> to vector<64x32xf32>
    %cst_130 = arith.constant 0.176776692 : f32
    %314 = vector.broadcast %cst_130 : f32 to vector<64x32xf32>
    %315 = arith.mulf %313, %314 : vector<64x32xf32>
    %316 = vector.extract_strided_slice %279 {offsets = [0, 160], sizes = [64, 32], strides = [1, 1]} : vector<64x384xf32> to vector<64x32xf32>
    %317 = vector.extract_strided_slice %279 {offsets = [0, 288], sizes = [64, 32], strides = [1, 1]} : vector<64x384xf32> to vector<64x32xf32>
    %318 = vector.shape_cast %315 : vector<64x32xf32> to vector<8x8x32xf32>
    %319 = arith.truncf %318 : vector<8x8x32xf32> to vector<8x8x32xbf16>
    %320 = vector.shape_cast %316 : vector<64x32xf32> to vector<8x8x32xf32>
    %321 = arith.truncf %320 : vector<8x8x32xf32> to vector<8x8x32xbf16>
    %322 = vector.shape_cast %317 : vector<64x32xf32> to vector<8x8x32xf32>
    %323 = arith.truncf %322 : vector<8x8x32xf32> to vector<8x8x32xbf16>
    "tpu.trace_start"() <{level = 10 : i32, message = "bqd,bkd->bqk"}> : () -> ()
    %cst_131 = arith.constant dense<0.000000e+00> : vector<8x8x8xf32>
    %324 = tpu.matmul %319, %321, %cst_131 {dimension_numbers = #tpu.dot_dimension_numbers<[2], [2], [1], [1], [0, 0, 0, 1, 1, 1], [0], [0]>} : vector<8x8x32xbf16>, vector<8x8x32xbf16>, vector<8x8x8xf32> -> vector<8x8x8xf32>
    "tpu.trace_stop"() : () -> ()
    %325 = vector.broadcast %21 : vector<1x1x8xf32> to vector<8x8x8xf32>
    %326 = arith.addf %324, %325 : vector<8x8x8xf32>
    %cst_132 = arith.constant dense<0xFF800000> : vector<8x8xf32>
    %327 = vector.multi_reduction <maximumf>, %326, %cst_132 [2] : vector<8x8x8xf32> to vector<8x8xf32>
    %328 = vector.shape_cast %327 : vector<8x8xf32> to vector<8x8x1xf32>
    %329 = vector.broadcast %328 : vector<8x8x1xf32> to vector<8x8x8xf32>
    %330 = arith.subf %326, %329 : vector<8x8x8xf32>
    %331 = math.exp %330 : vector<8x8x8xf32>
    %cst_133 = arith.constant dense<0.000000e+00> : vector<8x8xf32>
    %332 = vector.multi_reduction <add>, %331, %cst_133 [2] : vector<8x8x8xf32> to vector<8x8xf32>
    %333 = vector.shape_cast %332 : vector<8x8xf32> to vector<8x8x1xf32>
    %334 = tpu.reciprocal %333 {approx = true} : vector<8x8x1xf32> -> vector<8x8x1xf32>
    %335 = vector.broadcast %334 : vector<8x8x1xf32> to vector<8x8x8xf32>
    %336 = arith.mulf %331, %335 : vector<8x8x8xf32>
    %337 = arith.truncf %336 : vector<8x8x8xf32> to vector<8x8x8xbf16>
    "tpu.trace_start"() <{level = 10 : i32, message = "bqk,bkd->bqd"}> : () -> ()
    %cst_134 = arith.constant dense<0.000000e+00> : vector<8x8x32xf32>
    %338 = tpu.matmul %337, %323, %cst_134 {dimension_numbers = #tpu.dot_dimension_numbers<[2], [1], [1], [2], [0, 0, 0, 1, 1, 2], [0], [0]>} : vector<8x8x8xbf16>, vector<8x8x32xbf16>, vector<8x8x32xf32> -> vector<8x8x32xf32>
    "tpu.trace_stop"() : () -> ()
    %339 = vector.shape_cast %338 : vector<8x8x32xf32> to vector<64x32xf32>
    %c1_135 = arith.constant 1 : index
    %c1_136 = arith.constant 1 : index
    %c0_137 = arith.constant 0 : index
    %c0_138 = arith.constant 0 : index
    %340 = vector.load %arg9[%c1_135, %c1_136, %c0_137, %c0_138] : memref<2x4x32x128xbf16, #tpu.memory_space<vmem>>, vector<1x1x32x128xbf16>
    %341 = vector.shape_cast %340 : vector<1x1x32x128xbf16> to vector<32x128xbf16>
    %342 = arith.truncf %339 : vector<64x32xf32> to vector<64x32xbf16>
    %cst_139 = arith.constant dense<0.000000e+00> : vector<64x128xf32>
    %343 = tpu.matmul %342, %341, %cst_139 {dimension_numbers = #tpu.dot_dimension_numbers<[1], [0], [0], [1], [0, 0, 1, 1], [], []>} : vector<64x32xbf16>, vector<32x128xbf16>, vector<64x128xf32> -> vector<64x128xf32>
    %344 = arith.addf %312, %343 : vector<64x128xf32>
    %345 = vector.extract_strided_slice %279 {offsets = [0, 64], sizes = [64, 32], strides = [1, 1]} : vector<64x384xf32> to vector<64x32xf32>
    %cst_140 = arith.constant 0.176776692 : f32
    %346 = vector.broadcast %cst_140 : f32 to vector<64x32xf32>
    %347 = arith.mulf %345, %346 : vector<64x32xf32>
    %348 = vector.extract_strided_slice %279 {offsets = [0, 192], sizes = [64, 32], strides = [1, 1]} : vector<64x384xf32> to vector<64x32xf32>
    %349 = vector.extract_strided_slice %279 {offsets = [0, 320], sizes = [64, 32], strides = [1, 1]} : vector<64x384xf32> to vector<64x32xf32>
    %350 = vector.shape_cast %347 : vector<64x32xf32> to vector<8x8x32xf32>
    %351 = arith.truncf %350 : vector<8x8x32xf32> to vector<8x8x32xbf16>
    %352 = vector.shape_cast %348 : vector<64x32xf32> to vector<8x8x32xf32>
    %353 = arith.truncf %352 : vector<8x8x32xf32> to vector<8x8x32xbf16>
    %354 = vector.shape_cast %349 : vector<64x32xf32> to vector<8x8x32xf32>
    %355 = arith.truncf %354 : vector<8x8x32xf32> to vector<8x8x32xbf16>
    "tpu.trace_start"() <{level = 10 : i32, message = "bqd,bkd->bqk"}> : () -> ()
    %cst_141 = arith.constant dense<0.000000e+00> : vector<8x8x8xf32>
    %356 = tpu.matmul %351, %353, %cst_141 {dimension_numbers = #tpu.dot_dimension_numbers<[2], [2], [1], [1], [0, 0, 0, 1, 1, 1], [0], [0]>} : vector<8x8x32xbf16>, vector<8x8x32xbf16>, vector<8x8x8xf32> -> vector<8x8x8xf32>
    "tpu.trace_stop"() : () -> ()
    %357 = vector.broadcast %21 : vector<1x1x8xf32> to vector<8x8x8xf32>
    %358 = arith.addf %356, %357 : vector<8x8x8xf32>
    %cst_142 = arith.constant dense<0xFF800000> : vector<8x8xf32>
    %359 = vector.multi_reduction <maximumf>, %358, %cst_142 [2] : vector<8x8x8xf32> to vector<8x8xf32>
    %360 = vector.shape_cast %359 : vector<8x8xf32> to vector<8x8x1xf32>
    %361 = vector.broadcast %360 : vector<8x8x1xf32> to vector<8x8x8xf32>
    %362 = arith.subf %358, %361 : vector<8x8x8xf32>
    %363 = math.exp %362 : vector<8x8x8xf32>
    %cst_143 = arith.constant dense<0.000000e+00> : vector<8x8xf32>
    %364 = vector.multi_reduction <add>, %363, %cst_143 [2] : vector<8x8x8xf32> to vector<8x8xf32>
    %365 = vector.shape_cast %364 : vector<8x8xf32> to vector<8x8x1xf32>
    %366 = tpu.reciprocal %365 {approx = true} : vector<8x8x1xf32> -> vector<8x8x1xf32>
    %367 = vector.broadcast %366 : vector<8x8x1xf32> to vector<8x8x8xf32>
    %368 = arith.mulf %363, %367 : vector<8x8x8xf32>
    %369 = arith.truncf %368 : vector<8x8x8xf32> to vector<8x8x8xbf16>
    "tpu.trace_start"() <{level = 10 : i32, message = "bqk,bkd->bqd"}> : () -> ()
    %cst_144 = arith.constant dense<0.000000e+00> : vector<8x8x32xf32>
    %370 = tpu.matmul %369, %355, %cst_144 {dimension_numbers = #tpu.dot_dimension_numbers<[2], [1], [1], [2], [0, 0, 0, 1, 1, 2], [0], [0]>} : vector<8x8x8xbf16>, vector<8x8x32xbf16>, vector<8x8x32xf32> -> vector<8x8x32xf32>
    "tpu.trace_stop"() : () -> ()
    %371 = vector.shape_cast %370 : vector<8x8x32xf32> to vector<64x32xf32>
    %c1_145 = arith.constant 1 : index
    %c2_146 = arith.constant 2 : index
    %c0_147 = arith.constant 0 : index
    %c0_148 = arith.constant 0 : index
    %372 = vector.load %arg9[%c1_145, %c2_146, %c0_147, %c0_148] : memref<2x4x32x128xbf16, #tpu.memory_space<vmem>>, vector<1x1x32x128xbf16>
    %373 = vector.shape_cast %372 : vector<1x1x32x128xbf16> to vector<32x128xbf16>
    %374 = arith.truncf %371 : vector<64x32xf32> to vector<64x32xbf16>
    %cst_149 = arith.constant dense<0.000000e+00> : vector<64x128xf32>
    %375 = tpu.matmul %374, %373, %cst_149 {dimension_numbers = #tpu.dot_dimension_numbers<[1], [0], [0], [1], [0, 0, 1, 1], [], []>} : vector<64x32xbf16>, vector<32x128xbf16>, vector<64x128xf32> -> vector<64x128xf32>
    %376 = arith.addf %344, %375 : vector<64x128xf32>
    %377 = vector.extract_strided_slice %279 {offsets = [0, 96], sizes = [64, 32], strides = [1, 1]} : vector<64x384xf32> to vector<64x32xf32>
    %cst_150 = arith.constant 0.176776692 : f32
    %378 = vector.broadcast %cst_150 : f32 to vector<64x32xf32>
    %379 = arith.mulf %377, %378 : vector<64x32xf32>
    %380 = vector.extract_strided_slice %279 {offsets = [0, 224], sizes = [64, 32], strides = [1, 1]} : vector<64x384xf32> to vector<64x32xf32>
    %381 = vector.extract_strided_slice %279 {offsets = [0, 352], sizes = [64, 32], strides = [1, 1]} : vector<64x384xf32> to vector<64x32xf32>
    %382 = vector.shape_cast %379 : vector<64x32xf32> to vector<8x8x32xf32>
    %383 = arith.truncf %382 : vector<8x8x32xf32> to vector<8x8x32xbf16>
    %384 = vector.shape_cast %380 : vector<64x32xf32> to vector<8x8x32xf32>
    %385 = arith.truncf %384 : vector<8x8x32xf32> to vector<8x8x32xbf16>
    %386 = vector.shape_cast %381 : vector<64x32xf32> to vector<8x8x32xf32>
    %387 = arith.truncf %386 : vector<8x8x32xf32> to vector<8x8x32xbf16>
    "tpu.trace_start"() <{level = 10 : i32, message = "bqd,bkd->bqk"}> : () -> ()
    %cst_151 = arith.constant dense<0.000000e+00> : vector<8x8x8xf32>
    %388 = tpu.matmul %383, %385, %cst_151 {dimension_numbers = #tpu.dot_dimension_numbers<[2], [2], [1], [1], [0, 0, 0, 1, 1, 1], [0], [0]>} : vector<8x8x32xbf16>, vector<8x8x32xbf16>, vector<8x8x8xf32> -> vector<8x8x8xf32>
    "tpu.trace_stop"() : () -> ()
    %389 = vector.broadcast %21 : vector<1x1x8xf32> to vector<8x8x8xf32>
    %390 = arith.addf %388, %389 : vector<8x8x8xf32>
    %cst_152 = arith.constant dense<0xFF800000> : vector<8x8xf32>
    %391 = vector.multi_reduction <maximumf>, %390, %cst_152 [2] : vector<8x8x8xf32> to vector<8x8xf32>
    %392 = vector.shape_cast %391 : vector<8x8xf32> to vector<8x8x1xf32>
    %393 = vector.broadcast %392 : vector<8x8x1xf32> to vector<8x8x8xf32>
    %394 = arith.subf %390, %393 : vector<8x8x8xf32>
    %395 = math.exp %394 : vector<8x8x8xf32>
    %cst_153 = arith.constant dense<0.000000e+00> : vector<8x8xf32>
    %396 = vector.multi_reduction <add>, %395, %cst_153 [2] : vector<8x8x8xf32> to vector<8x8xf32>
    %397 = vector.shape_cast %396 : vector<8x8xf32> to vector<8x8x1xf32>
    %398 = tpu.reciprocal %397 {approx = true} : vector<8x8x1xf32> -> vector<8x8x1xf32>
    %399 = vector.broadcast %398 : vector<8x8x1xf32> to vector<8x8x8xf32>
    %400 = arith.mulf %395, %399 : vector<8x8x8xf32>
    %401 = arith.truncf %400 : vector<8x8x8xf32> to vector<8x8x8xbf16>
    "tpu.trace_start"() <{level = 10 : i32, message = "bqk,bkd->bqd"}> : () -> ()
    %cst_154 = arith.constant dense<0.000000e+00> : vector<8x8x32xf32>
    %402 = tpu.matmul %401, %387, %cst_154 {dimension_numbers = #tpu.dot_dimension_numbers<[2], [1], [1], [2], [0, 0, 0, 1, 1, 2], [0], [0]>} : vector<8x8x8xbf16>, vector<8x8x32xbf16>, vector<8x8x32xf32> -> vector<8x8x32xf32>
    "tpu.trace_stop"() : () -> ()
    %403 = vector.shape_cast %402 : vector<8x8x32xf32> to vector<64x32xf32>
    %c1_155 = arith.constant 1 : index
    %c3_156 = arith.constant 3 : index
    %c0_157 = arith.constant 0 : index
    %c0_158 = arith.constant 0 : index
    %404 = vector.load %arg9[%c1_155, %c3_156, %c0_157, %c0_158] : memref<2x4x32x128xbf16, #tpu.memory_space<vmem>>, vector<1x1x32x128xbf16>
    %405 = vector.shape_cast %404 : vector<1x1x32x128xbf16> to vector<32x128xbf16>
    %406 = arith.truncf %403 : vector<64x32xf32> to vector<64x32xbf16>
    %cst_159 = arith.constant dense<0.000000e+00> : vector<64x128xf32>
    %407 = tpu.matmul %406, %405, %cst_159 {dimension_numbers = #tpu.dot_dimension_numbers<[1], [0], [0], [1], [0, 0, 1, 1], [], []>} : vector<64x32xbf16>, vector<32x128xbf16>, vector<64x128xf32> -> vector<64x128xf32>
    %408 = arith.addf %376, %407 : vector<64x128xf32>
    %409 = arith.addf %245, %408 : vector<64x128xf32>
    %c1_160 = arith.constant 1 : index
    %c0_161 = arith.constant 0 : index
    %c0_162 = arith.constant 0 : index
    %410 = vector.load %arg10[%c1_160, %c0_161, %c0_162] : memref<2x1x128xf32, #tpu.memory_space<vmem>>, vector<1x1x128xf32>
    %411 = vector.shape_cast %410 : vector<1x1x128xf32> to vector<1x128xf32>
    %412 = vector.broadcast %411 : vector<1x128xf32> to vector<64x128xf32>
    %413 = arith.addf %409, %412 : vector<64x128xf32>
    %c1_163 = arith.constant 1 : index
    %c0_164 = arith.constant 0 : index
    %c0_165 = arith.constant 0 : index
    %414 = vector.load %arg11[%c1_163, %c0_164, %c0_165] : memref<2x1x128xf32, #tpu.memory_space<vmem>>, vector<1x1x128xf32>
    %415 = vector.shape_cast %414 : vector<1x1x128xf32> to vector<1x128xf32>
    %c1_166 = arith.constant 1 : index
    %c0_167 = arith.constant 0 : index
    %c0_168 = arith.constant 0 : index
    %416 = vector.load %arg12[%c1_166, %c0_167, %c0_168] : memref<2x1x128xf32, #tpu.memory_space<vmem>>, vector<1x1x128xf32>
    %417 = vector.shape_cast %416 : vector<1x1x128xf32> to vector<1x128xf32>
    %cst_169 = arith.constant dense<0.000000e+00> : vector<64xf32>
    %418 = vector.multi_reduction <add>, %413, %cst_169 [1] : vector<64x128xf32> to vector<64xf32>
    %419 = vector.shape_cast %418 : vector<64xf32> to vector<64x1xf32>
    %cst_170 = arith.constant 1.280000e+02 : f32
    %420 = vector.broadcast %cst_170 : f32 to vector<64x1xf32>
    %421 = arith.divf %419, %420 : vector<64x1xf32>
    %422 = vector.broadcast %421 : vector<64x1xf32> to vector<64x128xf32>
    %423 = arith.subf %413, %422 : vector<64x128xf32>
    %424 = arith.mulf %423, %423 : vector<64x128xf32>
    %cst_171 = arith.constant dense<0.000000e+00> : vector<64xf32>
    %425 = vector.multi_reduction <add>, %424, %cst_171 [1] : vector<64x128xf32> to vector<64xf32>
    %426 = vector.shape_cast %425 : vector<64xf32> to vector<64x1xf32>
    %cst_172 = arith.constant 1.280000e+02 : f32
    %427 = vector.broadcast %cst_172 : f32 to vector<64x1xf32>
    %428 = arith.divf %426, %427 : vector<64x1xf32>
    %429 = vector.broadcast %421 : vector<64x1xf32> to vector<64x128xf32>
    %430 = arith.subf %413, %429 : vector<64x128xf32>
    %cst_173 = arith.constant 9.99999974E-6 : f32
    %431 = vector.broadcast %cst_173 : f32 to vector<64x1xf32>
    %432 = arith.addf %428, %431 : vector<64x1xf32>
    %433 = math.rsqrt %432 : vector<64x1xf32>
    %434 = vector.broadcast %433 : vector<64x1xf32> to vector<64x128xf32>
    %435 = arith.mulf %430, %434 : vector<64x128xf32>
    %436 = vector.broadcast %415 : vector<1x128xf32> to vector<64x128xf32>
    %437 = arith.mulf %435, %436 : vector<64x128xf32>
    %438 = vector.broadcast %417 : vector<1x128xf32> to vector<64x128xf32>
    %439 = arith.addf %437, %438 : vector<64x128xf32>
    %c1_174 = arith.constant 1 : index
    %c0_175 = arith.constant 0 : index
    %c0_176 = arith.constant 0 : index
    %440 = vector.load %arg13[%c1_174, %c0_175, %c0_176] : memref<2x128x256xbf16, #tpu.memory_space<vmem>>, vector<1x128x256xbf16>
    %441 = vector.shape_cast %440 : vector<1x128x256xbf16> to vector<128x256xbf16>
    %442 = arith.truncf %439 : vector<64x128xf32> to vector<64x128xbf16>
    %cst_177 = arith.constant dense<0.000000e+00> : vector<64x256xf32>
    %443 = tpu.matmul %442, %441, %cst_177 {dimension_numbers = #tpu.dot_dimension_numbers<[1], [0], [0], [1], [0, 0, 1, 1], [], []>} : vector<64x128xbf16>, vector<128x256xbf16>, vector<64x256xf32> -> vector<64x256xf32>
    %c1_178 = arith.constant 1 : index
    %c0_179 = arith.constant 0 : index
    %c0_180 = arith.constant 0 : index
    %444 = vector.load %arg14[%c1_178, %c0_179, %c0_180] : memref<2x1x256xf32, #tpu.memory_space<vmem>>, vector<1x1x256xf32>
    %445 = vector.shape_cast %444 : vector<1x1x256xf32> to vector<1x256xf32>
    %446 = vector.broadcast %445 : vector<1x256xf32> to vector<64x256xf32>
    %447 = arith.addf %443, %446 : vector<64x256xf32>
    %cst_181 = arith.constant 5.000000e-01 : f32
    %448 = vector.broadcast %cst_181 : f32 to vector<64x256xf32>
    %449 = arith.mulf %448, %447 : vector<64x256xf32>
    %cst_182 = arith.constant 4.471500e-02 : f32
    %450 = vector.broadcast %cst_182 : f32 to vector<64x256xf32>
    %451 = arith.mulf %450, %447 : vector<64x256xf32>
    %452 = arith.mulf %451, %447 : vector<64x256xf32>
    %453 = arith.mulf %452, %447 : vector<64x256xf32>
    %454 = arith.addf %447, %453 : vector<64x256xf32>
    %cst_183 = arith.constant 0.797884583 : f32
    %455 = vector.broadcast %cst_183 : f32 to vector<64x256xf32>
    %456 = arith.mulf %455, %454 : vector<64x256xf32>
    %457 = math.tanh %456 : vector<64x256xf32>
    %cst_184 = arith.constant 1.000000e+00 : f32
    %458 = vector.broadcast %cst_184 : f32 to vector<64x256xf32>
    %459 = arith.addf %458, %457 : vector<64x256xf32>
    %460 = arith.mulf %449, %459 : vector<64x256xf32>
    %c1_185 = arith.constant 1 : index
    %c0_186 = arith.constant 0 : index
    %c0_187 = arith.constant 0 : index
    %461 = vector.load %arg15[%c1_185, %c0_186, %c0_187] : memref<2x256x128xbf16, #tpu.memory_space<vmem>>, vector<1x256x128xbf16>
    %462 = vector.shape_cast %461 : vector<1x256x128xbf16> to vector<256x128xbf16>
    %463 = arith.truncf %460 : vector<64x256xf32> to vector<64x256xbf16>
    %cst_188 = arith.constant dense<0.000000e+00> : vector<64x128xf32>
    %464 = tpu.matmul %463, %462, %cst_188 {dimension_numbers = #tpu.dot_dimension_numbers<[1], [0], [0], [1], [0, 0, 1, 1], [], []>} : vector<64x256xbf16>, vector<256x128xbf16>, vector<64x128xf32> -> vector<64x128xf32>
    %465 = arith.addf %413, %464 : vector<64x128xf32>
    %c1_189 = arith.constant 1 : index
    %c0_190 = arith.constant 0 : index
    %c0_191 = arith.constant 0 : index
    %466 = vector.load %arg16[%c1_189, %c0_190, %c0_191] : memref<2x1x128xf32, #tpu.memory_space<vmem>>, vector<1x1x128xf32>
    %467 = vector.shape_cast %466 : vector<1x1x128xf32> to vector<1x128xf32>
    %468 = vector.broadcast %467 : vector<1x128xf32> to vector<64x128xf32>
    %469 = arith.addf %465, %468 : vector<64x128xf32>
    %470 = vector.shape_cast %469 : vector<64x128xf32> to vector<8x8x128xf32>
    %471 = vector.extract_strided_slice %470 {offsets = [0, 0, 0], sizes = [8, 1, 128], strides = [1, 1, 1]} : vector<8x8x128xf32> to vector<8x1x128xf32>
    %472 = vector.shape_cast %471 : vector<8x1x128xf32> to vector<8x128xf32>
    %c0_192 = arith.constant 0 : index
    %c0_193 = arith.constant 0 : index
    %473 = vector.load %arg17[%c0_192, %c0_193] : memref<1x128xf32, #tpu.memory_space<vmem>>, vector<1x128xf32>
    %c0_194 = arith.constant 0 : index
    %c0_195 = arith.constant 0 : index
    %474 = vector.load %arg18[%c0_194, %c0_195] : memref<1x128xf32, #tpu.memory_space<vmem>>, vector<1x128xf32>
    %cst_196 = arith.constant dense<0.000000e+00> : vector<8xf32>
    %475 = vector.multi_reduction <add>, %472, %cst_196 [1] : vector<8x128xf32> to vector<8xf32>
    %476 = vector.shape_cast %475 : vector<8xf32> to vector<8x1xf32>
    %cst_197 = arith.constant 1.280000e+02 : f32
    %477 = vector.broadcast %cst_197 : f32 to vector<8x1xf32>
    %478 = arith.divf %476, %477 : vector<8x1xf32>
    %479 = vector.broadcast %478 : vector<8x1xf32> to vector<8x128xf32>
    %480 = arith.subf %472, %479 : vector<8x128xf32>
    %481 = arith.mulf %480, %480 : vector<8x128xf32>
    %cst_198 = arith.constant dense<0.000000e+00> : vector<8xf32>
    %482 = vector.multi_reduction <add>, %481, %cst_198 [1] : vector<8x128xf32> to vector<8xf32>
    %483 = vector.shape_cast %482 : vector<8xf32> to vector<8x1xf32>
    %cst_199 = arith.constant 1.280000e+02 : f32
    %484 = vector.broadcast %cst_199 : f32 to vector<8x1xf32>
    %485 = arith.divf %483, %484 : vector<8x1xf32>
    %486 = vector.broadcast %478 : vector<8x1xf32> to vector<8x128xf32>
    %487 = arith.subf %472, %486 : vector<8x128xf32>
    %cst_200 = arith.constant 9.99999974E-6 : f32
    %488 = vector.broadcast %cst_200 : f32 to vector<8x1xf32>
    %489 = arith.addf %485, %488 : vector<8x1xf32>
    %490 = math.rsqrt %489 : vector<8x1xf32>
    %491 = vector.broadcast %490 : vector<8x1xf32> to vector<8x128xf32>
    %492 = arith.mulf %487, %491 : vector<8x128xf32>
    %493 = vector.broadcast %473 : vector<1x128xf32> to vector<8x128xf32>
    %494 = arith.mulf %492, %493 : vector<8x128xf32>
    %495 = vector.broadcast %474 : vector<1x128xf32> to vector<8x128xf32>
    %496 = arith.addf %494, %495 : vector<8x128xf32>
    %c0_201 = arith.constant 0 : index
    %c0_202 = arith.constant 0 : index
    %497 = vector.load %arg19[%c0_201, %c0_202] : memref<128x128xbf16, #tpu.memory_space<vmem>>, vector<128x128xbf16>
    %498 = arith.truncf %496 : vector<8x128xf32> to vector<8x128xbf16>
    %cst_203 = arith.constant dense<0.000000e+00> : vector<8x128xf32>
    %499 = tpu.matmul %498, %497, %cst_203 {dimension_numbers = #tpu.dot_dimension_numbers<[1], [0], [0], [1], [0, 0, 1, 1], [], []>} : vector<8x128xbf16>, vector<128x128xbf16>, vector<8x128xf32> -> vector<8x128xf32>
    %c0_204 = arith.constant 0 : index
    %c0_205 = arith.constant 0 : index
    %500 = vector.load %arg20[%c0_204, %c0_205] : memref<1x128xf32, #tpu.memory_space<vmem>>, vector<1x128xf32>
    %501 = vector.broadcast %500 : vector<1x128xf32> to vector<8x128xf32>
    %502 = arith.addf %499, %501 : vector<8x128xf32>
    %c0_206 = arith.constant 0 : index
    %c0_207 = arith.constant 0 : index
    %503 = vector.load %arg21[%c0_206, %c0_207] : memref<8x128xf32, #tpu.memory_space<vmem>>, vector<8x128xf32>
    tpu.vector_store %arg21[%c0_206, %c0_207], %502 {strides = array<i32>} : memref<8x128xf32, #tpu.memory_space<vmem>>, vector<8x128xf32>,
    return
  }
  func.func @transform_0(%arg0: i32) -> (i32, i32, i32) {
    %c0_i32 = arith.constant 0 : i32
    %c0_i32_0 = arith.constant 0 : i32
    %c0_i32_1 = arith.constant 0 : i32
    return %arg0, %c0_i32, %c0_i32_0 : i32, i32, i32
  }
  func.func @transform_1(%arg0: i32) -> (i32, i32) {
    %c0_i32 = arith.constant 0 : i32
    %c0_i32_0 = arith.constant 0 : i32
    %c0_i32_1 = arith.constant 0 : i32
    return %c0_i32, %c0_i32_0 : i32, i32
  }
  func.func @transform_2(%arg0: i32) -> (i32, i32) {
    %c0_i32 = arith.constant 0 : i32
    %c0_i32_0 = arith.constant 0 : i32
    %c0_i32_1 = arith.constant 0 : i32
    return %c0_i32, %c0_i32_0 : i32, i32
  }
  func.func @transform_3(%arg0: i32) -> (i32, i32, i32) {
    %c0_i32 = arith.constant 0 : i32
    %c0_i32_0 = arith.constant 0 : i32
    %c0_i32_1 = arith.constant 0 : i32
    %c0_i32_2 = arith.constant 0 : i32
    return %c0_i32, %c0_i32_0, %c0_i32_1 : i32, i32, i32
  }
  func.func @transform_4(%arg0: i32) -> (i32, i32, i32) {
    %c0_i32 = arith.constant 0 : i32
    %c0_i32_0 = arith.constant 0 : i32
    %c0_i32_1 = arith.constant 0 : i32
    %c0_i32_2 = arith.constant 0 : i32
    return %c0_i32, %c0_i32_0, %c0_i32_1 : i32, i32, i32
  }
  func.func @transform_5(%arg0: i32) -> (i32, i32, i32) {
    %c0_i32 = arith.constant 0 : i32
    %c0_i32_0 = arith.constant 0 : i32
    %c0_i32_1 = arith.constant 0 : i32
    %c0_i32_2 = arith.constant 0 : i32
    return %c0_i32, %c0_i32_0, %c0_i32_1 : i32, i32, i32
  }
  func.func @transform_6(%arg0: i32) -> (i32, i32, i32) {
    %c0_i32 = arith.constant 0 : i32
    %c0_i32_0 = arith.constant 0 : i32
    %c0_i32_1 = arith.constant 0 : i32
    %c0_i32_2 = arith.constant 0 : i32
    return %c0_i32, %c0_i32_0, %c0_i32_1 : i32, i32, i32
  }
  func.func @transform_7(%arg0: i32) -> (i32, i32, i32) {
    %c0_i32 = arith.constant 0 : i32
    %c0_i32_0 = arith.constant 0 : i32
    %c0_i32_1 = arith.constant 0 : i32
    %c0_i32_2 = arith.constant 0 : i32
    return %c0_i32, %c0_i32_0, %c0_i32_1 : i32, i32, i32
  }
  func.func @transform_8(%arg0: i32) -> (i32, i32, i32, i32) {
    %c0_i32 = arith.constant 0 : i32
    %c0_i32_0 = arith.constant 0 : i32
    %c0_i32_1 = arith.constant 0 : i32
    %c0_i32_2 = arith.constant 0 : i32
    %c0_i32_3 = arith.constant 0 : i32
    return %c0_i32, %c0_i32_0, %c0_i32_1, %c0_i32_2 : i32, i32, i32, i32
  }
  func.func @transform_9(%arg0: i32) -> (i32, i32, i32) {
    %c0_i32 = arith.constant 0 : i32
    %c0_i32_0 = arith.constant 0 : i32
    %c0_i32_1 = arith.constant 0 : i32
    %c0_i32_2 = arith.constant 0 : i32
    return %c0_i32, %c0_i32_0, %c0_i32_1 : i32, i32, i32
  }
  func.func @transform_10(%arg0: i32) -> (i32, i32, i32) {
    %c0_i32 = arith.constant 0 : i32
    %c0_i32_0 = arith.constant 0 : i32
    %c0_i32_1 = arith.constant 0 : i32
    %c0_i32_2 = arith.constant 0 : i32
    return %c0_i32, %c0_i32_0, %c0_i32_1 : i32, i32, i32
  }
  func.func @transform_11(%arg0: i32) -> (i32, i32, i32) {
    %c0_i32 = arith.constant 0 : i32
    %c0_i32_0 = arith.constant 0 : i32
    %c0_i32_1 = arith.constant 0 : i32
    %c0_i32_2 = arith.constant 0 : i32
    return %c0_i32, %c0_i32_0, %c0_i32_1 : i32, i32, i32
  }
  func.func @transform_12(%arg0: i32) -> (i32, i32, i32) {
    %c0_i32 = arith.constant 0 : i32
    %c0_i32_0 = arith.constant 0 : i32
    %c0_i32_1 = arith.constant 0 : i32
    %c0_i32_2 = arith.constant 0 : i32
    return %c0_i32, %c0_i32_0, %c0_i32_1 : i32, i32, i32
  }
  func.func @transform_13(%arg0: i32) -> (i32, i32, i32) {
    %c0_i32 = arith.constant 0 : i32
    %c0_i32_0 = arith.constant 0 : i32
    %c0_i32_1 = arith.constant 0 : i32
    %c0_i32_2 = arith.constant 0 : i32
    return %c0_i32, %c0_i32_0, %c0_i32_1 : i32, i32, i32
  }
  func.func @transform_14(%arg0: i32) -> (i32, i32, i32) {
    %c0_i32 = arith.constant 0 : i32
    %c0_i32_0 = arith.constant 0 : i32
    %c0_i32_1 = arith.constant 0 : i32
    %c0_i32_2 = arith.constant 0 : i32
    return %c0_i32, %c0_i32_0, %c0_i32_1 : i32, i32, i32
  }
  func.func @transform_15(%arg0: i32) -> (i32, i32, i32) {
    %c0_i32 = arith.constant 0 : i32
    %c0_i32_0 = arith.constant 0 : i32
    %c0_i32_1 = arith.constant 0 : i32
    %c0_i32_2 = arith.constant 0 : i32
    return %c0_i32, %c0_i32_0, %c0_i32_1 : i32, i32, i32
  }
  func.func @transform_16(%arg0: i32) -> (i32, i32) {
    %c0_i32 = arith.constant 0 : i32
    %c0_i32_0 = arith.constant 0 : i32
    %c0_i32_1 = arith.constant 0 : i32
    return %c0_i32, %c0_i32_0 : i32, i32
  }
  func.func @transform_17(%arg0: i32) -> (i32, i32) {
    %c0_i32 = arith.constant 0 : i32
    %c0_i32_0 = arith.constant 0 : i32
    %c0_i32_1 = arith.constant 0 : i32
    return %c0_i32, %c0_i32_0 : i32, i32
  }
  func.func @transform_18(%arg0: i32) -> (i32, i32) {
    %c0_i32 = arith.constant 0 : i32
    %c0_i32_0 = arith.constant 0 : i32
    %c0_i32_1 = arith.constant 0 : i32
    return %c0_i32, %c0_i32_0 : i32, i32
  }
  func.func @transform_19(%arg0: i32) -> (i32, i32) {
    %c0_i32 = arith.constant 0 : i32
    %c0_i32_0 = arith.constant 0 : i32
    %c0_i32_1 = arith.constant 0 : i32
    return %c0_i32, %c0_i32_0 : i32, i32
  }
  func.func @transform_20(%arg0: i32) -> (i32, i32) {
    %c0_i32 = arith.constant 0 : i32
    %c0_i32_0 = arith.constant 0 : i32
    return %arg0, %c0_i32 : i32, i32
  }
}

</mosaic_0001>

<llo_original>
// kernel: vit_forward.1
$region0: #{vit_forward.1}
  #allocation0 [shape = 'u32[]', space=smem, size = 0x4, offset = 0x4, fixed_abs, tag = 'smem constant byte address 0x4 - core index']
  #allocation1 [shape = 'u32[72,128]{1,0:T(1,128)}', space=vmem, size = 0x9000, scoped, tag = 'internal scratch']
  %s0 = inlined_call_operand.vmem [shape: f32[8,4,256], index: 0, kind: input, shape index: {}]
  %s1 = inlined_call_operand.hbm [shape: bf16[256,128], index: 1, kind: input, shape index: {}]
  %s2 = inlined_call_operand.vmem [shape: f32[1,128], index: 2, kind: input, shape index: {}]
  %s3 = inlined_call_operand.vmem [shape: f32[1,8,128], index: 3, kind: input, shape index: {}]
  %s4 = inlined_call_operand.hbm [shape: f32[2,1,128], index: 4, kind: input, shape index: {}]
  %s5 = inlined_call_operand.hbm [shape: f32[2,1,128], index: 5, kind: input, shape index: {}]
  %s6 = inlined_call_operand.vmem [shape: bf16[2,128,384], index: 6, kind: input, shape index: {}]
  %s7 = inlined_call_operand.hbm [shape: f32[2,1,384], index: 7, kind: input, shape index: {}]
  %s8 = inlined_call_operand.hbm [shape: bf16[2,4,32,128], index: 8, kind: input, shape index: {}]
  %s9 = inlined_call_operand.hbm [shape: f32[2,1,128], index: 9, kind: input, shape index: {}]
  %s10 = inlined_call_operand.hbm [shape: f32[2,1,128], index: 10, kind: input, shape index: {}]
  %s11 = inlined_call_operand.hbm [shape: f32[2,1,128], index: 11, kind: input, shape index: {}]
  %s12 = inlined_call_operand.vmem [shape: bf16[2,128,256], index: 12, kind: input, shape index: {}]
  %s13 = inlined_call_operand.hbm [shape: f32[2,1,256], index: 13, kind: input, shape index: {}]
  %s14 = inlined_call_operand.vmem [shape: bf16[2,256,128], index: 14, kind: input, shape index: {}]
  %s15 = inlined_call_operand.hbm [shape: f32[2,1,128], index: 15, kind: input, shape index: {}]
  %s16 = inlined_call_operand.vmem [shape: f32[1,128], index: 16, kind: input, shape index: {}]
  %s17 = inlined_call_operand.vmem [shape: f32[1,128], index: 17, kind: input, shape index: {}]
  %s18 = inlined_call_operand.vmem [shape: bf16[128,128], index: 18, kind: input, shape index: {}]
  %s19 = inlined_call_operand.hbm [shape: f32[1,128], index: 19, kind: input, shape index: {}]
  %s20 = inlined_call_operand.vmem [shape: f32[8,128], index: 20, kind: output, shape index: {}]
  %s21 = sld [smem:[#allocation0]]
  $region134: #{vit_forward.1} parent=0
    _
  %s23 = ssub.s32 1, %s21
  %s24 = scalar_select 0, %s23, %s21
  $region1: #{vit_forward.1} parent=0
    #allocation2 [shape = 'u8[65536]{0}', space=vmem, size = 0x10000, scoped, tag = 'input window, operand 1, single buffered']
    #allocation3 [shape = 's32[1]{0}', space=sflag, size = 0x4, scoped, tag = 'scoped memory for vit_forward.1']
    #allocation4 [shape = 'u8[1024]{0}', space=vmem, size = 0x400, scoped, tag = 'input window, operand 4, single buffered']
    #allocation5 [shape = 's32[1]{0}', space=sflag, size = 0x4, scoped, tag = 'scoped memory for vit_forward.1']
    #allocation6 [shape = 'u8[1024]{0}', space=vmem, size = 0x400, scoped, tag = 'input window, operand 5, single buffered']
    #allocation7 [shape = 'u8[3072]{0}', space=vmem, size = 0xc00, scoped, tag = 'input window, operand 7, single buffered']
    #allocation8 [shape = 's32[1]{0}', space=sflag, size = 0x4, scoped, tag = 'scoped memory for vit_forward.1']
    #allocation9 [shape = 'u8[65536]{0}', space=vmem, size = 0x10000, scoped, tag = 'input window, operand 8, single buffered']
    #allocation10 [shape = 'u8[1024]{0}', space=vmem, size = 0x400, scoped, tag = 'input window, operand 9, single buffered']
    #allocation11 [shape = 's32[1]{0}', space=sflag, size = 0x4, scoped, tag = 'scoped memory for vit_forward.1']
    #allocation12 [shape = 'u8[1024]{0}', space=vmem, size = 0x400, scoped, tag = 'input window, operand 10, single buffered']
    #allocation13 [shape = 'u8[1024]{0}', space=vmem, size = 0x400, scoped, tag = 'input window, operand 11, single buffered']
    #allocation14 [shape = 's32[1]{0}', space=sflag, size = 0x4, scoped, tag = 'scoped memory for vit_forward.1']
    #allocation15 [shape = 'u8[2048]{0}', space=vmem, size = 0x800, scoped, tag = 'input window, operand 13, single buffered']
    #allocation16 [shape = 'u8[1024]{0}', space=vmem, size = 0x400, scoped, tag = 'input window, operand 15, single buffered']
    #allocation17 [shape = 's32[1]{0}', space=sflag, size = 0x4, scoped, tag = 'scoped memory for vit_forward.1']
    #allocation18 [shape = 'u8[512]{0}', space=vmem, size = 0x400, scoped, tag = 'input window, operand 19, single buffered']
    %25 = vsyncpa [#allocation3], 0
    %26 = vsyncpa [#allocation5], 0
    %27 = vsyncpa [#allocation8], 0
    %28 = vsyncpa [#allocation11], 0
    %29 = vsyncpa [#allocation14], 0
    %30 = vsyncpa [#allocation17], 0
    // Predicated region
    $region2: #{vit_forward.1} parent=1 // pred_check
      _
    $region3: #{vit_forward.1} parent=1 // pred_check_branch
      %32 = sbr.rel (0) target = $region5
    $region4: #{vit_forward.1} parent=1 // pred_region
      _
    $region5: #{vit_forward.1} parent=1 // pred_fallthru
      _
    // Predicated region
    $region6: #{vit_forward.1} parent=1 // pred_check
      _
    $region7: #{vit_forward.1} parent=1 // pred_check_branch
      %34 = sbr.rel (0) target = $region9
    $region8: #{vit_forward.1} parent=1 // pred_region
      %36 = vsyncadd [#allocation3], 0
      %s37 = sshll.u32 %s1, 4
      %s38 = int_to_ptr.hbm [resolvable:$true] %s37
      %s39 = sshll.u32 [#allocation2], 4
      %s40 = int_to_ptr.vmem [resolvable:$true] %s39
      %45 = dma.hbm_to_vmem [thread:$0]  %s38, 2048, %s40, [#allocation3], 64, 64, 4
    $region9: #{vit_forward.1} parent=1 // pred_fallthru
      _
    // Predicated region
    $region10: #{vit_forward.1} parent=1 // pred_check
      _
    $region11: #{vit_forward.1} parent=1 // pred_check_branch
      %47 = sbr.rel (0) target = $region13
    $region12: #{vit_forward.1} parent=1 // pred_region
      _
    $region13: #{vit_forward.1} parent=1 // pred_fallthru
      _
    // Predicated region
    $region14: #{vit_forward.1} parent=1 // pred_check
      _
    $region15: #{vit_forward.1} parent=1 // pred_check_branch
      %49 = sbr.rel (0) target = $region17
    $region16: #{vit_forward.1} parent=1 // pred_region
      _
    $region17: #{vit_forward.1} parent=1 // pred_fallthru
      _
    // Predicated region
    $region18: #{vit_forward.1} parent=1 // pred_check
      _
    $region19: #{vit_forward.1} parent=1 // pred_check_branch
      %51 = sbr.rel (0) target = $region21
    $region20: #{vit_forward.1} parent=1 // pred_region
      %53 = vsyncadd [#allocation5], 0
      %s54 = sshll.u32 %s4, 4
      %s55 = int_to_ptr.hbm [resolvable:$true] %s54
      %s56 = sshll.u32 [#allocation4], 4
      %s57 = int_to_ptr.vmem [resolvable:$true] %s56
      %62 = dma.hbm_to_vmem [thread:$0]  %s55, 32, %s57, [#allocation5], 16, 16, 1
    $region21: #{vit_forward.1} parent=1 // pred_fallthru
      _
    // Predicated region
    $region22: #{vit_forward.1} parent=1 // pred_check
      _
    $region23: #{vit_forward.1} parent=1 // pred_check_branch
      %64 = sbr.rel (0) target = $region25
    $region24: #{vit_forward.1} parent=1 // pred_region
      %66 = vsyncadd [#allocation5], 0
      %s67 = sshll.u32 %s5, 4
      %s68 = int_to_ptr.hbm [resolvable:$true] %s67
      %s69 = sshll.u32 [#allocation6], 4
      %s70 = int_to_ptr.vmem [resolvable:$true] %s69
      %75 = dma.hbm_to_vmem [thread:$0]  %s68, 32, %s70, [#allocation5], 16, 16, 1
    $region25: #{vit_forward.1} parent=1 // pred_fallthru
      _
    // Predicated region
    $region26: #{vit_forward.1} parent=1 // pred_check
      _
    $region27: #{vit_forward.1} parent=1 // pred_check_branch
      %77 = sbr.rel (0) target = $region29
    $region28: #{vit_forward.1} parent=1 // pred_region
      _
    $region29: #{vit_forward.1} parent=1 // pred_fallthru
      _
    // Predicated region
    $region30: #{vit_forward.1} parent=1 // pred_check
      _
    $region31: #{vit_forward.1} parent=1 // pred_check_branch
      %79 = sbr.rel (0) target = $region33
    $region32: #{vit_forward.1} parent=1 // pred_region
      %81 = vsyncadd [#allocation8], 0
      %s82 = sshll.u32 %s7, 4
      %s83 = int_to_ptr.hbm [resolvable:$true] %s82
      %s84 = sshll.u32 [#allocation7], 4
      %s85 = int_to_ptr.vmem [resolvable:$true] %s84
      %90 = dma.hbm_to_vmem [thread:$0]  %s83, 96, %s85, [#allocation8], 48, 48, 3
    $region33: #{vit_forward.1} parent=1 // pred_fallthru
      _
    // Predicated region
    $region34: #{vit_forward.1} parent=1 // pred_check
      _
    $region35: #{vit_forward.1} parent=1 // pred_check_branch
      %92 = sbr.rel (0) target = $region37
    $region36: #{vit_forward.1} parent=1 // pred_region
      %94 = vsyncadd [#allocation8], 0
      %s95 = sshll.u32 %s8, 4
      %s96 = int_to_ptr.hbm [resolvable:$true] %s95
      %s97 = sshll.u32 [#allocation9], 4
      %s98 = int_to_ptr.vmem [resolvable:$true] %s97
      %103 = dma.hbm_to_vmem [thread:$0]  %s96, 2048, %s98, [#allocation8], 64, 64, 4
    $region37: #{vit_forward.1} parent=1 // pred_fallthru
      _
    // Predicated region
    $region38: #{vit_forward.1} parent=1 // pred_check
      _
    $region39: #{vit_forward.1} parent=1 // pred_check_branch
      %105 = sbr.rel (0) target = $region41
    $region40: #{vit_forward.1} parent=1 // pred_region
      %107 = vsyncadd [#allocation11], 0
      %s108 = sshll.u32 %s9, 4
      %s109 = int_to_ptr.hbm [resolvable:$true] %s108
      %s110 = sshll.u32 [#allocation10], 4
      %s111 = int_to_ptr.vmem [resolvable:$true] %s110
      %116 = dma.hbm_to_vmem [thread:$0]  %s109, 32, %s111, [#allocation11], 16, 16, 1
    $region41: #{vit_forward.1} parent=1 // pred_fallthru
      _
    // Predicated region
    $region42: #{vit_forward.1} parent=1 // pred_check
      _
    $region43: #{vit_forward.1} parent=1 // pred_check_branch
      %118 = sbr.rel (0) target = $region45
    $region44: #{vit_forward.1} parent=1 // pred_region
      %120 = vsyncadd [#allocation11], 0
      %s121 = sshll.u32 %s10, 4
      %s122 = int_to_ptr.hbm [resolvable:$true] %s121
      %s123 = sshll.u32 [#allocation12], 4
      %s124 = int_to_ptr.vmem [resolvable:$true] %s123
      %129 = dma.hbm_to_vmem [thread:$0]  %s122, 32, %s124, [#allocation11], 16, 16, 1
    $region45: #{vit_forward.1} parent=1 // pred_fallthru
      _
    // Predicated region
    $region46: #{vit_forward.1} parent=1 // pred_check
      _
    $region47: #{vit_forward.1} parent=1 // pred_check_branch
      %131 = sbr.rel (0) target = $region49
    $region48: #{vit_forward.1} parent=1 // pred_region
      %133 = vsyncadd [#allocation14], 0
      %s134 = sshll.u32 %s11, 4
      %s135 = int_to_ptr.hbm [resolvable:$true] %s134
      %s136 = sshll.u32 [#allocation13], 4
      %s137 = int_to_ptr.vmem [resolvable:$true] %s136
      %142 = dma.hbm_to_vmem [thread:$0]  %s135, 32, %s137, [#allocation14], 16, 16, 1
    $region49: #{vit_forward.1} parent=1 // pred_fallthru
      _
    // Predicated region
    $region50: #{vit_forward.1} parent=1 // pred_check
      _
    $region51: #{vit_forward.1} parent=1 // pred_check_branch
      %144 = sbr.rel (0) target = $region53
    $region52: #{vit_forward.1} parent=1 // pred_region
      _
    $region53: #{vit_forward.1} parent=1 // pred_fallthru
      _
    // Predicated region
    $region54: #{vit_forward.1} parent=1 // pred_check
      _
    $region55: #{vit_forward.1} parent=1 // pred_check_branch
      %146 = sbr.rel (0) target = $region57
    $region56: #{vit_forward.1} parent=1 // pred_region
      %148 = vsyncadd [#allocation14], 0
      %s149 = sshll.u32 %s13, 4
      %s150 = int_to_ptr.hbm [resolvable:$true] %s149
      %s151 = sshll.u32 [#allocation15], 4
      %s152 = int_to_ptr.vmem [resolvable:$true] %s151
      %157 = dma.hbm_to_vmem [thread:$0]  %s150, 64, %s152, [#allocation14], 32, 32, 2
    $region57: #{vit_forward.1} parent=1 // pred_fallthru
      _
    // Predicated region
    $region58: #{vit_forward.1} parent=1 // pred_check
      _
    $region59: #{vit_forward.1} parent=1 // pred_check_branch
      %159 = sbr.rel (0) target = $region61
    $region60: #{vit_forward.1} parent=1 // pred_region
      _
    $region61: #{vit_forward.1} parent=1 // pred_fallthru
      _
    // Predicated region
    $region62: #{vit_forward.1} parent=1 // pred_check
      _
    $region63: #{vit_forward.1} parent=1 // pred_check_branch
      %161 = sbr.rel (0) target = $region65
    $region64: #{vit_forward.1} parent=1 // pred_region
      %163 = vsyncadd [#allocation17], 0
      %s164 = sshll.u32 %s15, 4
      %s165 = int_to_ptr.hbm [resolvable:$true] %s164
      %s166 = sshll.u32 [#allocation16], 4
      %s167 = int_to_ptr.vmem [resolvable:$true] %s166
      %172 = dma.hbm_to_vmem [thread:$0]  %s165, 32, %s167, [#allocation17], 16, 16, 1
    $region65: #{vit_forward.1} parent=1 // pred_fallthru
      _
    // Predicated region
    $region66: #{vit_forward.1} parent=1 // pred_check
      _
    $region67: #{vit_forward.1} parent=1 // pred_check_branch
      %174 = sbr.rel (0) target = $region69
    $region68: #{vit_forward.1} parent=1 // pred_region
      _
    $region69: #{vit_forward.1} parent=1 // pred_fallthru
      _
    // Predicated region
    $region70: #{vit_forward.1} parent=1 // pred_check
      _
    $region71: #{vit_forward.1} parent=1 // pred_check_branch
      %176 = sbr.rel (0) target = $region73
    $region72: #{vit_forward.1} parent=1 // pred_region
      _
    $region73: #{vit_forward.1} parent=1 // pred_fallthru
      _
    // Predicated region
    $region74: #{vit_forward.1} parent=1 // pred_check
      _
    $region75: #{vit_forward.1} parent=1 // pred_check_branch
      %178 = sbr.rel (0) target = $region77
    $region76: #{vit_forward.1} parent=1 // pred_region
      _
    $region77: #{vit_forward.1} parent=1 // pred_fallthru
      _
    // Predicated region
    $region78: #{vit_forward.1} parent=1 // pred_check
      _
    $region79: #{vit_forward.1} parent=1 // pred_check_branch
      %180 = sbr.rel (0) target = $region81
    $region80: #{vit_forward.1} parent=1 // pred_region
      %182 = vsyncadd [#allocation17], 0
      %s184 = sshll.u32 %s19, 4
      %s185 = int_to_ptr.hbm [resolvable:$true] %s184
      %s186 = sshll.u32 [#allocation18], 4
      %s187 = int_to_ptr.vmem [resolvable:$true] %s186
      %189 = dma.hbm_to_vmem [thread:$0]  %s185, 16, %s187, [#allocation17]
    $region81: #{vit_forward.1} parent=1 // pred_fallthru
      _
    // Predicated region
    $region82: #{vit_forward.1} parent=1 // pred_check
      _
    $region83: #{vit_forward.1} parent=1 // pred_check_branch
      %191 = sbr.rel (0) target = $region85
    $region84: #{vit_forward.1} parent=1 // pred_region
      %193 = dma.done [#allocation3], 2048
    $region85: #{vit_forward.1} parent=1 // pred_fallthru
      _
    // Predicated region
    $region86: #{vit_forward.1} parent=1 // pred_check
      _
    $region87: #{vit_forward.1} parent=1 // pred_check_branch
      %195 = sbr.rel (0) target = $region89
    $region88: #{vit_forward.1} parent=1 // pred_region
      %197 = dma.done [#allocation5], 32
    $region89: #{vit_forward.1} parent=1 // pred_fallthru
      _
    // Predicated region
    $region90: #{vit_forward.1} parent=1 // pred_check
      _
    $region91: #{vit_forward.1} parent=1 // pred_check_branch
      %199 = sbr.rel (0) target = $region93
    $region92: #{vit_forward.1} parent=1 // pred_region
      %201 = dma.done [#allocation5], 32
    $region93: #{vit_forward.1} parent=1 // pred_fallthru
      _
    // Predicated region
    $region94: #{vit_forward.1} parent=1 // pred_check
      _
    $region95: #{vit_forward.1} parent=1 // pred_check_branch
      %203 = sbr.rel (0) target = $region97
    $region96: #{vit_forward.1} parent=1 // pred_region
      %205 = dma.done [#allocation8], 96
    $region97: #{vit_forward.1} parent=1 // pred_fallthru
      _
    // Predicated region
    $region98: #{vit_forward.1} parent=1 // pred_check
      _
    $region99: #{vit_forward.1} parent=1 // pred_check_branch
      %207 = sbr.rel (0) target = $region101
    $region100: #{vit_forward.1} parent=1 // pred_region
      %209 = dma.done [#allocation8], 2048
    $region101: #{vit_forward.1} parent=1 // pred_fallthru
      _
    // Predicated region
    $region102: #{vit_forward.1} parent=1 // pred_check
      _
    $region103: #{vit_forward.1} parent=1 // pred_check_branch
      %211 = sbr.rel (0) target = $region105
    $region104: #{vit_forward.1} parent=1 // pred_region
      %213 = dma.done [#allocation11], 32
    $region105: #{vit_forward.1} parent=1 // pred_fallthru
      _
    // Predicated region
    $region106: #{vit_forward.1} parent=1 // pred_check
      _
    $region107: #{vit_forward.1} parent=1 // pred_check_branch
      %215 = sbr.rel (0) target = $region109
    $region108: #{vit_forward.1} parent=1 // pred_region
      %217 = dma.done [#allocation11], 32
    $region109: #{vit_forward.1} parent=1 // pred_fallthru
      _
    // Predicated region
    $region110: #{vit_forward.1} parent=1 // pred_check
      _
    $region111: #{vit_forward.1} parent=1 // pred_check_branch
      %219 = sbr.rel (0) target = $region113
    $region112: #{vit_forward.1} parent=1 // pred_region
      %221 = dma.done [#allocation14], 32
    $region113: #{vit_forward.1} parent=1 // pred_fallthru
      _
    // Predicated region
    $region114: #{vit_forward.1} parent=1 // pred_check
      _
    $region115: #{vit_forward.1} parent=1 // pred_check_branch
      %223 = sbr.rel (0) target = $region117
    $region116: #{vit_forward.1} parent=1 // pred_region
      %225 = dma.done [#allocation14], 64
    $region117: #{vit_forward.1} parent=1 // pred_fallthru
      _
    // Predicated region
    $region118: #{vit_forward.1} parent=1 // pred_check
      _
    $region119: #{vit_forward.1} parent=1 // pred_check_branch
      %227 = sbr.rel (0) target = $region121
    $region120: #{vit_forward.1} parent=1 // pred_region
      %229 = dma.done [#allocation17], 32
    $region121: #{vit_forward.1} parent=1 // pred_fallthru
      _
    // Predicated region
    $region122: #{vit_forward.1} parent=1 // pred_check
      _
    $region123: #{vit_forward.1} parent=1 // pred_check_branch
      %231 = sbr.rel (0) target = $region125
    $region124: #{vit_forward.1} parent=1 // pred_region
      %233 = dma.done [#allocation17], 16
    $region125: #{vit_forward.1} parent=1 // pred_fallthru
      _
    %v235 = vld [vmem:[%s0] sm:$0xff]
    %v236 = vld [vmem:[%s0 + $0x8] sm:$0xff]
    %v237 = vld [vmem:[%s0 + $0x10] sm:$0xff]
    %v238 = vld [vmem:[%s0 + $0x18] sm:$0xff]
    %v239 = vld [vmem:[%s0 + $0x20] sm:$0xff]
    %v240 = vld [vmem:[%s0 + $0x28] sm:$0xff]
    %v241 = vld [vmem:[%s0 + $0x30] sm:$0xff]
    %v242 = vld [vmem:[%s0 + $0x38] sm:$0xff]
    %v243 = vld [vmem:[#allocation2] sm:$0xf]
    %v244 = vld [vmem:[#allocation2 + $0x4] sm:$0xf]
    %v245 = vld [vmem:[#allocation2 + $0x8] sm:$0xf]
    %v246 = vld [vmem:[#allocation2 + $0xc] sm:$0xf]
    %v247 = vld [vmem:[#allocation2 + $0x10] sm:$0xf]
    %v248 = vld [vmem:[#allocation2 + $0x14] sm:$0xf]
    %v249 = vld [vmem:[#allocation2 + $0x18] sm:$0xf]
    %v250 = vld [vmem:[#allocation2 + $0x1c] sm:$0xf]
    %v251 = vld [vmem:[#allocation2 + $0x20] sm:$0xf]
    %v252 = vld [vmem:[#allocation2 + $0x24] sm:$0xf]
    %v253 = vld [vmem:[#allocation2 + $0x28] sm:$0xf]
    %v254 = vld [vmem:[#allocation2 + $0x2c] sm:$0xf]
    %v255 = vld [vmem:[#allocation2 + $0x30] sm:$0xf]
    %v256 = vld [vmem:[#allocation2 + $0x34] sm:$0xf]
    %v257 = vld [vmem:[#allocation2 + $0x38] sm:$0xf]
    %v258 = vld [vmem:[#allocation2 + $0x3c] sm:$0xf]
    %v259 = vld [vmem:[#allocation2 + $0x40] sm:$0xf]
    %v260 = vld [vmem:[#allocation2 + $0x44] sm:$0xf]
    %v261 = vld [vmem:[#allocation2 + $0x48] sm:$0xf]
    %v262 = vld [vmem:[#allocation2 + $0x4c] sm:$0xf]
    %v263 = vld [vmem:[#allocation2 + $0x50] sm:$0xf]
    %v264 = vld [vmem:[#allocation2 + $0x54] sm:$0xf]
    %v265 = vld [vmem:[#allocation2 + $0x58] sm:$0xf]
    %v266 = vld [vmem:[#allocation2 + $0x5c] sm:$0xf]
    %v267 = vld [vmem:[#allocation2 + $0x60] sm:$0xf]
    %v268 = vld [vmem:[#allocation2 + $0x64] sm:$0xf]
    %v269 = vld [vmem:[#allocation2 + $0x68] sm:$0xf]
    %v270 = vld [vmem:[#allocation2 + $0x6c] sm:$0xf]
    %v271 = vld [vmem:[#allocation2 + $0x70] sm:$0xf]
    %v272 = vld [vmem:[#allocation2 + $0x74] sm:$0xf]
    %v273 = vld [vmem:[#allocation2 + $0x78] sm:$0xf]
    %v274 = vld [vmem:[#allocation2 + $0x7c] sm:$0xf]
    %283 = vst [vmem:[#allocation1] ss:$2 sm:$0xff] %v235
    %s284 = scalar_lea.vmem [#allocation1], 1
    %285 = vst [vmem:[%s284] ss:$2 sm:$0xff] %v236
    %s286 = scalar_lea.vmem [#allocation1], 16
    %287 = vst [vmem:[%s286] ss:$2 sm:$0xff] %v237
    %s288 = scalar_lea.vmem [#allocation1], 17
    %289 = vst [vmem:[%s288] ss:$2 sm:$0xff] %v238
    %s290 = scalar_lea.vmem [#allocation1], 32
    %291 = vst [vmem:[%s290] ss:$2 sm:$0xff] %v239
    %s292 = scalar_lea.vmem [#allocation1], 33
    %293 = vst [vmem:[%s292] ss:$2 sm:$0xff] %v240
    %s294 = scalar_lea.vmem [#allocation1], 48
    %295 = vst [vmem:[%s294] ss:$2 sm:$0xff] %v241
    %s296 = scalar_lea.vmem [#allocation1], 49
    %297 = vst [vmem:[%s296] ss:$2 sm:$0xff] %v242
    %v298 = vld.sshfl [vmem:[#allocation1] sm:$0xff pattern:$0x75316420]
    %v299 = vld.sshfl [vmem:[#allocation1 + $0x8] sm:$0xff pattern:$0x75316420]
    %v300 = vld.sshfl [vmem:[#allocation1 + $0x10] sm:$0xff pattern:$0x75316420]
    %v301 = vld.sshfl [vmem:[#allocation1 + $0x18] sm:$0xff pattern:$0x75316420]
    %v302 = vld.sshfl [vmem:[#allocation1 + $0x20] sm:$0xff pattern:$0x75316420]
    %v303 = vld.sshfl [vmem:[#allocation1 + $0x28] sm:$0xff pattern:$0x75316420]
    %v304 = vld.sshfl [vmem:[#allocation1 + $0x30] sm:$0xff pattern:$0x75316420]
    %v305 = vld.sshfl [vmem:[#allocation1 + $0x38] sm:$0xff pattern:$0x75316420]
    %v314 = vpack.c.bf16 %v300, %v298
    %v315 = vpack.c.bf16 %v301, %v299
    %v316 = vpack.c.bf16 %v304, %v302
    %v317 = vpack.c.bf16 %v305, %v303
    %v318 = vld [vmem:[%s2] sm:$0x1]
    %v320 = vperm.slane %v318, 0
    %v354 = vunpack.c.l.b16 %v243
    %v355 = vunpack.c.l.b16 %v244
    %v356 = vunpack.c.l.b16 %v245
    %v357 = vunpack.c.l.b16 %v246
    %v358 = vunpack.c.l.b16 %v247
    %v359 = vunpack.c.l.b16 %v248
    %v360 = vunpack.c.l.b16 %v249
    %v361 = vunpack.c.l.b16 %v250
    %v362 = vunpack.c.l.b16 %v251
    %v363 = vunpack.c.l.b16 %v252
    %v364 = vunpack.c.l.b16 %v253
    %v365 = vunpack.c.l.b16 %v254
    %v366 = vunpack.c.l.b16 %v255
    %v367 = vunpack.c.l.b16 %v256
    %v368 = vunpack.c.l.b16 %v257
    %v369 = vunpack.c.l.b16 %v258
    %v370 = vunpack.c.l.b16 %v259
    %v371 = vunpack.c.l.b16 %v260
    %v372 = vunpack.c.l.b16 %v261
    %v373 = vunpack.c.l.b16 %v262
    %v374 = vunpack.c.l.b16 %v263
    %v375 = vunpack.c.l.b16 %v264
    %v376 = vunpack.c.l.b16 %v265
    %v377 = vunpack.c.l.b16 %v266
    %v378 = vunpack.c.l.b16 %v267
    %v379 = vunpack.c.l.b16 %v268
    %v380 = vunpack.c.l.b16 %v269
    %v381 = vunpack.c.l.b16 %v270
    %v382 = vunpack.c.l.b16 %v271
    %v383 = vunpack.c.l.b16 %v272
    %v384 = vunpack.c.l.b16 %v273
    %v385 = vunpack.c.l.b16 %v274
    %v386 = vpack.c.b16 %v355, %v354
    %v387 = vpack.c.b16 %v357, %v356
    %v388 = vpack.c.b16 %v359, %v358
    %v389 = vpack.c.b16 %v361, %v360
    %v390 = vpack.c.b16 %v363, %v362
    %v391 = vpack.c.b16 %v365, %v364
    %v392 = vpack.c.b16 %v367, %v366
    %v393 = vpack.c.b16 %v369, %v368
    %v394 = vpack.c.b16 %v371, %v370
    %v395 = vpack.c.b16 %v373, %v372
    %v396 = vpack.c.b16 %v375, %v374
    %v397 = vpack.c.b16 %v377, %v376
    %v398 = vpack.c.b16 %v379, %v378
    %v399 = vpack.c.b16 %v381, %v380
    %v400 = vpack.c.b16 %v383, %v382
    %v401 = vpack.c.b16 %v385, %v384
    %418 = vmatpush.bf16.msra.mxu0 %v393
    %419 = vmatpush.bf16.msra.mxu0 %v392
    %420 = vmatpush.bf16.msra.mxu0 %v391
    %421 = vmatpush.bf16.msra.mxu0 %v390
    %422 = vmatpush.bf16.msra.mxu0 %v389
    %423 = vmatpush.bf16.msra.mxu0 %v388
    %424 = vmatpush.bf16.msra.mxu0 %v387
    %425 = vmatpush.bf16.msra.mxu0 %v386
    %426 = vmatmul.bf16.gmra.mxu0 %v314
    %v427 = vpop.f32.mrf.mxu0
    %v428 = vadd.f32 %v320, %v427
    %v429 = vpop.f32.mrf.mxu0
    %v430 = vadd.f32 %v320, %v429
    %431 = vmatmul.bf16.gmra.mxu0 %v316
    %v432 = vpop.f32.mrf.mxu0
    %v433 = vadd.f32 %v320, %v432
    %v434 = vpop.f32.mrf.mxu0
    %v435 = vadd.f32 %v320, %v434
    %436 = vdwg.mxu0
    %437 = vmatpush.bf16.msra.mxu0 %v401
    %438 = vmatpush.bf16.msra.mxu0 %v400
    %439 = vmatpush.bf16.msra.mxu0 %v399
    %440 = vmatpush.bf16.msra.mxu0 %v398
    %441 = vmatpush.bf16.msra.mxu0 %v397
    %442 = vmatpush.bf16.msra.mxu0 %v396
    %443 = vmatpush.bf16.msra.mxu0 %v395
    %444 = vmatpush.bf16.msra.mxu0 %v394
    %445 = vmatmul.bf16.gmra.mxu0 %v315
    %v446 = vpop.f32.mrf.mxu0
    %v447 = vadd.f32 %v428, %v446
    %v448 = vpop.f32.mrf.mxu0
    %v449 = vadd.f32 %v430, %v448
    %450 = vmatmul.bf16.gmra.mxu0 %v317
    %v451 = vpop.f32.mrf.mxu0
    %v452 = vadd.f32 %v433, %v451
    %v453 = vpop.f32.mrf.mxu0
    %v454 = vadd.f32 %v435, %v453
    %455 = vdwg.mxu0
    %v460 = vrot.slane %v447, 4
    %v461 = vrot.slane %v449, 4
    %v462 = vrot.slane %v452, 4
    %v463 = vrot.slane %v454, 4
    %464 = vst [vmem:[#allocation1] ss:$2 sm:$0xff] %v447
    %v465 = vld.sshfl [vmem:[#allocation1] sm:$0xff pattern:$0x75316420]
    %s466 = scalar_lea.vmem [#allocation1], 16
    %467 = vst [vmem:[%s466] ss:$2 sm:$0xff] %v460
    %v468 = vld.sshfl [vmem:[#allocation1 + $0x10] sm:$0xff pattern:$0x75316420]
    %s469 = scalar_lea.vmem [#allocation1], 32
    %470 = vst [vmem:[%s469] ss:$2 sm:$0xff] %v449
    %v471 = vld.sshfl [vmem:[#allocation1 + $0x20] sm:$0xff pattern:$0x75316420]
    %s472 = scalar_lea.vmem [#allocation1], 48
    %473 = vst [vmem:[%s472] ss:$2 sm:$0xff] %v461
    %v474 = vld.sshfl [vmem:[#allocation1 + $0x30] sm:$0xff pattern:$0x75316420]
    %475 = vst [vmem:[#allocation1] ss:$2 sm:$0xff] %v452
    %v476 = vld.sshfl [vmem:[#allocation1] sm:$0xff pattern:$0x75316420]
    %477 = vst [vmem:[%s466] ss:$2 sm:$0xff] %v462
    %v478 = vld.sshfl [vmem:[#allocation1 + $0x10] sm:$0xff pattern:$0x75316420]
    %479 = vst [vmem:[%s469] ss:$2 sm:$0xff] %v454
    %v480 = vld.sshfl [vmem:[#allocation1 + $0x20] sm:$0xff pattern:$0x75316420]
    %481 = vst [vmem:[%s472] ss:$2 sm:$0xff] %v463
    %v482 = vld.sshfl [vmem:[#allocation1 + $0x30] sm:$0xff pattern:$0x75316420]
    %v483 = vrot.slane %v465, 7
    %v484 = vrot.slane %v468, 7
    %v485 = vrot.slane %v471, 7
    %v486 = vrot.slane %v474, 7
    %v487 = vrot.slane %v476, 7
    %v488 = vrot.slane %v478, 7
    %v489 = vrot.slane %v480, 7
    %v490 = vrot.slane %v482, 7
    %vm499 = vcmask 1040384
    %v500 = vsel %vm499, 0.0, %v483
    %v501 = vsel %vm499, 0.0, %v484
    %v502 = vsel %vm499, 0.0, %v485
    %v503 = vsel %vm499, 0.0, %v486
    %v504 = vsel %vm499, 0.0, %v487
    %v505 = vsel %vm499, 0.0, %v488
    %v506 = vsel %vm499, 0.0, %v489
    %v507 = vsel %vm499, 0.0, %v490
    %vm508 = vcmask 1044480
    %v509 = vsel %vm508, %v500, 0.0
    %v510 = vsel %vm508, %v501, 0.0
    %v511 = vsel %vm508, %v502, 0.0
    %v512 = vsel %vm508, %v503, 0.0
    %v513 = vsel %vm508, %v504, 0.0
    %v514 = vsel %vm508, %v505, 0.0
    %v515 = vsel %vm508, %v506, 0.0
    %v516 = vsel %vm508, %v507, 0.0
    %v517 = vld [vmem:[%s3] sm:$0xff]
    %v518 = vadd.f32 %v509, %v517
    %v519 = vadd.f32 %v510, %v517
    %v520 = vadd.f32 %v511, %v517
    %v521 = vadd.f32 %v512, %v517
    %v522 = vadd.f32 %v513, %v517
    %v523 = vadd.f32 %v514, %v517
    %v524 = vadd.f32 %v515, %v517
    %v525 = vadd.f32 %v516, %v517
    %v526 = vlaneseq
    %v527 = vand.u32 %v526, 127
    %vm528 = vcmp.lt.s32.totalorder %v527, 5
    %v529 = vsel %vm528, 0.0, -1e+30
    %v530 = vld [vmem:[#allocation4] sm:$0x1]
    %v531 = vld [vmem:[#allocation6] sm:$0x1]
    %532 = vadd.xlane.f32.xlu0 %v518
    %v533 = vpop.xlane.xlu0 %532
    %534 = vadd.xlane.f32.xlu0 %v519
    %v535 = vpop.xlane.xlu0 %534
    %536 = vadd.xlane.f32.xlu0 %v520
    %v537 = vpop.xlane.xlu0 %536
    %538 = vadd.xlane.f32.xlu0 %v521
    %v539 = vpop.xlane.xlu0 %538
    %540 = vadd.xlane.f32.xlu0 %v522
    %v541 = vpop.xlane.xlu0 %540
    %542 = vadd.xlane.f32.xlu0 %v523
    %v543 = vpop.xlane.xlu0 %542
    %544 = vadd.xlane.f32.xlu0 %v524
    %v545 = vpop.xlane.xlu0 %544
    %546 = vadd.xlane.f32.xlu0 %v525
    %v547 = vpop.xlane.xlu0 %546
    %v548 = vrcp.pop 128.0
    %v549 = vmul.f32 128.0, %v548
    %v550 = vsub.f32 1.0, %v549
    %v551 = vmul.f32 %v548, %v550
    %v552 = vadd.f32 %v548, %v551
    %vm553 = vweird.f32 %v548
    %v554 = vsel %vm553, %v548, %v552
    %v555 = vmul.f32 %v533, %v554
    %v556 = vmul.f32 %v535, %v554
    %v557 = vmul.f32 %v537, %v554
    %v558 = vmul.f32 %v539, %v554
    %v559 = vmul.f32 %v541, %v554
    %v560 = vmul.f32 %v543, %v554
    %v561 = vmul.f32 %v545, %v554
    %v562 = vmul.f32 %v547, %v554
    %v563 = vsub.f32 %v518, %v555
    %v564 = vsub.f32 %v519, %v556
    %v565 = vsub.f32 %v520, %v557
    %v566 = vsub.f32 %v521, %v558
    %v567 = vsub.f32 %v522, %v559
    %v568 = vsub.f32 %v523, %v560
    %v569 = vsub.f32 %v524, %v561
    %v570 = vsub.f32 %v525, %v562
    %v571 = vmul.f32 %v563, %v563
    %v572 = vmul.f32 %v564, %v564
    %v573 = vmul.f32 %v565, %v565
    %v574 = vmul.f32 %v566, %v566
    %v575 = vmul.f32 %v567, %v567
    %v576 = vmul.f32 %v568, %v568
    %v577 = vmul.f32 %v569, %v569
    %v578 = vmul.f32 %v570, %v570
    %579 = vadd.xlane.f32.xlu0 %v571
    %v580 = vpop.xlane.xlu0 %579
    %581 = vadd.xlane.f32.xlu0 %v572
    %v582 = vpop.xlane.xlu0 %581
    %583 = vadd.xlane.f32.xlu0 %v573
    %v584 = vpop.xlane.xlu0 %583
    %585 = vadd.xlane.f32.xlu0 %v574
    %v586 = vpop.xlane.xlu0 %585
    %587 = vadd.xlane.f32.xlu0 %v575
    %v588 = vpop.xlane.xlu0 %587
    %589 = vadd.xlane.f32.xlu0 %v576
    %v590 = vpop.xlane.xlu0 %589
    %591 = vadd.xlane.f32.xlu0 %v577
    %v592 = vpop.xlane.xlu0 %591
    %593 = vadd.xlane.f32.xlu0 %v578
    %v594 = vpop.xlane.xlu0 %593
    %v595 = vmul.f32 %v580, %v554
    %v596 = vmul.f32 %v582, %v554
    %v597 = vmul.f32 %v584, %v554
    %v598 = vmul.f32 %v586, %v554
    %v599 = vmul.f32 %v588, %v554
    %v600 = vmul.f32 %v590, %v554
    %v601 = vmul.f32 %v592, %v554
    %v602 = vmul.f32 %v594, %v554
    %v603 = vadd.f32 %v595, 1e-05
    %v604 = vadd.f32 %v596, 1e-05
    %v605 = vadd.f32 %v597, 1e-05
    %v606 = vadd.f32 %v598, 1e-05
    %v607 = vadd.f32 %v599, 1e-05
    %v608 = vadd.f32 %v600, 1e-05
    %v609 = vadd.f32 %v601, 1e-05
    %v610 = vadd.f32 %v602, 1e-05
    %v611 = vrsqrt.pop %v603
    %v612 = vmul.f32 %v611, %v603
    %v613 = vmul.f32 %v612, %v611
    %v614 = vmul.f32 0.5, %v613
    %v615 = vsub.f32 1.5, %v614
    %v616 = vmul.f32 %v611, %v615
    %vm617 = vweird.f32 %v603
    %vm618 = vweird.f32 %v611
    %vm619 = vmor %vm617, %vm618
    %v620 = vsel %vm619, %v611, %v616
    %v621 = vrsqrt.pop %v604
    %v622 = vmul.f32 %v621, %v604
    %v623 = vmul.f32 %v622, %v621
    %v624 = vmul.f32 0.5, %v623
    %v625 = vsub.f32 1.5, %v624
    %v626 = vmul.f32 %v621, %v625
    %vm627 = vweird.f32 %v604
    %vm628 = vweird.f32 %v621
    %vm629 = vmor %vm627, %vm628
    %v630 = vsel %vm629, %v621, %v626
    %v631 = vrsqrt.pop %v605
    %v632 = vmul.f32 %v631, %v605
    %v633 = vmul.f32 %v632, %v631
    %v634 = vmul.f32 0.5, %v633
    %v635 = vsub.f32 1.5, %v634
    %v636 = vmul.f32 %v631, %v635
    %vm637 = vweird.f32 %v605
    %vm638 = vweird.f32 %v631
    %vm639 = vmor %vm637, %vm638
    %v640 = vsel %vm639, %v631, %v636
    %v641 = vrsqrt.pop %v606
    %v642 = vmul.f32 %v641, %v606
    %v643 = vmul.f32 %v642, %v641
    %v644 = vmul.f32 0.5, %v643
    %v645 = vsub.f32 1.5, %v644
    %v646 = vmul.f32 %v641, %v645
    %vm647 = vweird.f32 %v606
    %vm648 = vweird.f32 %v641
    %vm649 = vmor %vm647, %vm648
    %v650 = vsel %vm649, %v641, %v646
    %v651 = vrsqrt.pop %v607
    %v652 = vmul.f32 %v651, %v607
    %v653 = vmul.f32 %v652, %v651
    %v654 = vmul.f32 0.5, %v653
    %v655 = vsub.f32 1.5, %v654
    %v656 = vmul.f32 %v651, %v655
    %vm657 = vweird.f32 %v607
    %vm658 = vweird.f32 %v651
    %vm659 = vmor %vm657, %vm658
    %v660 = vsel %vm659, %v651, %v656
    %v661 = vrsqrt.pop %v608
    %v662 = vmul.f32 %v661, %v608
    %v663 = vmul.f32 %v662, %v661
    %v664 = vmul.f32 0.5, %v663
    %v665 = vsub.f32 1.5, %v664
    %v666 = vmul.f32 %v661, %v665
    %vm667 = vweird.f32 %v608
    %vm668 = vweird.f32 %v661
    %vm669 = vmor %vm667, %vm668
    %v670 = vsel %vm669, %v661, %v666
    %v671 = vrsqrt.pop %v609
    %v672 = vmul.f32 %v671, %v609
    %v673 = vmul.f32 %v672, %v671
    %v674 = vmul.f32 0.5, %v673
    %v675 = vsub.f32 1.5, %v674
    %v676 = vmul.f32 %v671, %v675
    %vm677 = vweird.f32 %v609
    %vm678 = vweird.f32 %v671
    %vm679 = vmor %vm677, %vm678
    %v680 = vsel %vm679, %v671, %v676
    %v681 = vrsqrt.pop %v610
    %v682 = vmul.f32 %v681, %v610
    %v683 = vmul.f32 %v682, %v681
    %v684 = vmul.f32 0.5, %v683
    %v685 = vsub.f32 1.5, %v684
    %v686 = vmul.f32 %v681, %v685
    %vm687 = vweird.f32 %v610
    %vm688 = vweird.f32 %v681
    %vm689 = vmor %vm687, %vm688
    %v690 = vsel %vm689, %v681, %v686
    %v691 = vmul.f32 %v563, %v620
    %v692 = vmul.f32 %v564, %v630
    %v693 = vmul.f32 %v565, %v640
    %v694 = vmul.f32 %v566, %v650
    %v695 = vmul.f32 %v567, %v660
    %v696 = vmul.f32 %v568, %v670
    %v697 = vmul.f32 %v569, %v680
    %v698 = vmul.f32 %v570, %v690
    %v700 = vperm.slane %v530, 0
    %v702 = vmul.f32 %v691, %v700
    %v703 = vmul.f32 %v692, %v700
    %v704 = vmul.f32 %v693, %v700
    %v705 = vmul.f32 %v694, %v700
    %v706 = vmul.f32 %v695, %v700
    %v707 = vmul.f32 %v696, %v700
    %v708 = vmul.f32 %v697, %v700
    %v709 = vmul.f32 %v698, %v700
    %v711 = vperm.slane %v531, 0
    %v713 = vadd.f32 %v702, %v711
    %v714 = vadd.f32 %v703, %v711
    %v715 = vadd.f32 %v704, %v711
    %v716 = vadd.f32 %v705, %v711
    %v717 = vadd.f32 %v706, %v711
    %v718 = vadd.f32 %v707, %v711
    %v719 = vadd.f32 %v708, %v711
    %v720 = vadd.f32 %v709, %v711
    %v721 = vld [vmem:[%s6] sm:$0xff]
    %v722 = vld [vmem:[%s6 + $0x8] sm:$0xf]
    %v723 = vld [vmem:[%s6 + $0xc] sm:$0xff]
    %v724 = vld [vmem:[%s6 + $0x14] sm:$0xf]
    %v725 = vld [vmem:[%s6 + $0x18] sm:$0xff]
    %v726 = vld [vmem:[%s6 + $0x20] sm:$0xf]
    %v727 = vld [vmem:[%s6 + $0x24] sm:$0xff]
    %v728 = vld [vmem:[%s6 + $0x2c] sm:$0xf]
    %v729 = vld [vmem:[%s6 + $0x30] sm:$0xff]
    %v730 = vld [vmem:[%s6 + $0x38] sm:$0xf]
    %v731 = vld [vmem:[%s6 + $0x3c] sm:$0xff]
    %v732 = vld [vmem:[%s6 + $0x44] sm:$0xf]
    %v733 = vld [vmem:[%s6 + $0x48] sm:$0xff]
    %v734 = vld [vmem:[%s6 + $0x50] sm:$0xf]
    %v735 = vld [vmem:[%s6 + $0x54] sm:$0xff]
    %v736 = vld [vmem:[%s6 + $0x5c] sm:$0xf]
    %v737 = vld [vmem:[%s6 + $0x60] sm:$0xff]
    %v738 = vld [vmem:[%s6 + $0x68] sm:$0xf]
    %v739 = vld [vmem:[%s6 + $0x6c] sm:$0xff]
    %v740 = vld [vmem:[%s6 + $0x74] sm:$0xf]
    %v741 = vld [vmem:[%s6 + $0x78] sm:$0xff]
    %v742 = vld [vmem:[%s6 + $0x80] sm:$0xf]
    %v743 = vld [vmem:[%s6 + $0x84] sm:$0xff]
    %v744 = vld [vmem:[%s6 + $0x8c] sm:$0xf]
    %v745 = vld [vmem:[%s6 + $0x90] sm:$0xff]
    %v746 = vld [vmem:[%s6 + $0x98] sm:$0xf]
    %v747 = vld [vmem:[%s6 + $0x9c] sm:$0xff]
    %v748 = vld [vmem:[%s6 + $0xa4] sm:$0xf]
    %v749 = vld [vmem:[%s6 + $0xa8] sm:$0xff]
    %v750 = vld [vmem:[%s6 + $0xb0] sm:$0xf]
    %v751 = vld [vmem:[%s6 + $0xb4] sm:$0xff]
    %v752 = vld [vmem:[%s6 + $0xbc] sm:$0xf]
    %v753 = vpack.c.bf16 %v714, %v713
    %v754 = vpack.c.bf16 %v716, %v715
    %v755 = vpack.c.bf16 %v718, %v717
    %v756 = vpack.c.bf16 %v720, %v719
    %v757 = vld [vmem:[#allocation7] sm:$0x7]
    %v759 = vperm.slane %v757, 0
    %v760 = vperm.slane %v757, 1
    %v761 = vperm.slane %v757, 2
    %v797 = vunpack.c.l.b16 %v721
    %v798 = vunpack.c.h.b16 %v721
    %v799 = vunpack.c.l.b16 %v722
    %v800 = vunpack.c.l.b16 %v723
    %v801 = vunpack.c.h.b16 %v723
    %v802 = vunpack.c.l.b16 %v724
    %v803 = vunpack.c.l.b16 %v725
    %v804 = vunpack.c.h.b16 %v725
    %v805 = vunpack.c.l.b16 %v726
    %v806 = vunpack.c.l.b16 %v727
    %v807 = vunpack.c.h.b16 %v727
    %v808 = vunpack.c.l.b16 %v728
    %v809 = vunpack.c.l.b16 %v729
    %v810 = vunpack.c.h.b16 %v729
    %v811 = vunpack.c.l.b16 %v730
    %v812 = vunpack.c.l.b16 %v731
    %v813 = vunpack.c.h.b16 %v731
    %v814 = vunpack.c.l.b16 %v732
    %v815 = vunpack.c.l.b16 %v733
    %v816 = vunpack.c.h.b16 %v733
    %v817 = vunpack.c.l.b16 %v734
    %v818 = vunpack.c.l.b16 %v735
    %v819 = vunpack.c.h.b16 %v735
    %v820 = vunpack.c.l.b16 %v736
    %v821 = vunpack.c.l.b16 %v737
    %v822 = vunpack.c.h.b16 %v737
    %v823 = vunpack.c.l.b16 %v738
    %v824 = vunpack.c.l.b16 %v739
    %v825 = vunpack.c.h.b16 %v739
    %v826 = vunpack.c.l.b16 %v740
    %v827 = vunpack.c.l.b16 %v741
    %v828 = vunpack.c.h.b16 %v741
    %v829 = vunpack.c.l.b16 %v742
    %v830 = vunpack.c.l.b16 %v743
    %v831 = vunpack.c.h.b16 %v743
    %v832 = vunpack.c.l.b16 %v744
    %v833 = vunpack.c.l.b16 %v745
    %v834 = vunpack.c.h.b16 %v745
    %v835 = vunpack.c.l.b16 %v746
    %v836 = vunpack.c.l.b16 %v747
    %v837 = vunpack.c.h.b16 %v747
    %v838 = vunpack.c.l.b16 %v748
    %v839 = vunpack.c.l.b16 %v749
    %v840 = vunpack.c.h.b16 %v749
    %v841 = vunpack.c.l.b16 %v750
    %v842 = vunpack.c.l.b16 %v751
    %v843 = vunpack.c.h.b16 %v751
    %v844 = vunpack.c.l.b16 %v752
    %v845 = vpack.c.b16 %v800, %v797
    %v846 = vpack.c.b16 %v801, %v798
    %v847 = vpack.c.b16 %v802, %v799
    %v848 = vpack.c.b16 %v806, %v803
    %v849 = vpack.c.b16 %v807, %v804
    %v850 = vpack.c.b16 %v808, %v805
    %v851 = vpack.c.b16 %v812, %v809
    %v852 = vpack.c.b16 %v813, %v810
    %v853 = vpack.c.b16 %v814, %v811
    %v854 = vpack.c.b16 %v818, %v815
    %v855 = vpack.c.b16 %v819, %v816
    %v856 = vpack.c.b16 %v820, %v817
    %v857 = vpack.c.b16 %v824, %v821
    %v858 = vpack.c.b16 %v825, %v822
    %v859 = vpack.c.b16 %v826, %v823
    %v860 = vpack.c.b16 %v830, %v827
    %v861 = vpack.c.b16 %v831, %v828
    %v862 = vpack.c.b16 %v832, %v829
    %v863 = vpack.c.b16 %v836, %v833
    %v864 = vpack.c.b16 %v837, %v834
    %v865 = vpack.c.b16 %v838, %v835
    %v866 = vpack.c.b16 %v842, %v839
    %v867 = vpack.c.b16 %v843, %v840
    %v868 = vpack.c.b16 %v844, %v841
    %893 = vmatpush.bf16.msra.mxu0 %v866
    %894 = vmatpush.bf16.msra.mxu0 %v863
    %895 = vmatpush.bf16.msra.mxu0 %v860
    %896 = vmatpush.bf16.msra.mxu0 %v857
    %897 = vmatpush.bf16.msra.mxu0 %v854
    %898 = vmatpush.bf16.msra.mxu0 %v851
    %899 = vmatpush.bf16.msra.mxu0 %v848
    %900 = vmatpush.bf16.msra.mxu0 %v845
    %901 = vmatmul.bf16.gmra.mxu0 %v753
    %v902 = vpop.f32.mrf.mxu0
    %v903 = vadd.f32 %v759, %v902
    %v904 = vpop.f32.mrf.mxu0
    %v905 = vadd.f32 %v759, %v904
    %906 = vmatmul.bf16.gmra.mxu0 %v754
    %v907 = vpop.f32.mrf.mxu0
    %v908 = vadd.f32 %v759, %v907
    %v909 = vpop.f32.mrf.mxu0
    %v910 = vadd.f32 %v759, %v909
    %911 = vmatmul.bf16.gmra.mxu0 %v755
    %v912 = vpop.f32.mrf.mxu0
    %v913 = vadd.f32 %v759, %v912
    %v914 = vpop.f32.mrf.mxu0
    %v915 = vadd.f32 %v759, %v914
    %916 = vmatmul.bf16.gmra.mxu0 %v756
    %v917 = vpop.f32.mrf.mxu0
    %v918 = vadd.f32 %v759, %v917
    %v919 = vpop.f32.mrf.mxu0
    %v920 = vadd.f32 %v759, %v919
    %921 = vdwg.mxu0
    %922 = vmatpush.bf16.msra.mxu0 %v867
    %923 = vmatpush.bf16.msra.mxu0 %v864
    %924 = vmatpush.bf16.msra.mxu0 %v861
    %925 = vmatpush.bf16.msra.mxu0 %v858
    %926 = vmatpush.bf16.msra.mxu0 %v855
    %927 = vmatpush.bf16.msra.mxu0 %v852
    %928 = vmatpush.bf16.msra.mxu0 %v849
    %929 = vmatpush.bf16.msra.mxu0 %v846
    %930 = vmatmul.bf16.gmra.mxu0 %v753
    %v931 = vpop.f32.mrf.mxu0
    %v932 = vadd.f32 %v760, %v931
    %v933 = vpop.f32.mrf.mxu0
    %v934 = vadd.f32 %v760, %v933
    %935 = vmatmul.bf16.gmra.mxu0 %v754
    %v936 = vpop.f32.mrf.mxu0
    %v937 = vadd.f32 %v760, %v936
    %v938 = vpop.f32.mrf.mxu0
    %v939 = vadd.f32 %v760, %v938
    %940 = vmatmul.bf16.gmra.mxu0 %v755
    %v941 = vpop.f32.mrf.mxu0
    %v942 = vadd.f32 %v760, %v941
    %v943 = vpop.f32.mrf.mxu0
    %v944 = vadd.f32 %v760, %v943
    %945 = vmatmul.bf16.gmra.mxu0 %v756
    %v946 = vpop.f32.mrf.mxu0
    %v947 = vadd.f32 %v760, %v946
    %v948 = vpop.f32.mrf.mxu0
    %v949 = vadd.f32 %v760, %v948
    %950 = vdwg.mxu0
    %951 = vmatpush.bf16.msra.mxu0 %v868
    %952 = vmatpush.bf16.msra.mxu0 %v865
    %953 = vmatpush.bf16.msra.mxu0 %v862
    %954 = vmatpush.bf16.msra.mxu0 %v859
    %955 = vmatpush.bf16.msra.mxu0 %v856
    %956 = vmatpush.bf16.msra.mxu0 %v853
    %957 = vmatpush.bf16.msra.mxu0 %v850
    %958 = vmatpush.bf16.msra.mxu0 %v847
    %959 = vmatmul.bf16.gmra.mxu0 %v753
    %v960 = vpop.f32.mrf.mxu0
    %v961 = vadd.f32 %v761, %v960
    %v962 = vpop.f32.mrf.mxu0
    %v963 = vadd.f32 %v761, %v962
    %964 = vmatmul.bf16.gmra.mxu0 %v754
    %v965 = vpop.f32.mrf.mxu0
    %v966 = vadd.f32 %v761, %v965
    %v967 = vpop.f32.mrf.mxu0
    %v968 = vadd.f32 %v761, %v967
    %969 = vmatmul.bf16.gmra.mxu0 %v755
    %v970 = vpop.f32.mrf.mxu0
    %v971 = vadd.f32 %v761, %v970
    %v972 = vpop.f32.mrf.mxu0
    %v973 = vadd.f32 %v761, %v972
    %974 = vmatmul.bf16.gmra.mxu0 %v756
    %v975 = vpop.f32.mrf.mxu0
    %v976 = vadd.f32 %v761, %v975
    %v977 = vpop.f32.mrf.mxu0
    %v978 = vadd.f32 %v761, %v977
    %979 = vdwg.mxu0
    %v980 = vmul.f32 %v903, 0.17677669
    %v981 = vmul.f32 %v905, 0.17677669
    %v982 = vmul.f32 %v908, 0.17677669
    %v983 = vmul.f32 %v910, 0.17677669
    %v984 = vmul.f32 %v913, 0.17677669
    %v985 = vmul.f32 %v915, 0.17677669
    %v986 = vmul.f32 %v918, 0.17677669
    %v987 = vmul.f32 %v920, 0.17677669
    %v988 = vpack.c.bf16 %v980, %v980
    %v989 = vpack.c.bf16 %v981, %v981
    %v990 = vpack.c.bf16 %v982, %v982
    %v991 = vpack.c.bf16 %v983, %v983
    %v992 = vpack.c.bf16 %v984, %v984
    %v993 = vpack.c.bf16 %v985, %v985
    %v994 = vpack.c.bf16 %v986, %v986
    %v995 = vpack.c.bf16 %v987, %v987
    %v996 = vpack.c.bf16 %v932, %v932
    %v997 = vpack.c.bf16 %v934, %v934
    %v998 = vpack.c.bf16 %v937, %v937
    %v999 = vpack.c.bf16 %v939, %v939
    %v1000 = vpack.c.bf16 %v942, %v942
    %v1001 = vpack.c.bf16 %v944, %v944
    %v1002 = vpack.c.bf16 %v947, %v947
    %v1003 = vpack.c.bf16 %v949, %v949
    %v1004 = vpack.c.bf16 %v961, %v961
    %v1005 = vpack.c.bf16 %v963, %v963
    %v1006 = vpack.c.bf16 %v966, %v966
    %v1007 = vpack.c.bf16 %v968, %v968
    %v1008 = vpack.c.bf16 %v971, %v971
    %v1009 = vpack.c.bf16 %v973, %v973
    %v1010 = vpack.c.bf16 %v976, %v976
    %v1011 = vpack.c.bf16 %v978, %v978
    %vm1012 = vcmask 261120
    %v1014 = vsel %vm1012, %v988, 0
    %v1017 = vsel %vm1012, %v996, 0
    %1019 = vmatpush.bf16.xpose.msra.mxu0 0
    %1020 = vmatpush.bf16.xpose.msra.mxu0 0
    %1021 = vmatpush.bf16.xpose.msra.mxu0 0
    %1022 = vmatpush.bf16.xpose.msra.mxu0 0
    %1023 = vmatpush.bf16.xpose.msra.mxu0 0
    %1024 = vmatpush.bf16.xpose.msra.mxu0 0
    %1025 = vmatpush.bf16.xpose.msra.mxu0 0
    %1026 = vmatpush.bf16.xpose.msra.mxu0 %v1017
    %1027 = vmatmul.bf16.gmra.mxu0 %v1014
    %v1028 = vpop.f32.mrf.mxu0
    %v1029 = vadd.f32 %v529, %v1028
    %v1030 = vpop.f32.mrf.mxu0
    %1031 = vdwg.mxu0
    %v1033 = vsel %vm1012, %v989, 0
    %v1036 = vsel %vm1012, %v997, 0
    %1038 = vmatpush.bf16.xpose.msra.mxu0 0
    %1039 = vmatpush.bf16.xpose.msra.mxu0 0
    %1040 = vmatpush.bf16.xpose.msra.mxu0 0
    %1041 = vmatpush.bf16.xpose.msra.mxu0 0
    %1042 = vmatpush.bf16.xpose.msra.mxu0 0
    %1043 = vmatpush.bf16.xpose.msra.mxu0 0
    %1044 = vmatpush.bf16.xpose.msra.mxu0 0
    %1045 = vmatpush.bf16.xpose.msra.mxu0 %v1036
    %1046 = vmatmul.bf16.gmra.mxu0 %v1033
    %v1047 = vpop.f32.mrf.mxu0
    %v1048 = vadd.f32 %v529, %v1047
    %v1049 = vpop.f32.mrf.mxu0
    %1050 = vdwg.mxu0
    %v1052 = vsel %vm1012, %v990, 0
    %v1055 = vsel %vm1012, %v998, 0
    %1057 = vmatpush.bf16.xpose.msra.mxu0 0
    %1058 = vmatpush.bf16.xpose.msra.mxu0 0
    %1059 = vmatpush.bf16.xpose.msra.mxu0 0
    %1060 = vmatpush.bf16.xpose.msra.mxu0 0
    %1061 = vmatpush.bf16.xpose.msra.mxu0 0
    %1062 = vmatpush.bf16.xpose.msra.mxu0 0
    %1063 = vmatpush.bf16.xpose.msra.mxu0 0
    %1064 = vmatpush.bf16.xpose.msra.mxu0 %v1055
    %1065 = vmatmul.bf16.gmra.mxu0 %v1052
    %v1066 = vpop.f32.mrf.mxu0
    %v1067 = vadd.f32 %v529, %v1066
    %v1068 = vpop.f32.mrf.mxu0
    %1069 = vdwg.mxu0
    %v1071 = vsel %vm1012, %v991, 0
    %v1074 = vsel %vm1012, %v999, 0
    %1076 = vmatpush.bf16.xpose.msra.mxu0 0
    %1077 = vmatpush.bf16.xpose.msra.mxu0 0
    %1078 = vmatpush.bf16.xpose.msra.mxu0 0
    %1079 = vmatpush.bf16.xpose.msra.mxu0 0
    %1080 = vmatpush.bf16.xpose.msra.mxu0 0
    %1081 = vmatpush.bf16.xpose.msra.mxu0 0
    %1082 = vmatpush.bf16.xpose.msra.mxu0 0
    %1083 = vmatpush.bf16.xpose.msra.mxu0 %v1074
    %1084 = vmatmul.bf16.gmra.mxu0 %v1071
    %v1085 = vpop.f32.mrf.mxu0
    %v1086 = vadd.f32 %v529, %v1085
    %v1087 = vpop.f32.mrf.mxu0
    %1088 = vdwg.mxu0
    %v1090 = vsel %vm1012, %v992, 0
    %v1093 = vsel %vm1012, %v1000, 0
    %1095 = vmatpush.bf16.xpose.msra.mxu0 0
    %1096 = vmatpush.bf16.xpose.msra.mxu0 0
    %1097 = vmatpush.bf16.xpose.msra.mxu0 0
    %1098 = vmatpush.bf16.xpose.msra.mxu0 0
    %1099 = vmatpush.bf16.xpose.msra.mxu0 0
    %1100 = vmatpush.bf16.xpose.msra.mxu0 0
    %1101 = vmatpush.bf16.xpose.msra.mxu0 0
    %1102 = vmatpush.bf16.xpose.msra.mxu0 %v1093
    %1103 = vmatmul.bf16.gmra.mxu0 %v1090
    %v1104 = vpop.f32.mrf.mxu0
    %v1105 = vadd.f32 %v529, %v1104
    %v1106 = vpop.f32.mrf.mxu0
    %1107 = vdwg.mxu0
    %v1109 = vsel %vm1012, %v993, 0
    %v1112 = vsel %vm1012, %v1001, 0
    %1114 = vmatpush.bf16.xpose.msra.mxu0 0
    %1115 = vmatpush.bf16.xpose.msra.mxu0 0
    %1116 = vmatpush.bf16.xpose.msra.mxu0 0
    %1117 = vmatpush.bf16.xpose.msra.mxu0 0
    %1118 = vmatpush.bf16.xpose.msra.mxu0 0
    %1119 = vmatpush.bf16.xpose.msra.mxu0 0
    %1120 = vmatpush.bf16.xpose.msra.mxu0 0
    %1121 = vmatpush.bf16.xpose.msra.mxu0 %v1112
    %1122 = vmatmul.bf16.gmra.mxu0 %v1109
    %v1123 = vpop.f32.mrf.mxu0
    %v1124 = vadd.f32 %v529, %v1123
    %v1125 = vpop.f32.mrf.mxu0
    %1126 = vdwg.mxu0
    %v1128 = vsel %vm1012, %v994, 0
    %v1131 = vsel %vm1012, %v1002, 0
    %1133 = vmatpush.bf16.xpose.msra.mxu0 0
    %1134 = vmatpush.bf16.xpose.msra.mxu0 0
    %1135 = vmatpush.bf16.xpose.msra.mxu0 0
    %1136 = vmatpush.bf16.xpose.msra.mxu0 0
    %1137 = vmatpush.bf16.xpose.msra.mxu0 0
    %1138 = vmatpush.bf16.xpose.msra.mxu0 0
    %1139 = vmatpush.bf16.xpose.msra.mxu0 0
    %1140 = vmatpush.bf16.xpose.msra.mxu0 %v1131
    %1141 = vmatmul.bf16.gmra.mxu0 %v1128
    %v1142 = vpop.f32.mrf.mxu0
    %v1143 = vadd.f32 %v529, %v1142
    %v1144 = vpop.f32.mrf.mxu0
    %1145 = vdwg.mxu0
    %v1147 = vsel %vm1012, %v995, 0
    %v1150 = vsel %vm1012, %v1003, 0
    %1152 = vmatpush.bf16.xpose.msra.mxu0 0
    %1153 = vmatpush.bf16.xpose.msra.mxu0 0
    %1154 = vmatpush.bf16.xpose.msra.mxu0 0
    %1155 = vmatpush.bf16.xpose.msra.mxu0 0
    %1156 = vmatpush.bf16.xpose.msra.mxu0 0
    %1157 = vmatpush.bf16.xpose.msra.mxu0 0
    %1158 = vmatpush.bf16.xpose.msra.mxu0 0
    %1159 = vmatpush.bf16.xpose.msra.mxu0 %v1150
    %1160 = vmatmul.bf16.gmra.mxu0 %v1147
    %v1161 = vpop.f32.mrf.mxu0
    %v1162 = vadd.f32 %v529, %v1161
    %v1163 = vpop.f32.mrf.mxu0
    %1164 = vdwg.mxu0
    %vm1165 = vcmask 64512
    %v1166 = vsel %vm1165, %v1029, -inf
    %1167 = vmax.xlane.f32.xlu0 %v1166
    %v1168 = vpop.xlane.xlu0 %1167
    %v1169 = vsel %vm1165, %v1048, -inf
    %1170 = vmax.xlane.f32.xlu0 %v1169
    %v1171 = vpop.xlane.xlu0 %1170
    %v1172 = vsel %vm1165, %v1067, -inf
    %1173 = vmax.xlane.f32.xlu0 %v1172
    %v1174 = vpop.xlane.xlu0 %1173
    %v1175 = vsel %vm1165, %v1086, -inf
    %1176 = vmax.xlane.f32.xlu0 %v1175
    %v1177 = vpop.xlane.xlu0 %1176
    %v1178 = vsel %vm1165, %v1105, -inf
    %1179 = vmax.xlane.f32.xlu0 %v1178
    %v1180 = vpop.xlane.xlu0 %1179
    %v1181 = vsel %vm1165, %v1124, -inf
    %1182 = vmax.xlane.f32.xlu0 %v1181
    %v1183 = vpop.xlane.xlu0 %1182
    %v1184 = vsel %vm1165, %v1143, -inf
    %1185 = vmax.xlane.f32.xlu0 %v1184
    %v1186 = vpop.xlane.xlu0 %1185
    %v1187 = vsel %vm1165, %v1162, -inf
    %1188 = vmax.xlane.f32.xlu0 %v1187
    %v1189 = vpop.xlane.xlu0 %1188
    %v1190 = vsub.f32 %v1029, %v1168
    %v1191 = vsub.f32 %v1048, %v1171
    %v1192 = vsub.f32 %v1067, %v1174
    %v1193 = vsub.f32 %v1086, %v1177
    %v1194 = vsub.f32 %v1105, %v1180
    %v1195 = vsub.f32 %v1124, %v1183
    %v1196 = vsub.f32 %v1143, %v1186
    %v1197 = vsub.f32 %v1162, %v1189
    %v1198 = vmul.f32 %v1190, 1.442695
    %v1199 = vpow.pop %v1198
    %v1200 = vmul.f32 %v1191, 1.442695
    %v1201 = vpow.pop %v1200
    %v1202 = vmul.f32 %v1192, 1.442695
    %v1203 = vpow.pop %v1202
    %v1204 = vmul.f32 %v1193, 1.442695
    %v1205 = vpow.pop %v1204
    %v1206 = vmul.f32 %v1194, 1.442695
    %v1207 = vpow.pop %v1206
    %v1208 = vmul.f32 %v1195, 1.442695
    %v1209 = vpow.pop %v1208
    %v1210 = vmul.f32 %v1196, 1.442695
    %v1211 = vpow.pop %v1210
    %v1212 = vmul.f32 %v1197, 1.442695
    %v1213 = vpow.pop %v1212
    %v1214 = vsel %vm1165, %v1199, 0.0
    %1215 = vadd.xlane.f32.xlu0 %v1214
    %v1216 = vpop.xlane.xlu0 %1215
    %v1217 = vsel %vm1165, %v1201, 0.0
    %1218 = vadd.xlane.f32.xlu0 %v1217
    %v1219 = vpop.xlane.xlu0 %1218
    %v1220 = vsel %vm1165, %v1203, 0.0
    %1221 = vadd.xlane.f32.xlu0 %v1220
    %v1222 = vpop.xlane.xlu0 %1221
    %v1223 = vsel %vm1165, %v1205, 0.0
    %1224 = vadd.xlane.f32.xlu0 %v1223
    %v1225 = vpop.xlane.xlu0 %1224
    %v1226 = vsel %vm1165, %v1207, 0.0
    %1227 = vadd.xlane.f32.xlu0 %v1226
    %v1228 = vpop.xlane.xlu0 %1227
    %v1229 = vsel %vm1165, %v1209, 0.0
    %1230 = vadd.xlane.f32.xlu0 %v1229
    %v1231 = vpop.xlane.xlu0 %1230
    %v1232 = vsel %vm1165, %v1211, 0.0
    %1233 = vadd.xlane.f32.xlu0 %v1232
    %v1234 = vpop.xlane.xlu0 %1233
    %v1235 = vsel %vm1165, %v1213, 0.0
    %1236 = vadd.xlane.f32.xlu0 %v1235
    %v1237 = vpop.xlane.xlu0 %1236
    %v1238 = vrcp.pop %v1216
    %v1239 = vrcp.pop %v1219
    %v1240 = vrcp.pop %v1222
    %v1241 = vrcp.pop %v1225
    %v1242 = vrcp.pop %v1228
    %v1243 = vrcp.pop %v1231
    %v1244 = vrcp.pop %v1234
    %v1245 = vrcp.pop %v1237
    %v1246 = vmul.f32 %v1199, %v1238
    %v1247 = vmul.f32 %v1201, %v1239
    %v1248 = vmul.f32 %v1203, %v1240
    %v1249 = vmul.f32 %v1205, %v1241
    %v1250 = vmul.f32 %v1207, %v1242
    %v1251 = vmul.f32 %v1209, %v1243
    %v1252 = vmul.f32 %v1211, %v1244
    %v1253 = vmul.f32 %v1213, %v1245
    %v1254 = vpack.c.bf16 %v1246, %v1246
    %v1255 = vpack.c.bf16 %v1247, %v1247
    %v1256 = vpack.c.bf16 %v1248, %v1248
    %v1257 = vpack.c.bf16 %v1249, %v1249
    %v1258 = vpack.c.bf16 %v1250, %v1250
    %v1259 = vpack.c.bf16 %v1251, %v1251
    %v1260 = vpack.c.bf16 %v1252, %v1252
    %v1261 = vpack.c.bf16 %v1253, %v1253
    %v1263 = vsel %vm1165, %v1254, 0
    %vm1265 = vcmask 1043456
    %v1267 = vsel %vm1265, %v1004, 0
    %1269 = vmatpush.bf16.msra.mxu0 0
    %1270 = vmatpush.bf16.msra.mxu0 0
    %1271 = vmatpush.bf16.msra.mxu0 0
    %1272 = vmatpush.bf16.msra.mxu0 0
    %1273 = vmatpush.bf16.msra.mxu0 0
    %1274 = vmatpush.bf16.msra.mxu0 0
    %1275 = vmatpush.bf16.msra.mxu0 0
    %1276 = vmatpush.bf16.msra.mxu0 %v1267
    %1277 = vmatmul.bf16.gmra.mxu0 %v1263
    %v1278 = vpop.f32.mrf.mxu0
    %v1279 = vadd.f32 0.0, %v1278
    %v1280 = vpop.f32.mrf.mxu0
    %1281 = vdwg.mxu0
    %v1283 = vsel %vm1165, %v1255, 0
    %v1286 = vsel %vm1265, %v1005, 0
    %1288 = vmatpush.bf16.msra.mxu0 0
    %1289 = vmatpush.bf16.msra.mxu0 0
    %1290 = vmatpush.bf16.msra.mxu0 0
    %1291 = vmatpush.bf16.msra.mxu0 0
    %1292 = vmatpush.bf16.msra.mxu0 0
    %1293 = vmatpush.bf16.msra.mxu0 0
    %1294 = vmatpush.bf16.msra.mxu0 0
    %1295 = vmatpush.bf16.msra.mxu0 %v1286
    %1296 = vmatmul.bf16.gmra.mxu0 %v1283
    %v1297 = vpop.f32.mrf.mxu0
    %v1298 = vadd.f32 0.0, %v1297
    %v1299 = vpop.f32.mrf.mxu0
    %1300 = vdwg.mxu0
    %v1302 = vsel %vm1165, %v1256, 0
    %v1305 = vsel %vm1265, %v1006, 0
    %1307 = vmatpush.bf16.msra.mxu0 0
    %1308 = vmatpush.bf16.msra.mxu0 0
    %1309 = vmatpush.bf16.msra.mxu0 0
    %1310 = vmatpush.bf16.msra.mxu0 0
    %1311 = vmatpush.bf16.msra.mxu0 0
    %1312 = vmatpush.bf16.msra.mxu0 0
    %1313 = vmatpush.bf16.msra.mxu0 0
    %1314 = vmatpush.bf16.msra.mxu0 %v1305
    %1315 = vmatmul.bf16.gmra.mxu0 %v1302
    %v1316 = vpop.f32.mrf.mxu0
    %v1317 = vadd.f32 0.0, %v1316
    %v1318 = vpop.f32.mrf.mxu0
    %1319 = vdwg.mxu0
    %v1321 = vsel %vm1165, %v1257, 0
    %v1324 = vsel %vm1265, %v1007, 0
    %1326 = vmatpush.bf16.msra.mxu0 0
    %1327 = vmatpush.bf16.msra.mxu0 0
    %1328 = vmatpush.bf16.msra.mxu0 0
    %1329 = vmatpush.bf16.msra.mxu0 0
    %1330 = vmatpush.bf16.msra.mxu0 0
    %1331 = vmatpush.bf16.msra.mxu0 0
    %1332 = vmatpush.bf16.msra.mxu0 0
    %1333 = vmatpush.bf16.msra.mxu0 %v1324
    %1334 = vmatmul.bf16.gmra.mxu0 %v1321
    %v1335 = vpop.f32.mrf.mxu0
    %v1336 = vadd.f32 0.0, %v1335
    %v1337 = vpop.f32.mrf.mxu0
    %1338 = vdwg.mxu0
    %v1340 = vsel %vm1165, %v1258, 0
    %v1343 = vsel %vm1265, %v1008, 0
    %1345 = vmatpush.bf16.msra.mxu0 0
    %1346 = vmatpush.bf16.msra.mxu0 0
    %1347 = vmatpush.bf16.msra.mxu0 0
    %1348 = vmatpush.bf16.msra.mxu0 0
    %1349 = vmatpush.bf16.msra.mxu0 0
    %1350 = vmatpush.bf16.msra.mxu0 0
    %1351 = vmatpush.bf16.msra.mxu0 0
    %1352 = vmatpush.bf16.msra.mxu0 %v1343
    %1353 = vmatmul.bf16.gmra.mxu0 %v1340
    %v1354 = vpop.f32.mrf.mxu0
    %v1355 = vadd.f32 0.0, %v1354
    %v1356 = vpop.f32.mrf.mxu0
    %1357 = vdwg.mxu0
    %v1359 = vsel %vm1165, %v1259, 0
    %v1362 = vsel %vm1265, %v1009, 0
    %1364 = vmatpush.bf16.msra.mxu0 0
    %1365 = vmatpush.bf16.msra.mxu0 0
    %1366 = vmatpush.bf16.msra.mxu0 0
    %1367 = vmatpush.bf16.msra.mxu0 0
    %1368 = vmatpush.bf16.msra.mxu0 0
    %1369 = vmatpush.bf16.msra.mxu0 0
    %1370 = vmatpush.bf16.msra.mxu0 0
    %1371 = vmatpush.bf16.msra.mxu0 %v1362
    %1372 = vmatmul.bf16.gmra.mxu0 %v1359
    %v1373 = vpop.f32.mrf.mxu0
    %v1374 = vadd.f32 0.0, %v1373
    %v1375 = vpop.f32.mrf.mxu0
    %1376 = vdwg.mxu0
    %v1378 = vsel %vm1165, %v1260, 0
    %v1381 = vsel %vm1265, %v1010, 0
    %1383 = vmatpush.bf16.msra.mxu0 0
    %1384 = vmatpush.bf16.msra.mxu0 0
    %1385 = vmatpush.bf16.msra.mxu0 0
    %1386 = vmatpush.bf16.msra.mxu0 0
    %1387 = vmatpush.bf16.msra.mxu0 0
    %1388 = vmatpush.bf16.msra.mxu0 0
    %1389 = vmatpush.bf16.msra.mxu0 0
    %1390 = vmatpush.bf16.msra.mxu0 %v1381
    %1391 = vmatmul.bf16.gmra.mxu0 %v1378
    %v1392 = vpop.f32.mrf.mxu0
    %v1393 = vadd.f32 0.0, %v1392
    %v1394 = vpop.f32.mrf.mxu0
    %1395 = vdwg.mxu0
    %v1397 = vsel %vm1165, %v1261, 0
    %v1400 = vsel %vm1265, %v1011, 0
    %1402 = vmatpush.bf16.msra.mxu0 0
    %1403 = vmatpush.bf16.msra.mxu0 0
    %1404 = vmatpush.bf16.msra.mxu0 0
    %1405 = vmatpush.bf16.msra.mxu0 0
    %1406 = vmatpush.bf16.msra.mxu0 0
    %1407 = vmatpush.bf16.msra.mxu0 0
    %1408 = vmatpush.bf16.msra.mxu0 0
    %1409 = vmatpush.bf16.msra.mxu0 %v1400
    %1410 = vmatmul.bf16.gmra.mxu0 %v1397
    %v1411 = vpop.f32.mrf.mxu0
    %v1412 = vadd.f32 0.0, %v1411
    %v1413 = vpop.f32.mrf.mxu0
    %1414 = vdwg.mxu0
    %v1415 = vld [vmem:[#allocation9] sm:$0xf]
    %v1416 = vld [vmem:[#allocation9 + $0x4] sm:$0xf]
    %v1417 = vld [vmem:[#allocation9 + $0x8] sm:$0xf]
    %v1418 = vld [vmem:[#allocation9 + $0xc] sm:$0xf]
    %v1419 = vpack.c.bf16 %v1298, %v1279
    %v1420 = vpack.c.bf16 %v1336, %v1317
    %v1421 = vpack.c.bf16 %v1374, %v1355
    %v1422 = vpack.c.bf16 %v1412, %v1393
    %v1424 = vunpack.c.l.b16 %v988
    %v1425 = vpack.c.b16 %v1424, %v1424
    %1426 = vrot.lane.b32.xlu0 %v1425, 96
    %v1427 = vpop.permute.xlu0 %1426
    %v1429 = vunpack.c.l.b16 %v996
    %v1430 = vpack.c.b16 %v1429, %v1429
    %1431 = vrot.lane.b32.xlu0 %v1430, 96
    %v1432 = vpop.permute.xlu0 %1431
    %v1434 = vsel %vm1012, %v1427, 0
    %v1437 = vsel %vm1012, %v1432, 0
    %1439 = vmatpush.bf16.xpose.msra.mxu0 0
    %1440 = vmatpush.bf16.xpose.msra.mxu0 0
    %1441 = vmatpush.bf16.xpose.msra.mxu0 0
    %1442 = vmatpush.bf16.xpose.msra.mxu0 0
    %1443 = vmatpush.bf16.xpose.msra.mxu0 0
    %1444 = vmatpush.bf16.xpose.msra.mxu0 0
    %1445 = vmatpush.bf16.xpose.msra.mxu0 0
    %1446 = vmatpush.bf16.xpose.msra.mxu0 %v1437
    %1447 = vmatmul.bf16.gmra.mxu0 %v1434
    %v1448 = vpop.f32.mrf.mxu0
    %v1449 = vadd.f32 %v529, %v1448
    %v1450 = vpop.f32.mrf.mxu0
    %1451 = vdwg.mxu0
    %v1453 = vunpack.c.l.b16 %v989
    %v1454 = vpack.c.b16 %v1453, %v1453
    %1455 = vrot.lane.b32.xlu0 %v1454, 96
    %v1456 = vpop.permute.xlu0 %1455
    %v1458 = vunpack.c.l.b16 %v997
    %v1459 = vpack.c.b16 %v1458, %v1458
    %1460 = vrot.lane.b32.xlu0 %v1459, 96
    %v1461 = vpop.permute.xlu0 %1460
    %v1463 = vsel %vm1012, %v1456, 0
    %v1466 = vsel %vm1012, %v1461, 0
    %1468 = vmatpush.bf16.xpose.msra.mxu0 0
    %1469 = vmatpush.bf16.xpose.msra.mxu0 0
    %1470 = vmatpush.bf16.xpose.msra.mxu0 0
    %1471 = vmatpush.bf16.xpose.msra.mxu0 0
    %1472 = vmatpush.bf16.xpose.msra.mxu0 0
    %1473 = vmatpush.bf16.xpose.msra.mxu0 0
    %1474 = vmatpush.bf16.xpose.msra.mxu0 0
    %1475 = vmatpush.bf16.xpose.msra.mxu0 %v1466
    %1476 = vmatmul.bf16.gmra.mxu0 %v1463
    %v1477 = vpop.f32.mrf.mxu0
    %v1478 = vadd.f32 %v529, %v1477
    %v1479 = vpop.f32.mrf.mxu0
    %1480 = vdwg.mxu0
    %v1482 = vunpack.c.l.b16 %v990
    %v1483 = vpack.c.b16 %v1482, %v1482
    %1484 = vrot.lane.b32.xlu0 %v1483, 96
    %v1485 = vpop.permute.xlu0 %1484
    %v1487 = vunpack.c.l.b16 %v998
    %v1488 = vpack.c.b16 %v1487, %v1487
    %1489 = vrot.lane.b32.xlu0 %v1488, 96
    %v1490 = vpop.permute.xlu0 %1489
    %v1492 = vsel %vm1012, %v1485, 0
    %v1495 = vsel %vm1012, %v1490, 0
    %1497 = vmatpush.bf16.xpose.msra.mxu0 0
    %1498 = vmatpush.bf16.xpose.msra.mxu0 0
    %1499 = vmatpush.bf16.xpose.msra.mxu0 0
    %1500 = vmatpush.bf16.xpose.msra.mxu0 0
    %1501 = vmatpush.bf16.xpose.msra.mxu0 0
    %1502 = vmatpush.bf16.xpose.msra.mxu0 0
    %1503 = vmatpush.bf16.xpose.msra.mxu0 0
    %1504 = vmatpush.bf16.xpose.msra.mxu0 %v1495
    %1505 = vmatmul.bf16.gmra.mxu0 %v1492
    %v1506 = vpop.f32.mrf.mxu0
    %v1507 = vadd.f32 %v529, %v1506
    %v1508 = vpop.f32.mrf.mxu0
    %1509 = vdwg.mxu0
    %v1511 = vunpack.c.l.b16 %v991
    %v1512 = vpack.c.b16 %v1511, %v1511
    %1513 = vrot.lane.b32.xlu0 %v1512, 96
    %v1514 = vpop.permute.xlu0 %1513
    %v1516 = vunpack.c.l.b16 %v999
    %v1517 = vpack.c.b16 %v1516, %v1516
    %1518 = vrot.lane.b32.xlu0 %v1517, 96
    %v1519 = vpop.permute.xlu0 %1518
    %v1521 = vsel %vm1012, %v1514, 0
    %v1524 = vsel %vm1012, %v1519, 0
    %1526 = vmatpush.bf16.xpose.msra.mxu0 0
    %1527 = vmatpush.bf16.xpose.msra.mxu0 0
    %1528 = vmatpush.bf16.xpose.msra.mxu0 0
    %1529 = vmatpush.bf16.xpose.msra.mxu0 0
    %1530 = vmatpush.bf16.xpose.msra.mxu0 0
    %1531 = vmatpush.bf16.xpose.msra.mxu0 0
    %1532 = vmatpush.bf16.xpose.msra.mxu0 0
    %1533 = vmatpush.bf16.xpose.msra.mxu0 %v1524
    %1534 = vmatmul.bf16.gmra.mxu0 %v1521
    %v1535 = vpop.f32.mrf.mxu0
    %v1536 = vadd.f32 %v529, %v1535
    %v1537 = vpop.f32.mrf.mxu0
    %1538 = vdwg.mxu0
    %v1540 = vunpack.c.l.b16 %v992
    %v1541 = vpack.c.b16 %v1540, %v1540
    %1542 = vrot.lane.b32.xlu0 %v1541, 96
    %v1543 = vpop.permute.xlu0 %1542
    %v1545 = vunpack.c.l.b16 %v1000
    %v1546 = vpack.c.b16 %v1545, %v1545
    %1547 = vrot.lane.b32.xlu0 %v1546, 96
    %v1548 = vpop.permute.xlu0 %1547
    %v1550 = vsel %vm1012, %v1543, 0
    %v1553 = vsel %vm1012, %v1548, 0
    %1555 = vmatpush.bf16.xpose.msra.mxu0 0
    %1556 = vmatpush.bf16.xpose.msra.mxu0 0
    %1557 = vmatpush.bf16.xpose.msra.mxu0 0
    %1558 = vmatpush.bf16.xpose.msra.mxu0 0
    %1559 = vmatpush.bf16.xpose.msra.mxu0 0
    %1560 = vmatpush.bf16.xpose.msra.mxu0 0
    %1561 = vmatpush.bf16.xpose.msra.mxu0 0
    %1562 = vmatpush.bf16.xpose.msra.mxu0 %v1553
    %1563 = vmatmul.bf16.gmra.mxu0 %v1550
    %v1564 = vpop.f32.mrf.mxu0
    %v1565 = vadd.f32 %v529, %v1564
    %v1566 = vpop.f32.mrf.mxu0
    %1567 = vdwg.mxu0
    %v1569 = vunpack.c.l.b16 %v993
    %v1570 = vpack.c.b16 %v1569, %v1569
    %1571 = vrot.lane.b32.xlu0 %v1570, 96
    %v1572 = vpop.permute.xlu0 %1571
    %v1574 = vunpack.c.l.b16 %v1001
    %v1575 = vpack.c.b16 %v1574, %v1574
    %1576 = vrot.lane.b32.xlu0 %v1575, 96
    %v1577 = vpop.permute.xlu0 %1576
    %v1579 = vsel %vm1012, %v1572, 0
    %v1582 = vsel %vm1012, %v1577, 0
    %1584 = vmatpush.bf16.xpose.msra.mxu0 0
    %1585 = vmatpush.bf16.xpose.msra.mxu0 0
    %1586 = vmatpush.bf16.xpose.msra.mxu0 0
    %1587 = vmatpush.bf16.xpose.msra.mxu0 0
    %1588 = vmatpush.bf16.xpose.msra.mxu0 0
    %1589 = vmatpush.bf16.xpose.msra.mxu0 0
    %1590 = vmatpush.bf16.xpose.msra.mxu0 0
    %1591 = vmatpush.bf16.xpose.msra.mxu0 %v1582
    %1592 = vmatmul.bf16.gmra.mxu0 %v1579
    %v1593 = vpop.f32.mrf.mxu0
    %v1594 = vadd.f32 %v529, %v1593
    %v1595 = vpop.f32.mrf.mxu0
    %1596 = vdwg.mxu0
    %v1598 = vunpack.c.l.b16 %v994
    %v1599 = vpack.c.b16 %v1598, %v1598
    %1600 = vrot.lane.b32.xlu0 %v1599, 96
    %v1601 = vpop.permute.xlu0 %1600
    %v1603 = vunpack.c.l.b16 %v1002
    %v1604 = vpack.c.b16 %v1603, %v1603
    %1605 = vrot.lane.b32.xlu0 %v1604, 96
    %v1606 = vpop.permute.xlu0 %1605
    %v1608 = vsel %vm1012, %v1601, 0
    %v1611 = vsel %vm1012, %v1606, 0
    %1613 = vmatpush.bf16.xpose.msra.mxu0 0
    %1614 = vmatpush.bf16.xpose.msra.mxu0 0
    %1615 = vmatpush.bf16.xpose.msra.mxu0 0
    %1616 = vmatpush.bf16.xpose.msra.mxu0 0
    %1617 = vmatpush.bf16.xpose.msra.mxu0 0
    %1618 = vmatpush.bf16.xpose.msra.mxu0 0
    %1619 = vmatpush.bf16.xpose.msra.mxu0 0
    %1620 = vmatpush.bf16.xpose.msra.mxu0 %v1611
    %1621 = vmatmul.bf16.gmra.mxu0 %v1608
    %v1622 = vpop.f32.mrf.mxu0
    %v1623 = vadd.f32 %v529, %v1622
    %v1624 = vpop.f32.mrf.mxu0
    %1625 = vdwg.mxu0
    %v1627 = vunpack.c.l.b16 %v995
    %v1628 = vpack.c.b16 %v1627, %v1627
    %1629 = vrot.lane.b32.xlu0 %v1628, 96
    %v1630 = vpop.permute.xlu0 %1629
    %v1632 = vunpack.c.l.b16 %v1003
    %v1633 = vpack.c.b16 %v1632, %v1632
    %1634 = vrot.lane.b32.xlu0 %v1633, 96
    %v1635 = vpop.permute.xlu0 %1634
    %v1637 = vsel %vm1012, %v1630, 0
    %v1640 = vsel %vm1012, %v1635, 0
    %1642 = vmatpush.bf16.xpose.msra.mxu0 0
    %1643 = vmatpush.bf16.xpose.msra.mxu0 0
    %1644 = vmatpush.bf16.xpose.msra.mxu0 0
    %1645 = vmatpush.bf16.xpose.msra.mxu0 0
    %1646 = vmatpush.bf16.xpose.msra.mxu0 0
    %1647 = vmatpush.bf16.xpose.msra.mxu0 0
    %1648 = vmatpush.bf16.xpose.msra.mxu0 0
    %1649 = vmatpush.bf16.xpose.msra.mxu0 %v1640
    %1650 = vmatmul.bf16.gmra.mxu0 %v1637
    %v1651 = vpop.f32.mrf.mxu0
    %v1652 = vadd.f32 %v529, %v1651
    %v1653 = vpop.f32.mrf.mxu0
    %1654 = vdwg.mxu0
    %v1655 = vsel %vm1165, %v1449, -inf
    %1656 = vmax.xlane.f32.xlu0 %v1655
    %v1657 = vpop.xlane.xlu0 %1656
    %v1658 = vsel %vm1165, %v1478, -inf
    %1659 = vmax.xlane.f32.xlu0 %v1658
    %v1660 = vpop.xlane.xlu0 %1659
    %v1661 = vsel %vm1165, %v1507, -inf
    %1662 = vmax.xlane.f32.xlu0 %v1661
    %v1663 = vpop.xlane.xlu0 %1662
    %v1664 = vsel %vm1165, %v1536, -inf
    %1665 = vmax.xlane.f32.xlu0 %v1664
    %v1666 = vpop.xlane.xlu0 %1665
    %v1667 = vsel %vm1165, %v1565, -inf
    %1668 = vmax.xlane.f32.xlu0 %v1667
    %v1669 = vpop.xlane.xlu0 %1668
    %v1670 = vsel %vm1165, %v1594, -inf
    %1671 = vmax.xlane.f32.xlu0 %v1670
    %v1672 = vpop.xlane.xlu0 %1671
    %v1673 = vsel %vm1165, %v1623, -inf
    %1674 = vmax.xlane.f32.xlu0 %v1673
    %v1675 = vpop.xlane.xlu0 %1674
    %v1676 = vsel %vm1165, %v1652, -inf
    %1677 = vmax.xlane.f32.xlu0 %v1676
    %v1678 = vpop.xlane.xlu0 %1677
    %v1679 = vsub.f32 %v1449, %v1657
    %v1680 = vsub.f32 %v1478, %v1660
    %v1681 = vsub.f32 %v1507, %v1663
    %v1682 = vsub.f32 %v1536, %v1666
    %v1683 = vsub.f32 %v1565, %v1669
    %v1684 = vsub.f32 %v1594, %v1672
    %v1685 = vsub.f32 %v1623, %v1675
    %v1686 = vsub.f32 %v1652, %v1678
    %v1687 = vmul.f32 %v1679, 1.442695
    %v1688 = vpow.pop %v1687
    %v1689 = vmul.f32 %v1680, 1.442695
    %v1690 = vpow.pop %v1689
    %v1691 = vmul.f32 %v1681, 1.442695
    %v1692 = vpow.pop %v1691
    %v1693 = vmul.f32 %v1682, 1.442695
    %v1694 = vpow.pop %v1693
    %v1695 = vmul.f32 %v1683, 1.442695
    %v1696 = vpow.pop %v1695
    %v1697 = vmul.f32 %v1684, 1.442695
    %v1698 = vpow.pop %v1697
    %v1699 = vmul.f32 %v1685, 1.442695
    %v1700 = vpow.pop %v1699
    %v1701 = vmul.f32 %v1686, 1.442695
    %v1702 = vpow.pop %v1701
    %v1703 = vsel %vm1165, %v1688, 0.0
    %1704 = vadd.xlane.f32.xlu0 %v1703
    %v1705 = vpop.xlane.xlu0 %1704
    %v1706 = vsel %vm1165, %v1690, 0.0
    %1707 = vadd.xlane.f32.xlu0 %v1706
    %v1708 = vpop.xlane.xlu0 %1707
    %v1709 = vsel %vm1165, %v1692, 0.0
    %1710 = vadd.xlane.f32.xlu0 %v1709
    %v1711 = vpop.xlane.xlu0 %1710
    %v1712 = vsel %vm1165, %v1694, 0.0
    %1713 = vadd.xlane.f32.xlu0 %v1712
    %v1714 = vpop.xlane.xlu0 %1713
    %v1715 = vsel %vm1165, %v1696, 0.0
    %1716 = vadd.xlane.f32.xlu0 %v1715
    %v1717 = vpop.xlane.xlu0 %1716
    %v1718 = vsel %vm1165, %v1698, 0.0
    %1719 = vadd.xlane.f32.xlu0 %v1718
    %v1720 = vpop.xlane.xlu0 %1719
    %v1721 = vsel %vm1165, %v1700, 0.0
    %1722 = vadd.xlane.f32.xlu0 %v1721
    %v1723 = vpop.xlane.xlu0 %1722
    %v1724 = vsel %vm1165, %v1702, 0.0
    %1725 = vadd.xlane.f32.xlu0 %v1724
    %v1726 = vpop.xlane.xlu0 %1725
    %v1727 = vrcp.pop %v1705
    %v1728 = vrcp.pop %v1708
    %v1729 = vrcp.pop %v1711
    %v1730 = vrcp.pop %v1714
    %v1731 = vrcp.pop %v1717
    %v1732 = vrcp.pop %v1720
    %v1733 = vrcp.pop %v1723
    %v1734 = vrcp.pop %v1726
    %v1735 = vmul.f32 %v1688, %v1727
    %v1736 = vmul.f32 %v1690, %v1728
    %v1737 = vmul.f32 %v1692, %v1729
    %v1738 = vmul.f32 %v1694, %v1730
    %v1739 = vmul.f32 %v1696, %v1731
    %v1740 = vmul.f32 %v1698, %v1732
    %v1741 = vmul.f32 %v1700, %v1733
    %v1742 = vmul.f32 %v1702, %v1734
    %v1743 = vpack.c.bf16 %v1735, %v1735
    %v1744 = vpack.c.bf16 %v1736, %v1736
    %v1745 = vpack.c.bf16 %v1737, %v1737
    %v1746 = vpack.c.bf16 %v1738, %v1738
    %v1747 = vpack.c.bf16 %v1739, %v1739
    %v1748 = vpack.c.bf16 %v1740, %v1740
    %v1749 = vpack.c.bf16 %v1741, %v1741
    %v1750 = vpack.c.bf16 %v1742, %v1742
    %v1752 = vunpack.c.l.b16 %v1004
    %v1753 = vpack.c.b16 %v1752, %v1752
    %1754 = vrot.lane.b32.xlu0 %v1753, 96
    %v1755 = vpop.permute.xlu0 %1754
    %v1757 = vsel %vm1165, %v1743, 0
    %v1760 = vsel %vm1265, %v1755, 0
    %1762 = vmatpush.bf16.msra.mxu0 0
    %1763 = vmatpush.bf16.msra.mxu0 0
    %1764 = vmatpush.bf16.msra.mxu0 0
    %1765 = vmatpush.bf16.msra.mxu0 0
    %1766 = vmatpush.bf16.msra.mxu0 0
    %1767 = vmatpush.bf16.msra.mxu0 0
    %1768 = vmatpush.bf16.msra.mxu0 0
    %1769 = vmatpush.bf16.msra.mxu0 %v1760
    %1770 = vmatmul.bf16.gmra.mxu0 %v1757
    %v1771 = vpop.f32.mrf.mxu0
    %v1772 = vadd.f32 0.0, %v1771
    %v1773 = vpop.f32.mrf.mxu0
    %1774 = vdwg.mxu0
    %v1776 = vunpack.c.l.b16 %v1005
    %v1777 = vpack.c.b16 %v1776, %v1776
    %1778 = vrot.lane.b32.xlu0 %v1777, 96
    %v1779 = vpop.permute.xlu0 %1778
    %v1781 = vsel %vm1165, %v1744, 0
    %v1784 = vsel %vm1265, %v1779, 0
    %1786 = vmatpush.bf16.msra.mxu0 0
    %1787 = vmatpush.bf16.msra.mxu0 0
    %1788 = vmatpush.bf16.msra.mxu0 0
    %1789 = vmatpush.bf16.msra.mxu0 0
    %1790 = vmatpush.bf16.msra.mxu0 0
    %1791 = vmatpush.bf16.msra.mxu0 0
    %1792 = vmatpush.bf16.msra.mxu0 0
    %1793 = vmatpush.bf16.msra.mxu0 %v1784
    %1794 = vmatmul.bf16.gmra.mxu0 %v1781
    %v1795 = vpop.f32.mrf.mxu0
    %v1796 = vadd.f32 0.0, %v1795
    %v1797 = vpop.f32.mrf.mxu0
    %1798 = vdwg.mxu0
    %v1800 = vunpack.c.l.b16 %v1006
    %v1801 = vpack.c.b16 %v1800, %v1800
    %1802 = vrot.lane.b32.xlu0 %v1801, 96
    %v1803 = vpop.permute.xlu0 %1802
    %v1805 = vsel %vm1165, %v1745, 0
    %v1808 = vsel %vm1265, %v1803, 0
    %1810 = vmatpush.bf16.msra.mxu0 0
    %1811 = vmatpush.bf16.msra.mxu0 0
    %1812 = vmatpush.bf16.msra.mxu0 0
    %1813 = vmatpush.bf16.msra.mxu0 0
    %1814 = vmatpush.bf16.msra.mxu0 0
    %1815 = vmatpush.bf16.msra.mxu0 0
    %1816 = vmatpush.bf16.msra.mxu0 0
    %1817 = vmatpush.bf16.msra.mxu0 %v1808
    %1818 = vmatmul.bf16.gmra.mxu0 %v1805
    %v1819 = vpop.f32.mrf.mxu0
    %v1820 = vadd.f32 0.0, %v1819
    %v1821 = vpop.f32.mrf.mxu0
    %1822 = vdwg.mxu0
    %v1824 = vunpack.c.l.b16 %v1007
    %v1825 = vpack.c.b16 %v1824, %v1824
    %1826 = vrot.lane.b32.xlu0 %v1825, 96
    %v1827 = vpop.permute.xlu0 %1826
    %v1829 = vsel %vm1165, %v1746, 0
    %v1832 = vsel %vm1265, %v1827, 0
    %1834 = vmatpush.bf16.msra.mxu0 0
    %1835 = vmatpush.bf16.msra.mxu0 0
    %1836 = vmatpush.bf16.msra.mxu0 0
    %1837 = vmatpush.bf16.msra.mxu0 0
    %1838 = vmatpush.bf16.msra.mxu0 0
    %1839 = vmatpush.bf16.msra.mxu0 0
    %1840 = vmatpush.bf16.msra.mxu0 0
    %1841 = vmatpush.bf16.msra.mxu0 %v1832
    %1842 = vmatmul.bf16.gmra.mxu0 %v1829
    %v1843 = vpop.f32.mrf.mxu0
    %v1844 = vadd.f32 0.0, %v1843
    %v1845 = vpop.f32.mrf.mxu0
    %1846 = vdwg.mxu0
    %v1848 = vunpack.c.l.b16 %v1008
    %v1849 = vpack.c.b16 %v1848, %v1848
    %1850 = vrot.lane.b32.xlu0 %v1849, 96
    %v1851 = vpop.permute.xlu0 %1850
    %v1853 = vsel %vm1165, %v1747, 0
    %v1856 = vsel %vm1265, %v1851, 0
    %1858 = vmatpush.bf16.msra.mxu0 0
    %1859 = vmatpush.bf16.msra.mxu0 0
    %1860 = vmatpush.bf16.msra.mxu0 0
    %1861 = vmatpush.bf16.msra.mxu0 0
    %1862 = vmatpush.bf16.msra.mxu0 0
    %1863 = vmatpush.bf16.msra.mxu0 0
    %1864 = vmatpush.bf16.msra.mxu0 0
    %1865 = vmatpush.bf16.msra.mxu0 %v1856
    %1866 = vmatmul.bf16.gmra.mxu0 %v1853
    %v1867 = vpop.f32.mrf.mxu0
    %v1868 = vadd.f32 0.0, %v1867
    %v1869 = vpop.f32.mrf.mxu0
    %1870 = vdwg.mxu0
    %v1872 = vunpack.c.l.b16 %v1009
    %v1873 = vpack.c.b16 %v1872, %v1872
    %1874 = vrot.lane.b32.xlu0 %v1873, 96
    %v1875 = vpop.permute.xlu0 %1874
    %v1877 = vsel %vm1165, %v1748, 0
    %v1880 = vsel %vm1265, %v1875, 0
    %1882 = vmatpush.bf16.msra.mxu0 0
    %1883 = vmatpush.bf16.msra.mxu0 0
    %1884 = vmatpush.bf16.msra.mxu0 0
    %1885 = vmatpush.bf16.msra.mxu0 0
    %1886 = vmatpush.bf16.msra.mxu0 0
    %1887 = vmatpush.bf16.msra.mxu0 0
    %1888 = vmatpush.bf16.msra.mxu0 0
    %1889 = vmatpush.bf16.msra.mxu0 %v1880
    %1890 = vmatmul.bf16.gmra.mxu0 %v1877
    %v1891 = vpop.f32.mrf.mxu0
    %v1892 = vadd.f32 0.0, %v1891
    %v1893 = vpop.f32.mrf.mxu0
    %1894 = vdwg.mxu0
    %v1896 = vunpack.c.l.b16 %v1010
    %v1897 = vpack.c.b16 %v1896, %v1896
    %1898 = vrot.lane.b32.xlu0 %v1897, 96
    %v1899 = vpop.permute.xlu0 %1898
    %v1901 = vsel %vm1165, %v1749, 0
    %v1904 = vsel %vm1265, %v1899, 0
    %1906 = vmatpush.bf16.msra.mxu0 0
    %1907 = vmatpush.bf16.msra.mxu0 0
    %1908 = vmatpush.bf16.msra.mxu0 0
    %1909 = vmatpush.bf16.msra.mxu0 0
    %1910 = vmatpush.bf16.msra.mxu0 0
    %1911 = vmatpush.bf16.msra.mxu0 0
    %1912 = vmatpush.bf16.msra.mxu0 0
    %1913 = vmatpush.bf16.msra.mxu0 %v1904
    %1914 = vmatmul.bf16.gmra.mxu0 %v1901
    %v1915 = vpop.f32.mrf.mxu0
    %v1916 = vadd.f32 0.0, %v1915
    %v1917 = vpop.f32.mrf.mxu0
    %1918 = vdwg.mxu0
    %v1920 = vunpack.c.l.b16 %v1011
    %v1921 = vpack.c.b16 %v1920, %v1920
    %1922 = vrot.lane.b32.xlu0 %v1921, 96
    %v1923 = vpop.permute.xlu0 %1922
    %v1925 = vsel %vm1165, %v1750, 0
    %v1928 = vsel %vm1265, %v1923, 0
    %1930 = vmatpush.bf16.msra.mxu0 0
    %1931 = vmatpush.bf16.msra.mxu0 0
    %1932 = vmatpush.bf16.msra.mxu0 0
    %1933 = vmatpush.bf16.msra.mxu0 0
    %1934 = vmatpush.bf16.msra.mxu0 0
    %1935 = vmatpush.bf16.msra.mxu0 0
    %1936 = vmatpush.bf16.msra.mxu0 0
    %1937 = vmatpush.bf16.msra.mxu0 %v1928
    %1938 = vmatmul.bf16.gmra.mxu0 %v1925
    %v1939 = vpop.f32.mrf.mxu0
    %v1940 = vadd.f32 0.0, %v1939
    %v1941 = vpop.f32.mrf.mxu0
    %1942 = vdwg.mxu0
    %s1943 = scalar_lea.vmem [#allocation9], 16
    %v1944 = vld [vmem:[%s1943] sm:$0xf]
    %v1945 = vld [vmem:[%s1943 + $0x4] sm:$0xf]
    %v1946 = vld [vmem:[%s1943 + $0x8] sm:$0xf]
    %v1947 = vld [vmem:[%s1943 + $0xc] sm:$0xf]
    %v1948 = vpack.c.bf16 %v1796, %v1772
    %v1949 = vpack.c.bf16 %v1844, %v1820
    %v1950 = vpack.c.bf16 %v1892, %v1868
    %v1951 = vpack.c.bf16 %v1940, %v1916
    %v1956 = vunpack.c.l.b16 %v1944
    %v1957 = vunpack.c.l.b16 %v1945
    %v1958 = vunpack.c.l.b16 %v1946
    %v1959 = vunpack.c.l.b16 %v1947
    %v1960 = vpack.c.b16 %v1957, %v1956
    %v1961 = vpack.c.b16 %v1959, %v1958
    %v1965 = vsel %vm1012, %v1948, 0
    %v1968 = vsel %vm1012, %v1949, 0
    %v1971 = vsel %vm1012, %v1950, 0
    %v1974 = vsel %vm1012, %v1951, 0
    %1976 = vmatpush.bf16.msra.mxu0 0
    %1977 = vmatpush.bf16.msra.mxu0 0
    %1978 = vmatpush.bf16.msra.mxu0 0
    %1979 = vmatpush.bf16.msra.mxu0 0
    %1980 = vmatpush.bf16.msra.mxu0 0
    %1981 = vmatpush.bf16.msra.mxu0 0
    %1982 = vmatpush.bf16.msra.mxu0 %v1961
    %1983 = vmatpush.bf16.msra.mxu0 %v1960
    %1984 = vmatmul.bf16.gmra.mxu0 %v1965
    %v1985 = vpop.f32.mrf.mxu0
    %v1986 = vadd.f32 0.0, %v1985
    %v1987 = vpop.f32.mrf.mxu0
    %v1988 = vadd.f32 0.0, %v1987
    %1989 = vmatmul.bf16.gmra.mxu0 %v1968
    %v1990 = vpop.f32.mrf.mxu0
    %v1991 = vadd.f32 0.0, %v1990
    %v1992 = vpop.f32.mrf.mxu0
    %v1993 = vadd.f32 0.0, %v1992
    %1994 = vmatmul.bf16.gmra.mxu0 %v1971
    %v1995 = vpop.f32.mrf.mxu0
    %v1996 = vadd.f32 0.0, %v1995
    %v1997 = vpop.f32.mrf.mxu0
    %v1998 = vadd.f32 0.0, %v1997
    %1999 = vmatmul.bf16.gmra.mxu0 %v1974
    %v2000 = vpop.f32.mrf.mxu0
    %v2001 = vadd.f32 0.0, %v2000
    %v2002 = vpop.f32.mrf.mxu0
    %v2003 = vadd.f32 0.0, %v2002
    %2004 = vdwg.mxu0
    %v2009 = vunpack.c.l.b16 %v1415
    %v2010 = vunpack.c.l.b16 %v1416
    %v2011 = vunpack.c.l.b16 %v1417
    %v2012 = vunpack.c.l.b16 %v1418
    %v2013 = vpack.c.b16 %v2010, %v2009
    %v2014 = vpack.c.b16 %v2012, %v2011
    %v2018 = vsel %vm1012, %v1419, 0
    %v2021 = vsel %vm1012, %v1420, 0
    %v2024 = vsel %vm1012, %v1421, 0
    %v2027 = vsel %vm1012, %v1422, 0
    %2029 = vmatpush.bf16.msra.mxu0 0
    %2030 = vmatpush.bf16.msra.mxu0 0
    %2031 = vmatpush.bf16.msra.mxu0 0
    %2032 = vmatpush.bf16.msra.mxu0 0
    %2033 = vmatpush.bf16.msra.mxu0 0
    %2034 = vmatpush.bf16.msra.mxu0 0
    %2035 = vmatpush.bf16.msra.mxu0 %v2014
    %2036 = vmatpush.bf16.msra.mxu0 %v2013
    %2037 = vmatmul.bf16.gmra.mxu0 %v2018
    %v2038 = vpop.f32.mrf.mxu0
    %v2039 = vadd.f32 %v1986, %v2038
    %v2040 = vpop.f32.mrf.mxu0
    %v2041 = vadd.f32 %v1988, %v2040
    %2042 = vmatmul.bf16.gmra.mxu0 %v2021
    %v2043 = vpop.f32.mrf.mxu0
    %v2044 = vadd.f32 %v1991, %v2043
    %v2045 = vpop.f32.mrf.mxu0
    %v2046 = vadd.f32 %v1993, %v2045
    %2047 = vmatmul.bf16.gmra.mxu0 %v2024
    %v2048 = vpop.f32.mrf.mxu0
    %v2049 = vadd.f32 %v1996, %v2048
    %v2050 = vpop.f32.mrf.mxu0
    %v2051 = vadd.f32 %v1998, %v2050
    %2052 = vmatmul.bf16.gmra.mxu0 %v2027
    %v2053 = vpop.f32.mrf.mxu0
    %v2054 = vadd.f32 %v2001, %v2053
    %v2055 = vpop.f32.mrf.mxu0
    %v2056 = vadd.f32 %v2003, %v2055
    %2057 = vdwg.mxu0
    %2058 = vrot.lane.b32.xlu0 %v1425, 64
    %v2059 = vpop.permute.xlu0 %2058
    %2060 = vrot.lane.b32.xlu0 %v1430, 64
    %v2061 = vpop.permute.xlu0 %2060
    %v2063 = vsel %vm1012, %v2059, 0
    %v2066 = vsel %vm1012, %v2061, 0
    %2068 = vmatpush.bf16.xpose.msra.mxu0 0
    %2069 = vmatpush.bf16.xpose.msra.mxu0 0
    %2070 = vmatpush.bf16.xpose.msra.mxu0 0
    %2071 = vmatpush.bf16.xpose.msra.mxu0 0
    %2072 = vmatpush.bf16.xpose.msra.mxu0 0
    %2073 = vmatpush.bf16.xpose.msra.mxu0 0
    %2074 = vmatpush.bf16.xpose.msra.mxu0 0
    %2075 = vmatpush.bf16.xpose.msra.mxu0 %v2066
    %2076 = vmatmul.bf16.gmra.mxu0 %v2063
    %v2077 = vpop.f32.mrf.mxu0
    %v2078 = vadd.f32 %v529, %v2077
    %v2079 = vpop.f32.mrf.mxu0
    %2080 = vdwg.mxu0
    %2081 = vrot.lane.b32.xlu0 %v1454, 64
    %v2082 = vpop.permute.xlu0 %2081
    %2083 = vrot.lane.b32.xlu0 %v1459, 64
    %v2084 = vpop.permute.xlu0 %2083
    %v2086 = vsel %vm1012, %v2082, 0
    %v2089 = vsel %vm1012, %v2084, 0
    %2091 = vmatpush.bf16.xpose.msra.mxu0 0
    %2092 = vmatpush.bf16.xpose.msra.mxu0 0
    %2093 = vmatpush.bf16.xpose.msra.mxu0 0
    %2094 = vmatpush.bf16.xpose.msra.mxu0 0
    %2095 = vmatpush.bf16.xpose.msra.mxu0 0
    %2096 = vmatpush.bf16.xpose.msra.mxu0 0
    %2097 = vmatpush.bf16.xpose.msra.mxu0 0
    %2098 = vmatpush.bf16.xpose.msra.mxu0 %v2089
    %2099 = vmatmul.bf16.gmra.mxu0 %v2086
    %v2100 = vpop.f32.mrf.mxu0
    %v2101 = vadd.f32 %v529, %v2100
    %v2102 = vpop.f32.mrf.mxu0
    %2103 = vdwg.mxu0
    %2104 = vrot.lane.b32.xlu0 %v1483, 64
    %v2105 = vpop.permute.xlu0 %2104
    %2106 = vrot.lane.b32.xlu0 %v1488, 64
    %v2107 = vpop.permute.xlu0 %2106
    %v2109 = vsel %vm1012, %v2105, 0
    %v2112 = vsel %vm1012, %v2107, 0
    %2114 = vmatpush.bf16.xpose.msra.mxu0 0
    %2115 = vmatpush.bf16.xpose.msra.mxu0 0
    %2116 = vmatpush.bf16.xpose.msra.mxu0 0
    %2117 = vmatpush.bf16.xpose.msra.mxu0 0
    %2118 = vmatpush.bf16.xpose.msra.mxu0 0
    %2119 = vmatpush.bf16.xpose.msra.mxu0 0
    %2120 = vmatpush.bf16.xpose.msra.mxu0 0
    %2121 = vmatpush.bf16.xpose.msra.mxu0 %v2112
    %2122 = vmatmul.bf16.gmra.mxu0 %v2109
    %v2123 = vpop.f32.mrf.mxu0
    %v2124 = vadd.f32 %v529, %v2123
    %v2125 = vpop.f32.mrf.mxu0
    %2126 = vdwg.mxu0
    %2127 = vrot.lane.b32.xlu0 %v1512, 64
    %v2128 = vpop.permute.xlu0 %2127
    %2129 = vrot.lane.b32.xlu0 %v1517, 64
    %v2130 = vpop.permute.xlu0 %2129
    %v2132 = vsel %vm1012, %v2128, 0
    %v2135 = vsel %vm1012, %v2130, 0
    %2137 = vmatpush.bf16.xpose.msra.mxu0 0
    %2138 = vmatpush.bf16.xpose.msra.mxu0 0
    %2139 = vmatpush.bf16.xpose.msra.mxu0 0
    %2140 = vmatpush.bf16.xpose.msra.mxu0 0
    %2141 = vmatpush.bf16.xpose.msra.mxu0 0
    %2142 = vmatpush.bf16.xpose.msra.mxu0 0
    %2143 = vmatpush.bf16.xpose.msra.mxu0 0
    %2144 = vmatpush.bf16.xpose.msra.mxu0 %v2135
    %2145 = vmatmul.bf16.gmra.mxu0 %v2132
    %v2146 = vpop.f32.mrf.mxu0
    %v2147 = vadd.f32 %v529, %v2146
    %v2148 = vpop.f32.mrf.mxu0
    %2149 = vdwg.mxu0
    %2150 = vrot.lane.b32.xlu0 %v1541, 64
    %v2151 = vpop.permute.xlu0 %2150
    %2152 = vrot.lane.b32.xlu0 %v1546, 64
    %v2153 = vpop.permute.xlu0 %2152
    %v2155 = vsel %vm1012, %v2151, 0
    %v2158 = vsel %vm1012, %v2153, 0
    %2160 = vmatpush.bf16.xpose.msra.mxu0 0
    %2161 = vmatpush.bf16.xpose.msra.mxu0 0
    %2162 = vmatpush.bf16.xpose.msra.mxu0 0
    %2163 = vmatpush.bf16.xpose.msra.mxu0 0
    %2164 = vmatpush.bf16.xpose.msra.mxu0 0
    %2165 = vmatpush.bf16.xpose.msra.mxu0 0
    %2166 = vmatpush.bf16.xpose.msra.mxu0 0
    %2167 = vmatpush.bf16.xpose.msra.mxu0 %v2158
    %2168 = vmatmul.bf16.gmra.mxu0 %v2155
    %v2169 = vpop.f32.mrf.mxu0
    %v2170 = vadd.f32 %v529, %v2169
    %v2171 = vpop.f32.mrf.mxu0
    %2172 = vdwg.mxu0
    %2173 = vrot.lane.b32.xlu0 %v1570, 64
    %v2174 = vpop.permute.xlu0 %2173
    %2175 = vrot.lane.b32.xlu0 %v1575, 64
    %v2176 = vpop.permute.xlu0 %2175
    %v2178 = vsel %vm1012, %v2174, 0
    %v2181 = vsel %vm1012, %v2176, 0
    %2183 = vmatpush.bf16.xpose.msra.mxu0 0
    %2184 = vmatpush.bf16.xpose.msra.mxu0 0
    %2185 = vmatpush.bf16.xpose.msra.mxu0 0
    %2186 = vmatpush.bf16.xpose.msra.mxu0 0
    %2187 = vmatpush.bf16.xpose.msra.mxu0 0
    %2188 = vmatpush.bf16.xpose.msra.mxu0 0
    %2189 = vmatpush.bf16.xpose.msra.mxu0 0
    %2190 = vmatpush.bf16.xpose.msra.mxu0 %v2181
    %2191 = vmatmul.bf16.gmra.mxu0 %v2178
    %v2192 = vpop.f32.mrf.mxu0
    %v2193 = vadd.f32 %v529, %v2192
    %v2194 = vpop.f32.mrf.mxu0
    %2195 = vdwg.mxu0
    %2196 = vrot.lane.b32.xlu0 %v1599, 64
    %v2197 = vpop.permute.xlu0 %2196
    %2198 = vrot.lane.b32.xlu0 %v1604, 64
    %v2199 = vpop.permute.xlu0 %2198
    %v2201 = vsel %vm1012, %v2197, 0
    %v2204 = vsel %vm1012, %v2199, 0
    %2206 = vmatpush.bf16.xpose.msra.mxu0 0
    %2207 = vmatpush.bf16.xpose.msra.mxu0 0
    %2208 = vmatpush.bf16.xpose.msra.mxu0 0
    %2209 = vmatpush.bf16.xpose.msra.mxu0 0
    %2210 = vmatpush.bf16.xpose.msra.mxu0 0
    %2211 = vmatpush.bf16.xpose.msra.mxu0 0
    %2212 = vmatpush.bf16.xpose.msra.mxu0 0
    %2213 = vmatpush.bf16.xpose.msra.mxu0 %v2204
    %2214 = vmatmul.bf16.gmra.mxu0 %v2201
    %v2215 = vpop.f32.mrf.mxu0
    %v2216 = vadd.f32 %v529, %v2215
    %v2217 = vpop.f32.mrf.mxu0
    %2218 = vdwg.mxu0
    %2219 = vrot.lane.b32.xlu0 %v1628, 64
    %v2220 = vpop.permute.xlu0 %2219
    %2221 = vrot.lane.b32.xlu0 %v1633, 64
    %v2222 = vpop.permute.xlu0 %2221
    %v2224 = vsel %vm1012, %v2220, 0
    %v2227 = vsel %vm1012, %v2222, 0
    %2229 = vmatpush.bf16.xpose.msra.mxu0 0
    %2230 = vmatpush.bf16.xpose.msra.mxu0 0
    %2231 = vmatpush.bf16.xpose.msra.mxu0 0
    %2232 = vmatpush.bf16.xpose.msra.mxu0 0
    %2233 = vmatpush.bf16.xpose.msra.mxu0 0
    %2234 = vmatpush.bf16.xpose.msra.mxu0 0
    %2235 = vmatpush.bf16.xpose.msra.mxu0 0
    %2236 = vmatpush.bf16.xpose.msra.mxu0 %v2227
    %2237 = vmatmul.bf16.gmra.mxu0 %v2224
    %v2238 = vpop.f32.mrf.mxu0
    %v2239 = vadd.f32 %v529, %v2238
    %v2240 = vpop.f32.mrf.mxu0
    %2241 = vdwg.mxu0
    %v2242 = vsel %vm1165, %v2078, -inf
    %2243 = vmax.xlane.f32.xlu0 %v2242
    %v2244 = vpop.xlane.xlu0 %2243
    %v2245 = vsel %vm1165, %v2101, -inf
    %2246 = vmax.xlane.f32.xlu0 %v2245
    %v2247 = vpop.xlane.xlu0 %2246
    %v2248 = vsel %vm1165, %v2124, -inf
    %2249 = vmax.xlane.f32.xlu0 %v2248
    %v2250 = vpop.xlane.xlu0 %2249
    %v2251 = vsel %vm1165, %v2147, -inf
    %2252 = vmax.xlane.f32.xlu0 %v2251
    %v2253 = vpop.xlane.xlu0 %2252
    %v2254 = vsel %vm1165, %v2170, -inf
    %2255 = vmax.xlane.f32.xlu0 %v2254
    %v2256 = vpop.xlane.xlu0 %2255
    %v2257 = vsel %vm1165, %v2193, -inf
    %2258 = vmax.xlane.f32.xlu0 %v2257
    %v2259 = vpop.xlane.xlu0 %2258
    %v2260 = vsel %vm1165, %v2216, -inf
    %2261 = vmax.xlane.f32.xlu0 %v2260
    %v2262 = vpop.xlane.xlu0 %2261
    %v2263 = vsel %vm1165, %v2239, -inf
    %2264 = vmax.xlane.f32.xlu0 %v2263
    %v2265 = vpop.xlane.xlu0 %2264
    %v2266 = vsub.f32 %v2078, %v2244
    %v2267 = vsub.f32 %v2101, %v2247
    %v2268 = vsub.f32 %v2124, %v2250
    %v2269 = vsub.f32 %v2147, %v2253
    %v2270 = vsub.f32 %v2170, %v2256
    %v2271 = vsub.f32 %v2193, %v2259
    %v2272 = vsub.f32 %v2216, %v2262
    %v2273 = vsub.f32 %v2239, %v2265
    %v2274 = vmul.f32 %v2266, 1.442695
    %v2275 = vpow.pop %v2274
    %v2276 = vmul.f32 %v2267, 1.442695
    %v2277 = vpow.pop %v2276
    %v2278 = vmul.f32 %v2268, 1.442695
    %v2279 = vpow.pop %v2278
    %v2280 = vmul.f32 %v2269, 1.442695
    %v2281 = vpow.pop %v2280
    %v2282 = vmul.f32 %v2270, 1.442695
    %v2283 = vpow.pop %v2282
    %v2284 = vmul.f32 %v2271, 1.442695
    %v2285 = vpow.pop %v2284
    %v2286 = vmul.f32 %v2272, 1.442695
    %v2287 = vpow.pop %v2286
    %v2288 = vmul.f32 %v2273, 1.442695
    %v2289 = vpow.pop %v2288
    %v2290 = vsel %vm1165, %v2275, 0.0
    %2291 = vadd.xlane.f32.xlu0 %v2290
    %v2292 = vpop.xlane.xlu0 %2291
    %v2293 = vsel %vm1165, %v2277, 0.0
    %2294 = vadd.xlane.f32.xlu0 %v2293
    %v2295 = vpop.xlane.xlu0 %2294
    %v2296 = vsel %vm1165, %v2279, 0.0
    %2297 = vadd.xlane.f32.xlu0 %v2296
    %v2298 = vpop.xlane.xlu0 %2297
    %v2299 = vsel %vm1165, %v2281, 0.0
    %2300 = vadd.xlane.f32.xlu0 %v2299
    %v2301 = vpop.xlane.xlu0 %2300
    %v2302 = vsel %vm1165, %v2283, 0.0
    %2303 = vadd.xlane.f32.xlu0 %v2302
    %v2304 = vpop.xlane.xlu0 %2303
    %v2305 = vsel %vm1165, %v2285, 0.0
    %2306 = vadd.xlane.f32.xlu0 %v2305
    %v2307 = vpop.xlane.xlu0 %2306
    %v2308 = vsel %vm1165, %v2287, 0.0
    %2309 = vadd.xlane.f32.xlu0 %v2308
    %v2310 = vpop.xlane.xlu0 %2309
    %v2311 = vsel %vm1165, %v2289, 0.0
    %2312 = vadd.xlane.f32.xlu0 %v2311
    %v2313 = vpop.xlane.xlu0 %2312
    %v2314 = vrcp.pop %v2292
    %v2315 = vrcp.pop %v2295
    %v2316 = vrcp.pop %v2298
    %v2317 = vrcp.pop %v2301
    %v2318 = vrcp.pop %v2304
    %v2319 = vrcp.pop %v2307
    %v2320 = vrcp.pop %v2310
    %v2321 = vrcp.pop %v2313
    %v2322 = vmul.f32 %v2275, %v2314
    %v2323 = vmul.f32 %v2277, %v2315
    %v2324 = vmul.f32 %v2279, %v2316
    %v2325 = vmul.f32 %v2281, %v2317
    %v2326 = vmul.f32 %v2283, %v2318
    %v2327 = vmul.f32 %v2285, %v2319
    %v2328 = vmul.f32 %v2287, %v2320
    %v2329 = vmul.f32 %v2289, %v2321
    %v2330 = vpack.c.bf16 %v2322, %v2322
    %v2331 = vpack.c.bf16 %v2323, %v2323
    %v2332 = vpack.c.bf16 %v2324, %v2324
    %v2333 = vpack.c.bf16 %v2325, %v2325
    %v2334 = vpack.c.bf16 %v2326, %v2326
    %v2335 = vpack.c.bf16 %v2327, %v2327
    %v2336 = vpack.c.bf16 %v2328, %v2328
    %v2337 = vpack.c.bf16 %v2329, %v2329
    %2338 = vrot.lane.b32.xlu0 %v1753, 64
    %v2339 = vpop.permute.xlu0 %2338
    %v2341 = vsel %vm1165, %v2330, 0
    %v2344 = vsel %vm1265, %v2339, 0
    %2346 = vmatpush.bf16.msra.mxu0 0
    %2347 = vmatpush.bf16.msra.mxu0 0
    %2348 = vmatpush.bf16.msra.mxu0 0
    %2349 = vmatpush.bf16.msra.mxu0 0
    %2350 = vmatpush.bf16.msra.mxu0 0
    %2351 = vmatpush.bf16.msra.mxu0 0
    %2352 = vmatpush.bf16.msra.mxu0 0
    %2353 = vmatpush.bf16.msra.mxu0 %v2344
    %2354 = vmatmul.bf16.gmra.mxu0 %v2341
    %v2355 = vpop.f32.mrf.mxu0
    %v2356 = vadd.f32 0.0, %v2355
    %v2357 = vpop.f32.mrf.mxu0
    %2358 = vdwg.mxu0
    %2359 = vrot.lane.b32.xlu0 %v1777, 64
    %v2360 = vpop.permute.xlu0 %2359
    %v2362 = vsel %vm1165, %v2331, 0
    %v2365 = vsel %vm1265, %v2360, 0
    %2367 = vmatpush.bf16.msra.mxu0 0
    %2368 = vmatpush.bf16.msra.mxu0 0
    %2369 = vmatpush.bf16.msra.mxu0 0
    %2370 = vmatpush.bf16.msra.mxu0 0
    %2371 = vmatpush.bf16.msra.mxu0 0
    %2372 = vmatpush.bf16.msra.mxu0 0
    %2373 = vmatpush.bf16.msra.mxu0 0
    %2374 = vmatpush.bf16.msra.mxu0 %v2365
    %2375 = vmatmul.bf16.gmra.mxu0 %v2362
    %v2376 = vpop.f32.mrf.mxu0
    %v2377 = vadd.f32 0.0, %v2376
    %v2378 = vpop.f32.mrf.mxu0
    %2379 = vdwg.mxu0
    %2380 = vrot.lane.b32.xlu0 %v1801, 64
    %v2381 = vpop.permute.xlu0 %2380
    %v2383 = vsel %vm1165, %v2332, 0
    %v2386 = vsel %vm1265, %v2381, 0
    %2388 = vmatpush.bf16.msra.mxu0 0
    %2389 = vmatpush.bf16.msra.mxu0 0
    %2390 = vmatpush.bf16.msra.mxu0 0
    %2391 = vmatpush.bf16.msra.mxu0 0
    %2392 = vmatpush.bf16.msra.mxu0 0
    %2393 = vmatpush.bf16.msra.mxu0 0
    %2394 = vmatpush.bf16.msra.mxu0 0
    %2395 = vmatpush.bf16.msra.mxu0 %v2386
    %2396 = vmatmul.bf16.gmra.mxu0 %v2383
    %v2397 = vpop.f32.mrf.mxu0
    %v2398 = vadd.f32 0.0, %v2397
    %v2399 = vpop.f32.mrf.mxu0
    %2400 = vdwg.mxu0
    %2401 = vrot.lane.b32.xlu0 %v1825, 64
    %v2402 = vpop.permute.xlu0 %2401
    %v2404 = vsel %vm1165, %v2333, 0
    %v2407 = vsel %vm1265, %v2402, 0
    %2409 = vmatpush.bf16.msra.mxu0 0
    %2410 = vmatpush.bf16.msra.mxu0 0
    %2411 = vmatpush.bf16.msra.mxu0 0
    %2412 = vmatpush.bf16.msra.mxu0 0
    %2413 = vmatpush.bf16.msra.mxu0 0
    %2414 = vmatpush.bf16.msra.mxu0 0
    %2415 = vmatpush.bf16.msra.mxu0 0
    %2416 = vmatpush.bf16.msra.mxu0 %v2407
    %2417 = vmatmul.bf16.gmra.mxu0 %v2404
    %v2418 = vpop.f32.mrf.mxu0
    %v2419 = vadd.f32 0.0, %v2418
    %v2420 = vpop.f32.mrf.mxu0
    %2421 = vdwg.mxu0
    %2422 = vrot.lane.b32.xlu0 %v1849, 64
    %v2423 = vpop.permute.xlu0 %2422
    %v2425 = vsel %vm1165, %v2334, 0
    %v2428 = vsel %vm1265, %v2423, 0
    %2430 = vmatpush.bf16.msra.mxu0 0
    %2431 = vmatpush.bf16.msra.mxu0 0
    %2432 = vmatpush.bf16.msra.mxu0 0
    %2433 = vmatpush.bf16.msra.mxu0 0
    %2434 = vmatpush.bf16.msra.mxu0 0
    %2435 = vmatpush.bf16.msra.mxu0 0
    %2436 = vmatpush.bf16.msra.mxu0 0
    %2437 = vmatpush.bf16.msra.mxu0 %v2428
    %2438 = vmatmul.bf16.gmra.mxu0 %v2425
    %v2439 = vpop.f32.mrf.mxu0
    %v2440 = vadd.f32 0.0, %v2439
    %v2441 = vpop.f32.mrf.mxu0
    %2442 = vdwg.mxu0
    %2443 = vrot.lane.b32.xlu0 %v1873, 64
    %v2444 = vpop.permute.xlu0 %2443
    %v2446 = vsel %vm1165, %v2335, 0
    %v2449 = vsel %vm1265, %v2444, 0
    %2451 = vmatpush.bf16.msra.mxu0 0
    %2452 = vmatpush.bf16.msra.mxu0 0
    %2453 = vmatpush.bf16.msra.mxu0 0
    %2454 = vmatpush.bf16.msra.mxu0 0
    %2455 = vmatpush.bf16.msra.mxu0 0
    %2456 = vmatpush.bf16.msra.mxu0 0
    %2457 = vmatpush.bf16.msra.mxu0 0
    %2458 = vmatpush.bf16.msra.mxu0 %v2449
    %2459 = vmatmul.bf16.gmra.mxu0 %v2446
    %v2460 = vpop.f32.mrf.mxu0
    %v2461 = vadd.f32 0.0, %v2460
    %v2462 = vpop.f32.mrf.mxu0
    %2463 = vdwg.mxu0
    %2464 = vrot.lane.b32.xlu0 %v1897, 64
    %v2465 = vpop.permute.xlu0 %2464
    %v2467 = vsel %vm1165, %v2336, 0
    %v2470 = vsel %vm1265, %v2465, 0
    %2472 = vmatpush.bf16.msra.mxu0 0
    %2473 = vmatpush.bf16.msra.mxu0 0
    %2474 = vmatpush.bf16.msra.mxu0 0
    %2475 = vmatpush.bf16.msra.mxu0 0
    %2476 = vmatpush.bf16.msra.mxu0 0
    %2477 = vmatpush.bf16.msra.mxu0 0
    %2478 = vmatpush.bf16.msra.mxu0 0
    %2479 = vmatpush.bf16.msra.mxu0 %v2470
    %2480 = vmatmul.bf16.gmra.mxu0 %v2467
    %v2481 = vpop.f32.mrf.mxu0
    %v2482 = vadd.f32 0.0, %v2481
    %v2483 = vpop.f32.mrf.mxu0
    %2484 = vdwg.mxu0
    %2485 = vrot.lane.b32.xlu0 %v1921, 64
    %v2486 = vpop.permute.xlu0 %2485
    %v2488 = vsel %vm1165, %v2337, 0
    %v2491 = vsel %vm1265, %v2486, 0
    %2493 = vmatpush.bf16.msra.mxu0 0
    %2494 = vmatpush.bf16.msra.mxu0 0
    %2495 = vmatpush.bf16.msra.mxu0 0
    %2496 = vmatpush.bf16.msra.mxu0 0
    %2497 = vmatpush.bf16.msra.mxu0 0
    %2498 = vmatpush.bf16.msra.mxu0 0
    %2499 = vmatpush.bf16.msra.mxu0 0
    %2500 = vmatpush.bf16.msra.mxu0 %v2491
    %2501 = vmatmul.bf16.gmra.mxu0 %v2488
    %v2502 = vpop.f32.mrf.mxu0
    %v2503 = vadd.f32 0.0, %v2502
    %v2504 = vpop.f32.mrf.mxu0
    %2505 = vdwg.mxu0
    %s2506 = scalar_lea.vmem [#allocation9], 32
    %v2507 = vld [vmem:[%s2506] sm:$0xf]
    %v2508 = vld [vmem:[%s2506 + $0x4] sm:$0xf]
    %v2509 = vld [vmem:[%s2506 + $0x8] sm:$0xf]
    %v2510 = vld [vmem:[%s2506 + $0xc] sm:$0xf]
    %v2511 = vpack.c.bf16 %v2377, %v2356
    %v2512 = vpack.c.bf16 %v2419, %v2398
    %v2513 = vpack.c.bf16 %v2461, %v2440
    %v2514 = vpack.c.bf16 %v2503, %v2482
    %v2519 = vunpack.c.l.b16 %v2507
    %v2520 = vunpack.c.l.b16 %v2508
    %v2521 = vunpack.c.l.b16 %v2509
    %v2522 = vunpack.c.l.b16 %v2510
    %v2523 = vpack.c.b16 %v2520, %v2519
    %v2524 = vpack.c.b16 %v2522, %v2521
    %v2528 = vsel %vm1012, %v2511, 0
    %v2531 = vsel %vm1012, %v2512, 0
    %v2534 = vsel %vm1012, %v2513, 0
    %v2537 = vsel %vm1012, %v2514, 0
    %2539 = vmatpush.bf16.msra.mxu0 0
    %2540 = vmatpush.bf16.msra.mxu0 0
    %2541 = vmatpush.bf16.msra.mxu0 0
    %2542 = vmatpush.bf16.msra.mxu0 0
    %2543 = vmatpush.bf16.msra.mxu0 0
    %2544 = vmatpush.bf16.msra.mxu0 0
    %2545 = vmatpush.bf16.msra.mxu0 %v2524
    %2546 = vmatpush.bf16.msra.mxu0 %v2523
    %2547 = vmatmul.bf16.gmra.mxu0 %v2528
    %v2548 = vpop.f32.mrf.mxu0
    %v2549 = vadd.f32 0.0, %v2548
    %v2550 = vpop.f32.mrf.mxu0
    %v2551 = vadd.f32 0.0, %v2550
    %2552 = vmatmul.bf16.gmra.mxu0 %v2531
    %v2553 = vpop.f32.mrf.mxu0
    %v2554 = vadd.f32 0.0, %v2553
    %v2555 = vpop.f32.mrf.mxu0
    %v2556 = vadd.f32 0.0, %v2555
    %2557 = vmatmul.bf16.gmra.mxu0 %v2534
    %v2558 = vpop.f32.mrf.mxu0
    %v2559 = vadd.f32 0.0, %v2558
    %v2560 = vpop.f32.mrf.mxu0
    %v2561 = vadd.f32 0.0, %v2560
    %2562 = vmatmul.bf16.gmra.mxu0 %v2537
    %v2563 = vpop.f32.mrf.mxu0
    %v2564 = vadd.f32 0.0, %v2563
    %v2565 = vpop.f32.mrf.mxu0
    %v2566 = vadd.f32 0.0, %v2565
    %2567 = vdwg.mxu0
    %v2568 = vadd.f32 %v2039, %v2549
    %v2569 = vadd.f32 %v2041, %v2551
    %v2570 = vadd.f32 %v2044, %v2554
    %v2571 = vadd.f32 %v2046, %v2556
    %v2572 = vadd.f32 %v2049, %v2559
    %v2573 = vadd.f32 %v2051, %v2561
    %v2574 = vadd.f32 %v2054, %v2564
    %v2575 = vadd.f32 %v2056, %v2566
    %2576 = vrot.lane.b32.xlu0 %v1425, 32
    %v2577 = vpop.permute.xlu0 %2576
    %2578 = vrot.lane.b32.xlu0 %v1430, 32
    %v2579 = vpop.permute.xlu0 %2578
    %v2581 = vsel %vm1012, %v2577, 0
    %v2584 = vsel %vm1012, %v2579, 0
    %2586 = vmatpush.bf16.xpose.msra.mxu0 0
    %2587 = vmatpush.bf16.xpose.msra.mxu0 0
    %2588 = vmatpush.bf16.xpose.msra.mxu0 0
    %2589 = vmatpush.bf16.xpose.msra.mxu0 0
    %2590 = vmatpush.bf16.xpose.msra.mxu0 0
    %2591 = vmatpush.bf16.xpose.msra.mxu0 0
    %2592 = vmatpush.bf16.xpose.msra.mxu0 0
    %2593 = vmatpush.bf16.xpose.msra.mxu0 %v2584
    %2594 = vmatmul.bf16.gmra.mxu0 %v2581
    %v2595 = vpop.f32.mrf.mxu0
    %v2596 = vadd.f32 %v529, %v2595
    %v2597 = vpop.f32.mrf.mxu0
    %2598 = vdwg.mxu0
    %2599 = vrot.lane.b32.xlu0 %v1454, 32
    %v2600 = vpop.permute.xlu0 %2599
    %2601 = vrot.lane.b32.xlu0 %v1459, 32
    %v2602 = vpop.permute.xlu0 %2601
    %v2604 = vsel %vm1012, %v2600, 0
    %v2607 = vsel %vm1012, %v2602, 0
    %2609 = vmatpush.bf16.xpose.msra.mxu0 0
    %2610 = vmatpush.bf16.xpose.msra.mxu0 0
    %2611 = vmatpush.bf16.xpose.msra.mxu0 0
    %2612 = vmatpush.bf16.xpose.msra.mxu0 0
    %2613 = vmatpush.bf16.xpose.msra.mxu0 0
    %2614 = vmatpush.bf16.xpose.msra.mxu0 0
    %2615 = vmatpush.bf16.xpose.msra.mxu0 0
    %2616 = vmatpush.bf16.xpose.msra.mxu0 %v2607
    %2617 = vmatmul.bf16.gmra.mxu0 %v2604
    %v2618 = vpop.f32.mrf.mxu0
    %v2619 = vadd.f32 %v529, %v2618
    %v2620 = vpop.f32.mrf.mxu0
    %2621 = vdwg.mxu0
    %2622 = vrot.lane.b32.xlu0 %v1483, 32
    %v2623 = vpop.permute.xlu0 %2622
    %2624 = vrot.lane.b32.xlu0 %v1488, 32
    %v2625 = vpop.permute.xlu0 %2624
    %v2627 = vsel %vm1012, %v2623, 0
    %v2630 = vsel %vm1012, %v2625, 0
    %2632 = vmatpush.bf16.xpose.msra.mxu0 0
    %2633 = vmatpush.bf16.xpose.msra.mxu0 0
    %2634 = vmatpush.bf16.xpose.msra.mxu0 0
    %2635 = vmatpush.bf16.xpose.msra.mxu0 0
    %2636 = vmatpush.bf16.xpose.msra.mxu0 0
    %2637 = vmatpush.bf16.xpose.msra.mxu0 0
    %2638 = vmatpush.bf16.xpose.msra.mxu0 0
    %2639 = vmatpush.bf16.xpose.msra.mxu0 %v2630
    %2640 = vmatmul.bf16.gmra.mxu0 %v2627
    %v2641 = vpop.f32.mrf.mxu0
    %v2642 = vadd.f32 %v529, %v2641
    %v2643 = vpop.f32.mrf.mxu0
    %2644 = vdwg.mxu0
    %2645 = vrot.lane.b32.xlu0 %v1512, 32
    %v2646 = vpop.permute.xlu0 %2645
    %2647 = vrot.lane.b32.xlu0 %v1517, 32
    %v2648 = vpop.permute.xlu0 %2647
    %v2650 = vsel %vm1012, %v2646, 0
    %v2653 = vsel %vm1012, %v2648, 0
    %2655 = vmatpush.bf16.xpose.msra.mxu0 0
    %2656 = vmatpush.bf16.xpose.msra.mxu0 0
    %2657 = vmatpush.bf16.xpose.msra.mxu0 0
    %2658 = vmatpush.bf16.xpose.msra.mxu0 0
    %2659 = vmatpush.bf16.xpose.msra.mxu0 0
    %2660 = vmatpush.bf16.xpose.msra.mxu0 0
    %2661 = vmatpush.bf16.xpose.msra.mxu0 0
    %2662 = vmatpush.bf16.xpose.msra.mxu0 %v2653
    %2663 = vmatmul.bf16.gmra.mxu0 %v2650
    %v2664 = vpop.f32.mrf.mxu0
    %v2665 = vadd.f32 %v529, %v2664
    %v2666 = vpop.f32.mrf.mxu0
    %2667 = vdwg.mxu0
    %2668 = vrot.lane.b32.xlu0 %v1541, 32
    %v2669 = vpop.permute.xlu0 %2668
    %2670 = vrot.lane.b32.xlu0 %v1546, 32
    %v2671 = vpop.permute.xlu0 %2670
    %v2673 = vsel %vm1012, %v2669, 0
    %v2676 = vsel %vm1012, %v2671, 0
    %2678 = vmatpush.bf16.xpose.msra.mxu0 0
    %2679 = vmatpush.bf16.xpose.msra.mxu0 0
    %2680 = vmatpush.bf16.xpose.msra.mxu0 0
    %2681 = vmatpush.bf16.xpose.msra.mxu0 0
    %2682 = vmatpush.bf16.xpose.msra.mxu0 0
    %2683 = vmatpush.bf16.xpose.msra.mxu0 0
    %2684 = vmatpush.bf16.xpose.msra.mxu0 0
    %2685 = vmatpush.bf16.xpose.msra.mxu0 %v2676
    %2686 = vmatmul.bf16.gmra.mxu0 %v2673
    %v2687 = vpop.f32.mrf.mxu0
    %v2688 = vadd.f32 %v529, %v2687
    %v2689 = vpop.f32.mrf.mxu0
    %2690 = vdwg.mxu0
    %2691 = vrot.lane.b32.xlu0 %v1570, 32
    %v2692 = vpop.permute.xlu0 %2691
    %2693 = vrot.lane.b32.xlu0 %v1575, 32
    %v2694 = vpop.permute.xlu0 %2693
    %v2696 = vsel %vm1012, %v2692, 0
    %v2699 = vsel %vm1012, %v2694, 0
    %2701 = vmatpush.bf16.xpose.msra.mxu0 0
    %2702 = vmatpush.bf16.xpose.msra.mxu0 0
    %2703 = vmatpush.bf16.xpose.msra.mxu0 0
    %2704 = vmatpush.bf16.xpose.msra.mxu0 0
    %2705 = vmatpush.bf16.xpose.msra.mxu0 0
    %2706 = vmatpush.bf16.xpose.msra.mxu0 0
    %2707 = vmatpush.bf16.xpose.msra.mxu0 0
    %2708 = vmatpush.bf16.xpose.msra.mxu0 %v2699
    %2709 = vmatmul.bf16.gmra.mxu0 %v2696
    %v2710 = vpop.f32.mrf.mxu0
    %v2711 = vadd.f32 %v529, %v2710
    %v2712 = vpop.f32.mrf.mxu0
    %2713 = vdwg.mxu0
    %2714 = vrot.lane.b32.xlu0 %v1599, 32
    %v2715 = vpop.permute.xlu0 %2714
    %2716 = vrot.lane.b32.xlu0 %v1604, 32
    %v2717 = vpop.permute.xlu0 %2716
    %v2719 = vsel %vm1012, %v2715, 0
    %v2722 = vsel %vm1012, %v2717, 0
    %2724 = vmatpush.bf16.xpose.msra.mxu0 0
    %2725 = vmatpush.bf16.xpose.msra.mxu0 0
    %2726 = vmatpush.bf16.xpose.msra.mxu0 0
    %2727 = vmatpush.bf16.xpose.msra.mxu0 0
    %2728 = vmatpush.bf16.xpose.msra.mxu0 0
    %2729 = vmatpush.bf16.xpose.msra.mxu0 0
    %2730 = vmatpush.bf16.xpose.msra.mxu0 0
    %2731 = vmatpush.bf16.xpose.msra.mxu0 %v2722
    %2732 = vmatmul.bf16.gmra.mxu0 %v2719
    %v2733 = vpop.f32.mrf.mxu0
    %v2734 = vadd.f32 %v529, %v2733
    %v2735 = vpop.f32.mrf.mxu0
    %2736 = vdwg.mxu0
    %2737 = vrot.lane.b32.xlu0 %v1628, 32
    %v2738 = vpop.permute.xlu0 %2737
    %2739 = vrot.lane.b32.xlu0 %v1633, 32
    %v2740 = vpop.permute.xlu0 %2739
    %v2742 = vsel %vm1012, %v2738, 0
    %v2745 = vsel %vm1012, %v2740, 0
    %2747 = vmatpush.bf16.xpose.msra.mxu0 0
    %2748 = vmatpush.bf16.xpose.msra.mxu0 0
    %2749 = vmatpush.bf16.xpose.msra.mxu0 0
    %2750 = vmatpush.bf16.xpose.msra.mxu0 0
    %2751 = vmatpush.bf16.xpose.msra.mxu0 0
    %2752 = vmatpush.bf16.xpose.msra.mxu0 0
    %2753 = vmatpush.bf16.xpose.msra.mxu0 0
    %2754 = vmatpush.bf16.xpose.msra.mxu0 %v2745
    %2755 = vmatmul.bf16.gmra.mxu0 %v2742
    %v2756 = vpop.f32.mrf.mxu0
    %v2757 = vadd.f32 %v529, %v2756
    %v2758 = vpop.f32.mrf.mxu0
    %2759 = vdwg.mxu0
    %v2760 = vsel %vm1165, %v2596, -inf
    %2761 = vmax.xlane.f32.xlu0 %v2760
    %v2762 = vpop.xlane.xlu0 %2761
    %v2763 = vsel %vm1165, %v2619, -inf
    %2764 = vmax.xlane.f32.xlu0 %v2763
    %v2765 = vpop.xlane.xlu0 %2764
    %v2766 = vsel %vm1165, %v2642, -inf
    %2767 = vmax.xlane.f32.xlu0 %v2766
    %v2768 = vpop.xlane.xlu0 %2767
    %v2769 = vsel %vm1165, %v2665, -inf
    %2770 = vmax.xlane.f32.xlu0 %v2769
    %v2771 = vpop.xlane.xlu0 %2770
    %v2772 = vsel %vm1165, %v2688, -inf
    %2773 = vmax.xlane.f32.xlu0 %v2772
    %v2774 = vpop.xlane.xlu0 %2773
    %v2775 = vsel %vm1165, %v2711, -inf
    %2776 = vmax.xlane.f32.xlu0 %v2775
    %v2777 = vpop.xlane.xlu0 %2776
    %v2778 = vsel %vm1165, %v2734, -inf
    %2779 = vmax.xlane.f32.xlu0 %v2778
    %v2780 = vpop.xlane.xlu0 %2779
    %v2781 = vsel %vm1165, %v2757, -inf
    %2782 = vmax.xlane.f32.xlu0 %v2781
    %v2783 = vpop.xlane.xlu0 %2782
    %v2784 = vsub.f32 %v2596, %v2762
    %v2785 = vsub.f32 %v2619, %v2765
    %v2786 = vsub.f32 %v2642, %v2768
    %v2787 = vsub.f32 %v2665, %v2771
    %v2788 = vsub.f32 %v2688, %v2774
    %v2789 = vsub.f32 %v2711, %v2777
    %v2790 = vsub.f32 %v2734, %v2780
    %v2791 = vsub.f32 %v2757, %v2783
    %v2792 = vmul.f32 %v2784, 1.442695
    %v2793 = vpow.pop %v2792
    %v2794 = vmul.f32 %v2785, 1.442695
    %v2795 = vpow.pop %v2794
    %v2796 = vmul.f32 %v2786, 1.442695
    %v2797 = vpow.pop %v2796
    %v2798 = vmul.f32 %v2787, 1.442695
    %v2799 = vpow.pop %v2798
    %v2800 = vmul.f32 %v2788, 1.442695
    %v2801 = vpow.pop %v2800
    %v2802 = vmul.f32 %v2789, 1.442695
    %v2803 = vpow.pop %v2802
    %v2804 = vmul.f32 %v2790, 1.442695
    %v2805 = vpow.pop %v2804
    %v2806 = vmul.f32 %v2791, 1.442695
    %v2807 = vpow.pop %v2806
    %v2808 = vsel %vm1165, %v2793, 0.0
    %2809 = vadd.xlane.f32.xlu0 %v2808
    %v2810 = vpop.xlane.xlu0 %2809
    %v2811 = vsel %vm1165, %v2795, 0.0
    %2812 = vadd.xlane.f32.xlu0 %v2811
    %v2813 = vpop.xlane.xlu0 %2812
    %v2814 = vsel %vm1165, %v2797, 0.0
    %2815 = vadd.xlane.f32.xlu0 %v2814
    %v2816 = vpop.xlane.xlu0 %2815
    %v2817 = vsel %vm1165, %v2799, 0.0
    %2818 = vadd.xlane.f32.xlu0 %v2817
    %v2819 = vpop.xlane.xlu0 %2818
    %v2820 = vsel %vm1165, %v2801, 0.0
    %2821 = vadd.xlane.f32.xlu0 %v2820
    %v2822 = vpop.xlane.xlu0 %2821
    %v2823 = vsel %vm1165, %v2803, 0.0
    %2824 = vadd.xlane.f32.xlu0 %v2823
    %v2825 = vpop.xlane.xlu0 %2824
    %v2826 = vsel %vm1165, %v2805, 0.0
    %2827 = vadd.xlane.f32.xlu0 %v2826
    %v2828 = vpop.xlane.xlu0 %2827
    %v2829 = vsel %vm1165, %v2807, 0.0
    %2830 = vadd.xlane.f32.xlu0 %v2829
    %v2831 = vpop.xlane.xlu0 %2830
    %v2832 = vrcp.pop %v2810
    %v2833 = vrcp.pop %v2813
    %v2834 = vrcp.pop %v2816
    %v2835 = vrcp.pop %v2819
    %v2836 = vrcp.pop %v2822
    %v2837 = vrcp.pop %v2825
    %v2838 = vrcp.pop %v2828
    %v2839 = vrcp.pop %v2831
    %v2840 = vmul.f32 %v2793, %v2832
    %v2841 = vmul.f32 %v2795, %v2833
    %v2842 = vmul.f32 %v2797, %v2834
    %v2843 = vmul.f32 %v2799, %v2835
    %v2844 = vmul.f32 %v2801, %v2836
    %v2845 = vmul.f32 %v2803, %v2837
    %v2846 = vmul.f32 %v2805, %v2838
    %v2847 = vmul.f32 %v2807, %v2839
    %v2848 = vpack.c.bf16 %v2840, %v2840
    %v2849 = vpack.c.bf16 %v2841, %v2841
    %v2850 = vpack.c.bf16 %v2842, %v2842
    %v2851 = vpack.c.bf16 %v2843, %v2843
    %v2852 = vpack.c.bf16 %v2844, %v2844
    %v2853 = vpack.c.bf16 %v2845, %v2845
    %v2854 = vpack.c.bf16 %v2846, %v2846
    %v2855 = vpack.c.bf16 %v2847, %v2847
    %2856 = vrot.lane.b32.xlu0 %v1753, 32
    %v2857 = vpop.permute.xlu0 %2856
    %v2859 = vsel %vm1165, %v2848, 0
    %v2862 = vsel %vm1265, %v2857, 0
    %2864 = vmatpush.bf16.msra.mxu0 0
    %2865 = vmatpush.bf16.msra.mxu0 0
    %2866 = vmatpush.bf16.msra.mxu0 0
    %2867 = vmatpush.bf16.msra.mxu0 0
    %2868 = vmatpush.bf16.msra.mxu0 0
    %2869 = vmatpush.bf16.msra.mxu0 0
    %2870 = vmatpush.bf16.msra.mxu0 0
    %2871 = vmatpush.bf16.msra.mxu0 %v2862
    %2872 = vmatmul.bf16.gmra.mxu0 %v2859
    %v2873 = vpop.f32.mrf.mxu0
    %v2874 = vadd.f32 0.0, %v2873
    %v2875 = vpop.f32.mrf.mxu0
    %2876 = vdwg.mxu0
    %2877 = vrot.lane.b32.xlu0 %v1777, 32
    %v2878 = vpop.permute.xlu0 %2877
    %v2880 = vsel %vm1165, %v2849, 0
    %v2883 = vsel %vm1265, %v2878, 0
    %2885 = vmatpush.bf16.msra.mxu0 0
    %2886 = vmatpush.bf16.msra.mxu0 0
    %2887 = vmatpush.bf16.msra.mxu0 0
    %2888 = vmatpush.bf16.msra.mxu0 0
    %2889 = vmatpush.bf16.msra.mxu0 0
    %2890 = vmatpush.bf16.msra.mxu0 0
    %2891 = vmatpush.bf16.msra.mxu0 0
    %2892 = vmatpush.bf16.msra.mxu0 %v2883
    %2893 = vmatmul.bf16.gmra.mxu0 %v2880
    %v2894 = vpop.f32.mrf.mxu0
    %v2895 = vadd.f32 0.0, %v2894
    %v2896 = vpop.f32.mrf.mxu0
    %2897 = vdwg.mxu0
    %2898 = vrot.lane.b32.xlu0 %v1801, 32
    %v2899 = vpop.permute.xlu0 %2898
    %v2901 = vsel %vm1165, %v2850, 0
    %v2904 = vsel %vm1265, %v2899, 0
    %2906 = vmatpush.bf16.msra.mxu0 0
    %2907 = vmatpush.bf16.msra.mxu0 0
    %2908 = vmatpush.bf16.msra.mxu0 0
    %2909 = vmatpush.bf16.msra.mxu0 0
    %2910 = vmatpush.bf16.msra.mxu0 0
    %2911 = vmatpush.bf16.msra.mxu0 0
    %2912 = vmatpush.bf16.msra.mxu0 0
    %2913 = vmatpush.bf16.msra.mxu0 %v2904
    %2914 = vmatmul.bf16.gmra.mxu0 %v2901
    %v2915 = vpop.f32.mrf.mxu0
    %v2916 = vadd.f32 0.0, %v2915
    %v2917 = vpop.f32.mrf.mxu0
    %2918 = vdwg.mxu0
    %2919 = vrot.lane.b32.xlu0 %v1825, 32
    %v2920 = vpop.permute.xlu0 %2919
    %v2922 = vsel %vm1165, %v2851, 0
    %v2925 = vsel %vm1265, %v2920, 0
    %2927 = vmatpush.bf16.msra.mxu0 0
    %2928 = vmatpush.bf16.msra.mxu0 0
    %2929 = vmatpush.bf16.msra.mxu0 0
    %2930 = vmatpush.bf16.msra.mxu0 0
    %2931 = vmatpush.bf16.msra.mxu0 0
    %2932 = vmatpush.bf16.msra.mxu0 0
    %2933 = vmatpush.bf16.msra.mxu0 0
    %2934 = vmatpush.bf16.msra.mxu0 %v2925
    %2935 = vmatmul.bf16.gmra.mxu0 %v2922
    %v2936 = vpop.f32.mrf.mxu0
    %v2937 = vadd.f32 0.0, %v2936
    %v2938 = vpop.f32.mrf.mxu0
    %2939 = vdwg.mxu0
    %2940 = vrot.lane.b32.xlu0 %v1849, 32
    %v2941 = vpop.permute.xlu0 %2940
    %v2943 = vsel %vm1165, %v2852, 0
    %v2946 = vsel %vm1265, %v2941, 0
    %2948 = vmatpush.bf16.msra.mxu0 0
    %2949 = vmatpush.bf16.msra.mxu0 0
    %2950 = vmatpush.bf16.msra.mxu0 0
    %2951 = vmatpush.bf16.msra.mxu0 0
    %2952 = vmatpush.bf16.msra.mxu0 0
    %2953 = vmatpush.bf16.msra.mxu0 0
    %2954 = vmatpush.bf16.msra.mxu0 0
    %2955 = vmatpush.bf16.msra.mxu0 %v2946
    %2956 = vmatmul.bf16.gmra.mxu0 %v2943
    %v2957 = vpop.f32.mrf.mxu0
    %v2958 = vadd.f32 0.0, %v2957
    %v2959 = vpop.f32.mrf.mxu0
    %2960 = vdwg.mxu0
    %2961 = vrot.lane.b32.xlu0 %v1873, 32
    %v2962 = vpop.permute.xlu0 %2961
    %v2964 = vsel %vm1165, %v2853, 0
    %v2967 = vsel %vm1265, %v2962, 0
    %2969 = vmatpush.bf16.msra.mxu0 0
    %2970 = vmatpush.bf16.msra.mxu0 0
    %2971 = vmatpush.bf16.msra.mxu0 0
    %2972 = vmatpush.bf16.msra.mxu0 0
    %2973 = vmatpush.bf16.msra.mxu0 0
    %2974 = vmatpush.bf16.msra.mxu0 0
    %2975 = vmatpush.bf16.msra.mxu0 0
    %2976 = vmatpush.bf16.msra.mxu0 %v2967
    %2977 = vmatmul.bf16.gmra.mxu0 %v2964
    %v2978 = vpop.f32.mrf.mxu0
    %v2979 = vadd.f32 0.0, %v2978
    %v2980 = vpop.f32.mrf.mxu0
    %2981 = vdwg.mxu0
    %2982 = vrot.lane.b32.xlu0 %v1897, 32
    %v2983 = vpop.permute.xlu0 %2982
    %v2985 = vsel %vm1165, %v2854, 0
    %v2988 = vsel %vm1265, %v2983, 0
    %2990 = vmatpush.bf16.msra.mxu0 0
    %2991 = vmatpush.bf16.msra.mxu0 0
    %2992 = vmatpush.bf16.msra.mxu0 0
    %2993 = vmatpush.bf16.msra.mxu0 0
    %2994 = vmatpush.bf16.msra.mxu0 0
    %2995 = vmatpush.bf16.msra.mxu0 0
    %2996 = vmatpush.bf16.msra.mxu0 0
    %2997 = vmatpush.bf16.msra.mxu0 %v2988
    %2998 = vmatmul.bf16.gmra.mxu0 %v2985
    %v2999 = vpop.f32.mrf.mxu0
    %v3000 = vadd.f32 0.0, %v2999
    %v3001 = vpop.f32.mrf.mxu0
    %3002 = vdwg.mxu0
    %3003 = vrot.lane.b32.xlu0 %v1921, 32
    %v3004 = vpop.permute.xlu0 %3003
    %v3006 = vsel %vm1165, %v2855, 0
    %v3009 = vsel %vm1265, %v3004, 0
    %3011 = vmatpush.bf16.msra.mxu0 0
    %3012 = vmatpush.bf16.msra.mxu0 0
    %3013 = vmatpush.bf16.msra.mxu0 0
    %3014 = vmatpush.bf16.msra.mxu0 0
    %3015 = vmatpush.bf16.msra.mxu0 0
    %3016 = vmatpush.bf16.msra.mxu0 0
    %3017 = vmatpush.bf16.msra.mxu0 0
    %3018 = vmatpush.bf16.msra.mxu0 %v3009
    %3019 = vmatmul.bf16.gmra.mxu0 %v3006
    %v3020 = vpop.f32.mrf.mxu0
    %v3021 = vadd.f32 0.0, %v3020
    %v3022 = vpop.f32.mrf.mxu0
    %3023 = vdwg.mxu0
    %s3024 = scalar_lea.vmem [#allocation9], 48
    %v3025 = vld [vmem:[%s3024] sm:$0xf]
    %v3026 = vld [vmem:[%s3024 + $0x4] sm:$0xf]
    %v3027 = vld [vmem:[%s3024 + $0x8] sm:$0xf]
    %v3028 = vld [vmem:[%s3024 + $0xc] sm:$0xf]
    %v3029 = vpack.c.bf16 %v2895, %v2874
    %v3030 = vpack.c.bf16 %v2937, %v2916
    %v3031 = vpack.c.bf16 %v2979, %v2958
    %v3032 = vpack.c.bf16 %v3021, %v3000
    %v3037 = vunpack.c.l.b16 %v3025
    %v3038 = vunpack.c.l.b16 %v3026
    %v3039 = vunpack.c.l.b16 %v3027
    %v3040 = vunpack.c.l.b16 %v3028
    %v3041 = vpack.c.b16 %v3038, %v3037
    %v3042 = vpack.c.b16 %v3040, %v3039
    %v3046 = vsel %vm1012, %v3029, 0
    %v3049 = vsel %vm1012, %v3030, 0
    %v3052 = vsel %vm1012, %v3031, 0
    %v3055 = vsel %vm1012, %v3032, 0
    %3057 = vmatpush.bf16.msra.mxu0 0
    %3058 = vmatpush.bf16.msra.mxu0 0
    %3059 = vmatpush.bf16.msra.mxu0 0
    %3060 = vmatpush.bf16.msra.mxu0 0
    %3061 = vmatpush.bf16.msra.mxu0 0
    %3062 = vmatpush.bf16.msra.mxu0 0
    %3063 = vmatpush.bf16.msra.mxu0 %v3042
    %3064 = vmatpush.bf16.msra.mxu0 %v3041
    %3065 = vmatmul.bf16.gmra.mxu0 %v3046
    %v3066 = vpop.f32.mrf.mxu0
    %v3067 = vadd.f32 0.0, %v3066
    %v3068 = vpop.f32.mrf.mxu0
    %v3069 = vadd.f32 0.0, %v3068
    %3070 = vmatmul.bf16.gmra.mxu0 %v3049
    %v3071 = vpop.f32.mrf.mxu0
    %v3072 = vadd.f32 0.0, %v3071
    %v3073 = vpop.f32.mrf.mxu0
    %v3074 = vadd.f32 0.0, %v3073
    %3075 = vmatmul.bf16.gmra.mxu0 %v3052
    %v3076 = vpop.f32.mrf.mxu0
    %v3077 = vadd.f32 0.0, %v3076
    %v3078 = vpop.f32.mrf.mxu0
    %v3079 = vadd.f32 0.0, %v3078
    %3080 = vmatmul.bf16.gmra.mxu0 %v3055
    %v3081 = vpop.f32.mrf.mxu0
    %v3082 = vadd.f32 0.0, %v3081
    %v3083 = vpop.f32.mrf.mxu0
    %v3084 = vadd.f32 0.0, %v3083
    %3085 = vdwg.mxu0
    %v3086 = vadd.f32 %v2568, %v3067
    %v3087 = vadd.f32 %v2569, %v3069
    %v3088 = vadd.f32 %v2570, %v3072
    %v3089 = vadd.f32 %v2571, %v3074
    %v3090 = vadd.f32 %v2572, %v3077
    %v3091 = vadd.f32 %v2573, %v3079
    %v3092 = vadd.f32 %v2574, %v3082
    %v3093 = vadd.f32 %v2575, %v3084
    %v3094 = vadd.f32 %v518, %v3086
    %v3095 = vadd.f32 %v519, %v3087
    %v3096 = vadd.f32 %v520, %v3088
    %v3097 = vadd.f32 %v521, %v3089
    %v3098 = vadd.f32 %v522, %v3090
    %v3099 = vadd.f32 %v523, %v3091
    %v3100 = vadd.f32 %v524, %v3092
    %v3101 = vadd.f32 %v525, %v3093
    %v3102 = vld [vmem:[#allocation10] sm:$0x1]
    %v3104 = vperm.slane %v3102, 0
    %v3106 = vadd.f32 %v3094, %v3104
    %v3107 = vadd.f32 %v3095, %v3104
    %v3108 = vadd.f32 %v3096, %v3104
    %v3109 = vadd.f32 %v3097, %v3104
    %v3110 = vadd.f32 %v3098, %v3104
    %v3111 = vadd.f32 %v3099, %v3104
    %v3112 = vadd.f32 %v3100, %v3104
    %v3113 = vadd.f32 %v3101, %v3104
    %v3114 = vld [vmem:[#allocation12] sm:$0x1]
    %v3115 = vld [vmem:[#allocation13] sm:$0x1]
    %3116 = vadd.xlane.f32.xlu0 %v3106
    %v3117 = vpop.xlane.xlu0 %3116
    %3118 = vadd.xlane.f32.xlu0 %v3107
    %v3119 = vpop.xlane.xlu0 %3118
    %3120 = vadd.xlane.f32.xlu0 %v3108
    %v3121 = vpop.xlane.xlu0 %3120
    %3122 = vadd.xlane.f32.xlu0 %v3109
    %v3123 = vpop.xlane.xlu0 %3122
    %3124 = vadd.xlane.f32.xlu0 %v3110
    %v3125 = vpop.xlane.xlu0 %3124
    %3126 = vadd.xlane.f32.xlu0 %v3111
    %v3127 = vpop.xlane.xlu0 %3126
    %3128 = vadd.xlane.f32.xlu0 %v3112
    %v3129 = vpop.xlane.xlu0 %3128
    %3130 = vadd.xlane.f32.xlu0 %v3113
    %v3131 = vpop.xlane.xlu0 %3130
    %v3132 = vmul.f32 %v3117, %v554
    %v3133 = vmul.f32 %v3119, %v554
    %v3134 = vmul.f32 %v3121, %v554
    %v3135 = vmul.f32 %v3123, %v554
    %v3136 = vmul.f32 %v3125, %v554
    %v3137 = vmul.f32 %v3127, %v554
    %v3138 = vmul.f32 %v3129, %v554
    %v3139 = vmul.f32 %v3131, %v554
    %v3140 = vsub.f32 %v3106, %v3132
    %v3141 = vsub.f32 %v3107, %v3133
    %v3142 = vsub.f32 %v3108, %v3134
    %v3143 = vsub.f32 %v3109, %v3135
    %v3144 = vsub.f32 %v3110, %v3136
    %v3145 = vsub.f32 %v3111, %v3137
    %v3146 = vsub.f32 %v3112, %v3138
    %v3147 = vsub.f32 %v3113, %v3139
    %v3148 = vmul.f32 %v3140, %v3140
    %v3149 = vmul.f32 %v3141, %v3141
    %v3150 = vmul.f32 %v3142, %v3142
    %v3151 = vmul.f32 %v3143, %v3143
    %v3152 = vmul.f32 %v3144, %v3144
    %v3153 = vmul.f32 %v3145, %v3145
    %v3154 = vmul.f32 %v3146, %v3146
    %v3155 = vmul.f32 %v3147, %v3147
    %3156 = vadd.xlane.f32.xlu0 %v3148
    %v3157 = vpop.xlane.xlu0 %3156
    %3158 = vadd.xlane.f32.xlu0 %v3149
    %v3159 = vpop.xlane.xlu0 %3158
    %3160 = vadd.xlane.f32.xlu0 %v3150
    %v3161 = vpop.xlane.xlu0 %3160
    %3162 = vadd.xlane.f32.xlu0 %v3151
    %v3163 = vpop.xlane.xlu0 %3162
    %3164 = vadd.xlane.f32.xlu0 %v3152
    %v3165 = vpop.xlane.xlu0 %3164
    %3166 = vadd.xlane.f32.xlu0 %v3153
    %v3167 = vpop.xlane.xlu0 %3166
    %3168 = vadd.xlane.f32.xlu0 %v3154
    %v3169 = vpop.xlane.xlu0 %3168
    %3170 = vadd.xlane.f32.xlu0 %v3155
    %v3171 = vpop.xlane.xlu0 %3170
    %v3172 = vmul.f32 %v3157, %v554
    %v3173 = vmul.f32 %v3159, %v554
    %v3174 = vmul.f32 %v3161, %v554
    %v3175 = vmul.f32 %v3163, %v554
    %v3176 = vmul.f32 %v3165, %v554
    %v3177 = vmul.f32 %v3167, %v554
    %v3178 = vmul.f32 %v3169, %v554
    %v3179 = vmul.f32 %v3171, %v554
    %v3180 = vadd.f32 %v3172, 1e-05
    %v3181 = vadd.f32 %v3173, 1e-05
    %v3182 = vadd.f32 %v3174, 1e-05
    %v3183 = vadd.f32 %v3175, 1e-05
    %v3184 = vadd.f32 %v3176, 1e-05
    %v3185 = vadd.f32 %v3177, 1e-05
    %v3186 = vadd.f32 %v3178, 1e-05
    %v3187 = vadd.f32 %v3179, 1e-05
    %v3188 = vrsqrt.pop %v3180
    %v3189 = vmul.f32 %v3188, %v3180
    %v3190 = vmul.f32 %v3189, %v3188
    %v3191 = vmul.f32 0.5, %v3190
    %v3192 = vsub.f32 1.5, %v3191
    %v3193 = vmul.f32 %v3188, %v3192
    %vm3194 = vweird.f32 %v3180
    %vm3195 = vweird.f32 %v3188
    %vm3196 = vmor %vm3194, %vm3195
    %v3197 = vsel %vm3196, %v3188, %v3193
    %v3198 = vrsqrt.pop %v3181
    %v3199 = vmul.f32 %v3198, %v3181
    %v3200 = vmul.f32 %v3199, %v3198
    %v3201 = vmul.f32 0.5, %v3200
    %v3202 = vsub.f32 1.5, %v3201
    %v3203 = vmul.f32 %v3198, %v3202
    %vm3204 = vweird.f32 %v3181
    %vm3205 = vweird.f32 %v3198
    %vm3206 = vmor %vm3204, %vm3205
    %v3207 = vsel %vm3206, %v3198, %v3203
    %v3208 = vrsqrt.pop %v3182
    %v3209 = vmul.f32 %v3208, %v3182
    %v3210 = vmul.f32 %v3209, %v3208
    %v3211 = vmul.f32 0.5, %v3210
    %v3212 = vsub.f32 1.5, %v3211
    %v3213 = vmul.f32 %v3208, %v3212
    %vm3214 = vweird.f32 %v3182
    %vm3215 = vweird.f32 %v3208
    %vm3216 = vmor %vm3214, %vm3215
    %v3217 = vsel %vm3216, %v3208, %v3213
    %v3218 = vrsqrt.pop %v3183
    %v3219 = vmul.f32 %v3218, %v3183
    %v3220 = vmul.f32 %v3219, %v3218
    %v3221 = vmul.f32 0.5, %v3220
    %v3222 = vsub.f32 1.5, %v3221
    %v3223 = vmul.f32 %v3218, %v3222
    %vm3224 = vweird.f32 %v3183
    %vm3225 = vweird.f32 %v3218
    %vm3226 = vmor %vm3224, %vm3225
    %v3227 = vsel %vm3226, %v3218, %v3223
    %v3228 = vrsqrt.pop %v3184
    %v3229 = vmul.f32 %v3228, %v3184
    %v3230 = vmul.f32 %v3229, %v3228
    %v3231 = vmul.f32 0.5, %v3230
    %v3232 = vsub.f32 1.5, %v3231
    %v3233 = vmul.f32 %v3228, %v3232
    %vm3234 = vweird.f32 %v3184
    %vm3235 = vweird.f32 %v3228
    %vm3236 = vmor %vm3234, %vm3235
    %v3237 = vsel %vm3236, %v3228, %v3233
    %v3238 = vrsqrt.pop %v3185
    %v3239 = vmul.f32 %v3238, %v3185
    %v3240 = vmul.f32 %v3239, %v3238
    %v3241 = vmul.f32 0.5, %v3240
    %v3242 = vsub.f32 1.5, %v3241
    %v3243 = vmul.f32 %v3238, %v3242
    %vm3244 = vweird.f32 %v3185
    %vm3245 = vweird.f32 %v3238
    %vm3246 = vmor %vm3244, %vm3245
    %v3247 = vsel %vm3246, %v3238, %v3243
    %v3248 = vrsqrt.pop %v3186
    %v3249 = vmul.f32 %v3248, %v3186
    %v3250 = vmul.f32 %v3249, %v3248
    %v3251 = vmul.f32 0.5, %v3250
    %v3252 = vsub.f32 1.5, %v3251
    %v3253 = vmul.f32 %v3248, %v3252
    %vm3254 = vweird.f32 %v3186
    %vm3255 = vweird.f32 %v3248
    %vm3256 = vmor %vm3254, %vm3255
    %v3257 = vsel %vm3256, %v3248, %v3253
    %v3258 = vrsqrt.pop %v3187
    %v3259 = vmul.f32 %v3258, %v3187
    %v3260 = vmul.f32 %v3259, %v3258
    %v3261 = vmul.f32 0.5, %v3260
    %v3262 = vsub.f32 1.5, %v3261
    %v3263 = vmul.f32 %v3258, %v3262
    %vm3264 = vweird.f32 %v3187
    %vm3265 = vweird.f32 %v3258
    %vm3266 = vmor %vm3264, %vm3265
    %v3267 = vsel %vm3266, %v3258, %v3263
    %v3268 = vmul.f32 %v3140, %v3197
    %v3269 = vmul.f32 %v3141, %v3207
    %v3270 = vmul.f32 %v3142, %v3217
    %v3271 = vmul.f32 %v3143, %v3227
    %v3272 = vmul.f32 %v3144, %v3237
    %v3273 = vmul.f32 %v3145, %v3247
    %v3274 = vmul.f32 %v3146, %v3257
    %v3275 = vmul.f32 %v3147, %v3267
    %v3277 = vperm.slane %v3114, 0
    %v3279 = vmul.f32 %v3268, %v3277
    %v3280 = vmul.f32 %v3269, %v3277
    %v3281 = vmul.f32 %v3270, %v3277
    %v3282 = vmul.f32 %v3271, %v3277
    %v3283 = vmul.f32 %v3272, %v3277
    %v3284 = vmul.f32 %v3273, %v3277
    %v3285 = vmul.f32 %v3274, %v3277
    %v3286 = vmul.f32 %v3275, %v3277
    %v3288 = vperm.slane %v3115, 0
    %v3290 = vadd.f32 %v3279, %v3288
    %v3291 = vadd.f32 %v3280, %v3288
    %v3292 = vadd.f32 %v3281, %v3288
    %v3293 = vadd.f32 %v3282, %v3288
    %v3294 = vadd.f32 %v3283, %v3288
    %v3295 = vadd.f32 %v3284, %v3288
    %v3296 = vadd.f32 %v3285, %v3288
    %v3297 = vadd.f32 %v3286, %v3288
    %v3298 = vld [vmem:[%s12] sm:$0xff]
    %v3299 = vld [vmem:[%s12 + $0x8] sm:$0xff]
    %v3300 = vld [vmem:[%s12 + $0x10] sm:$0xff]
    %v3301 = vld [vmem:[%s12 + $0x18] sm:$0xff]
    %v3302 = vld [vmem:[%s12 + $0x20] sm:$0xff]
    %v3303 = vld [vmem:[%s12 + $0x28] sm:$0xff]
    %v3304 = vld [vmem:[%s12 + $0x30] sm:$0xff]
    %v3305 = vld [vmem:[%s12 + $0x38] sm:$0xff]
    %v3306 = vld [vmem:[%s12 + $0x40] sm:$0xff]
    %v3307 = vld [vmem:[%s12 + $0x48] sm:$0xff]
    %v3308 = vld [vmem:[%s12 + $0x50] sm:$0xff]
    %v3309 = vld [vmem:[%s12 + $0x58] sm:$0xff]
    %v3310 = vld [vmem:[%s12 + $0x60] sm:$0xff]
    %v3311 = vld [vmem:[%s12 + $0x68] sm:$0xff]
    %v3312 = vld [vmem:[%s12 + $0x70] sm:$0xff]
    %v3313 = vld [vmem:[%s12 + $0x78] sm:$0xff]
    %v3314 = vpack.c.bf16 %v3291, %v3290
    %v3315 = vpack.c.bf16 %v3293, %v3292
    %v3316 = vpack.c.bf16 %v3295, %v3294
    %v3317 = vpack.c.bf16 %v3297, %v3296
    %v3318 = vld [vmem:[#allocation15] sm:$0x3]
    %v3320 = vperm.slane %v3318, 0
    %v3321 = vperm.slane %v3318, 1
    %v3340 = vunpack.c.l.b16 %v3298
    %v3341 = vunpack.c.h.b16 %v3298
    %v3342 = vunpack.c.l.b16 %v3299
    %v3343 = vunpack.c.h.b16 %v3299
    %v3344 = vunpack.c.l.b16 %v3300
    %v3345 = vunpack.c.h.b16 %v3300
    %v3346 = vunpack.c.l.b16 %v3301
    %v3347 = vunpack.c.h.b16 %v3301
    %v3348 = vunpack.c.l.b16 %v3302
    %v3349 = vunpack.c.h.b16 %v3302
    %v3350 = vunpack.c.l.b16 %v3303
    %v3351 = vunpack.c.h.b16 %v3303
    %v3352 = vunpack.c.l.b16 %v3304
    %v3353 = vunpack.c.h.b16 %v3304
    %v3354 = vunpack.c.l.b16 %v3305
    %v3355 = vunpack.c.h.b16 %v3305
    %v3356 = vunpack.c.l.b16 %v3306
    %v3357 = vunpack.c.h.b16 %v3306
    %v3358 = vunpack.c.l.b16 %v3307
    %v3359 = vunpack.c.h.b16 %v3307
    %v3360 = vunpack.c.l.b16 %v3308
    %v3361 = vunpack.c.h.b16 %v3308
    %v3362 = vunpack.c.l.b16 %v3309
    %v3363 = vunpack.c.h.b16 %v3309
    %v3364 = vunpack.c.l.b16 %v3310
    %v3365 = vunpack.c.h.b16 %v3310
    %v3366 = vunpack.c.l.b16 %v3311
    %v3367 = vunpack.c.h.b16 %v3311
    %v3368 = vunpack.c.l.b16 %v3312
    %v3369 = vunpack.c.h.b16 %v3312
    %v3370 = vunpack.c.l.b16 %v3313
    %v3371 = vunpack.c.h.b16 %v3313
    %v3372 = vpack.c.b16 %v3342, %v3340
    %v3373 = vpack.c.b16 %v3343, %v3341
    %v3374 = vpack.c.b16 %v3346, %v3344
    %v3375 = vpack.c.b16 %v3347, %v3345
    %v3376 = vpack.c.b16 %v3350, %v3348
    %v3377 = vpack.c.b16 %v3351, %v3349
    %v3378 = vpack.c.b16 %v3354, %v3352
    %v3379 = vpack.c.b16 %v3355, %v3353
    %v3380 = vpack.c.b16 %v3358, %v3356
    %v3381 = vpack.c.b16 %v3359, %v3357
    %v3382 = vpack.c.b16 %v3362, %v3360
    %v3383 = vpack.c.b16 %v3363, %v3361
    %v3384 = vpack.c.b16 %v3366, %v3364
    %v3385 = vpack.c.b16 %v3367, %v3365
    %v3386 = vpack.c.b16 %v3370, %v3368
    %v3387 = vpack.c.b16 %v3371, %v3369
    %3404 = vmatpush.bf16.msra.mxu0 %v3386
    %3405 = vmatpush.bf16.msra.mxu0 %v3384
    %3406 = vmatpush.bf16.msra.mxu0 %v3382
    %3407 = vmatpush.bf16.msra.mxu0 %v3380
    %3408 = vmatpush.bf16.msra.mxu0 %v3378
    %3409 = vmatpush.bf16.msra.mxu0 %v3376
    %3410 = vmatpush.bf16.msra.mxu0 %v3374
    %3411 = vmatpush.bf16.msra.mxu0 %v3372
    %3412 = vmatmul.bf16.gmra.mxu0 %v3314
    %v3413 = vpop.f32.mrf.mxu0
    %v3414 = vadd.f32 %v3320, %v3413
    %v3415 = vpop.f32.mrf.mxu0
    %v3416 = vadd.f32 %v3320, %v3415
    %3417 = vmatmul.bf16.gmra.mxu0 %v3315
    %v3418 = vpop.f32.mrf.mxu0
    %v3419 = vadd.f32 %v3320, %v3418
    %v3420 = vpop.f32.mrf.mxu0
    %v3421 = vadd.f32 %v3320, %v3420
    %3422 = vmatmul.bf16.gmra.mxu0 %v3316
    %v3423 = vpop.f32.mrf.mxu0
    %v3424 = vadd.f32 %v3320, %v3423
    %v3425 = vpop.f32.mrf.mxu0
    %v3426 = vadd.f32 %v3320, %v3425
    %3427 = vmatmul.bf16.gmra.mxu0 %v3317
    %v3428 = vpop.f32.mrf.mxu0
    %v3429 = vadd.f32 %v3320, %v3428
    %v3430 = vpop.f32.mrf.mxu0
    %v3431 = vadd.f32 %v3320, %v3430
    %3432 = vdwg.mxu0
    %3433 = vmatpush.bf16.msra.mxu0 %v3387
    %3434 = vmatpush.bf16.msra.mxu0 %v3385
    %3435 = vmatpush.bf16.msra.mxu0 %v3383
    %3436 = vmatpush.bf16.msra.mxu0 %v3381
    %3437 = vmatpush.bf16.msra.mxu0 %v3379
    %3438 = vmatpush.bf16.msra.mxu0 %v3377
    %3439 = vmatpush.bf16.msra.mxu0 %v3375
    %3440 = vmatpush.bf16.msra.mxu0 %v3373
    %3441 = vmatmul.bf16.gmra.mxu0 %v3314
    %v3442 = vpop.f32.mrf.mxu0
    %v3443 = vadd.f32 %v3321, %v3442
    %v3444 = vpop.f32.mrf.mxu0
    %v3445 = vadd.f32 %v3321, %v3444
    %3446 = vmatmul.bf16.gmra.mxu0 %v3315
    %v3447 = vpop.f32.mrf.mxu0
    %v3448 = vadd.f32 %v3321, %v3447
    %v3449 = vpop.f32.mrf.mxu0
    %v3450 = vadd.f32 %v3321, %v3449
    %3451 = vmatmul.bf16.gmra.mxu0 %v3316
    %v3452 = vpop.f32.mrf.mxu0
    %v3453 = vadd.f32 %v3321, %v3452
    %v3454 = vpop.f32.mrf.mxu0
    %v3455 = vadd.f32 %v3321, %v3454
    %3456 = vmatmul.bf16.gmra.mxu0 %v3317
    %v3457 = vpop.f32.mrf.mxu0
    %v3458 = vadd.f32 %v3321, %v3457
    %v3459 = vpop.f32.mrf.mxu0
    %v3460 = vadd.f32 %v3321, %v3459
    %3461 = vdwg.mxu0
    %v3462 = vmul.f32 %v3414, 0.5
    %v3463 = vmul.f32 %v3443, 0.5
    %v3464 = vmul.f32 %v3416, 0.5
    %v3465 = vmul.f32 %v3445, 0.5
    %v3466 = vmul.f32 %v3419, 0.5
    %v3467 = vmul.f32 %v3448, 0.5
    %v3468 = vmul.f32 %v3421, 0.5
    %v3469 = vmul.f32 %v3450, 0.5
    %v3470 = vmul.f32 %v3424, 0.5
    %v3471 = vmul.f32 %v3453, 0.5
    %v3472 = vmul.f32 %v3426, 0.5
    %v3473 = vmul.f32 %v3455, 0.5
    %v3474 = vmul.f32 %v3429, 0.5
    %v3475 = vmul.f32 %v3458, 0.5
    %v3476 = vmul.f32 %v3431, 0.5
    %v3477 = vmul.f32 %v3460, 0.5
    %v3478 = vmul.f32 %v3414, 0.044715
    %v3479 = vmul.f32 %v3443, 0.044715
    %v3480 = vmul.f32 %v3416, 0.044715
    %v3481 = vmul.f32 %v3445, 0.044715
    %v3482 = vmul.f32 %v3419, 0.044715
    %v3483 = vmul.f32 %v3448, 0.044715
    %v3484 = vmul.f32 %v3421, 0.044715
    %v3485 = vmul.f32 %v3450, 0.044715
    %v3486 = vmul.f32 %v3424, 0.044715
    %v3487 = vmul.f32 %v3453, 0.044715
    %v3488 = vmul.f32 %v3426, 0.044715
    %v3489 = vmul.f32 %v3455, 0.044715
    %v3490 = vmul.f32 %v3429, 0.044715
    %v3491 = vmul.f32 %v3458, 0.044715
    %v3492 = vmul.f32 %v3431, 0.044715
    %v3493 = vmul.f32 %v3460, 0.044715
    %v3494 = vmul.f32 %v3478, %v3414
    %v3495 = vmul.f32 %v3479, %v3443
    %v3496 = vmul.f32 %v3480, %v3416
    %v3497 = vmul.f32 %v3481, %v3445
    %v3498 = vmul.f32 %v3482, %v3419
    %v3499 = vmul.f32 %v3483, %v3448
    %v3500 = vmul.f32 %v3484, %v3421
    %v3501 = vmul.f32 %v3485, %v3450
    %v3502 = vmul.f32 %v3486, %v3424
    %v3503 = vmul.f32 %v3487, %v3453
    %v3504 = vmul.f32 %v3488, %v3426
    %v3505 = vmul.f32 %v3489, %v3455
    %v3506 = vmul.f32 %v3490, %v3429
    %v3507 = vmul.f32 %v3491, %v3458
    %v3508 = vmul.f32 %v3492, %v3431
    %v3509 = vmul.f32 %v3493, %v3460
    %v3510 = vmul.f32 %v3494, %v3414
    %v3511 = vmul.f32 %v3495, %v3443
    %v3512 = vmul.f32 %v3496, %v3416
    %v3513 = vmul.f32 %v3497, %v3445
    %v3514 = vmul.f32 %v3498, %v3419
    %v3515 = vmul.f32 %v3499, %v3448
    %v3516 = vmul.f32 %v3500, %v3421
    %v3517 = vmul.f32 %v3501, %v3450
    %v3518 = vmul.f32 %v3502, %v3424
    %v3519 = vmul.f32 %v3503, %v3453
    %v3520 = vmul.f32 %v3504, %v3426
    %v3521 = vmul.f32 %v3505, %v3455
    %v3522 = vmul.f32 %v3506, %v3429
    %v3523 = vmul.f32 %v3507, %v3458
    %v3524 = vmul.f32 %v3508, %v3431
    %v3525 = vmul.f32 %v3509, %v3460
    %v3526 = vadd.f32 %v3414, %v3510
    %v3527 = vadd.f32 %v3443, %v3511
    %v3528 = vadd.f32 %v3416, %v3512
    %v3529 = vadd.f32 %v3445, %v3513
    %v3530 = vadd.f32 %v3419, %v3514
    %v3531 = vadd.f32 %v3448, %v3515
    %v3532 = vadd.f32 %v3421, %v3516
    %v3533 = vadd.f32 %v3450, %v3517
    %v3534 = vadd.f32 %v3424, %v3518
    %v3535 = vadd.f32 %v3453, %v3519
    %v3536 = vadd.f32 %v3426, %v3520
    %v3537 = vadd.f32 %v3455, %v3521
    %v3538 = vadd.f32 %v3429, %v3522
    %v3539 = vadd.f32 %v3458, %v3523
    %v3540 = vadd.f32 %v3431, %v3524
    %v3541 = vadd.f32 %v3460, %v3525
    %v3542 = vmul.f32 %v3526, 0.7978846
    %v3543 = vmul.f32 %v3527, 0.7978846
    %v3544 = vmul.f32 %v3528, 0.7978846
    %v3545 = vmul.f32 %v3529, 0.7978846
    %v3546 = vmul.f32 %v3530, 0.7978846
    %v3547 = vmul.f32 %v3531, 0.7978846
    %v3548 = vmul.f32 %v3532, 0.7978846
    %v3549 = vmul.f32 %v3533, 0.7978846
    %v3550 = vmul.f32 %v3534, 0.7978846
    %v3551 = vmul.f32 %v3535, 0.7978846
    %v3552 = vmul.f32 %v3536, 0.7978846
    %v3553 = vmul.f32 %v3537, 0.7978846
    %v3554 = vmul.f32 %v3538, 0.7978846
    %v3555 = vmul.f32 %v3539, 0.7978846
    %v3556 = vmul.f32 %v3540, 0.7978846
    %v3557 = vmul.f32 %v3541, 0.7978846
    %v3558 = vtanh.pop %v3542
    %v3559 = vtanh.pop %v3543
    %v3560 = vtanh.pop %v3544
    %v3561 = vtanh.pop %v3545
    %v3562 = vtanh.pop %v3546
    %v3563 = vtanh.pop %v3547
    %v3564 = vtanh.pop %v3548
    %v3565 = vtanh.pop %v3549
    %v3566 = vtanh.pop %v3550
    %v3567 = vtanh.pop %v3551
    %v3568 = vtanh.pop %v3552
    %v3569 = vtanh.pop %v3553
    %v3570 = vtanh.pop %v3554
    %v3571 = vtanh.pop %v3555
    %v3572 = vtanh.pop %v3556
    %v3573 = vtanh.pop %v3557
    %v3574 = vadd.f32 %v3558, 1.0
    %v3575 = vadd.f32 %v3559, 1.0
    %v3576 = vadd.f32 %v3560, 1.0
    %v3577 = vadd.f32 %v3561, 1.0
    %v3578 = vadd.f32 %v3562, 1.0
    %v3579 = vadd.f32 %v3563, 1.0
    %v3580 = vadd.f32 %v3564, 1.0
    %v3581 = vadd.f32 %v3565, 1.0
    %v3582 = vadd.f32 %v3566, 1.0
    %v3583 = vadd.f32 %v3567, 1.0
    %v3584 = vadd.f32 %v3568, 1.0
    %v3585 = vadd.f32 %v3569, 1.0
    %v3586 = vadd.f32 %v3570, 1.0
    %v3587 = vadd.f32 %v3571, 1.0
    %v3588 = vadd.f32 %v3572, 1.0
    %v3589 = vadd.f32 %v3573, 1.0
    %v3590 = vmul.f32 %v3462, %v3574
    %v3591 = vmul.f32 %v3463, %v3575
    %v3592 = vmul.f32 %v3464, %v3576
    %v3593 = vmul.f32 %v3465, %v3577
    %v3594 = vmul.f32 %v3466, %v3578
    %v3595 = vmul.f32 %v3467, %v3579
    %v3596 = vmul.f32 %v3468, %v3580
    %v3597 = vmul.f32 %v3469, %v3581
    %v3598 = vmul.f32 %v3470, %v3582
    %v3599 = vmul.f32 %v3471, %v3583
    %v3600 = vmul.f32 %v3472, %v3584
    %v3601 = vmul.f32 %v3473, %v3585
    %v3602 = vmul.f32 %v3474, %v3586
    %v3603 = vmul.f32 %v3475, %v3587
    %v3604 = vmul.f32 %v3476, %v3588
    %v3605 = vmul.f32 %v3477, %v3589
    %v3606 = vld [vmem:[%s14] sm:$0xf]
    %v3607 = vld [vmem:[%s14 + $0x4] sm:$0xf]
    %v3608 = vld [vmem:[%s14 + $0x8] sm:$0xf]
    %v3609 = vld [vmem:[%s14 + $0xc] sm:$0xf]
    %v3610 = vld [vmem:[%s14 + $0x10] sm:$0xf]
    %v3611 = vld [vmem:[%s14 + $0x14] sm:$0xf]
    %v3612 = vld [vmem:[%s14 + $0x18] sm:$0xf]
    %v3613 = vld [vmem:[%s14 + $0x1c] sm:$0xf]
    %v3614 = vld [vmem:[%s14 + $0x20] sm:$0xf]
    %v3615 = vld [vmem:[%s14 + $0x24] sm:$0xf]
    %v3616 = vld [vmem:[%s14 + $0x28] sm:$0xf]
    %v3617 = vld [vmem:[%s14 + $0x2c] sm:$0xf]
    %v3618 = vld [vmem:[%s14 + $0x30] sm:$0xf]
    %v3619 = vld [vmem:[%s14 + $0x34] sm:$0xf]
    %v3620 = vld [vmem:[%s14 + $0x38] sm:$0xf]
    %v3621 = vld [vmem:[%s14 + $0x3c] sm:$0xf]
    %v3622 = vld [vmem:[%s14 + $0x40] sm:$0xf]
    %v3623 = vld [vmem:[%s14 + $0x44] sm:$0xf]
    %v3624 = vld [vmem:[%s14 + $0x48] sm:$0xf]
    %v3625 = vld [vmem:[%s14 + $0x4c] sm:$0xf]
    %v3626 = vld [vmem:[%s14 + $0x50] sm:$0xf]
    %v3627 = vld [vmem:[%s14 + $0x54] sm:$0xf]
    %v3628 = vld [vmem:[%s14 + $0x58] sm:$0xf]
    %v3629 = vld [vmem:[%s14 + $0x5c] sm:$0xf]
    %v3630 = vld [vmem:[%s14 + $0x60] sm:$0xf]
    %v3631 = vld [vmem:[%s14 + $0x64] sm:$0xf]
    %v3632 = vld [vmem:[%s14 + $0x68] sm:$0xf]
    %v3633 = vld [vmem:[%s14 + $0x6c] sm:$0xf]
    %v3634 = vld [vmem:[%s14 + $0x70] sm:$0xf]
    %v3635 = vld [vmem:[%s14 + $0x74] sm:$0xf]
    %v3636 = vld [vmem:[%s14 + $0x78] sm:$0xf]
    %v3637 = vld [vmem:[%s14 + $0x7c] sm:$0xf]
    %v3638 = vpack.c.bf16 %v3592, %v3590
    %v3639 = vpack.c.bf16 %v3593, %v3591
    %v3640 = vpack.c.bf16 %v3596, %v3594
    %v3641 = vpack.c.bf16 %v3597, %v3595
    %v3642 = vpack.c.bf16 %v3600, %v3598
    %v3643 = vpack.c.bf16 %v3601, %v3599
    %v3644 = vpack.c.bf16 %v3604, %v3602
    %v3645 = vpack.c.bf16 %v3605, %v3603
    %v3678 = vunpack.c.l.b16 %v3606
    %v3679 = vunpack.c.l.b16 %v3607
    %v3680 = vunpack.c.l.b16 %v3608
    %v3681 = vunpack.c.l.b16 %v3609
    %v3682 = vunpack.c.l.b16 %v3610
    %v3683 = vunpack.c.l.b16 %v3611
    %v3684 = vunpack.c.l.b16 %v3612
    %v3685 = vunpack.c.l.b16 %v3613
    %v3686 = vunpack.c.l.b16 %v3614
    %v3687 = vunpack.c.l.b16 %v3615
    %v3688 = vunpack.c.l.b16 %v3616
    %v3689 = vunpack.c.l.b16 %v3617
    %v3690 = vunpack.c.l.b16 %v3618
    %v3691 = vunpack.c.l.b16 %v3619
    %v3692 = vunpack.c.l.b16 %v3620
    %v3693 = vunpack.c.l.b16 %v3621
    %v3694 = vunpack.c.l.b16 %v3622
    %v3695 = vunpack.c.l.b16 %v3623
    %v3696 = vunpack.c.l.b16 %v3624
    %v3697 = vunpack.c.l.b16 %v3625
    %v3698 = vunpack.c.l.b16 %v3626
    %v3699 = vunpack.c.l.b16 %v3627
    %v3700 = vunpack.c.l.b16 %v3628
    %v3701 = vunpack.c.l.b16 %v3629
    %v3702 = vunpack.c.l.b16 %v3630
    %v3703 = vunpack.c.l.b16 %v3631
    %v3704 = vunpack.c.l.b16 %v3632
    %v3705 = vunpack.c.l.b16 %v3633
    %v3706 = vunpack.c.l.b16 %v3634
    %v3707 = vunpack.c.l.b16 %v3635
    %v3708 = vunpack.c.l.b16 %v3636
    %v3709 = vunpack.c.l.b16 %v3637
    %v3710 = vpack.c.b16 %v3679, %v3678
    %v3711 = vpack.c.b16 %v3681, %v3680
    %v3712 = vpack.c.b16 %v3683, %v3682
    %v3713 = vpack.c.b16 %v3685, %v3684
    %v3714 = vpack.c.b16 %v3687, %v3686
    %v3715 = vpack.c.b16 %v3689, %v3688
    %v3716 = vpack.c.b16 %v3691, %v3690
    %v3717 = vpack.c.b16 %v3693, %v3692
    %v3718 = vpack.c.b16 %v3695, %v3694
    %v3719 = vpack.c.b16 %v3697, %v3696
    %v3720 = vpack.c.b16 %v3699, %v3698
    %v3721 = vpack.c.b16 %v3701, %v3700
    %v3722 = vpack.c.b16 %v3703, %v3702
    %v3723 = vpack.c.b16 %v3705, %v3704
    %v3724 = vpack.c.b16 %v3707, %v3706
    %v3725 = vpack.c.b16 %v3709, %v3708
    %3742 = vmatpush.bf16.msra.mxu0 %v3717
    %3743 = vmatpush.bf16.msra.mxu0 %v3716
    %3744 = vmatpush.bf16.msra.mxu0 %v3715
    %3745 = vmatpush.bf16.msra.mxu0 %v3714
    %3746 = vmatpush.bf16.msra.mxu0 %v3713
    %3747 = vmatpush.bf16.msra.mxu0 %v3712
    %3748 = vmatpush.bf16.msra.mxu0 %v3711
    %3749 = vmatpush.bf16.msra.mxu0 %v3710
    %3750 = vmatmul.bf16.gmra.mxu0 %v3638
    %v3751 = vpop.f32.mrf.mxu0
    %v3752 = vadd.f32 0.0, %v3751
    %v3753 = vpop.f32.mrf.mxu0
    %v3754 = vadd.f32 0.0, %v3753
    %3755 = vmatmul.bf16.gmra.mxu0 %v3640
    %v3756 = vpop.f32.mrf.mxu0
    %v3757 = vadd.f32 0.0, %v3756
    %v3758 = vpop.f32.mrf.mxu0
    %v3759 = vadd.f32 0.0, %v3758
    %3760 = vmatmul.bf16.gmra.mxu0 %v3642
    %v3761 = vpop.f32.mrf.mxu0
    %v3762 = vadd.f32 0.0, %v3761
    %v3763 = vpop.f32.mrf.mxu0
    %v3764 = vadd.f32 0.0, %v3763
    %3765 = vmatmul.bf16.gmra.mxu0 %v3644
    %v3766 = vpop.f32.mrf.mxu0
    %v3767 = vadd.f32 0.0, %v3766
    %v3768 = vpop.f32.mrf.mxu0
    %v3769 = vadd.f32 0.0, %v3768
    %3770 = vdwg.mxu0
    %3771 = vmatpush.bf16.msra.mxu0 %v3725
    %3772 = vmatpush.bf16.msra.mxu0 %v3724
    %3773 = vmatpush.bf16.msra.mxu0 %v3723
    %3774 = vmatpush.bf16.msra.mxu0 %v3722
    %3775 = vmatpush.bf16.msra.mxu0 %v3721
    %3776 = vmatpush.bf16.msra.mxu0 %v3720
    %3777 = vmatpush.bf16.msra.mxu0 %v3719
    %3778 = vmatpush.bf16.msra.mxu0 %v3718
    %3779 = vmatmul.bf16.gmra.mxu0 %v3639
    %v3780 = vpop.f32.mrf.mxu0
    %v3781 = vadd.f32 %v3752, %v3780
    %v3782 = vpop.f32.mrf.mxu0
    %v3783 = vadd.f32 %v3754, %v3782
    %3784 = vmatmul.bf16.gmra.mxu0 %v3641
    %v3785 = vpop.f32.mrf.mxu0
    %v3786 = vadd.f32 %v3757, %v3785
    %v3787 = vpop.f32.mrf.mxu0
    %v3788 = vadd.f32 %v3759, %v3787
    %3789 = vmatmul.bf16.gmra.mxu0 %v3643
    %v3790 = vpop.f32.mrf.mxu0
    %v3791 = vadd.f32 %v3762, %v3790
    %v3792 = vpop.f32.mrf.mxu0
    %v3793 = vadd.f32 %v3764, %v3792
    %3794 = vmatmul.bf16.gmra.mxu0 %v3645
    %v3795 = vpop.f32.mrf.mxu0
    %v3796 = vadd.f32 %v3767, %v3795
    %v3797 = vpop.f32.mrf.mxu0
    %v3798 = vadd.f32 %v3769, %v3797
    %3799 = vdwg.mxu0
    %v3800 = vadd.f32 %v3106, %v3781
    %v3801 = vadd.f32 %v3107, %v3783
    %v3802 = vadd.f32 %v3108, %v3786
    %v3803 = vadd.f32 %v3109, %v3788
    %v3804 = vadd.f32 %v3110, %v3791
    %v3805 = vadd.f32 %v3111, %v3793
    %v3806 = vadd.f32 %v3112, %v3796
    %v3807 = vadd.f32 %v3113, %v3798
    %v3808 = vld [vmem:[#allocation16] sm:$0x1]
    %v3810 = vperm.slane %v3808, 0
    %v3812 = vadd.f32 %v3800, %v3810
    %v3813 = vadd.f32 %v3801, %v3810
    %v3814 = vadd.f32 %v3802, %v3810
    %v3815 = vadd.f32 %v3803, %v3810
    %v3816 = vadd.f32 %v3804, %v3810
    %v3817 = vadd.f32 %v3805, %v3810
    %v3818 = vadd.f32 %v3806, %v3810
    %v3819 = vadd.f32 %v3807, %v3810
    %s3820 = scalar_lea.vmem [#allocation4], 1
    %v3821 = vld [vmem:[%s3820] sm:$0x1]
    %s3822 = scalar_lea.vmem [#allocation6], 1
    %v3823 = vld [vmem:[%s3822] sm:$0x1]
    %3824 = vadd.xlane.f32.xlu0 %v3812
    %v3825 = vpop.xlane.xlu0 %3824
    %3826 = vadd.xlane.f32.xlu0 %v3813
    %v3827 = vpop.xlane.xlu0 %3826
    %3828 = vadd.xlane.f32.xlu0 %v3814
    %v3829 = vpop.xlane.xlu0 %3828
    %3830 = vadd.xlane.f32.xlu0 %v3815
    %v3831 = vpop.xlane.xlu0 %3830
    %3832 = vadd.xlane.f32.xlu0 %v3816
    %v3833 = vpop.xlane.xlu0 %3832
    %3834 = vadd.xlane.f32.xlu0 %v3817
    %v3835 = vpop.xlane.xlu0 %3834
    %3836 = vadd.xlane.f32.xlu0 %v3818
    %v3837 = vpop.xlane.xlu0 %3836
    %3838 = vadd.xlane.f32.xlu0 %v3819
    %v3839 = vpop.xlane.xlu0 %3838
    %v3840 = vmul.f32 %v3825, %v554
    %v3841 = vmul.f32 %v3827, %v554
    %v3842 = vmul.f32 %v3829, %v554
    %v3843 = vmul.f32 %v3831, %v554
    %v3844 = vmul.f32 %v3833, %v554
    %v3845 = vmul.f32 %v3835, %v554
    %v3846 = vmul.f32 %v3837, %v554
    %v3847 = vmul.f32 %v3839, %v554
    %v3848 = vsub.f32 %v3812, %v3840
    %v3849 = vsub.f32 %v3813, %v3841
    %v3850 = vsub.f32 %v3814, %v3842
    %v3851 = vsub.f32 %v3815, %v3843
    %v3852 = vsub.f32 %v3816, %v3844
    %v3853 = vsub.f32 %v3817, %v3845
    %v3854 = vsub.f32 %v3818, %v3846
    %v3855 = vsub.f32 %v3819, %v3847
    %v3856 = vmul.f32 %v3848, %v3848
    %v3857 = vmul.f32 %v3849, %v3849
    %v3858 = vmul.f32 %v3850, %v3850
    %v3859 = vmul.f32 %v3851, %v3851
    %v3860 = vmul.f32 %v3852, %v3852
    %v3861 = vmul.f32 %v3853, %v3853
    %v3862 = vmul.f32 %v3854, %v3854
    %v3863 = vmul.f32 %v3855, %v3855
    %3864 = vadd.xlane.f32.xlu0 %v3856
    %v3865 = vpop.xlane.xlu0 %3864
    %3866 = vadd.xlane.f32.xlu0 %v3857
    %v3867 = vpop.xlane.xlu0 %3866
    %3868 = vadd.xlane.f32.xlu0 %v3858
    %v3869 = vpop.xlane.xlu0 %3868
    %3870 = vadd.xlane.f32.xlu0 %v3859
    %v3871 = vpop.xlane.xlu0 %3870
    %3872 = vadd.xlane.f32.xlu0 %v3860
    %v3873 = vpop.xlane.xlu0 %3872
    %3874 = vadd.xlane.f32.xlu0 %v3861
    %v3875 = vpop.xlane.xlu0 %3874
    %3876 = vadd.xlane.f32.xlu0 %v3862
    %v3877 = vpop.xlane.xlu0 %3876
    %3878 = vadd.xlane.f32.xlu0 %v3863
    %v3879 = vpop.xlane.xlu0 %3878
    %v3880 = vmul.f32 %v3865, %v554
    %v3881 = vmul.f32 %v3867, %v554
    %v3882 = vmul.f32 %v3869, %v554
    %v3883 = vmul.f32 %v3871, %v554
    %v3884 = vmul.f32 %v3873, %v554
    %v3885 = vmul.f32 %v3875, %v554
    %v3886 = vmul.f32 %v3877, %v554
    %v3887 = vmul.f32 %v3879, %v554
    %v3888 = vadd.f32 %v3880, 1e-05
    %v3889 = vadd.f32 %v3881, 1e-05
    %v3890 = vadd.f32 %v3882, 1e-05
    %v3891 = vadd.f32 %v3883, 1e-05
    %v3892 = vadd.f32 %v3884, 1e-05
    %v3893 = vadd.f32 %v3885, 1e-05
    %v3894 = vadd.f32 %v3886, 1e-05
    %v3895 = vadd.f32 %v3887, 1e-05
    %v3896 = vrsqrt.pop %v3888
    %v3897 = vmul.f32 %v3896, %v3888
    %v3898 = vmul.f32 %v3897, %v3896
    %v3899 = vmul.f32 0.5, %v3898
    %v3900 = vsub.f32 1.5, %v3899
    %v3901 = vmul.f32 %v3896, %v3900
    %vm3902 = vweird.f32 %v3888
    %vm3903 = vweird.f32 %v3896
    %vm3904 = vmor %vm3902, %vm3903
    %v3905 = vsel %vm3904, %v3896, %v3901
    %v3906 = vrsqrt.pop %v3889
    %v3907 = vmul.f32 %v3906, %v3889
    %v3908 = vmul.f32 %v3907, %v3906
    %v3909 = vmul.f32 0.5, %v3908
    %v3910 = vsub.f32 1.5, %v3909
    %v3911 = vmul.f32 %v3906, %v3910
    %vm3912 = vweird.f32 %v3889
    %vm3913 = vweird.f32 %v3906
    %vm3914 = vmor %vm3912, %vm3913
    %v3915 = vsel %vm3914, %v3906, %v3911
    %v3916 = vrsqrt.pop %v3890
    %v3917 = vmul.f32 %v3916, %v3890
    %v3918 = vmul.f32 %v3917, %v3916
    %v3919 = vmul.f32 0.5, %v3918
    %v3920 = vsub.f32 1.5, %v3919
    %v3921 = vmul.f32 %v3916, %v3920
    %vm3922 = vweird.f32 %v3890
    %vm3923 = vweird.f32 %v3916
    %vm3924 = vmor %vm3922, %vm3923
    %v3925 = vsel %vm3924, %v3916, %v3921
    %v3926 = vrsqrt.pop %v3891
    %v3927 = vmul.f32 %v3926, %v3891
    %v3928 = vmul.f32 %v3927, %v3926
    %v3929 = vmul.f32 0.5, %v3928
    %v3930 = vsub.f32 1.5, %v3929
    %v3931 = vmul.f32 %v3926, %v3930
    %vm3932 = vweird.f32 %v3891
    %vm3933 = vweird.f32 %v3926
    %vm3934 = vmor %vm3932, %vm3933
    %v3935 = vsel %vm3934, %v3926, %v3931
    %v3936 = vrsqrt.pop %v3892
    %v3937 = vmul.f32 %v3936, %v3892
    %v3938 = vmul.f32 %v3937, %v3936
    %v3939 = vmul.f32 0.5, %v3938
    %v3940 = vsub.f32 1.5, %v3939
    %v3941 = vmul.f32 %v3936, %v3940
    %vm3942 = vweird.f32 %v3892
    %vm3943 = vweird.f32 %v3936
    %vm3944 = vmor %vm3942, %vm3943
    %v3945 = vsel %vm3944, %v3936, %v3941
    %v3946 = vrsqrt.pop %v3893
    %v3947 = vmul.f32 %v3946, %v3893
    %v3948 = vmul.f32 %v3947, %v3946
    %v3949 = vmul.f32 0.5, %v3948
    %v3950 = vsub.f32 1.5, %v3949
    %v3951 = vmul.f32 %v3946, %v3950
    %vm3952 = vweird.f32 %v3893
    %vm3953 = vweird.f32 %v3946
    %vm3954 = vmor %vm3952, %vm3953
    %v3955 = vsel %vm3954, %v3946, %v3951
    %v3956 = vrsqrt.pop %v3894
    %v3957 = vmul.f32 %v3956, %v3894
    %v3958 = vmul.f32 %v3957, %v3956
    %v3959 = vmul.f32 0.5, %v3958
    %v3960 = vsub.f32 1.5, %v3959
    %v3961 = vmul.f32 %v3956, %v3960
    %vm3962 = vweird.f32 %v3894
    %vm3963 = vweird.f32 %v3956
    %vm3964 = vmor %vm3962, %vm3963
    %v3965 = vsel %vm3964, %v3956, %v3961
    %v3966 = vrsqrt.pop %v3895
    %v3967 = vmul.f32 %v3966, %v3895
    %v3968 = vmul.f32 %v3967, %v3966
    %v3969 = vmul.f32 0.5, %v3968
    %v3970 = vsub.f32 1.5, %v3969
    %v3971 = vmul.f32 %v3966, %v3970
    %vm3972 = vweird.f32 %v3895
    %vm3973 = vweird.f32 %v3966
    %vm3974 = vmor %vm3972, %vm3973
    %v3975 = vsel %vm3974, %v3966, %v3971
    %v3976 = vmul.f32 %v3848, %v3905
    %v3977 = vmul.f32 %v3849, %v3915
    %v3978 = vmul.f32 %v3850, %v3925
    %v3979 = vmul.f32 %v3851, %v3935
    %v3980 = vmul.f32 %v3852, %v3945
    %v3981 = vmul.f32 %v3853, %v3955
    %v3982 = vmul.f32 %v3854, %v3965
    %v3983 = vmul.f32 %v3855, %v3975
    %v3985 = vperm.slane %v3821, 0
    %v3987 = vmul.f32 %v3976, %v3985
    %v3988 = vmul.f32 %v3977, %v3985
    %v3989 = vmul.f32 %v3978, %v3985
    %v3990 = vmul.f32 %v3979, %v3985
    %v3991 = vmul.f32 %v3980, %v3985
    %v3992 = vmul.f32 %v3981, %v3985
    %v3993 = vmul.f32 %v3982, %v3985
    %v3994 = vmul.f32 %v3983, %v3985
    %v3996 = vperm.slane %v3823, 0
    %v3998 = vadd.f32 %v3987, %v3996
    %v3999 = vadd.f32 %v3988, %v3996
    %v4000 = vadd.f32 %v3989, %v3996
    %v4001 = vadd.f32 %v3990, %v3996
    %v4002 = vadd.f32 %v3991, %v3996
    %v4003 = vadd.f32 %v3992, %v3996
    %v4004 = vadd.f32 %v3993, %v3996
    %v4005 = vadd.f32 %v3994, %v3996
    %s4006 = scalar_lea.vmem %s6, 192
    %v4007 = vld [vmem:[%s4006] sm:$0xff]
    %v4008 = vld [vmem:[%s4006 + $0x8] sm:$0xf]
    %v4009 = vld [vmem:[%s4006 + $0xc] sm:$0xff]
    %v4010 = vld [vmem:[%s4006 + $0x14] sm:$0xf]
    %v4011 = vld [vmem:[%s4006 + $0x18] sm:$0xff]
    %v4012 = vld [vmem:[%s4006 + $0x20] sm:$0xf]
    %v4013 = vld [vmem:[%s4006 + $0x24] sm:$0xff]
    %v4014 = vld [vmem:[%s4006 + $0x2c] sm:$0xf]
    %v4015 = vld [vmem:[%s4006 + $0x30] sm:$0xff]
    %v4016 = vld [vmem:[%s4006 + $0x38] sm:$0xf]
    %v4017 = vld [vmem:[%s4006 + $0x3c] sm:$0xff]
    %v4018 = vld [vmem:[%s4006 + $0x44] sm:$0xf]
    %v4019 = vld [vmem:[%s4006 + $0x48] sm:$0xff]
    %v4020 = vld [vmem:[%s4006 + $0x50] sm:$0xf]
    %v4021 = vld [vmem:[%s4006 + $0x54] sm:$0xff]
    %v4022 = vld [vmem:[%s4006 + $0x5c] sm:$0xf]
    %v4023 = vld [vmem:[%s4006 + $0x60] sm:$0xff]
    %v4024 = vld [vmem:[%s4006 + $0x68] sm:$0xf]
    %v4025 = vld [vmem:[%s4006 + $0x6c] sm:$0xff]
    %v4026 = vld [vmem:[%s4006 + $0x74] sm:$0xf]
    %v4027 = vld [vmem:[%s4006 + $0x78] sm:$0xff]
    %v4028 = vld [vmem:[%s4006 + $0x80] sm:$0xf]
    %v4029 = vld [vmem:[%s4006 + $0x84] sm:$0xff]
    %v4030 = vld [vmem:[%s4006 + $0x8c] sm:$0xf]
    %v4031 = vld [vmem:[%s4006 + $0x90] sm:$0xff]
    %v4032 = vld [vmem:[%s4006 + $0x98] sm:$0xf]
    %v4033 = vld [vmem:[%s4006 + $0x9c] sm:$0xff]
    %v4034 = vld [vmem:[%s4006 + $0xa4] sm:$0xf]
    %v4035 = vld [vmem:[%s4006 + $0xa8] sm:$0xff]
    %v4036 = vld [vmem:[%s4006 + $0xb0] sm:$0xf]
    %v4037 = vld [vmem:[%s4006 + $0xb4] sm:$0xff]
    %v4038 = vld [vmem:[%s4006 + $0xbc] sm:$0xf]
    %v4039 = vpack.c.bf16 %v3999, %v3998
    %v4040 = vpack.c.bf16 %v4001, %v4000
    %v4041 = vpack.c.bf16 %v4003, %v4002
    %v4042 = vpack.c.bf16 %v4005, %v4004
    %s4043 = scalar_lea.vmem [#allocation7], 3
    %v4044 = vld [vmem:[%s4043] sm:$0x7]
    %v4046 = vperm.slane %v4044, 0
    %v4047 = vperm.slane %v4044, 1
    %v4048 = vperm.slane %v4044, 2
    %v4084 = vunpack.c.l.b16 %v4007
    %v4085 = vunpack.c.h.b16 %v4007
    %v4086 = vunpack.c.l.b16 %v4008
    %v4087 = vunpack.c.l.b16 %v4009
    %v4088 = vunpack.c.h.b16 %v4009
    %v4089 = vunpack.c.l.b16 %v4010
    %v4090 = vunpack.c.l.b16 %v4011
    %v4091 = vunpack.c.h.b16 %v4011
    %v4092 = vunpack.c.l.b16 %v4012
    %v4093 = vunpack.c.l.b16 %v4013
    %v4094 = vunpack.c.h.b16 %v4013
    %v4095 = vunpack.c.l.b16 %v4014
    %v4096 = vunpack.c.l.b16 %v4015
    %v4097 = vunpack.c.h.b16 %v4015
    %v4098 = vunpack.c.l.b16 %v4016
    %v4099 = vunpack.c.l.b16 %v4017
    %v4100 = vunpack.c.h.b16 %v4017
    %v4101 = vunpack.c.l.b16 %v4018
    %v4102 = vunpack.c.l.b16 %v4019
    %v4103 = vunpack.c.h.b16 %v4019
    %v4104 = vunpack.c.l.b16 %v4020
    %v4105 = vunpack.c.l.b16 %v4021
    %v4106 = vunpack.c.h.b16 %v4021
    %v4107 = vunpack.c.l.b16 %v4022
    %v4108 = vunpack.c.l.b16 %v4023
    %v4109 = vunpack.c.h.b16 %v4023
    %v4110 = vunpack.c.l.b16 %v4024
    %v4111 = vunpack.c.l.b16 %v4025
    %v4112 = vunpack.c.h.b16 %v4025
    %v4113 = vunpack.c.l.b16 %v4026
    %v4114 = vunpack.c.l.b16 %v4027
    %v4115 = vunpack.c.h.b16 %v4027
    %v4116 = vunpack.c.l.b16 %v4028
    %v4117 = vunpack.c.l.b16 %v4029
    %v4118 = vunpack.c.h.b16 %v4029
    %v4119 = vunpack.c.l.b16 %v4030
    %v4120 = vunpack.c.l.b16 %v4031
    %v4121 = vunpack.c.h.b16 %v4031
    %v4122 = vunpack.c.l.b16 %v4032
    %v4123 = vunpack.c.l.b16 %v4033
    %v4124 = vunpack.c.h.b16 %v4033
    %v4125 = vunpack.c.l.b16 %v4034
    %v4126 = vunpack.c.l.b16 %v4035
    %v4127 = vunpack.c.h.b16 %v4035
    %v4128 = vunpack.c.l.b16 %v4036
    %v4129 = vunpack.c.l.b16 %v4037
    %v4130 = vunpack.c.h.b16 %v4037
    %v4131 = vunpack.c.l.b16 %v4038
    %v4132 = vpack.c.b16 %v4087, %v4084
    %v4133 = vpack.c.b16 %v4088, %v4085
    %v4134 = vpack.c.b16 %v4089, %v4086
    %v4135 = vpack.c.b16 %v4093, %v4090
    %v4136 = vpack.c.b16 %v4094, %v4091
    %v4137 = vpack.c.b16 %v4095, %v4092
    %v4138 = vpack.c.b16 %v4099, %v4096
    %v4139 = vpack.c.b16 %v4100, %v4097
    %v4140 = vpack.c.b16 %v4101, %v4098
    %v4141 = vpack.c.b16 %v4105, %v4102
    %v4142 = vpack.c.b16 %v4106, %v4103
    %v4143 = vpack.c.b16 %v4107, %v4104
    %v4144 = vpack.c.b16 %v4111, %v4108
    %v4145 = vpack.c.b16 %v4112, %v4109
    %v4146 = vpack.c.b16 %v4113, %v4110
    %v4147 = vpack.c.b16 %v4117, %v4114
    %v4148 = vpack.c.b16 %v4118, %v4115
    %v4149 = vpack.c.b16 %v4119, %v4116
    %v4150 = vpack.c.b16 %v4123, %v4120
    %v4151 = vpack.c.b16 %v4124, %v4121
    %v4152 = vpack.c.b16 %v4125, %v4122
    %v4153 = vpack.c.b16 %v4129, %v4126
    %v4154 = vpack.c.b16 %v4130, %v4127
    %v4155 = vpack.c.b16 %v4131, %v4128
    %4180 = vmatpush.bf16.msra.mxu0 %v4153
    %4181 = vmatpush.bf16.msra.mxu0 %v4150
    %4182 = vmatpush.bf16.msra.mxu0 %v4147
    %4183 = vmatpush.bf16.msra.mxu0 %v4144
    %4184 = vmatpush.bf16.msra.mxu0 %v4141
    %4185 = vmatpush.bf16.msra.mxu0 %v4138
    %4186 = vmatpush.bf16.msra.mxu0 %v4135
    %4187 = vmatpush.bf16.msra.mxu0 %v4132
    %4188 = vmatmul.bf16.gmra.mxu0 %v4039
    %v4189 = vpop.f32.mrf.mxu0
    %v4190 = vadd.f32 %v4046, %v4189
    %v4191 = vpop.f32.mrf.mxu0
    %v4192 = vadd.f32 %v4046, %v4191
    %4193 = vmatmul.bf16.gmra.mxu0 %v4040
    %v4194 = vpop.f32.mrf.mxu0
    %v4195 = vadd.f32 %v4046, %v4194
    %v4196 = vpop.f32.mrf.mxu0
    %v4197 = vadd.f32 %v4046, %v4196
    %4198 = vmatmul.bf16.gmra.mxu0 %v4041
    %v4199 = vpop.f32.mrf.mxu0
    %v4200 = vadd.f32 %v4046, %v4199
    %v4201 = vpop.f32.mrf.mxu0
    %v4202 = vadd.f32 %v4046, %v4201
    %4203 = vmatmul.bf16.gmra.mxu0 %v4042
    %v4204 = vpop.f32.mrf.mxu0
    %v4205 = vadd.f32 %v4046, %v4204
    %v4206 = vpop.f32.mrf.mxu0
    %v4207 = vadd.f32 %v4046, %v4206
    %4208 = vdwg.mxu0
    %4209 = vmatpush.bf16.msra.mxu0 %v4154
    %4210 = vmatpush.bf16.msra.mxu0 %v4151
    %4211 = vmatpush.bf16.msra.mxu0 %v4148
    %4212 = vmatpush.bf16.msra.mxu0 %v4145
    %4213 = vmatpush.bf16.msra.mxu0 %v4142
    %4214 = vmatpush.bf16.msra.mxu0 %v4139
    %4215 = vmatpush.bf16.msra.mxu0 %v4136
    %4216 = vmatpush.bf16.msra.mxu0 %v4133
    %4217 = vmatmul.bf16.gmra.mxu0 %v4039
    %v4218 = vpop.f32.mrf.mxu0
    %v4219 = vadd.f32 %v4047, %v4218
    %v4220 = vpop.f32.mrf.mxu0
    %v4221 = vadd.f32 %v4047, %v4220
    %4222 = vmatmul.bf16.gmra.mxu0 %v4040
    %v4223 = vpop.f32.mrf.mxu0
    %v4224 = vadd.f32 %v4047, %v4223
    %v4225 = vpop.f32.mrf.mxu0
    %v4226 = vadd.f32 %v4047, %v4225
    %4227 = vmatmul.bf16.gmra.mxu0 %v4041
    %v4228 = vpop.f32.mrf.mxu0
    %v4229 = vadd.f32 %v4047, %v4228
    %v4230 = vpop.f32.mrf.mxu0
    %v4231 = vadd.f32 %v4047, %v4230
    %4232 = vmatmul.bf16.gmra.mxu0 %v4042
    %v4233 = vpop.f32.mrf.mxu0
    %v4234 = vadd.f32 %v4047, %v4233
    %v4235 = vpop.f32.mrf.mxu0
    %v4236 = vadd.f32 %v4047, %v4235
    %4237 = vdwg.mxu0
    %4238 = vmatpush.bf16.msra.mxu0 %v4155
    %4239 = vmatpush.bf16.msra.mxu0 %v4152
    %4240 = vmatpush.bf16.msra.mxu0 %v4149
    %4241 = vmatpush.bf16.msra.mxu0 %v4146
    %4242 = vmatpush.bf16.msra.mxu0 %v4143
    %4243 = vmatpush.bf16.msra.mxu0 %v4140
    %4244 = vmatpush.bf16.msra.mxu0 %v4137
    %4245 = vmatpush.bf16.msra.mxu0 %v4134
    %4246 = vmatmul.bf16.gmra.mxu0 %v4039
    %v4247 = vpop.f32.mrf.mxu0
    %v4248 = vadd.f32 %v4048, %v4247
    %v4249 = vpop.f32.mrf.mxu0
    %v4250 = vadd.f32 %v4048, %v4249
    %4251 = vmatmul.bf16.gmra.mxu0 %v4040
    %v4252 = vpop.f32.mrf.mxu0
    %v4253 = vadd.f32 %v4048, %v4252
    %v4254 = vpop.f32.mrf.mxu0
    %v4255 = vadd.f32 %v4048, %v4254
    %4256 = vmatmul.bf16.gmra.mxu0 %v4041
    %v4257 = vpop.f32.mrf.mxu0
    %v4258 = vadd.f32 %v4048, %v4257
    %v4259 = vpop.f32.mrf.mxu0
    %v4260 = vadd.f32 %v4048, %v4259
    %4261 = vmatmul.bf16.gmra.mxu0 %v4042
    %v4262 = vpop.f32.mrf.mxu0
    %v4263 = vadd.f32 %v4048, %v4262
    %v4264 = vpop.f32.mrf.mxu0
    %v4265 = vadd.f32 %v4048, %v4264
    %4266 = vdwg.mxu0
    %v4267 = vmul.f32 %v4190, 0.17677669
    %v4268 = vmul.f32 %v4192, 0.17677669
    %v4269 = vmul.f32 %v4195, 0.17677669
    %v4270 = vmul.f32 %v4197, 0.17677669
    %v4271 = vmul.f32 %v4200, 0.17677669
    %v4272 = vmul.f32 %v4202, 0.17677669
    %v4273 = vmul.f32 %v4205, 0.17677669
    %v4274 = vmul.f32 %v4207, 0.17677669
    %v4275 = vpack.c.bf16 %v4267, %v4267
    %v4276 = vpack.c.bf16 %v4268, %v4268
    %v4277 = vpack.c.bf16 %v4269, %v4269
    %v4278 = vpack.c.bf16 %v4270, %v4270
    %v4279 = vpack.c.bf16 %v4271, %v4271
    %v4280 = vpack.c.bf16 %v4272, %v4272
    %v4281 = vpack.c.bf16 %v4273, %v4273
    %v4282 = vpack.c.bf16 %v4274, %v4274
    %v4283 = vpack.c.bf16 %v4219, %v4219
    %v4284 = vpack.c.bf16 %v4221, %v4221
    %v4285 = vpack.c.bf16 %v4224, %v4224
    %v4286 = vpack.c.bf16 %v4226, %v4226
    %v4287 = vpack.c.bf16 %v4229, %v4229
    %v4288 = vpack.c.bf16 %v4231, %v4231
    %v4289 = vpack.c.bf16 %v4234, %v4234
    %v4290 = vpack.c.bf16 %v4236, %v4236
    %v4291 = vpack.c.bf16 %v4248, %v4248
    %v4292 = vpack.c.bf16 %v4250, %v4250
    %v4293 = vpack.c.bf16 %v4253, %v4253
    %v4294 = vpack.c.bf16 %v4255, %v4255
    %v4295 = vpack.c.bf16 %v4258, %v4258
    %v4296 = vpack.c.bf16 %v4260, %v4260
    %v4297 = vpack.c.bf16 %v4263, %v4263
    %v4298 = vpack.c.bf16 %v4265, %v4265
    %v4300 = vsel %vm1012, %v4275, 0
    %v4303 = vsel %vm1012, %v4283, 0
    %4305 = vmatpush.bf16.xpose.msra.mxu0 0
    %4306 = vmatpush.bf16.xpose.msra.mxu0 0
    %4307 = vmatpush.bf16.xpose.msra.mxu0 0
    %4308 = vmatpush.bf16.xpose.msra.mxu0 0
    %4309 = vmatpush.bf16.xpose.msra.mxu0 0
    %4310 = vmatpush.bf16.xpose.msra.mxu0 0
    %4311 = vmatpush.bf16.xpose.msra.mxu0 0
    %4312 = vmatpush.bf16.xpose.msra.mxu0 %v4303
    %4313 = vmatmul.bf16.gmra.mxu0 %v4300
    %v4314 = vpop.f32.mrf.mxu0
    %v4315 = vadd.f32 %v529, %v4314
    %v4316 = vpop.f32.mrf.mxu0
    %4317 = vdwg.mxu0
    %v4319 = vsel %vm1012, %v4276, 0
    %v4322 = vsel %vm1012, %v4284, 0
    %4324 = vmatpush.bf16.xpose.msra.mxu0 0
    %4325 = vmatpush.bf16.xpose.msra.mxu0 0
    %4326 = vmatpush.bf16.xpose.msra.mxu0 0
    %4327 = vmatpush.bf16.xpose.msra.mxu0 0
    %4328 = vmatpush.bf16.xpose.msra.mxu0 0
    %4329 = vmatpush.bf16.xpose.msra.mxu0 0
    %4330 = vmatpush.bf16.xpose.msra.mxu0 0
    %4331 = vmatpush.bf16.xpose.msra.mxu0 %v4322
    %4332 = vmatmul.bf16.gmra.mxu0 %v4319
    %v4333 = vpop.f32.mrf.mxu0
    %v4334 = vadd.f32 %v529, %v4333
    %v4335 = vpop.f32.mrf.mxu0
    %4336 = vdwg.mxu0
    %v4338 = vsel %vm1012, %v4277, 0
    %v4341 = vsel %vm1012, %v4285, 0
    %4343 = vmatpush.bf16.xpose.msra.mxu0 0
    %4344 = vmatpush.bf16.xpose.msra.mxu0 0
    %4345 = vmatpush.bf16.xpose.msra.mxu0 0
    %4346 = vmatpush.bf16.xpose.msra.mxu0 0
    %4347 = vmatpush.bf16.xpose.msra.mxu0 0
    %4348 = vmatpush.bf16.xpose.msra.mxu0 0
    %4349 = vmatpush.bf16.xpose.msra.mxu0 0
    %4350 = vmatpush.bf16.xpose.msra.mxu0 %v4341
    %4351 = vmatmul.bf16.gmra.mxu0 %v4338
    %v4352 = vpop.f32.mrf.mxu0
    %v4353 = vadd.f32 %v529, %v4352
    %v4354 = vpop.f32.mrf.mxu0
    %4355 = vdwg.mxu0
    %v4357 = vsel %vm1012, %v4278, 0
    %v4360 = vsel %vm1012, %v4286, 0
    %4362 = vmatpush.bf16.xpose.msra.mxu0 0
    %4363 = vmatpush.bf16.xpose.msra.mxu0 0
    %4364 = vmatpush.bf16.xpose.msra.mxu0 0
    %4365 = vmatpush.bf16.xpose.msra.mxu0 0
    %4366 = vmatpush.bf16.xpose.msra.mxu0 0
    %4367 = vmatpush.bf16.xpose.msra.mxu0 0
    %4368 = vmatpush.bf16.xpose.msra.mxu0 0
    %4369 = vmatpush.bf16.xpose.msra.mxu0 %v4360
    %4370 = vmatmul.bf16.gmra.mxu0 %v4357
    %v4371 = vpop.f32.mrf.mxu0
    %v4372 = vadd.f32 %v529, %v4371
    %v4373 = vpop.f32.mrf.mxu0
    %4374 = vdwg.mxu0
    %v4376 = vsel %vm1012, %v4279, 0
    %v4379 = vsel %vm1012, %v4287, 0
    %4381 = vmatpush.bf16.xpose.msra.mxu0 0
    %4382 = vmatpush.bf16.xpose.msra.mxu0 0
    %4383 = vmatpush.bf16.xpose.msra.mxu0 0
    %4384 = vmatpush.bf16.xpose.msra.mxu0 0
    %4385 = vmatpush.bf16.xpose.msra.mxu0 0
    %4386 = vmatpush.bf16.xpose.msra.mxu0 0
    %4387 = vmatpush.bf16.xpose.msra.mxu0 0
    %4388 = vmatpush.bf16.xpose.msra.mxu0 %v4379
    %4389 = vmatmul.bf16.gmra.mxu0 %v4376
    %v4390 = vpop.f32.mrf.mxu0
    %v4391 = vadd.f32 %v529, %v4390
    %v4392 = vpop.f32.mrf.mxu0
    %4393 = vdwg.mxu0
    %v4395 = vsel %vm1012, %v4280, 0
    %v4398 = vsel %vm1012, %v4288, 0
    %4400 = vmatpush.bf16.xpose.msra.mxu0 0
    %4401 = vmatpush.bf16.xpose.msra.mxu0 0
    %4402 = vmatpush.bf16.xpose.msra.mxu0 0
    %4403 = vmatpush.bf16.xpose.msra.mxu0 0
    %4404 = vmatpush.bf16.xpose.msra.mxu0 0
    %4405 = vmatpush.bf16.xpose.msra.mxu0 0
    %4406 = vmatpush.bf16.xpose.msra.mxu0 0
    %4407 = vmatpush.bf16.xpose.msra.mxu0 %v4398
    %4408 = vmatmul.bf16.gmra.mxu0 %v4395
    %v4409 = vpop.f32.mrf.mxu0
    %v4410 = vadd.f32 %v529, %v4409
    %v4411 = vpop.f32.mrf.mxu0
    %4412 = vdwg.mxu0
    %v4414 = vsel %vm1012, %v4281, 0
    %v4417 = vsel %vm1012, %v4289, 0
    %4419 = vmatpush.bf16.xpose.msra.mxu0 0
    %4420 = vmatpush.bf16.xpose.msra.mxu0 0
    %4421 = vmatpush.bf16.xpose.msra.mxu0 0
    %4422 = vmatpush.bf16.xpose.msra.mxu0 0
    %4423 = vmatpush.bf16.xpose.msra.mxu0 0
    %4424 = vmatpush.bf16.xpose.msra.mxu0 0
    %4425 = vmatpush.bf16.xpose.msra.mxu0 0
    %4426 = vmatpush.bf16.xpose.msra.mxu0 %v4417
    %4427 = vmatmul.bf16.gmra.mxu0 %v4414
    %v4428 = vpop.f32.mrf.mxu0
    %v4429 = vadd.f32 %v529, %v4428
    %v4430 = vpop.f32.mrf.mxu0
    %4431 = vdwg.mxu0
    %v4433 = vsel %vm1012, %v4282, 0
    %v4436 = vsel %vm1012, %v4290, 0
    %4438 = vmatpush.bf16.xpose.msra.mxu0 0
    %4439 = vmatpush.bf16.xpose.msra.mxu0 0
    %4440 = vmatpush.bf16.xpose.msra.mxu0 0
    %4441 = vmatpush.bf16.xpose.msra.mxu0 0
    %4442 = vmatpush.bf16.xpose.msra.mxu0 0
    %4443 = vmatpush.bf16.xpose.msra.mxu0 0
    %4444 = vmatpush.bf16.xpose.msra.mxu0 0
    %4445 = vmatpush.bf16.xpose.msra.mxu0 %v4436
    %4446 = vmatmul.bf16.gmra.mxu0 %v4433
    %v4447 = vpop.f32.mrf.mxu0
    %v4448 = vadd.f32 %v529, %v4447
    %v4449 = vpop.f32.mrf.mxu0
    %4450 = vdwg.mxu0
    %v4451 = vsel %vm1165, %v4315, -inf
    %4452 = vmax.xlane.f32.xlu0 %v4451
    %v4453 = vpop.xlane.xlu0 %4452
    %v4454 = vsel %vm1165, %v4334, -inf
    %4455 = vmax.xlane.f32.xlu0 %v4454
    %v4456 = vpop.xlane.xlu0 %4455
    %v4457 = vsel %vm1165, %v4353, -inf
    %4458 = vmax.xlane.f32.xlu0 %v4457
    %v4459 = vpop.xlane.xlu0 %4458
    %v4460 = vsel %vm1165, %v4372, -inf
    %4461 = vmax.xlane.f32.xlu0 %v4460
    %v4462 = vpop.xlane.xlu0 %4461
    %v4463 = vsel %vm1165, %v4391, -inf
    %4464 = vmax.xlane.f32.xlu0 %v4463
    %v4465 = vpop.xlane.xlu0 %4464
    %v4466 = vsel %vm1165, %v4410, -inf
    %4467 = vmax.xlane.f32.xlu0 %v4466
    %v4468 = vpop.xlane.xlu0 %4467
    %v4469 = vsel %vm1165, %v4429, -inf
    %4470 = vmax.xlane.f32.xlu0 %v4469
    %v4471 = vpop.xlane.xlu0 %4470
    %v4472 = vsel %vm1165, %v4448, -inf
    %4473 = vmax.xlane.f32.xlu0 %v4472
    %v4474 = vpop.xlane.xlu0 %4473
    %v4475 = vsub.f32 %v4315, %v4453
    %v4476 = vsub.f32 %v4334, %v4456
    %v4477 = vsub.f32 %v4353, %v4459
    %v4478 = vsub.f32 %v4372, %v4462
    %v4479 = vsub.f32 %v4391, %v4465
    %v4480 = vsub.f32 %v4410, %v4468
    %v4481 = vsub.f32 %v4429, %v4471
    %v4482 = vsub.f32 %v4448, %v4474
    %v4483 = vmul.f32 %v4475, 1.442695
    %v4484 = vpow.pop %v4483
    %v4485 = vmul.f32 %v4476, 1.442695
    %v4486 = vpow.pop %v4485
    %v4487 = vmul.f32 %v4477, 1.442695
    %v4488 = vpow.pop %v4487
    %v4489 = vmul.f32 %v4478, 1.442695
    %v4490 = vpow.pop %v4489
    %v4491 = vmul.f32 %v4479, 1.442695
    %v4492 = vpow.pop %v4491
    %v4493 = vmul.f32 %v4480, 1.442695
    %v4494 = vpow.pop %v4493
    %v4495 = vmul.f32 %v4481, 1.442695
    %v4496 = vpow.pop %v4495
    %v4497 = vmul.f32 %v4482, 1.442695
    %v4498 = vpow.pop %v4497
    %v4499 = vsel %vm1165, %v4484, 0.0
    %4500 = vadd.xlane.f32.xlu0 %v4499
    %v4501 = vpop.xlane.xlu0 %4500
    %v4502 = vsel %vm1165, %v4486, 0.0
    %4503 = vadd.xlane.f32.xlu0 %v4502
    %v4504 = vpop.xlane.xlu0 %4503
    %v4505 = vsel %vm1165, %v4488, 0.0
    %4506 = vadd.xlane.f32.xlu0 %v4505
    %v4507 = vpop.xlane.xlu0 %4506
    %v4508 = vsel %vm1165, %v4490, 0.0
    %4509 = vadd.xlane.f32.xlu0 %v4508
    %v4510 = vpop.xlane.xlu0 %4509
    %v4511 = vsel %vm1165, %v4492, 0.0
    %4512 = vadd.xlane.f32.xlu0 %v4511
    %v4513 = vpop.xlane.xlu0 %4512
    %v4514 = vsel %vm1165, %v4494, 0.0
    %4515 = vadd.xlane.f32.xlu0 %v4514
    %v4516 = vpop.xlane.xlu0 %4515
    %v4517 = vsel %vm1165, %v4496, 0.0
    %4518 = vadd.xlane.f32.xlu0 %v4517
    %v4519 = vpop.xlane.xlu0 %4518
    %v4520 = vsel %vm1165, %v4498, 0.0
    %4521 = vadd.xlane.f32.xlu0 %v4520
    %v4522 = vpop.xlane.xlu0 %4521
    %v4523 = vrcp.pop %v4501
    %v4524 = vrcp.pop %v4504
    %v4525 = vrcp.pop %v4507
    %v4526 = vrcp.pop %v4510
    %v4527 = vrcp.pop %v4513
    %v4528 = vrcp.pop %v4516
    %v4529 = vrcp.pop %v4519
    %v4530 = vrcp.pop %v4522
    %v4531 = vmul.f32 %v4484, %v4523
    %v4532 = vmul.f32 %v4486, %v4524
    %v4533 = vmul.f32 %v4488, %v4525
    %v4534 = vmul.f32 %v4490, %v4526
    %v4535 = vmul.f32 %v4492, %v4527
    %v4536 = vmul.f32 %v4494, %v4528
    %v4537 = vmul.f32 %v4496, %v4529
    %v4538 = vmul.f32 %v4498, %v4530
    %v4539 = vpack.c.bf16 %v4531, %v4531
    %v4540 = vpack.c.bf16 %v4532, %v4532
    %v4541 = vpack.c.bf16 %v4533, %v4533
    %v4542 = vpack.c.bf16 %v4534, %v4534
    %v4543 = vpack.c.bf16 %v4535, %v4535
    %v4544 = vpack.c.bf16 %v4536, %v4536
    %v4545 = vpack.c.bf16 %v4537, %v4537
    %v4546 = vpack.c.bf16 %v4538, %v4538
    %v4548 = vsel %vm1165, %v4539, 0
    %v4551 = vsel %vm1265, %v4291, 0
    %4553 = vmatpush.bf16.msra.mxu0 0
    %4554 = vmatpush.bf16.msra.mxu0 0
    %4555 = vmatpush.bf16.msra.mxu0 0
    %4556 = vmatpush.bf16.msra.mxu0 0
    %4557 = vmatpush.bf16.msra.mxu0 0
    %4558 = vmatpush.bf16.msra.mxu0 0
    %4559 = vmatpush.bf16.msra.mxu0 0
    %4560 = vmatpush.bf16.msra.mxu0 %v4551
    %4561 = vmatmul.bf16.gmra.mxu0 %v4548
    %v4562 = vpop.f32.mrf.mxu0
    %v4563 = vadd.f32 0.0, %v4562
    %v4564 = vpop.f32.mrf.mxu0
    %4565 = vdwg.mxu0
    %v4567 = vsel %vm1165, %v4540, 0
    %v4570 = vsel %vm1265, %v4292, 0
    %4572 = vmatpush.bf16.msra.mxu0 0
    %4573 = vmatpush.bf16.msra.mxu0 0
    %4574 = vmatpush.bf16.msra.mxu0 0
    %4575 = vmatpush.bf16.msra.mxu0 0
    %4576 = vmatpush.bf16.msra.mxu0 0
    %4577 = vmatpush.bf16.msra.mxu0 0
    %4578 = vmatpush.bf16.msra.mxu0 0
    %4579 = vmatpush.bf16.msra.mxu0 %v4570
    %4580 = vmatmul.bf16.gmra.mxu0 %v4567
    %v4581 = vpop.f32.mrf.mxu0
    %v4582 = vadd.f32 0.0, %v4581
    %v4583 = vpop.f32.mrf.mxu0
    %4584 = vdwg.mxu0
    %v4586 = vsel %vm1165, %v4541, 0
    %v4589 = vsel %vm1265, %v4293, 0
    %4591 = vmatpush.bf16.msra.mxu0 0
    %4592 = vmatpush.bf16.msra.mxu0 0
    %4593 = vmatpush.bf16.msra.mxu0 0
    %4594 = vmatpush.bf16.msra.mxu0 0
    %4595 = vmatpush.bf16.msra.mxu0 0
    %4596 = vmatpush.bf16.msra.mxu0 0
    %4597 = vmatpush.bf16.msra.mxu0 0
    %4598 = vmatpush.bf16.msra.mxu0 %v4589
    %4599 = vmatmul.bf16.gmra.mxu0 %v4586
    %v4600 = vpop.f32.mrf.mxu0
    %v4601 = vadd.f32 0.0, %v4600
    %v4602 = vpop.f32.mrf.mxu0
    %4603 = vdwg.mxu0
    %v4605 = vsel %vm1165, %v4542, 0
    %v4608 = vsel %vm1265, %v4294, 0
    %4610 = vmatpush.bf16.msra.mxu0 0
    %4611 = vmatpush.bf16.msra.mxu0 0
    %4612 = vmatpush.bf16.msra.mxu0 0
    %4613 = vmatpush.bf16.msra.mxu0 0
    %4614 = vmatpush.bf16.msra.mxu0 0
    %4615 = vmatpush.bf16.msra.mxu0 0
    %4616 = vmatpush.bf16.msra.mxu0 0
    %4617 = vmatpush.bf16.msra.mxu0 %v4608
    %4618 = vmatmul.bf16.gmra.mxu0 %v4605
    %v4619 = vpop.f32.mrf.mxu0
    %v4620 = vadd.f32 0.0, %v4619
    %v4621 = vpop.f32.mrf.mxu0
    %4622 = vdwg.mxu0
    %v4624 = vsel %vm1165, %v4543, 0
    %v4627 = vsel %vm1265, %v4295, 0
    %4629 = vmatpush.bf16.msra.mxu0 0
    %4630 = vmatpush.bf16.msra.mxu0 0
    %4631 = vmatpush.bf16.msra.mxu0 0
    %4632 = vmatpush.bf16.msra.mxu0 0
    %4633 = vmatpush.bf16.msra.mxu0 0
    %4634 = vmatpush.bf16.msra.mxu0 0
    %4635 = vmatpush.bf16.msra.mxu0 0
    %4636 = vmatpush.bf16.msra.mxu0 %v4627
    %4637 = vmatmul.bf16.gmra.mxu0 %v4624
    %v4638 = vpop.f32.mrf.mxu0
    %v4639 = vadd.f32 0.0, %v4638
    %v4640 = vpop.f32.mrf.mxu0
    %4641 = vdwg.mxu0
    %v4643 = vsel %vm1165, %v4544, 0
    %v4646 = vsel %vm1265, %v4296, 0
    %4648 = vmatpush.bf16.msra.mxu0 0
    %4649 = vmatpush.bf16.msra.mxu0 0
    %4650 = vmatpush.bf16.msra.mxu0 0
    %4651 = vmatpush.bf16.msra.mxu0 0
    %4652 = vmatpush.bf16.msra.mxu0 0
    %4653 = vmatpush.bf16.msra.mxu0 0
    %4654 = vmatpush.bf16.msra.mxu0 0
    %4655 = vmatpush.bf16.msra.mxu0 %v4646
    %4656 = vmatmul.bf16.gmra.mxu0 %v4643
    %v4657 = vpop.f32.mrf.mxu0
    %v4658 = vadd.f32 0.0, %v4657
    %v4659 = vpop.f32.mrf.mxu0
    %4660 = vdwg.mxu0
    %v4662 = vsel %vm1165, %v4545, 0
    %v4665 = vsel %vm1265, %v4297, 0
    %4667 = vmatpush.bf16.msra.mxu0 0
    %4668 = vmatpush.bf16.msra.mxu0 0
    %4669 = vmatpush.bf16.msra.mxu0 0
    %4670 = vmatpush.bf16.msra.mxu0 0
    %4671 = vmatpush.bf16.msra.mxu0 0
    %4672 = vmatpush.bf16.msra.mxu0 0
    %4673 = vmatpush.bf16.msra.mxu0 0
    %4674 = vmatpush.bf16.msra.mxu0 %v4665
    %4675 = vmatmul.bf16.gmra.mxu0 %v4662
    %v4676 = vpop.f32.mrf.mxu0
    %v4677 = vadd.f32 0.0, %v4676
    %v4678 = vpop.f32.mrf.mxu0
    %4679 = vdwg.mxu0
    %v4681 = vsel %vm1165, %v4546, 0
    %v4684 = vsel %vm1265, %v4298, 0
    %4686 = vmatpush.bf16.msra.mxu0 0
    %4687 = vmatpush.bf16.msra.mxu0 0
    %4688 = vmatpush.bf16.msra.mxu0 0
    %4689 = vmatpush.bf16.msra.mxu0 0
    %4690 = vmatpush.bf16.msra.mxu0 0
    %4691 = vmatpush.bf16.msra.mxu0 0
    %4692 = vmatpush.bf16.msra.mxu0 0
    %4693 = vmatpush.bf16.msra.mxu0 %v4684
    %4694 = vmatmul.bf16.gmra.mxu0 %v4681
    %v4695 = vpop.f32.mrf.mxu0
    %v4696 = vadd.f32 0.0, %v4695
    %v4697 = vpop.f32.mrf.mxu0
    %4698 = vdwg.mxu0
    %s4699 = scalar_lea.vmem [#allocation9], 64
    %v4700 = vld [vmem:[%s4699] sm:$0xf]
    %v4701 = vld [vmem:[%s4699 + $0x4] sm:$0xf]
    %v4702 = vld [vmem:[%s4699 + $0x8] sm:$0xf]
    %v4703 = vld [vmem:[%s4699 + $0xc] sm:$0xf]
    %v4704 = vpack.c.bf16 %v4582, %v4563
    %v4705 = vpack.c.bf16 %v4620, %v4601
    %v4706 = vpack.c.bf16 %v4658, %v4639
    %v4707 = vpack.c.bf16 %v4696, %v4677
    %v4709 = vunpack.c.l.b16 %v4275
    %v4710 = vpack.c.b16 %v4709, %v4709
    %4711 = vrot.lane.b32.xlu0 %v4710, 96
    %v4712 = vpop.permute.xlu0 %4711
    %v4714 = vunpack.c.l.b16 %v4283
    %v4715 = vpack.c.b16 %v4714, %v4714
    %4716 = vrot.lane.b32.xlu0 %v4715, 96
    %v4717 = vpop.permute.xlu0 %4716
    %v4719 = vsel %vm1012, %v4712, 0
    %v4722 = vsel %vm1012, %v4717, 0
    %4724 = vmatpush.bf16.xpose.msra.mxu0 0
    %4725 = vmatpush.bf16.xpose.msra.mxu0 0
    %4726 = vmatpush.bf16.xpose.msra.mxu0 0
    %4727 = vmatpush.bf16.xpose.msra.mxu0 0
    %4728 = vmatpush.bf16.xpose.msra.mxu0 0
    %4729 = vmatpush.bf16.xpose.msra.mxu0 0
    %4730 = vmatpush.bf16.xpose.msra.mxu0 0
    %4731 = vmatpush.bf16.xpose.msra.mxu0 %v4722
    %4732 = vmatmul.bf16.gmra.mxu0 %v4719
    %v4733 = vpop.f32.mrf.mxu0
    %v4734 = vadd.f32 %v529, %v4733
    %v4735 = vpop.f32.mrf.mxu0
    %4736 = vdwg.mxu0
    %v4738 = vunpack.c.l.b16 %v4276
    %v4739 = vpack.c.b16 %v4738, %v4738
    %4740 = vrot.lane.b32.xlu0 %v4739, 96
    %v4741 = vpop.permute.xlu0 %4740
    %v4743 = vunpack.c.l.b16 %v4284
    %v4744 = vpack.c.b16 %v4743, %v4743
    %4745 = vrot.lane.b32.xlu0 %v4744, 96
    %v4746 = vpop.permute.xlu0 %4745
    %v4748 = vsel %vm1012, %v4741, 0
    %v4751 = vsel %vm1012, %v4746, 0
    %4753 = vmatpush.bf16.xpose.msra.mxu0 0
    %4754 = vmatpush.bf16.xpose.msra.mxu0 0
    %4755 = vmatpush.bf16.xpose.msra.mxu0 0
    %4756 = vmatpush.bf16.xpose.msra.mxu0 0
    %4757 = vmatpush.bf16.xpose.msra.mxu0 0
    %4758 = vmatpush.bf16.xpose.msra.mxu0 0
    %4759 = vmatpush.bf16.xpose.msra.mxu0 0
    %4760 = vmatpush.bf16.xpose.msra.mxu0 %v4751
    %4761 = vmatmul.bf16.gmra.mxu0 %v4748
    %v4762 = vpop.f32.mrf.mxu0
    %v4763 = vadd.f32 %v529, %v4762
    %v4764 = vpop.f32.mrf.mxu0
    %4765 = vdwg.mxu0
    %v4767 = vunpack.c.l.b16 %v4277
    %v4768 = vpack.c.b16 %v4767, %v4767
    %4769 = vrot.lane.b32.xlu0 %v4768, 96
    %v4770 = vpop.permute.xlu0 %4769
    %v4772 = vunpack.c.l.b16 %v4285
    %v4773 = vpack.c.b16 %v4772, %v4772
    %4774 = vrot.lane.b32.xlu0 %v4773, 96
    %v4775 = vpop.permute.xlu0 %4774
    %v4777 = vsel %vm1012, %v4770, 0
    %v4780 = vsel %vm1012, %v4775, 0
    %4782 = vmatpush.bf16.xpose.msra.mxu0 0
    %4783 = vmatpush.bf16.xpose.msra.mxu0 0
    %4784 = vmatpush.bf16.xpose.msra.mxu0 0
    %4785 = vmatpush.bf16.xpose.msra.mxu0 0
    %4786 = vmatpush.bf16.xpose.msra.mxu0 0
    %4787 = vmatpush.bf16.xpose.msra.mxu0 0
    %4788 = vmatpush.bf16.xpose.msra.mxu0 0
    %4789 = vmatpush.bf16.xpose.msra.mxu0 %v4780
    %4790 = vmatmul.bf16.gmra.mxu0 %v4777
    %v4791 = vpop.f32.mrf.mxu0
    %v4792 = vadd.f32 %v529, %v4791
    %v4793 = vpop.f32.mrf.mxu0
    %4794 = vdwg.mxu0
    %v4796 = vunpack.c.l.b16 %v4278
    %v4797 = vpack.c.b16 %v4796, %v4796
    %4798 = vrot.lane.b32.xlu0 %v4797, 96
    %v4799 = vpop.permute.xlu0 %4798
    %v4801 = vunpack.c.l.b16 %v4286
    %v4802 = vpack.c.b16 %v4801, %v4801
    %4803 = vrot.lane.b32.xlu0 %v4802, 96
    %v4804 = vpop.permute.xlu0 %4803
    %v4806 = vsel %vm1012, %v4799, 0
    %v4809 = vsel %vm1012, %v4804, 0
    %4811 = vmatpush.bf16.xpose.msra.mxu0 0
    %4812 = vmatpush.bf16.xpose.msra.mxu0 0
    %4813 = vmatpush.bf16.xpose.msra.mxu0 0
    %4814 = vmatpush.bf16.xpose.msra.mxu0 0
    %4815 = vmatpush.bf16.xpose.msra.mxu0 0
    %4816 = vmatpush.bf16.xpose.msra.mxu0 0
    %4817 = vmatpush.bf16.xpose.msra.mxu0 0
    %4818 = vmatpush.bf16.xpose.msra.mxu0 %v4809
    %4819 = vmatmul.bf16.gmra.mxu0 %v4806
    %v4820 = vpop.f32.mrf.mxu0
    %v4821 = vadd.f32 %v529, %v4820
    %v4822 = vpop.f32.mrf.mxu0
    %4823 = vdwg.mxu0
    %v4825 = vunpack.c.l.b16 %v4279
    %v4826 = vpack.c.b16 %v4825, %v4825
    %4827 = vrot.lane.b32.xlu0 %v4826, 96
    %v4828 = vpop.permute.xlu0 %4827
    %v4830 = vunpack.c.l.b16 %v4287
    %v4831 = vpack.c.b16 %v4830, %v4830
    %4832 = vrot.lane.b32.xlu0 %v4831, 96
    %v4833 = vpop.permute.xlu0 %4832
    %v4835 = vsel %vm1012, %v4828, 0
    %v4838 = vsel %vm1012, %v4833, 0
    %4840 = vmatpush.bf16.xpose.msra.mxu0 0
    %4841 = vmatpush.bf16.xpose.msra.mxu0 0
    %4842 = vmatpush.bf16.xpose.msra.mxu0 0
    %4843 = vmatpush.bf16.xpose.msra.mxu0 0
    %4844 = vmatpush.bf16.xpose.msra.mxu0 0
    %4845 = vmatpush.bf16.xpose.msra.mxu0 0
    %4846 = vmatpush.bf16.xpose.msra.mxu0 0
    %4847 = vmatpush.bf16.xpose.msra.mxu0 %v4838
    %4848 = vmatmul.bf16.gmra.mxu0 %v4835
    %v4849 = vpop.f32.mrf.mxu0
    %v4850 = vadd.f32 %v529, %v4849
    %v4851 = vpop.f32.mrf.mxu0
    %4852 = vdwg.mxu0
    %v4854 = vunpack.c.l.b16 %v4280
    %v4855 = vpack.c.b16 %v4854, %v4854
    %4856 = vrot.lane.b32.xlu0 %v4855, 96
    %v4857 = vpop.permute.xlu0 %4856
    %v4859 = vunpack.c.l.b16 %v4288
    %v4860 = vpack.c.b16 %v4859, %v4859
    %4861 = vrot.lane.b32.xlu0 %v4860, 96
    %v4862 = vpop.permute.xlu0 %4861
    %v4864 = vsel %vm1012, %v4857, 0
    %v4867 = vsel %vm1012, %v4862, 0
    %4869 = vmatpush.bf16.xpose.msra.mxu0 0
    %4870 = vmatpush.bf16.xpose.msra.mxu0 0
    %4871 = vmatpush.bf16.xpose.msra.mxu0 0
    %4872 = vmatpush.bf16.xpose.msra.mxu0 0
    %4873 = vmatpush.bf16.xpose.msra.mxu0 0
    %4874 = vmatpush.bf16.xpose.msra.mxu0 0
    %4875 = vmatpush.bf16.xpose.msra.mxu0 0
    %4876 = vmatpush.bf16.xpose.msra.mxu0 %v4867
    %4877 = vmatmul.bf16.gmra.mxu0 %v4864
    %v4878 = vpop.f32.mrf.mxu0
    %v4879 = vadd.f32 %v529, %v4878
    %v4880 = vpop.f32.mrf.mxu0
    %4881 = vdwg.mxu0
    %v4883 = vunpack.c.l.b16 %v4281
    %v4884 = vpack.c.b16 %v4883, %v4883
    %4885 = vrot.lane.b32.xlu0 %v4884, 96
    %v4886 = vpop.permute.xlu0 %4885
    %v4888 = vunpack.c.l.b16 %v4289
    %v4889 = vpack.c.b16 %v4888, %v4888
    %4890 = vrot.lane.b32.xlu0 %v4889, 96
    %v4891 = vpop.permute.xlu0 %4890
    %v4893 = vsel %vm1012, %v4886, 0
    %v4896 = vsel %vm1012, %v4891, 0
    %4898 = vmatpush.bf16.xpose.msra.mxu0 0
    %4899 = vmatpush.bf16.xpose.msra.mxu0 0
    %4900 = vmatpush.bf16.xpose.msra.mxu0 0
    %4901 = vmatpush.bf16.xpose.msra.mxu0 0
    %4902 = vmatpush.bf16.xpose.msra.mxu0 0
    %4903 = vmatpush.bf16.xpose.msra.mxu0 0
    %4904 = vmatpush.bf16.xpose.msra.mxu0 0
    %4905 = vmatpush.bf16.xpose.msra.mxu0 %v4896
    %4906 = vmatmul.bf16.gmra.mxu0 %v4893
    %v4907 = vpop.f32.mrf.mxu0
    %v4908 = vadd.f32 %v529, %v4907
    %v4909 = vpop.f32.mrf.mxu0
    %4910 = vdwg.mxu0
    %v4912 = vunpack.c.l.b16 %v4282
    %v4913 = vpack.c.b16 %v4912, %v4912
    %4914 = vrot.lane.b32.xlu0 %v4913, 96
    %v4915 = vpop.permute.xlu0 %4914
    %v4917 = vunpack.c.l.b16 %v4290
    %v4918 = vpack.c.b16 %v4917, %v4917
    %4919 = vrot.lane.b32.xlu0 %v4918, 96
    %v4920 = vpop.permute.xlu0 %4919
    %v4922 = vsel %vm1012, %v4915, 0
    %v4925 = vsel %vm1012, %v4920, 0
    %4927 = vmatpush.bf16.xpose.msra.mxu0 0
    %4928 = vmatpush.bf16.xpose.msra.mxu0 0
    %4929 = vmatpush.bf16.xpose.msra.mxu0 0
    %4930 = vmatpush.bf16.xpose.msra.mxu0 0
    %4931 = vmatpush.bf16.xpose.msra.mxu0 0
    %4932 = vmatpush.bf16.xpose.msra.mxu0 0
    %4933 = vmatpush.bf16.xpose.msra.mxu0 0
    %4934 = vmatpush.bf16.xpose.msra.mxu0 %v4925
    %4935 = vmatmul.bf16.gmra.mxu0 %v4922
    %v4936 = vpop.f32.mrf.mxu0
    %v4937 = vadd.f32 %v529, %v4936
    %v4938 = vpop.f32.mrf.mxu0
    %4939 = vdwg.mxu0
    %v4940 = vsel %vm1165, %v4734, -inf
    %4941 = vmax.xlane.f32.xlu0 %v4940
    %v4942 = vpop.xlane.xlu0 %4941
    %v4943 = vsel %vm1165, %v4763, -inf
    %4944 = vmax.xlane.f32.xlu0 %v4943
    %v4945 = vpop.xlane.xlu0 %4944
    %v4946 = vsel %vm1165, %v4792, -inf
    %4947 = vmax.xlane.f32.xlu0 %v4946
    %v4948 = vpop.xlane.xlu0 %4947
    %v4949 = vsel %vm1165, %v4821, -inf
    %4950 = vmax.xlane.f32.xlu0 %v4949
    %v4951 = vpop.xlane.xlu0 %4950
    %v4952 = vsel %vm1165, %v4850, -inf
    %4953 = vmax.xlane.f32.xlu0 %v4952
    %v4954 = vpop.xlane.xlu0 %4953
    %v4955 = vsel %vm1165, %v4879, -inf
    %4956 = vmax.xlane.f32.xlu0 %v4955
    %v4957 = vpop.xlane.xlu0 %4956
    %v4958 = vsel %vm1165, %v4908, -inf
    %4959 = vmax.xlane.f32.xlu0 %v4958
    %v4960 = vpop.xlane.xlu0 %4959
    %v4961 = vsel %vm1165, %v4937, -inf
    %4962 = vmax.xlane.f32.xlu0 %v4961
    %v4963 = vpop.xlane.xlu0 %4962
    %v4964 = vsub.f32 %v4734, %v4942
    %v4965 = vsub.f32 %v4763, %v4945
    %v4966 = vsub.f32 %v4792, %v4948
    %v4967 = vsub.f32 %v4821, %v4951
    %v4968 = vsub.f32 %v4850, %v4954
    %v4969 = vsub.f32 %v4879, %v4957
    %v4970 = vsub.f32 %v4908, %v4960
    %v4971 = vsub.f32 %v4937, %v4963
    %v4972 = vmul.f32 %v4964, 1.442695
    %v4973 = vpow.pop %v4972
    %v4974 = vmul.f32 %v4965, 1.442695
    %v4975 = vpow.pop %v4974
    %v4976 = vmul.f32 %v4966, 1.442695
    %v4977 = vpow.pop %v4976
    %v4978 = vmul.f32 %v4967, 1.442695
    %v4979 = vpow.pop %v4978
    %v4980 = vmul.f32 %v4968, 1.442695
    %v4981 = vpow.pop %v4980
    %v4982 = vmul.f32 %v4969, 1.442695
    %v4983 = vpow.pop %v4982
    %v4984 = vmul.f32 %v4970, 1.442695
    %v4985 = vpow.pop %v4984
    %v4986 = vmul.f32 %v4971, 1.442695
    %v4987 = vpow.pop %v4986
    %v4988 = vsel %vm1165, %v4973, 0.0
    %4989 = vadd.xlane.f32.xlu0 %v4988
    %v4990 = vpop.xlane.xlu0 %4989
    %v4991 = vsel %vm1165, %v4975, 0.0
    %4992 = vadd.xlane.f32.xlu0 %v4991
    %v4993 = vpop.xlane.xlu0 %4992
    %v4994 = vsel %vm1165, %v4977, 0.0
    %4995 = vadd.xlane.f32.xlu0 %v4994
    %v4996 = vpop.xlane.xlu0 %4995
    %v4997 = vsel %vm1165, %v4979, 0.0
    %4998 = vadd.xlane.f32.xlu0 %v4997
    %v4999 = vpop.xlane.xlu0 %4998
    %v5000 = vsel %vm1165, %v4981, 0.0
    %5001 = vadd.xlane.f32.xlu0 %v5000
    %v5002 = vpop.xlane.xlu0 %5001
    %v5003 = vsel %vm1165, %v4983, 0.0
    %5004 = vadd.xlane.f32.xlu0 %v5003
    %v5005 = vpop.xlane.xlu0 %5004
    %v5006 = vsel %vm1165, %v4985, 0.0
    %5007 = vadd.xlane.f32.xlu0 %v5006
    %v5008 = vpop.xlane.xlu0 %5007
    %v5009 = vsel %vm1165, %v4987, 0.0
    %5010 = vadd.xlane.f32.xlu0 %v5009
    %v5011 = vpop.xlane.xlu0 %5010
    %v5012 = vrcp.pop %v4990
    %v5013 = vrcp.pop %v4993
    %v5014 = vrcp.pop %v4996
    %v5015 = vrcp.pop %v4999
    %v5016 = vrcp.pop %v5002
    %v5017 = vrcp.pop %v5005
    %v5018 = vrcp.pop %v5008
    %v5019 = vrcp.pop %v5011
    %v5020 = vmul.f32 %v4973, %v5012
    %v5021 = vmul.f32 %v4975, %v5013
    %v5022 = vmul.f32 %v4977, %v5014
    %v5023 = vmul.f32 %v4979, %v5015
    %v5024 = vmul.f32 %v4981, %v5016
    %v5025 = vmul.f32 %v4983, %v5017
    %v5026 = vmul.f32 %v4985, %v5018
    %v5027 = vmul.f32 %v4987, %v5019
    %v5028 = vpack.c.bf16 %v5020, %v5020
    %v5029 = vpack.c.bf16 %v5021, %v5021
    %v5030 = vpack.c.bf16 %v5022, %v5022
    %v5031 = vpack.c.bf16 %v5023, %v5023
    %v5032 = vpack.c.bf16 %v5024, %v5024
    %v5033 = vpack.c.bf16 %v5025, %v5025
    %v5034 = vpack.c.bf16 %v5026, %v5026
    %v5035 = vpack.c.bf16 %v5027, %v5027
    %v5037 = vunpack.c.l.b16 %v4291
    %v5038 = vpack.c.b16 %v5037, %v5037
    %5039 = vrot.lane.b32.xlu0 %v5038, 96
    %v5040 = vpop.permute.xlu0 %5039
    %v5042 = vsel %vm1165, %v5028, 0
    %v5045 = vsel %vm1265, %v5040, 0
    %5047 = vmatpush.bf16.msra.mxu0 0
    %5048 = vmatpush.bf16.msra.mxu0 0
    %5049 = vmatpush.bf16.msra.mxu0 0
    %5050 = vmatpush.bf16.msra.mxu0 0
    %5051 = vmatpush.bf16.msra.mxu0 0
    %5052 = vmatpush.bf16.msra.mxu0 0
    %5053 = vmatpush.bf16.msra.mxu0 0
    %5054 = vmatpush.bf16.msra.mxu0 %v5045
    %5055 = vmatmul.bf16.gmra.mxu0 %v5042
    %v5056 = vpop.f32.mrf.mxu0
    %v5057 = vadd.f32 0.0, %v5056
    %v5058 = vpop.f32.mrf.mxu0
    %5059 = vdwg.mxu0
    %v5061 = vunpack.c.l.b16 %v4292
    %v5062 = vpack.c.b16 %v5061, %v5061
    %5063 = vrot.lane.b32.xlu0 %v5062, 96
    %v5064 = vpop.permute.xlu0 %5063
    %v5066 = vsel %vm1165, %v5029, 0
    %v5069 = vsel %vm1265, %v5064, 0
    %5071 = vmatpush.bf16.msra.mxu0 0
    %5072 = vmatpush.bf16.msra.mxu0 0
    %5073 = vmatpush.bf16.msra.mxu0 0
    %5074 = vmatpush.bf16.msra.mxu0 0
    %5075 = vmatpush.bf16.msra.mxu0 0
    %5076 = vmatpush.bf16.msra.mxu0 0
    %5077 = vmatpush.bf16.msra.mxu0 0
    %5078 = vmatpush.bf16.msra.mxu0 %v5069
    %5079 = vmatmul.bf16.gmra.mxu0 %v5066
    %v5080 = vpop.f32.mrf.mxu0
    %v5081 = vadd.f32 0.0, %v5080
    %v5082 = vpop.f32.mrf.mxu0
    %5083 = vdwg.mxu0
    %v5085 = vunpack.c.l.b16 %v4293
    %v5086 = vpack.c.b16 %v5085, %v5085
    %5087 = vrot.lane.b32.xlu0 %v5086, 96
    %v5088 = vpop.permute.xlu0 %5087
    %v5090 = vsel %vm1165, %v5030, 0
    %v5093 = vsel %vm1265, %v5088, 0
    %5095 = vmatpush.bf16.msra.mxu0 0
    %5096 = vmatpush.bf16.msra.mxu0 0
    %5097 = vmatpush.bf16.msra.mxu0 0
    %5098 = vmatpush.bf16.msra.mxu0 0
    %5099 = vmatpush.bf16.msra.mxu0 0
    %5100 = vmatpush.bf16.msra.mxu0 0
    %5101 = vmatpush.bf16.msra.mxu0 0
    %5102 = vmatpush.bf16.msra.mxu0 %v5093
    %5103 = vmatmul.bf16.gmra.mxu0 %v5090
    %v5104 = vpop.f32.mrf.mxu0
    %v5105 = vadd.f32 0.0, %v5104
    %v5106 = vpop.f32.mrf.mxu0
    %5107 = vdwg.mxu0
    %v5109 = vunpack.c.l.b16 %v4294
    %v5110 = vpack.c.b16 %v5109, %v5109
    %5111 = vrot.lane.b32.xlu0 %v5110, 96
    %v5112 = vpop.permute.xlu0 %5111
    %v5114 = vsel %vm1165, %v5031, 0
    %v5117 = vsel %vm1265, %v5112, 0
    %5119 = vmatpush.bf16.msra.mxu0 0
    %5120 = vmatpush.bf16.msra.mxu0 0
    %5121 = vmatpush.bf16.msra.mxu0 0
    %5122 = vmatpush.bf16.msra.mxu0 0
    %5123 = vmatpush.bf16.msra.mxu0 0
    %5124 = vmatpush.bf16.msra.mxu0 0
    %5125 = vmatpush.bf16.msra.mxu0 0
    %5126 = vmatpush.bf16.msra.mxu0 %v5117
    %5127 = vmatmul.bf16.gmra.mxu0 %v5114
    %v5128 = vpop.f32.mrf.mxu0
    %v5129 = vadd.f32 0.0, %v5128
    %v5130 = vpop.f32.mrf.mxu0
    %5131 = vdwg.mxu0
    %v5133 = vunpack.c.l.b16 %v4295
    %v5134 = vpack.c.b16 %v5133, %v5133
    %5135 = vrot.lane.b32.xlu0 %v5134, 96
    %v5136 = vpop.permute.xlu0 %5135
    %v5138 = vsel %vm1165, %v5032, 0
    %v5141 = vsel %vm1265, %v5136, 0
    %5143 = vmatpush.bf16.msra.mxu0 0
    %5144 = vmatpush.bf16.msra.mxu0 0
    %5145 = vmatpush.bf16.msra.mxu0 0
    %5146 = vmatpush.bf16.msra.mxu0 0
    %5147 = vmatpush.bf16.msra.mxu0 0
    %5148 = vmatpush.bf16.msra.mxu0 0
    %5149 = vmatpush.bf16.msra.mxu0 0
    %5150 = vmatpush.bf16.msra.mxu0 %v5141
    %5151 = vmatmul.bf16.gmra.mxu0 %v5138
    %v5152 = vpop.f32.mrf.mxu0
    %v5153 = vadd.f32 0.0, %v5152
    %v5154 = vpop.f32.mrf.mxu0
    %5155 = vdwg.mxu0
    %v5157 = vunpack.c.l.b16 %v4296
    %v5158 = vpack.c.b16 %v5157, %v5157
    %5159 = vrot.lane.b32.xlu0 %v5158, 96
    %v5160 = vpop.permute.xlu0 %5159
    %v5162 = vsel %vm1165, %v5033, 0
    %v5165 = vsel %vm1265, %v5160, 0
    %5167 = vmatpush.bf16.msra.mxu0 0
    %5168 = vmatpush.bf16.msra.mxu0 0
    %5169 = vmatpush.bf16.msra.mxu0 0
    %5170 = vmatpush.bf16.msra.mxu0 0
    %5171 = vmatpush.bf16.msra.mxu0 0
    %5172 = vmatpush.bf16.msra.mxu0 0
    %5173 = vmatpush.bf16.msra.mxu0 0
    %5174 = vmatpush.bf16.msra.mxu0 %v5165
    %5175 = vmatmul.bf16.gmra.mxu0 %v5162
    %v5176 = vpop.f32.mrf.mxu0
    %v5177 = vadd.f32 0.0, %v5176
    %v5178 = vpop.f32.mrf.mxu0
    %5179 = vdwg.mxu0
    %v5181 = vunpack.c.l.b16 %v4297
    %v5182 = vpack.c.b16 %v5181, %v5181
    %5183 = vrot.lane.b32.xlu0 %v5182, 96
    %v5184 = vpop.permute.xlu0 %5183
    %v5186 = vsel %vm1165, %v5034, 0
    %v5189 = vsel %vm1265, %v5184, 0
    %5191 = vmatpush.bf16.msra.mxu0 0
    %5192 = vmatpush.bf16.msra.mxu0 0
    %5193 = vmatpush.bf16.msra.mxu0 0
    %5194 = vmatpush.bf16.msra.mxu0 0
    %5195 = vmatpush.bf16.msra.mxu0 0
    %5196 = vmatpush.bf16.msra.mxu0 0
    %5197 = vmatpush.bf16.msra.mxu0 0
    %5198 = vmatpush.bf16.msra.mxu0 %v5189
    %5199 = vmatmul.bf16.gmra.mxu0 %v5186
    %v5200 = vpop.f32.mrf.mxu0
    %v5201 = vadd.f32 0.0, %v5200
    %v5202 = vpop.f32.mrf.mxu0
    %5203 = vdwg.mxu0
    %v5205 = vunpack.c.l.b16 %v4298
    %v5206 = vpack.c.b16 %v5205, %v5205
    %5207 = vrot.lane.b32.xlu0 %v5206, 96
    %v5208 = vpop.permute.xlu0 %5207
    %v5210 = vsel %vm1165, %v5035, 0
    %v5213 = vsel %vm1265, %v5208, 0
    %5215 = vmatpush.bf16.msra.mxu0 0
    %5216 = vmatpush.bf16.msra.mxu0 0
    %5217 = vmatpush.bf16.msra.mxu0 0
    %5218 = vmatpush.bf16.msra.mxu0 0
    %5219 = vmatpush.bf16.msra.mxu0 0
    %5220 = vmatpush.bf16.msra.mxu0 0
    %5221 = vmatpush.bf16.msra.mxu0 0
    %5222 = vmatpush.bf16.msra.mxu0 %v5213
    %5223 = vmatmul.bf16.gmra.mxu0 %v5210
    %v5224 = vpop.f32.mrf.mxu0
    %v5225 = vadd.f32 0.0, %v5224
    %v5226 = vpop.f32.mrf.mxu0
    %5227 = vdwg.mxu0
    %s5228 = scalar_lea.vmem [#allocation9], 80
    %v5229 = vld [vmem:[%s5228] sm:$0xf]
    %v5230 = vld [vmem:[%s5228 + $0x4] sm:$0xf]
    %v5231 = vld [vmem:[%s5228 + $0x8] sm:$0xf]
    %v5232 = vld [vmem:[%s5228 + $0xc] sm:$0xf]
    %v5233 = vpack.c.bf16 %v5081, %v5057
    %v5234 = vpack.c.bf16 %v5129, %v5105
    %v5235 = vpack.c.bf16 %v5177, %v5153
    %v5236 = vpack.c.bf16 %v5225, %v5201
    %v5241 = vunpack.c.l.b16 %v5229
    %v5242 = vunpack.c.l.b16 %v5230
    %v5243 = vunpack.c.l.b16 %v5231
    %v5244 = vunpack.c.l.b16 %v5232
    %v5245 = vpack.c.b16 %v5242, %v5241
    %v5246 = vpack.c.b16 %v5244, %v5243
    %v5250 = vsel %vm1012, %v5233, 0
    %v5253 = vsel %vm1012, %v5234, 0
    %v5256 = vsel %vm1012, %v5235, 0
    %v5259 = vsel %vm1012, %v5236, 0
    %5261 = vmatpush.bf16.msra.mxu0 0
    %5262 = vmatpush.bf16.msra.mxu0 0
    %5263 = vmatpush.bf16.msra.mxu0 0
    %5264 = vmatpush.bf16.msra.mxu0 0
    %5265 = vmatpush.bf16.msra.mxu0 0
    %5266 = vmatpush.bf16.msra.mxu0 0
    %5267 = vmatpush.bf16.msra.mxu0 %v5246
    %5268 = vmatpush.bf16.msra.mxu0 %v5245
    %5269 = vmatmul.bf16.gmra.mxu0 %v5250
    %v5270 = vpop.f32.mrf.mxu0
    %v5271 = vadd.f32 0.0, %v5270
    %v5272 = vpop.f32.mrf.mxu0
    %v5273 = vadd.f32 0.0, %v5272
    %5274 = vmatmul.bf16.gmra.mxu0 %v5253
    %v5275 = vpop.f32.mrf.mxu0
    %v5276 = vadd.f32 0.0, %v5275
    %v5277 = vpop.f32.mrf.mxu0
    %v5278 = vadd.f32 0.0, %v5277
    %5279 = vmatmul.bf16.gmra.mxu0 %v5256
    %v5280 = vpop.f32.mrf.mxu0
    %v5281 = vadd.f32 0.0, %v5280
    %v5282 = vpop.f32.mrf.mxu0
    %v5283 = vadd.f32 0.0, %v5282
    %5284 = vmatmul.bf16.gmra.mxu0 %v5259
    %v5285 = vpop.f32.mrf.mxu0
    %v5286 = vadd.f32 0.0, %v5285
    %v5287 = vpop.f32.mrf.mxu0
    %v5288 = vadd.f32 0.0, %v5287
    %5289 = vdwg.mxu0
    %v5294 = vunpack.c.l.b16 %v4700
    %v5295 = vunpack.c.l.b16 %v4701
    %v5296 = vunpack.c.l.b16 %v4702
    %v5297 = vunpack.c.l.b16 %v4703
    %v5298 = vpack.c.b16 %v5295, %v5294
    %v5299 = vpack.c.b16 %v5297, %v5296
    %v5303 = vsel %vm1012, %v4704, 0
    %v5306 = vsel %vm1012, %v4705, 0
    %v5309 = vsel %vm1012, %v4706, 0
    %v5312 = vsel %vm1012, %v4707, 0
    %5314 = vmatpush.bf16.msra.mxu0 0
    %5315 = vmatpush.bf16.msra.mxu0 0
    %5316 = vmatpush.bf16.msra.mxu0 0
    %5317 = vmatpush.bf16.msra.mxu0 0
    %5318 = vmatpush.bf16.msra.mxu0 0
    %5319 = vmatpush.bf16.msra.mxu0 0
    %5320 = vmatpush.bf16.msra.mxu0 %v5299
    %5321 = vmatpush.bf16.msra.mxu0 %v5298
    %5322 = vmatmul.bf16.gmra.mxu0 %v5303
    %v5323 = vpop.f32.mrf.mxu0
    %v5324 = vadd.f32 %v5271, %v5323
    %v5325 = vpop.f32.mrf.mxu0
    %v5326 = vadd.f32 %v5273, %v5325
    %5327 = vmatmul.bf16.gmra.mxu0 %v5306
    %v5328 = vpop.f32.mrf.mxu0
    %v5329 = vadd.f32 %v5276, %v5328
    %v5330 = vpop.f32.mrf.mxu0
    %v5331 = vadd.f32 %v5278, %v5330
    %5332 = vmatmul.bf16.gmra.mxu0 %v5309
    %v5333 = vpop.f32.mrf.mxu0
    %v5334 = vadd.f32 %v5281, %v5333
    %v5335 = vpop.f32.mrf.mxu0
    %v5336 = vadd.f32 %v5283, %v5335
    %5337 = vmatmul.bf16.gmra.mxu0 %v5312
    %v5338 = vpop.f32.mrf.mxu0
    %v5339 = vadd.f32 %v5286, %v5338
    %v5340 = vpop.f32.mrf.mxu0
    %v5341 = vadd.f32 %v5288, %v5340
    %5342 = vdwg.mxu0
    %5343 = vrot.lane.b32.xlu0 %v4710, 64
    %v5344 = vpop.permute.xlu0 %5343
    %5345 = vrot.lane.b32.xlu0 %v4715, 64
    %v5346 = vpop.permute.xlu0 %5345
    %v5348 = vsel %vm1012, %v5344, 0
    %v5351 = vsel %vm1012, %v5346, 0
    %5353 = vmatpush.bf16.xpose.msra.mxu0 0
    %5354 = vmatpush.bf16.xpose.msra.mxu0 0
    %5355 = vmatpush.bf16.xpose.msra.mxu0 0
    %5356 = vmatpush.bf16.xpose.msra.mxu0 0
    %5357 = vmatpush.bf16.xpose.msra.mxu0 0
    %5358 = vmatpush.bf16.xpose.msra.mxu0 0
    %5359 = vmatpush.bf16.xpose.msra.mxu0 0
    %5360 = vmatpush.bf16.xpose.msra.mxu0 %v5351
    %5361 = vmatmul.bf16.gmra.mxu0 %v5348
    %v5362 = vpop.f32.mrf.mxu0
    %v5363 = vadd.f32 %v529, %v5362
    %v5364 = vpop.f32.mrf.mxu0
    %5365 = vdwg.mxu0
    %5366 = vrot.lane.b32.xlu0 %v4739, 64
    %v5367 = vpop.permute.xlu0 %5366
    %5368 = vrot.lane.b32.xlu0 %v4744, 64
    %v5369 = vpop.permute.xlu0 %5368
    %v5371 = vsel %vm1012, %v5367, 0
    %v5374 = vsel %vm1012, %v5369, 0
    %5376 = vmatpush.bf16.xpose.msra.mxu0 0
    %5377 = vmatpush.bf16.xpose.msra.mxu0 0
    %5378 = vmatpush.bf16.xpose.msra.mxu0 0
    %5379 = vmatpush.bf16.xpose.msra.mxu0 0
    %5380 = vmatpush.bf16.xpose.msra.mxu0 0
    %5381 = vmatpush.bf16.xpose.msra.mxu0 0
    %5382 = vmatpush.bf16.xpose.msra.mxu0 0
    %5383 = vmatpush.bf16.xpose.msra.mxu0 %v5374
    %5384 = vmatmul.bf16.gmra.mxu0 %v5371
    %v5385 = vpop.f32.mrf.mxu0
    %v5386 = vadd.f32 %v529, %v5385
    %v5387 = vpop.f32.mrf.mxu0
    %5388 = vdwg.mxu0
    %5389 = vrot.lane.b32.xlu0 %v4768, 64
    %v5390 = vpop.permute.xlu0 %5389
    %5391 = vrot.lane.b32.xlu0 %v4773, 64
    %v5392 = vpop.permute.xlu0 %5391
    %v5394 = vsel %vm1012, %v5390, 0
    %v5397 = vsel %vm1012, %v5392, 0
    %5399 = vmatpush.bf16.xpose.msra.mxu0 0
    %5400 = vmatpush.bf16.xpose.msra.mxu0 0
    %5401 = vmatpush.bf16.xpose.msra.mxu0 0
    %5402 = vmatpush.bf16.xpose.msra.mxu0 0
    %5403 = vmatpush.bf16.xpose.msra.mxu0 0
    %5404 = vmatpush.bf16.xpose.msra.mxu0 0
    %5405 = vmatpush.bf16.xpose.msra.mxu0 0
    %5406 = vmatpush.bf16.xpose.msra.mxu0 %v5397
    %5407 = vmatmul.bf16.gmra.mxu0 %v5394
    %v5408 = vpop.f32.mrf.mxu0
    %v5409 = vadd.f32 %v529, %v5408
    %v5410 = vpop.f32.mrf.mxu0
    %5411 = vdwg.mxu0
    %5412 = vrot.lane.b32.xlu0 %v4797, 64
    %v5413 = vpop.permute.xlu0 %5412
    %5414 = vrot.lane.b32.xlu0 %v4802, 64
    %v5415 = vpop.permute.xlu0 %5414
    %v5417 = vsel %vm1012, %v5413, 0
    %v5420 = vsel %vm1012, %v5415, 0
    %5422 = vmatpush.bf16.xpose.msra.mxu0 0
    %5423 = vmatpush.bf16.xpose.msra.mxu0 0
    %5424 = vmatpush.bf16.xpose.msra.mxu0 0
    %5425 = vmatpush.bf16.xpose.msra.mxu0 0
    %5426 = vmatpush.bf16.xpose.msra.mxu0 0
    %5427 = vmatpush.bf16.xpose.msra.mxu0 0
    %5428 = vmatpush.bf16.xpose.msra.mxu0 0
    %5429 = vmatpush.bf16.xpose.msra.mxu0 %v5420
    %5430 = vmatmul.bf16.gmra.mxu0 %v5417
    %v5431 = vpop.f32.mrf.mxu0
    %v5432 = vadd.f32 %v529, %v5431
    %v5433 = vpop.f32.mrf.mxu0
    %5434 = vdwg.mxu0
    %5435 = vrot.lane.b32.xlu0 %v4826, 64
    %v5436 = vpop.permute.xlu0 %5435
    %5437 = vrot.lane.b32.xlu0 %v4831, 64
    %v5438 = vpop.permute.xlu0 %5437
    %v5440 = vsel %vm1012, %v5436, 0
    %v5443 = vsel %vm1012, %v5438, 0
    %5445 = vmatpush.bf16.xpose.msra.mxu0 0
    %5446 = vmatpush.bf16.xpose.msra.mxu0 0
    %5447 = vmatpush.bf16.xpose.msra.mxu0 0
    %5448 = vmatpush.bf16.xpose.msra.mxu0 0
    %5449 = vmatpush.bf16.xpose.msra.mxu0 0
    %5450 = vmatpush.bf16.xpose.msra.mxu0 0
    %5451 = vmatpush.bf16.xpose.msra.mxu0 0
    %5452 = vmatpush.bf16.xpose.msra.mxu0 %v5443
    %5453 = vmatmul.bf16.gmra.mxu0 %v5440
    %v5454 = vpop.f32.mrf.mxu0
    %v5455 = vadd.f32 %v529, %v5454
    %v5456 = vpop.f32.mrf.mxu0
    %5457 = vdwg.mxu0
    %5458 = vrot.lane.b32.xlu0 %v4855, 64
    %v5459 = vpop.permute.xlu0 %5458
    %5460 = vrot.lane.b32.xlu0 %v4860, 64
    %v5461 = vpop.permute.xlu0 %5460
    %v5463 = vsel %vm1012, %v5459, 0
    %v5466 = vsel %vm1012, %v5461, 0
    %5468 = vmatpush.bf16.xpose.msra.mxu0 0
    %5469 = vmatpush.bf16.xpose.msra.mxu0 0
    %5470 = vmatpush.bf16.xpose.msra.mxu0 0
    %5471 = vmatpush.bf16.xpose.msra.mxu0 0
    %5472 = vmatpush.bf16.xpose.msra.mxu0 0
    %5473 = vmatpush.bf16.xpose.msra.mxu0 0
    %5474 = vmatpush.bf16.xpose.msra.mxu0 0
    %5475 = vmatpush.bf16.xpose.msra.mxu0 %v5466
    %5476 = vmatmul.bf16.gmra.mxu0 %v5463
    %v5477 = vpop.f32.mrf.mxu0
    %v5478 = vadd.f32 %v529, %v5477
    %v5479 = vpop.f32.mrf.mxu0
    %5480 = vdwg.mxu0
    %5481 = vrot.lane.b32.xlu0 %v4884, 64
    %v5482 = vpop.permute.xlu0 %5481
    %5483 = vrot.lane.b32.xlu0 %v4889, 64
    %v5484 = vpop.permute.xlu0 %5483
    %v5486 = vsel %vm1012, %v5482, 0
    %v5489 = vsel %vm1012, %v5484, 0
    %5491 = vmatpush.bf16.xpose.msra.mxu0 0
    %5492 = vmatpush.bf16.xpose.msra.mxu0 0
    %5493 = vmatpush.bf16.xpose.msra.mxu0 0
    %5494 = vmatpush.bf16.xpose.msra.mxu0 0
    %5495 = vmatpush.bf16.xpose.msra.mxu0 0
    %5496 = vmatpush.bf16.xpose.msra.mxu0 0
    %5497 = vmatpush.bf16.xpose.msra.mxu0 0
    %5498 = vmatpush.bf16.xpose.msra.mxu0 %v5489
    %5499 = vmatmul.bf16.gmra.mxu0 %v5486
    %v5500 = vpop.f32.mrf.mxu0
    %v5501 = vadd.f32 %v529, %v5500
    %v5502 = vpop.f32.mrf.mxu0
    %5503 = vdwg.mxu0
    %5504 = vrot.lane.b32.xlu0 %v4913, 64
    %v5505 = vpop.permute.xlu0 %5504
    %5506 = vrot.lane.b32.xlu0 %v4918, 64
    %v5507 = vpop.permute.xlu0 %5506
    %v5509 = vsel %vm1012, %v5505, 0
    %v5512 = vsel %vm1012, %v5507, 0
    %5514 = vmatpush.bf16.xpose.msra.mxu0 0
    %5515 = vmatpush.bf16.xpose.msra.mxu0 0
    %5516 = vmatpush.bf16.xpose.msra.mxu0 0
    %5517 = vmatpush.bf16.xpose.msra.mxu0 0
    %5518 = vmatpush.bf16.xpose.msra.mxu0 0
    %5519 = vmatpush.bf16.xpose.msra.mxu0 0
    %5520 = vmatpush.bf16.xpose.msra.mxu0 0
    %5521 = vmatpush.bf16.xpose.msra.mxu0 %v5512
    %5522 = vmatmul.bf16.gmra.mxu0 %v5509
    %v5523 = vpop.f32.mrf.mxu0
    %v5524 = vadd.f32 %v529, %v5523
    %v5525 = vpop.f32.mrf.mxu0
    %5526 = vdwg.mxu0
    %v5527 = vsel %vm1165, %v5363, -inf
    %5528 = vmax.xlane.f32.xlu0 %v5527
    %v5529 = vpop.xlane.xlu0 %5528
    %v5530 = vsel %vm1165, %v5386, -inf
    %5531 = vmax.xlane.f32.xlu0 %v5530
    %v5532 = vpop.xlane.xlu0 %5531
    %v5533 = vsel %vm1165, %v5409, -inf
    %5534 = vmax.xlane.f32.xlu0 %v5533
    %v5535 = vpop.xlane.xlu0 %5534
    %v5536 = vsel %vm1165, %v5432, -inf
    %5537 = vmax.xlane.f32.xlu0 %v5536
    %v5538 = vpop.xlane.xlu0 %5537
    %v5539 = vsel %vm1165, %v5455, -inf
    %5540 = vmax.xlane.f32.xlu0 %v5539
    %v5541 = vpop.xlane.xlu0 %5540
    %v5542 = vsel %vm1165, %v5478, -inf
    %5543 = vmax.xlane.f32.xlu0 %v5542
    %v5544 = vpop.xlane.xlu0 %5543
    %v5545 = vsel %vm1165, %v5501, -inf
    %5546 = vmax.xlane.f32.xlu0 %v5545
    %v5547 = vpop.xlane.xlu0 %5546
    %v5548 = vsel %vm1165, %v5524, -inf
    %5549 = vmax.xlane.f32.xlu0 %v5548
    %v5550 = vpop.xlane.xlu0 %5549
    %v5551 = vsub.f32 %v5363, %v5529
    %v5552 = vsub.f32 %v5386, %v5532
    %v5553 = vsub.f32 %v5409, %v5535
    %v5554 = vsub.f32 %v5432, %v5538
    %v5555 = vsub.f32 %v5455, %v5541
    %v5556 = vsub.f32 %v5478, %v5544
    %v5557 = vsub.f32 %v5501, %v5547
    %v5558 = vsub.f32 %v5524, %v5550
    %v5559 = vmul.f32 %v5551, 1.442695
    %v5560 = vpow.pop %v5559
    %v5561 = vmul.f32 %v5552, 1.442695
    %v5562 = vpow.pop %v5561
    %v5563 = vmul.f32 %v5553, 1.442695
    %v5564 = vpow.pop %v5563
    %v5565 = vmul.f32 %v5554, 1.442695
    %v5566 = vpow.pop %v5565
    %v5567 = vmul.f32 %v5555, 1.442695
    %v5568 = vpow.pop %v5567
    %v5569 = vmul.f32 %v5556, 1.442695
    %v5570 = vpow.pop %v5569
    %v5571 = vmul.f32 %v5557, 1.442695
    %v5572 = vpow.pop %v5571
    %v5573 = vmul.f32 %v5558, 1.442695
    %v5574 = vpow.pop %v5573
    %v5575 = vsel %vm1165, %v5560, 0.0
    %5576 = vadd.xlane.f32.xlu0 %v5575
    %v5577 = vpop.xlane.xlu0 %5576
    %v5578 = vsel %vm1165, %v5562, 0.0
    %5579 = vadd.xlane.f32.xlu0 %v5578
    %v5580 = vpop.xlane.xlu0 %5579
    %v5581 = vsel %vm1165, %v5564, 0.0
    %5582 = vadd.xlane.f32.xlu0 %v5581
    %v5583 = vpop.xlane.xlu0 %5582
    %v5584 = vsel %vm1165, %v5566, 0.0
    %5585 = vadd.xlane.f32.xlu0 %v5584
    %v5586 = vpop.xlane.xlu0 %5585
    %v5587 = vsel %vm1165, %v5568, 0.0
    %5588 = vadd.xlane.f32.xlu0 %v5587
    %v5589 = vpop.xlane.xlu0 %5588
    %v5590 = vsel %vm1165, %v5570, 0.0
    %5591 = vadd.xlane.f32.xlu0 %v5590
    %v5592 = vpop.xlane.xlu0 %5591
    %v5593 = vsel %vm1165, %v5572, 0.0
    %5594 = vadd.xlane.f32.xlu0 %v5593
    %v5595 = vpop.xlane.xlu0 %5594
    %v5596 = vsel %vm1165, %v5574, 0.0
    %5597 = vadd.xlane.f32.xlu0 %v5596
    %v5598 = vpop.xlane.xlu0 %5597
    %v5599 = vrcp.pop %v5577
    %v5600 = vrcp.pop %v5580
    %v5601 = vrcp.pop %v5583
    %v5602 = vrcp.pop %v5586
    %v5603 = vrcp.pop %v5589
    %v5604 = vrcp.pop %v5592
    %v5605 = vrcp.pop %v5595
    %v5606 = vrcp.pop %v5598
    %v5607 = vmul.f32 %v5560, %v5599
    %v5608 = vmul.f32 %v5562, %v5600
    %v5609 = vmul.f32 %v5564, %v5601
    %v5610 = vmul.f32 %v5566, %v5602
    %v5611 = vmul.f32 %v5568, %v5603
    %v5612 = vmul.f32 %v5570, %v5604
    %v5613 = vmul.f32 %v5572, %v5605
    %v5614 = vmul.f32 %v5574, %v5606
    %v5615 = vpack.c.bf16 %v5607, %v5607
    %v5616 = vpack.c.bf16 %v5608, %v5608
    %v5617 = vpack.c.bf16 %v5609, %v5609
    %v5618 = vpack.c.bf16 %v5610, %v5610
    %v5619 = vpack.c.bf16 %v5611, %v5611
    %v5620 = vpack.c.bf16 %v5612, %v5612
    %v5621 = vpack.c.bf16 %v5613, %v5613
    %v5622 = vpack.c.bf16 %v5614, %v5614
    %5623 = vrot.lane.b32.xlu0 %v5038, 64
    %v5624 = vpop.permute.xlu0 %5623
    %v5626 = vsel %vm1165, %v5615, 0
    %v5629 = vsel %vm1265, %v5624, 0
    %5631 = vmatpush.bf16.msra.mxu0 0
    %5632 = vmatpush.bf16.msra.mxu0 0
    %5633 = vmatpush.bf16.msra.mxu0 0
    %5634 = vmatpush.bf16.msra.mxu0 0
    %5635 = vmatpush.bf16.msra.mxu0 0
    %5636 = vmatpush.bf16.msra.mxu0 0
    %5637 = vmatpush.bf16.msra.mxu0 0
    %5638 = vmatpush.bf16.msra.mxu0 %v5629
    %5639 = vmatmul.bf16.gmra.mxu0 %v5626
    %v5640 = vpop.f32.mrf.mxu0
    %v5641 = vadd.f32 0.0, %v5640
    %v5642 = vpop.f32.mrf.mxu0
    %5643 = vdwg.mxu0
    %5644 = vrot.lane.b32.xlu0 %v5062, 64
    %v5645 = vpop.permute.xlu0 %5644
    %v5647 = vsel %vm1165, %v5616, 0
    %v5650 = vsel %vm1265, %v5645, 0
    %5652 = vmatpush.bf16.msra.mxu0 0
    %5653 = vmatpush.bf16.msra.mxu0 0
    %5654 = vmatpush.bf16.msra.mxu0 0
    %5655 = vmatpush.bf16.msra.mxu0 0
    %5656 = vmatpush.bf16.msra.mxu0 0
    %5657 = vmatpush.bf16.msra.mxu0 0
    %5658 = vmatpush.bf16.msra.mxu0 0
    %5659 = vmatpush.bf16.msra.mxu0 %v5650
    %5660 = vmatmul.bf16.gmra.mxu0 %v5647
    %v5661 = vpop.f32.mrf.mxu0
    %v5662 = vadd.f32 0.0, %v5661
    %v5663 = vpop.f32.mrf.mxu0
    %5664 = vdwg.mxu0
    %5665 = vrot.lane.b32.xlu0 %v5086, 64
    %v5666 = vpop.permute.xlu0 %5665
    %v5668 = vsel %vm1165, %v5617, 0
    %v5671 = vsel %vm1265, %v5666, 0
    %5673 = vmatpush.bf16.msra.mxu0 0
    %5674 = vmatpush.bf16.msra.mxu0 0
    %5675 = vmatpush.bf16.msra.mxu0 0
    %5676 = vmatpush.bf16.msra.mxu0 0
    %5677 = vmatpush.bf16.msra.mxu0 0
    %5678 = vmatpush.bf16.msra.mxu0 0
    %5679 = vmatpush.bf16.msra.mxu0 0
    %5680 = vmatpush.bf16.msra.mxu0 %v5671
    %5681 = vmatmul.bf16.gmra.mxu0 %v5668
    %v5682 = vpop.f32.mrf.mxu0
    %v5683 = vadd.f32 0.0, %v5682
    %v5684 = vpop.f32.mrf.mxu0
    %5685 = vdwg.mxu0
    %5686 = vrot.lane.b32.xlu0 %v5110, 64
    %v5687 = vpop.permute.xlu0 %5686
    %v5689 = vsel %vm1165, %v5618, 0
    %v5692 = vsel %vm1265, %v5687, 0
    %5694 = vmatpush.bf16.msra.mxu0 0
    %5695 = vmatpush.bf16.msra.mxu0 0
    %5696 = vmatpush.bf16.msra.mxu0 0
    %5697 = vmatpush.bf16.msra.mxu0 0
    %5698 = vmatpush.bf16.msra.mxu0 0
    %5699 = vmatpush.bf16.msra.mxu0 0
    %5700 = vmatpush.bf16.msra.mxu0 0
    %5701 = vmatpush.bf16.msra.mxu0 %v5692
    %5702 = vmatmul.bf16.gmra.mxu0 %v5689
    %v5703 = vpop.f32.mrf.mxu0
    %v5704 = vadd.f32 0.0, %v5703
    %v5705 = vpop.f32.mrf.mxu0
    %5706 = vdwg.mxu0
    %5707 = vrot.lane.b32.xlu0 %v5134, 64
    %v5708 = vpop.permute.xlu0 %5707
    %v5710 = vsel %vm1165, %v5619, 0
    %v5713 = vsel %vm1265, %v5708, 0
    %5715 = vmatpush.bf16.msra.mxu0 0
    %5716 = vmatpush.bf16.msra.mxu0 0
    %5717 = vmatpush.bf16.msra.mxu0 0
    %5718 = vmatpush.bf16.msra.mxu0 0
    %5719 = vmatpush.bf16.msra.mxu0 0
    %5720 = vmatpush.bf16.msra.mxu0 0
    %5721 = vmatpush.bf16.msra.mxu0 0
    %5722 = vmatpush.bf16.msra.mxu0 %v5713
    %5723 = vmatmul.bf16.gmra.mxu0 %v5710
    %v5724 = vpop.f32.mrf.mxu0
    %v5725 = vadd.f32 0.0, %v5724
    %v5726 = vpop.f32.mrf.mxu0
    %5727 = vdwg.mxu0
    %5728 = vrot.lane.b32.xlu0 %v5158, 64
    %v5729 = vpop.permute.xlu0 %5728
    %v5731 = vsel %vm1165, %v5620, 0
    %v5734 = vsel %vm1265, %v5729, 0
    %5736 = vmatpush.bf16.msra.mxu0 0
    %5737 = vmatpush.bf16.msra.mxu0 0
    %5738 = vmatpush.bf16.msra.mxu0 0
    %5739 = vmatpush.bf16.msra.mxu0 0
    %5740 = vmatpush.bf16.msra.mxu0 0
    %5741 = vmatpush.bf16.msra.mxu0 0
    %5742 = vmatpush.bf16.msra.mxu0 0
    %5743 = vmatpush.bf16.msra.mxu0 %v5734
    %5744 = vmatmul.bf16.gmra.mxu0 %v5731
    %v5745 = vpop.f32.mrf.mxu0
    %v5746 = vadd.f32 0.0, %v5745
    %v5747 = vpop.f32.mrf.mxu0
    %5748 = vdwg.mxu0
    %5749 = vrot.lane.b32.xlu0 %v5182, 64
    %v5750 = vpop.permute.xlu0 %5749
    %v5752 = vsel %vm1165, %v5621, 0
    %v5755 = vsel %vm1265, %v5750, 0
    %5757 = vmatpush.bf16.msra.mxu0 0
    %5758 = vmatpush.bf16.msra.mxu0 0
    %5759 = vmatpush.bf16.msra.mxu0 0
    %5760 = vmatpush.bf16.msra.mxu0 0
    %5761 = vmatpush.bf16.msra.mxu0 0
    %5762 = vmatpush.bf16.msra.mxu0 0
    %5763 = vmatpush.bf16.msra.mxu0 0
    %5764 = vmatpush.bf16.msra.mxu0 %v5755
    %5765 = vmatmul.bf16.gmra.mxu0 %v5752
    %v5766 = vpop.f32.mrf.mxu0
    %v5767 = vadd.f32 0.0, %v5766
    %v5768 = vpop.f32.mrf.mxu0
    %5769 = vdwg.mxu0
    %5770 = vrot.lane.b32.xlu0 %v5206, 64
    %v5771 = vpop.permute.xlu0 %5770
    %v5773 = vsel %vm1165, %v5622, 0
    %v5776 = vsel %vm1265, %v5771, 0
    %5778 = vmatpush.bf16.msra.mxu0 0
    %5779 = vmatpush.bf16.msra.mxu0 0
    %5780 = vmatpush.bf16.msra.mxu0 0
    %5781 = vmatpush.bf16.msra.mxu0 0
    %5782 = vmatpush.bf16.msra.mxu0 0
    %5783 = vmatpush.bf16.msra.mxu0 0
    %5784 = vmatpush.bf16.msra.mxu0 0
    %5785 = vmatpush.bf16.msra.mxu0 %v5776
    %5786 = vmatmul.bf16.gmra.mxu0 %v5773
    %v5787 = vpop.f32.mrf.mxu0
    %v5788 = vadd.f32 0.0, %v5787
    %v5789 = vpop.f32.mrf.mxu0
    %5790 = vdwg.mxu0
    %s5791 = scalar_lea.vmem [#allocation9], 96
    %v5792 = vld [vmem:[%s5791] sm:$0xf]
    %v5793 = vld [vmem:[%s5791 + $0x4] sm:$0xf]
    %v5794 = vld [vmem:[%s5791 + $0x8] sm:$0xf]
    %v5795 = vld [vmem:[%s5791 + $0xc] sm:$0xf]
    %v5796 = vpack.c.bf16 %v5662, %v5641
    %v5797 = vpack.c.bf16 %v5704, %v5683
    %v5798 = vpack.c.bf16 %v5746, %v5725
    %v5799 = vpack.c.bf16 %v5788, %v5767
    %v5804 = vunpack.c.l.b16 %v5792
    %v5805 = vunpack.c.l.b16 %v5793
    %v5806 = vunpack.c.l.b16 %v5794
    %v5807 = vunpack.c.l.b16 %v5795
    %v5808 = vpack.c.b16 %v5805, %v5804
    %v5809 = vpack.c.b16 %v5807, %v5806
    %v5813 = vsel %vm1012, %v5796, 0
    %v5816 = vsel %vm1012, %v5797, 0
    %v5819 = vsel %vm1012, %v5798, 0
    %v5822 = vsel %vm1012, %v5799, 0
    %5824 = vmatpush.bf16.msra.mxu0 0
    %5825 = vmatpush.bf16.msra.mxu0 0
    %5826 = vmatpush.bf16.msra.mxu0 0
    %5827 = vmatpush.bf16.msra.mxu0 0
    %5828 = vmatpush.bf16.msra.mxu0 0
    %5829 = vmatpush.bf16.msra.mxu0 0
    %5830 = vmatpush.bf16.msra.mxu0 %v5809
    %5831 = vmatpush.bf16.msra.mxu0 %v5808
    %5832 = vmatmul.bf16.gmra.mxu0 %v5813
    %v5833 = vpop.f32.mrf.mxu0
    %v5834 = vadd.f32 0.0, %v5833
    %v5835 = vpop.f32.mrf.mxu0
    %v5836 = vadd.f32 0.0, %v5835
    %5837 = vmatmul.bf16.gmra.mxu0 %v5816
    %v5838 = vpop.f32.mrf.mxu0
    %v5839 = vadd.f32 0.0, %v5838
    %v5840 = vpop.f32.mrf.mxu0
    %v5841 = vadd.f32 0.0, %v5840
    %5842 = vmatmul.bf16.gmra.mxu0 %v5819
    %v5843 = vpop.f32.mrf.mxu0
    %v5844 = vadd.f32 0.0, %v5843
    %v5845 = vpop.f32.mrf.mxu0
    %v5846 = vadd.f32 0.0, %v5845
    %5847 = vmatmul.bf16.gmra.mxu0 %v5822
    %v5848 = vpop.f32.mrf.mxu0
    %v5849 = vadd.f32 0.0, %v5848
    %v5850 = vpop.f32.mrf.mxu0
    %v5851 = vadd.f32 0.0, %v5850
    %5852 = vdwg.mxu0
    %v5853 = vadd.f32 %v5324, %v5834
    %v5854 = vadd.f32 %v5326, %v5836
    %v5855 = vadd.f32 %v5329, %v5839
    %v5856 = vadd.f32 %v5331, %v5841
    %v5857 = vadd.f32 %v5334, %v5844
    %v5858 = vadd.f32 %v5336, %v5846
    %v5859 = vadd.f32 %v5339, %v5849
    %v5860 = vadd.f32 %v5341, %v5851
    %5861 = vrot.lane.b32.xlu0 %v4710, 32
    %v5862 = vpop.permute.xlu0 %5861
    %5863 = vrot.lane.b32.xlu0 %v4715, 32
    %v5864 = vpop.permute.xlu0 %5863
    %v5866 = vsel %vm1012, %v5862, 0
    %v5869 = vsel %vm1012, %v5864, 0
    %5871 = vmatpush.bf16.xpose.msra.mxu0 0
    %5872 = vmatpush.bf16.xpose.msra.mxu0 0
    %5873 = vmatpush.bf16.xpose.msra.mxu0 0
    %5874 = vmatpush.bf16.xpose.msra.mxu0 0
    %5875 = vmatpush.bf16.xpose.msra.mxu0 0
    %5876 = vmatpush.bf16.xpose.msra.mxu0 0
    %5877 = vmatpush.bf16.xpose.msra.mxu0 0
    %5878 = vmatpush.bf16.xpose.msra.mxu0 %v5869
    %5879 = vmatmul.bf16.gmra.mxu0 %v5866
    %v5880 = vpop.f32.mrf.mxu0
    %v5881 = vadd.f32 %v529, %v5880
    %v5882 = vpop.f32.mrf.mxu0
    %5883 = vdwg.mxu0
    %5884 = vrot.lane.b32.xlu0 %v4739, 32
    %v5885 = vpop.permute.xlu0 %5884
    %5886 = vrot.lane.b32.xlu0 %v4744, 32
    %v5887 = vpop.permute.xlu0 %5886
    %v5889 = vsel %vm1012, %v5885, 0
    %v5892 = vsel %vm1012, %v5887, 0
    %5894 = vmatpush.bf16.xpose.msra.mxu0 0
    %5895 = vmatpush.bf16.xpose.msra.mxu0 0
    %5896 = vmatpush.bf16.xpose.msra.mxu0 0
    %5897 = vmatpush.bf16.xpose.msra.mxu0 0
    %5898 = vmatpush.bf16.xpose.msra.mxu0 0
    %5899 = vmatpush.bf16.xpose.msra.mxu0 0
    %5900 = vmatpush.bf16.xpose.msra.mxu0 0
    %5901 = vmatpush.bf16.xpose.msra.mxu0 %v5892
    %5902 = vmatmul.bf16.gmra.mxu0 %v5889
    %v5903 = vpop.f32.mrf.mxu0
    %v5904 = vadd.f32 %v529, %v5903
    %v5905 = vpop.f32.mrf.mxu0
    %5906 = vdwg.mxu0
    %5907 = vrot.lane.b32.xlu0 %v4768, 32
    %v5908 = vpop.permute.xlu0 %5907
    %5909 = vrot.lane.b32.xlu0 %v4773, 32
    %v5910 = vpop.permute.xlu0 %5909
    %v5912 = vsel %vm1012, %v5908, 0
    %v5915 = vsel %vm1012, %v5910, 0
    %5917 = vmatpush.bf16.xpose.msra.mxu0 0
    %5918 = vmatpush.bf16.xpose.msra.mxu0 0
    %5919 = vmatpush.bf16.xpose.msra.mxu0 0
    %5920 = vmatpush.bf16.xpose.msra.mxu0 0
    %5921 = vmatpush.bf16.xpose.msra.mxu0 0
    %5922 = vmatpush.bf16.xpose.msra.mxu0 0
    %5923 = vmatpush.bf16.xpose.msra.mxu0 0
    %5924 = vmatpush.bf16.xpose.msra.mxu0 %v5915
    %5925 = vmatmul.bf16.gmra.mxu0 %v5912
    %v5926 = vpop.f32.mrf.mxu0
    %v5927 = vadd.f32 %v529, %v5926
    %v5928 = vpop.f32.mrf.mxu0
    %5929 = vdwg.mxu0
    %5930 = vrot.lane.b32.xlu0 %v4797, 32
    %v5931 = vpop.permute.xlu0 %5930
    %5932 = vrot.lane.b32.xlu0 %v4802, 32
    %v5933 = vpop.permute.xlu0 %5932
    %v5935 = vsel %vm1012, %v5931, 0
    %v5938 = vsel %vm1012, %v5933, 0
    %5940 = vmatpush.bf16.xpose.msra.mxu0 0
    %5941 = vmatpush.bf16.xpose.msra.mxu0 0
    %5942 = vmatpush.bf16.xpose.msra.mxu0 0
    %5943 = vmatpush.bf16.xpose.msra.mxu0 0
    %5944 = vmatpush.bf16.xpose.msra.mxu0 0
    %5945 = vmatpush.bf16.xpose.msra.mxu0 0
    %5946 = vmatpush.bf16.xpose.msra.mxu0 0
    %5947 = vmatpush.bf16.xpose.msra.mxu0 %v5938
    %5948 = vmatmul.bf16.gmra.mxu0 %v5935
    %v5949 = vpop.f32.mrf.mxu0
    %v5950 = vadd.f32 %v529, %v5949
    %v5951 = vpop.f32.mrf.mxu0
    %5952 = vdwg.mxu0
    %5953 = vrot.lane.b32.xlu0 %v4826, 32
    %v5954 = vpop.permute.xlu0 %5953
    %5955 = vrot.lane.b32.xlu0 %v4831, 32
    %v5956 = vpop.permute.xlu0 %5955
    %v5958 = vsel %vm1012, %v5954, 0
    %v5961 = vsel %vm1012, %v5956, 0
    %5963 = vmatpush.bf16.xpose.msra.mxu0 0
    %5964 = vmatpush.bf16.xpose.msra.mxu0 0
    %5965 = vmatpush.bf16.xpose.msra.mxu0 0
    %5966 = vmatpush.bf16.xpose.msra.mxu0 0
    %5967 = vmatpush.bf16.xpose.msra.mxu0 0
    %5968 = vmatpush.bf16.xpose.msra.mxu0 0
    %5969 = vmatpush.bf16.xpose.msra.mxu0 0
    %5970 = vmatpush.bf16.xpose.msra.mxu0 %v5961
    %5971 = vmatmul.bf16.gmra.mxu0 %v5958
    %v5972 = vpop.f32.mrf.mxu0
    %v5973 = vadd.f32 %v529, %v5972
    %v5974 = vpop.f32.mrf.mxu0
    %5975 = vdwg.mxu0
    %5976 = vrot.lane.b32.xlu0 %v4855, 32
    %v5977 = vpop.permute.xlu0 %5976
    %5978 = vrot.lane.b32.xlu0 %v4860, 32
    %v5979 = vpop.permute.xlu0 %5978
    %v5981 = vsel %vm1012, %v5977, 0
    %v5984 = vsel %vm1012, %v5979, 0
    %5986 = vmatpush.bf16.xpose.msra.mxu0 0
    %5987 = vmatpush.bf16.xpose.msra.mxu0 0
    %5988 = vmatpush.bf16.xpose.msra.mxu0 0
    %5989 = vmatpush.bf16.xpose.msra.mxu0 0
    %5990 = vmatpush.bf16.xpose.msra.mxu0 0
    %5991 = vmatpush.bf16.xpose.msra.mxu0 0
    %5992 = vmatpush.bf16.xpose.msra.mxu0 0
    %5993 = vmatpush.bf16.xpose.msra.mxu0 %v5984
    %5994 = vmatmul.bf16.gmra.mxu0 %v5981
    %v5995 = vpop.f32.mrf.mxu0
    %v5996 = vadd.f32 %v529, %v5995
    %v5997 = vpop.f32.mrf.mxu0
    %5998 = vdwg.mxu0
    %5999 = vrot.lane.b32.xlu0 %v4884, 32
    %v6000 = vpop.permute.xlu0 %5999
    %6001 = vrot.lane.b32.xlu0 %v4889, 32
    %v6002 = vpop.permute.xlu0 %6001
    %v6004 = vsel %vm1012, %v6000, 0
    %v6007 = vsel %vm1012, %v6002, 0
    %6009 = vmatpush.bf16.xpose.msra.mxu0 0
    %6010 = vmatpush.bf16.xpose.msra.mxu0 0
    %6011 = vmatpush.bf16.xpose.msra.mxu0 0
    %6012 = vmatpush.bf16.xpose.msra.mxu0 0
    %6013 = vmatpush.bf16.xpose.msra.mxu0 0
    %6014 = vmatpush.bf16.xpose.msra.mxu0 0
    %6015 = vmatpush.bf16.xpose.msra.mxu0 0
    %6016 = vmatpush.bf16.xpose.msra.mxu0 %v6007
    %6017 = vmatmul.bf16.gmra.mxu0 %v6004
    %v6018 = vpop.f32.mrf.mxu0
    %v6019 = vadd.f32 %v529, %v6018
    %v6020 = vpop.f32.mrf.mxu0
    %6021 = vdwg.mxu0
    %6022 = vrot.lane.b32.xlu0 %v4913, 32
    %v6023 = vpop.permute.xlu0 %6022
    %6024 = vrot.lane.b32.xlu0 %v4918, 32
    %v6025 = vpop.permute.xlu0 %6024
    %v6027 = vsel %vm1012, %v6023, 0
    %v6030 = vsel %vm1012, %v6025, 0
    %6032 = vmatpush.bf16.xpose.msra.mxu0 0
    %6033 = vmatpush.bf16.xpose.msra.mxu0 0
    %6034 = vmatpush.bf16.xpose.msra.mxu0 0
    %6035 = vmatpush.bf16.xpose.msra.mxu0 0
    %6036 = vmatpush.bf16.xpose.msra.mxu0 0
    %6037 = vmatpush.bf16.xpose.msra.mxu0 0
    %6038 = vmatpush.bf16.xpose.msra.mxu0 0
    %6039 = vmatpush.bf16.xpose.msra.mxu0 %v6030
    %6040 = vmatmul.bf16.gmra.mxu0 %v6027
    %v6041 = vpop.f32.mrf.mxu0
    %v6042 = vadd.f32 %v529, %v6041
    %v6043 = vpop.f32.mrf.mxu0
    %6044 = vdwg.mxu0
    %v6045 = vsel %vm1165, %v5881, -inf
    %6046 = vmax.xlane.f32.xlu0 %v6045
    %v6047 = vpop.xlane.xlu0 %6046
    %v6048 = vsel %vm1165, %v5904, -inf
    %6049 = vmax.xlane.f32.xlu0 %v6048
    %v6050 = vpop.xlane.xlu0 %6049
    %v6051 = vsel %vm1165, %v5927, -inf
    %6052 = vmax.xlane.f32.xlu0 %v6051
    %v6053 = vpop.xlane.xlu0 %6052
    %v6054 = vsel %vm1165, %v5950, -inf
    %6055 = vmax.xlane.f32.xlu0 %v6054
    %v6056 = vpop.xlane.xlu0 %6055
    %v6057 = vsel %vm1165, %v5973, -inf
    %6058 = vmax.xlane.f32.xlu0 %v6057
    %v6059 = vpop.xlane.xlu0 %6058
    %v6060 = vsel %vm1165, %v5996, -inf
    %6061 = vmax.xlane.f32.xlu0 %v6060
    %v6062 = vpop.xlane.xlu0 %6061
    %v6063 = vsel %vm1165, %v6019, -inf
    %6064 = vmax.xlane.f32.xlu0 %v6063
    %v6065 = vpop.xlane.xlu0 %6064
    %v6066 = vsel %vm1165, %v6042, -inf
    %6067 = vmax.xlane.f32.xlu0 %v6066
    %v6068 = vpop.xlane.xlu0 %6067
    %v6069 = vsub.f32 %v5881, %v6047
    %v6070 = vsub.f32 %v5904, %v6050
    %v6071 = vsub.f32 %v5927, %v6053
    %v6072 = vsub.f32 %v5950, %v6056
    %v6073 = vsub.f32 %v5973, %v6059
    %v6074 = vsub.f32 %v5996, %v6062
    %v6075 = vsub.f32 %v6019, %v6065
    %v6076 = vsub.f32 %v6042, %v6068
    %v6077 = vmul.f32 %v6069, 1.442695
    %v6078 = vpow.pop %v6077
    %v6079 = vmul.f32 %v6070, 1.442695
    %v6080 = vpow.pop %v6079
    %v6081 = vmul.f32 %v6071, 1.442695
    %v6082 = vpow.pop %v6081
    %v6083 = vmul.f32 %v6072, 1.442695
    %v6084 = vpow.pop %v6083
    %v6085 = vmul.f32 %v6073, 1.442695
    %v6086 = vpow.pop %v6085
    %v6087 = vmul.f32 %v6074, 1.442695
    %v6088 = vpow.pop %v6087
    %v6089 = vmul.f32 %v6075, 1.442695
    %v6090 = vpow.pop %v6089
    %v6091 = vmul.f32 %v6076, 1.442695
    %v6092 = vpow.pop %v6091
    %v6093 = vsel %vm1165, %v6078, 0.0
    %6094 = vadd.xlane.f32.xlu0 %v6093
    %v6095 = vpop.xlane.xlu0 %6094
    %v6096 = vsel %vm1165, %v6080, 0.0
    %6097 = vadd.xlane.f32.xlu0 %v6096
    %v6098 = vpop.xlane.xlu0 %6097
    %v6099 = vsel %vm1165, %v6082, 0.0
    %6100 = vadd.xlane.f32.xlu0 %v6099
    %v6101 = vpop.xlane.xlu0 %6100
    %v6102 = vsel %vm1165, %v6084, 0.0
    %6103 = vadd.xlane.f32.xlu0 %v6102
    %v6104 = vpop.xlane.xlu0 %6103
    %v6105 = vsel %vm1165, %v6086, 0.0
    %6106 = vadd.xlane.f32.xlu0 %v6105
    %v6107 = vpop.xlane.xlu0 %6106
    %v6108 = vsel %vm1165, %v6088, 0.0
    %6109 = vadd.xlane.f32.xlu0 %v6108
    %v6110 = vpop.xlane.xlu0 %6109
    %v6111 = vsel %vm1165, %v6090, 0.0
    %6112 = vadd.xlane.f32.xlu0 %v6111
    %v6113 = vpop.xlane.xlu0 %6112
    %v6114 = vsel %vm1165, %v6092, 0.0
    %6115 = vadd.xlane.f32.xlu0 %v6114
    %v6116 = vpop.xlane.xlu0 %6115
    %v6117 = vrcp.pop %v6095
    %v6118 = vrcp.pop %v6098
    %v6119 = vrcp.pop %v6101
    %v6120 = vrcp.pop %v6104
    %v6121 = vrcp.pop %v6107
    %v6122 = vrcp.pop %v6110
    %v6123 = vrcp.pop %v6113
    %v6124 = vrcp.pop %v6116
    %v6125 = vmul.f32 %v6078, %v6117
    %v6126 = vmul.f32 %v6080, %v6118
    %v6127 = vmul.f32 %v6082, %v6119
    %v6128 = vmul.f32 %v6084, %v6120
    %v6129 = vmul.f32 %v6086, %v6121
    %v6130 = vmul.f32 %v6088, %v6122
    %v6131 = vmul.f32 %v6090, %v6123
    %v6132 = vmul.f32 %v6092, %v6124
    %v6133 = vpack.c.bf16 %v6125, %v6125
    %v6134 = vpack.c.bf16 %v6126, %v6126
    %v6135 = vpack.c.bf16 %v6127, %v6127
    %v6136 = vpack.c.bf16 %v6128, %v6128
    %v6137 = vpack.c.bf16 %v6129, %v6129
    %v6138 = vpack.c.bf16 %v6130, %v6130
    %v6139 = vpack.c.bf16 %v6131, %v6131
    %v6140 = vpack.c.bf16 %v6132, %v6132
    %6141 = vrot.lane.b32.xlu0 %v5038, 32
    %v6142 = vpop.permute.xlu0 %6141
    %v6144 = vsel %vm1165, %v6133, 0
    %v6147 = vsel %vm1265, %v6142, 0
    %6149 = vmatpush.bf16.msra.mxu0 0
    %6150 = vmatpush.bf16.msra.mxu0 0
    %6151 = vmatpush.bf16.msra.mxu0 0
    %6152 = vmatpush.bf16.msra.mxu0 0
    %6153 = vmatpush.bf16.msra.mxu0 0
    %6154 = vmatpush.bf16.msra.mxu0 0
    %6155 = vmatpush.bf16.msra.mxu0 0
    %6156 = vmatpush.bf16.msra.mxu0 %v6147
    %6157 = vmatmul.bf16.gmra.mxu0 %v6144
    %v6158 = vpop.f32.mrf.mxu0
    %v6159 = vadd.f32 0.0, %v6158
    %v6160 = vpop.f32.mrf.mxu0
    %6161 = vdwg.mxu0
    %6162 = vrot.lane.b32.xlu0 %v5062, 32
    %v6163 = vpop.permute.xlu0 %6162
    %v6165 = vsel %vm1165, %v6134, 0
    %v6168 = vsel %vm1265, %v6163, 0
    %6170 = vmatpush.bf16.msra.mxu0 0
    %6171 = vmatpush.bf16.msra.mxu0 0
    %6172 = vmatpush.bf16.msra.mxu0 0
    %6173 = vmatpush.bf16.msra.mxu0 0
    %6174 = vmatpush.bf16.msra.mxu0 0
    %6175 = vmatpush.bf16.msra.mxu0 0
    %6176 = vmatpush.bf16.msra.mxu0 0
    %6177 = vmatpush.bf16.msra.mxu0 %v6168
    %6178 = vmatmul.bf16.gmra.mxu0 %v6165
    %v6179 = vpop.f32.mrf.mxu0
    %v6180 = vadd.f32 0.0, %v6179
    %v6181 = vpop.f32.mrf.mxu0
    %6182 = vdwg.mxu0
    %6183 = vrot.lane.b32.xlu0 %v5086, 32
    %v6184 = vpop.permute.xlu0 %6183
    %v6186 = vsel %vm1165, %v6135, 0
    %v6189 = vsel %vm1265, %v6184, 0
    %6191 = vmatpush.bf16.msra.mxu0 0
    %6192 = vmatpush.bf16.msra.mxu0 0
    %6193 = vmatpush.bf16.msra.mxu0 0
    %6194 = vmatpush.bf16.msra.mxu0 0
    %6195 = vmatpush.bf16.msra.mxu0 0
    %6196 = vmatpush.bf16.msra.mxu0 0
    %6197 = vmatpush.bf16.msra.mxu0 0
    %6198 = vmatpush.bf16.msra.mxu0 %v6189
    %6199 = vmatmul.bf16.gmra.mxu0 %v6186
    %v6200 = vpop.f32.mrf.mxu0
    %v6201 = vadd.f32 0.0, %v6200
    %v6202 = vpop.f32.mrf.mxu0
    %6203 = vdwg.mxu0
    %6204 = vrot.lane.b32.xlu0 %v5110, 32
    %v6205 = vpop.permute.xlu0 %6204
    %v6207 = vsel %vm1165, %v6136, 0
    %v6210 = vsel %vm1265, %v6205, 0
    %6212 = vmatpush.bf16.msra.mxu0 0
    %6213 = vmatpush.bf16.msra.mxu0 0
    %6214 = vmatpush.bf16.msra.mxu0 0
    %6215 = vmatpush.bf16.msra.mxu0 0
    %6216 = vmatpush.bf16.msra.mxu0 0
    %6217 = vmatpush.bf16.msra.mxu0 0
    %6218 = vmatpush.bf16.msra.mxu0 0
    %6219 = vmatpush.bf16.msra.mxu0 %v6210
    %6220 = vmatmul.bf16.gmra.mxu0 %v6207
    %v6221 = vpop.f32.mrf.mxu0
    %v6222 = vadd.f32 0.0, %v6221
    %v6223 = vpop.f32.mrf.mxu0
    %6224 = vdwg.mxu0
    %6225 = vrot.lane.b32.xlu0 %v5134, 32
    %v6226 = vpop.permute.xlu0 %6225
    %v6228 = vsel %vm1165, %v6137, 0
    %v6231 = vsel %vm1265, %v6226, 0
    %6233 = vmatpush.bf16.msra.mxu0 0
    %6234 = vmatpush.bf16.msra.mxu0 0
    %6235 = vmatpush.bf16.msra.mxu0 0
    %6236 = vmatpush.bf16.msra.mxu0 0
    %6237 = vmatpush.bf16.msra.mxu0 0
    %6238 = vmatpush.bf16.msra.mxu0 0
    %6239 = vmatpush.bf16.msra.mxu0 0
    %6240 = vmatpush.bf16.msra.mxu0 %v6231
    %6241 = vmatmul.bf16.gmra.mxu0 %v6228
    %v6242 = vpop.f32.mrf.mxu0
    %v6243 = vadd.f32 0.0, %v6242
    %v6244 = vpop.f32.mrf.mxu0
    %6245 = vdwg.mxu0
    %6246 = vrot.lane.b32.xlu0 %v5158, 32
    %v6247 = vpop.permute.xlu0 %6246
    %v6249 = vsel %vm1165, %v6138, 0
    %v6252 = vsel %vm1265, %v6247, 0
    %6254 = vmatpush.bf16.msra.mxu0 0
    %6255 = vmatpush.bf16.msra.mxu0 0
    %6256 = vmatpush.bf16.msra.mxu0 0
    %6257 = vmatpush.bf16.msra.mxu0 0
    %6258 = vmatpush.bf16.msra.mxu0 0
    %6259 = vmatpush.bf16.msra.mxu0 0
    %6260 = vmatpush.bf16.msra.mxu0 0
    %6261 = vmatpush.bf16.msra.mxu0 %v6252
    %6262 = vmatmul.bf16.gmra.mxu0 %v6249
    %v6263 = vpop.f32.mrf.mxu0
    %v6264 = vadd.f32 0.0, %v6263
    %v6265 = vpop.f32.mrf.mxu0
    %6266 = vdwg.mxu0
    %6267 = vrot.lane.b32.xlu0 %v5182, 32
    %v6268 = vpop.permute.xlu0 %6267
    %v6270 = vsel %vm1165, %v6139, 0
    %v6273 = vsel %vm1265, %v6268, 0
    %6275 = vmatpush.bf16.msra.mxu0 0
    %6276 = vmatpush.bf16.msra.mxu0 0
    %6277 = vmatpush.bf16.msra.mxu0 0
    %6278 = vmatpush.bf16.msra.mxu0 0
    %6279 = vmatpush.bf16.msra.mxu0 0
    %6280 = vmatpush.bf16.msra.mxu0 0
    %6281 = vmatpush.bf16.msra.mxu0 0
    %6282 = vmatpush.bf16.msra.mxu0 %v6273
    %6283 = vmatmul.bf16.gmra.mxu0 %v6270
    %v6284 = vpop.f32.mrf.mxu0
    %v6285 = vadd.f32 0.0, %v6284
    %v6286 = vpop.f32.mrf.mxu0
    %6287 = vdwg.mxu0
    %6288 = vrot.lane.b32.xlu0 %v5206, 32
    %v6289 = vpop.permute.xlu0 %6288
    %v6291 = vsel %vm1165, %v6140, 0
    %v6294 = vsel %vm1265, %v6289, 0
    %6296 = vmatpush.bf16.msra.mxu0 0
    %6297 = vmatpush.bf16.msra.mxu0 0
    %6298 = vmatpush.bf16.msra.mxu0 0
    %6299 = vmatpush.bf16.msra.mxu0 0
    %6300 = vmatpush.bf16.msra.mxu0 0
    %6301 = vmatpush.bf16.msra.mxu0 0
    %6302 = vmatpush.bf16.msra.mxu0 0
    %6303 = vmatpush.bf16.msra.mxu0 %v6294
    %6304 = vmatmul.bf16.gmra.mxu0 %v6291
    %v6305 = vpop.f32.mrf.mxu0
    %v6306 = vadd.f32 0.0, %v6305
    %v6307 = vpop.f32.mrf.mxu0
    %6308 = vdwg.mxu0
    %s6309 = scalar_lea.vmem [#allocation9], 112
    %v6310 = vld [vmem:[%s6309] sm:$0xf]
    %v6311 = vld [vmem:[%s6309 + $0x4] sm:$0xf]
    %v6312 = vld [vmem:[%s6309 + $0x8] sm:$0xf]
    %v6313 = vld [vmem:[%s6309 + $0xc] sm:$0xf]
    %v6314 = vpack.c.bf16 %v6180, %v6159
    %v6315 = vpack.c.bf16 %v6222, %v6201
    %v6316 = vpack.c.bf16 %v6264, %v6243
    %v6317 = vpack.c.bf16 %v6306, %v6285
    %v6322 = vunpack.c.l.b16 %v6310
    %v6323 = vunpack.c.l.b16 %v6311
    %v6324 = vunpack.c.l.b16 %v6312
    %v6325 = vunpack.c.l.b16 %v6313
    %v6326 = vpack.c.b16 %v6323, %v6322
    %v6327 = vpack.c.b16 %v6325, %v6324
    %v6331 = vsel %vm1012, %v6314, 0
    %v6334 = vsel %vm1012, %v6315, 0
    %v6337 = vsel %vm1012, %v6316, 0
    %v6340 = vsel %vm1012, %v6317, 0
    %6342 = vmatpush.bf16.msra.mxu0 0
    %6343 = vmatpush.bf16.msra.mxu0 0
    %6344 = vmatpush.bf16.msra.mxu0 0
    %6345 = vmatpush.bf16.msra.mxu0 0
    %6346 = vmatpush.bf16.msra.mxu0 0
    %6347 = vmatpush.bf16.msra.mxu0 0
    %6348 = vmatpush.bf16.msra.mxu0 %v6327
    %6349 = vmatpush.bf16.msra.mxu0 %v6326
    %6350 = vmatmul.bf16.gmra.mxu0 %v6331
    %v6351 = vpop.f32.mrf.mxu0
    %v6352 = vadd.f32 0.0, %v6351
    %v6353 = vpop.f32.mrf.mxu0
    %v6354 = vadd.f32 0.0, %v6353
    %6355 = vmatmul.bf16.gmra.mxu0 %v6334
    %v6356 = vpop.f32.mrf.mxu0
    %v6357 = vadd.f32 0.0, %v6356
    %v6358 = vpop.f32.mrf.mxu0
    %v6359 = vadd.f32 0.0, %v6358
    %6360 = vmatmul.bf16.gmra.mxu0 %v6337
    %v6361 = vpop.f32.mrf.mxu0
    %v6362 = vadd.f32 0.0, %v6361
    %v6363 = vpop.f32.mrf.mxu0
    %v6364 = vadd.f32 0.0, %v6363
    %6365 = vmatmul.bf16.gmra.mxu0 %v6340
    %v6366 = vpop.f32.mrf.mxu0
    %v6367 = vadd.f32 0.0, %v6366
    %v6368 = vpop.f32.mrf.mxu0
    %v6369 = vadd.f32 0.0, %v6368
    %6370 = vdwg.mxu0
    %v6371 = vadd.f32 %v5853, %v6352
    %v6372 = vadd.f32 %v5854, %v6354
    %v6373 = vadd.f32 %v5855, %v6357
    %v6374 = vadd.f32 %v5856, %v6359
    %v6375 = vadd.f32 %v5857, %v6362
    %v6376 = vadd.f32 %v5858, %v6364
    %v6377 = vadd.f32 %v5859, %v6367
    %v6378 = vadd.f32 %v5860, %v6369
    %v6379 = vadd.f32 %v3812, %v6371
    %v6380 = vadd.f32 %v3813, %v6372
    %v6381 = vadd.f32 %v3814, %v6373
    %v6382 = vadd.f32 %v3815, %v6374
    %v6383 = vadd.f32 %v3816, %v6375
    %v6384 = vadd.f32 %v3817, %v6376
    %v6385 = vadd.f32 %v3818, %v6377
    %v6386 = vadd.f32 %v3819, %v6378
    %s6387 = scalar_lea.vmem [#allocation10], 1
    %v6388 = vld [vmem:[%s6387] sm:$0x1]
    %v6390 = vperm.slane %v6388, 0
    %v6392 = vadd.f32 %v6379, %v6390
    %v6393 = vadd.f32 %v6380, %v6390
    %v6394 = vadd.f32 %v6381, %v6390
    %v6395 = vadd.f32 %v6382, %v6390
    %v6396 = vadd.f32 %v6383, %v6390
    %v6397 = vadd.f32 %v6384, %v6390
    %v6398 = vadd.f32 %v6385, %v6390
    %v6399 = vadd.f32 %v6386, %v6390
    %s6400 = scalar_lea.vmem [#allocation12], 1
    %v6401 = vld [vmem:[%s6400] sm:$0x1]
    %s6402 = scalar_lea.vmem [#allocation13], 1
    %v6403 = vld [vmem:[%s6402] sm:$0x1]
    %6404 = vadd.xlane.f32.xlu0 %v6392
    %v6405 = vpop.xlane.xlu0 %6404
    %6406 = vadd.xlane.f32.xlu0 %v6393
    %v6407 = vpop.xlane.xlu0 %6406
    %6408 = vadd.xlane.f32.xlu0 %v6394
    %v6409 = vpop.xlane.xlu0 %6408
    %6410 = vadd.xlane.f32.xlu0 %v6395
    %v6411 = vpop.xlane.xlu0 %6410
    %6412 = vadd.xlane.f32.xlu0 %v6396
    %v6413 = vpop.xlane.xlu0 %6412
    %6414 = vadd.xlane.f32.xlu0 %v6397
    %v6415 = vpop.xlane.xlu0 %6414
    %6416 = vadd.xlane.f32.xlu0 %v6398
    %v6417 = vpop.xlane.xlu0 %6416
    %6418 = vadd.xlane.f32.xlu0 %v6399
    %v6419 = vpop.xlane.xlu0 %6418
    %v6420 = vmul.f32 %v6405, %v554
    %v6421 = vmul.f32 %v6407, %v554
    %v6422 = vmul.f32 %v6409, %v554
    %v6423 = vmul.f32 %v6411, %v554
    %v6424 = vmul.f32 %v6413, %v554
    %v6425 = vmul.f32 %v6415, %v554
    %v6426 = vmul.f32 %v6417, %v554
    %v6427 = vmul.f32 %v6419, %v554
    %v6428 = vsub.f32 %v6392, %v6420
    %v6429 = vsub.f32 %v6393, %v6421
    %v6430 = vsub.f32 %v6394, %v6422
    %v6431 = vsub.f32 %v6395, %v6423
    %v6432 = vsub.f32 %v6396, %v6424
    %v6433 = vsub.f32 %v6397, %v6425
    %v6434 = vsub.f32 %v6398, %v6426
    %v6435 = vsub.f32 %v6399, %v6427
    %v6436 = vmul.f32 %v6428, %v6428
    %v6437 = vmul.f32 %v6429, %v6429
    %v6438 = vmul.f32 %v6430, %v6430
    %v6439 = vmul.f32 %v6431, %v6431
    %v6440 = vmul.f32 %v6432, %v6432
    %v6441 = vmul.f32 %v6433, %v6433
    %v6442 = vmul.f32 %v6434, %v6434
    %v6443 = vmul.f32 %v6435, %v6435
    %6444 = vadd.xlane.f32.xlu0 %v6436
    %v6445 = vpop.xlane.xlu0 %6444
    %6446 = vadd.xlane.f32.xlu0 %v6437
    %v6447 = vpop.xlane.xlu0 %6446
    %6448 = vadd.xlane.f32.xlu0 %v6438
    %v6449 = vpop.xlane.xlu0 %6448
    %6450 = vadd.xlane.f32.xlu0 %v6439
    %v6451 = vpop.xlane.xlu0 %6450
    %6452 = vadd.xlane.f32.xlu0 %v6440
    %v6453 = vpop.xlane.xlu0 %6452
    %6454 = vadd.xlane.f32.xlu0 %v6441
    %v6455 = vpop.xlane.xlu0 %6454
    %6456 = vadd.xlane.f32.xlu0 %v6442
    %v6457 = vpop.xlane.xlu0 %6456
    %6458 = vadd.xlane.f32.xlu0 %v6443
    %v6459 = vpop.xlane.xlu0 %6458
    %v6460 = vmul.f32 %v6445, %v554
    %v6461 = vmul.f32 %v6447, %v554
    %v6462 = vmul.f32 %v6449, %v554
    %v6463 = vmul.f32 %v6451, %v554
    %v6464 = vmul.f32 %v6453, %v554
    %v6465 = vmul.f32 %v6455, %v554
    %v6466 = vmul.f32 %v6457, %v554
    %v6467 = vmul.f32 %v6459, %v554
    %v6468 = vadd.f32 %v6460, 1e-05
    %v6469 = vadd.f32 %v6461, 1e-05
    %v6470 = vadd.f32 %v6462, 1e-05
    %v6471 = vadd.f32 %v6463, 1e-05
    %v6472 = vadd.f32 %v6464, 1e-05
    %v6473 = vadd.f32 %v6465, 1e-05
    %v6474 = vadd.f32 %v6466, 1e-05
    %v6475 = vadd.f32 %v6467, 1e-05
    %v6476 = vrsqrt.pop %v6468
    %v6477 = vmul.f32 %v6476, %v6468
    %v6478 = vmul.f32 %v6477, %v6476
    %v6479 = vmul.f32 0.5, %v6478
    %v6480 = vsub.f32 1.5, %v6479
    %v6481 = vmul.f32 %v6476, %v6480
    %vm6482 = vweird.f32 %v6468
    %vm6483 = vweird.f32 %v6476
    %vm6484 = vmor %vm6482, %vm6483
    %v6485 = vsel %vm6484, %v6476, %v6481
    %v6486 = vrsqrt.pop %v6469
    %v6487 = vmul.f32 %v6486, %v6469
    %v6488 = vmul.f32 %v6487, %v6486
    %v6489 = vmul.f32 0.5, %v6488
    %v6490 = vsub.f32 1.5, %v6489
    %v6491 = vmul.f32 %v6486, %v6490
    %vm6492 = vweird.f32 %v6469
    %vm6493 = vweird.f32 %v6486
    %vm6494 = vmor %vm6492, %vm6493
    %v6495 = vsel %vm6494, %v6486, %v6491
    %v6496 = vrsqrt.pop %v6470
    %v6497 = vmul.f32 %v6496, %v6470
    %v6498 = vmul.f32 %v6497, %v6496
    %v6499 = vmul.f32 0.5, %v6498
    %v6500 = vsub.f32 1.5, %v6499
    %v6501 = vmul.f32 %v6496, %v6500
    %vm6502 = vweird.f32 %v6470
    %vm6503 = vweird.f32 %v6496
    %vm6504 = vmor %vm6502, %vm6503
    %v6505 = vsel %vm6504, %v6496, %v6501
    %v6506 = vrsqrt.pop %v6471
    %v6507 = vmul.f32 %v6506, %v6471
    %v6508 = vmul.f32 %v6507, %v6506
    %v6509 = vmul.f32 0.5, %v6508
    %v6510 = vsub.f32 1.5, %v6509
    %v6511 = vmul.f32 %v6506, %v6510
    %vm6512 = vweird.f32 %v6471
    %vm6513 = vweird.f32 %v6506
    %vm6514 = vmor %vm6512, %vm6513
    %v6515 = vsel %vm6514, %v6506, %v6511
    %v6516 = vrsqrt.pop %v6472
    %v6517 = vmul.f32 %v6516, %v6472
    %v6518 = vmul.f32 %v6517, %v6516
    %v6519 = vmul.f32 0.5, %v6518
    %v6520 = vsub.f32 1.5, %v6519
    %v6521 = vmul.f32 %v6516, %v6520
    %vm6522 = vweird.f32 %v6472
    %vm6523 = vweird.f32 %v6516
    %vm6524 = vmor %vm6522, %vm6523
    %v6525 = vsel %vm6524, %v6516, %v6521
    %v6526 = vrsqrt.pop %v6473
    %v6527 = vmul.f32 %v6526, %v6473
    %v6528 = vmul.f32 %v6527, %v6526
    %v6529 = vmul.f32 0.5, %v6528
    %v6530 = vsub.f32 1.5, %v6529
    %v6531 = vmul.f32 %v6526, %v6530
    %vm6532 = vweird.f32 %v6473
    %vm6533 = vweird.f32 %v6526
    %vm6534 = vmor %vm6532, %vm6533
    %v6535 = vsel %vm6534, %v6526, %v6531
    %v6536 = vrsqrt.pop %v6474
    %v6537 = vmul.f32 %v6536, %v6474
    %v6538 = vmul.f32 %v6537, %v6536
    %v6539 = vmul.f32 0.5, %v6538
    %v6540 = vsub.f32 1.5, %v6539
    %v6541 = vmul.f32 %v6536, %v6540
    %vm6542 = vweird.f32 %v6474
    %vm6543 = vweird.f32 %v6536
    %vm6544 = vmor %vm6542, %vm6543
    %v6545 = vsel %vm6544, %v6536, %v6541
    %v6546 = vrsqrt.pop %v6475
    %v6547 = vmul.f32 %v6546, %v6475
    %v6548 = vmul.f32 %v6547, %v6546
    %v6549 = vmul.f32 0.5, %v6548
    %v6550 = vsub.f32 1.5, %v6549
    %v6551 = vmul.f32 %v6546, %v6550
    %vm6552 = vweird.f32 %v6475
    %vm6553 = vweird.f32 %v6546
    %vm6554 = vmor %vm6552, %vm6553
    %v6555 = vsel %vm6554, %v6546, %v6551
    %v6556 = vmul.f32 %v6428, %v6485
    %v6557 = vmul.f32 %v6429, %v6495
    %v6558 = vmul.f32 %v6430, %v6505
    %v6559 = vmul.f32 %v6431, %v6515
    %v6560 = vmul.f32 %v6432, %v6525
    %v6561 = vmul.f32 %v6433, %v6535
    %v6562 = vmul.f32 %v6434, %v6545
    %v6563 = vmul.f32 %v6435, %v6555
    %v6565 = vperm.slane %v6401, 0
    %v6567 = vmul.f32 %v6556, %v6565
    %v6568 = vmul.f32 %v6557, %v6565
    %v6569 = vmul.f32 %v6558, %v6565
    %v6570 = vmul.f32 %v6559, %v6565
    %v6571 = vmul.f32 %v6560, %v6565
    %v6572 = vmul.f32 %v6561, %v6565
    %v6573 = vmul.f32 %v6562, %v6565
    %v6574 = vmul.f32 %v6563, %v6565
    %v6576 = vperm.slane %v6403, 0
    %v6578 = vadd.f32 %v6567, %v6576
    %v6579 = vadd.f32 %v6568, %v6576
    %v6580 = vadd.f32 %v6569, %v6576
    %v6581 = vadd.f32 %v6570, %v6576
    %v6582 = vadd.f32 %v6571, %v6576
    %v6583 = vadd.f32 %v6572, %v6576
    %v6584 = vadd.f32 %v6573, %v6576
    %v6585 = vadd.f32 %v6574, %v6576
    %s6586 = scalar_lea.vmem %s12, 128
    %v6587 = vld [vmem:[%s6586] sm:$0xff]
    %v6588 = vld [vmem:[%s6586 + $0x8] sm:$0xff]
    %v6589 = vld [vmem:[%s6586 + $0x10] sm:$0xff]
    %v6590 = vld [vmem:[%s6586 + $0x18] sm:$0xff]
    %v6591 = vld [vmem:[%s6586 + $0x20] sm:$0xff]
    %v6592 = vld [vmem:[%s6586 + $0x28] sm:$0xff]
    %v6593 = vld [vmem:[%s6586 + $0x30] sm:$0xff]
    %v6594 = vld [vmem:[%s6586 + $0x38] sm:$0xff]
    %v6595 = vld [vmem:[%s6586 + $0x40] sm:$0xff]
    %v6596 = vld [vmem:[%s6586 + $0x48] sm:$0xff]
    %v6597 = vld [vmem:[%s6586 + $0x50] sm:$0xff]
    %v6598 = vld [vmem:[%s6586 + $0x58] sm:$0xff]
    %v6599 = vld [vmem:[%s6586 + $0x60] sm:$0xff]
    %v6600 = vld [vmem:[%s6586 + $0x68] sm:$0xff]
    %v6601 = vld [vmem:[%s6586 + $0x70] sm:$0xff]
    %v6602 = vld [vmem:[%s6586 + $0x78] sm:$0xff]
    %v6603 = vpack.c.bf16 %v6579, %v6578
    %v6604 = vpack.c.bf16 %v6581, %v6580
    %v6605 = vpack.c.bf16 %v6583, %v6582
    %v6606 = vpack.c.bf16 %v6585, %v6584
    %s6607 = scalar_lea.vmem [#allocation15], 2
    %v6608 = vld [vmem:[%s6607] sm:$0x3]
    %v6610 = vperm.slane %v6608, 0
    %v6611 = vperm.slane %v6608, 1
    %v6630 = vunpack.c.l.b16 %v6587
    %v6631 = vunpack.c.h.b16 %v6587
    %v6632 = vunpack.c.l.b16 %v6588
    %v6633 = vunpack.c.h.b16 %v6588
    %v6634 = vunpack.c.l.b16 %v6589
    %v6635 = vunpack.c.h.b16 %v6589
    %v6636 = vunpack.c.l.b16 %v6590
    %v6637 = vunpack.c.h.b16 %v6590
    %v6638 = vunpack.c.l.b16 %v6591
    %v6639 = vunpack.c.h.b16 %v6591
    %v6640 = vunpack.c.l.b16 %v6592
    %v6641 = vunpack.c.h.b16 %v6592
    %v6642 = vunpack.c.l.b16 %v6593
    %v6643 = vunpack.c.h.b16 %v6593
    %v6644 = vunpack.c.l.b16 %v6594
    %v6645 = vunpack.c.h.b16 %v6594
    %v6646 = vunpack.c.l.b16 %v6595
    %v6647 = vunpack.c.h.b16 %v6595
    %v6648 = vunpack.c.l.b16 %v6596
    %v6649 = vunpack.c.h.b16 %v6596
    %v6650 = vunpack.c.l.b16 %v6597
    %v6651 = vunpack.c.h.b16 %v6597
    %v6652 = vunpack.c.l.b16 %v6598
    %v6653 = vunpack.c.h.b16 %v6598
    %v6654 = vunpack.c.l.b16 %v6599
    %v6655 = vunpack.c.h.b16 %v6599
    %v6656 = vunpack.c.l.b16 %v6600
    %v6657 = vunpack.c.h.b16 %v6600
    %v6658 = vunpack.c.l.b16 %v6601
    %v6659 = vunpack.c.h.b16 %v6601
    %v6660 = vunpack.c.l.b16 %v6602
    %v6661 = vunpack.c.h.b16 %v6602
    %v6662 = vpack.c.b16 %v6632, %v6630
    %v6663 = vpack.c.b16 %v6633, %v6631
    %v6664 = vpack.c.b16 %v6636, %v6634
    %v6665 = vpack.c.b16 %v6637, %v6635
    %v6666 = vpack.c.b16 %v6640, %v6638
    %v6667 = vpack.c.b16 %v6641, %v6639
    %v6668 = vpack.c.b16 %v6644, %v6642
    %v6669 = vpack.c.b16 %v6645, %v6643
    %v6670 = vpack.c.b16 %v6648, %v6646
    %v6671 = vpack.c.b16 %v6649, %v6647
    %v6672 = vpack.c.b16 %v6652, %v6650
    %v6673 = vpack.c.b16 %v6653, %v6651
    %v6674 = vpack.c.b16 %v6656, %v6654
    %v6675 = vpack.c.b16 %v6657, %v6655
    %v6676 = vpack.c.b16 %v6660, %v6658
    %v6677 = vpack.c.b16 %v6661, %v6659
    %6694 = vmatpush.bf16.msra.mxu0 %v6676
    %6695 = vmatpush.bf16.msra.mxu0 %v6674
    %6696 = vmatpush.bf16.msra.mxu0 %v6672
    %6697 = vmatpush.bf16.msra.mxu0 %v6670
    %6698 = vmatpush.bf16.msra.mxu0 %v6668
    %6699 = vmatpush.bf16.msra.mxu0 %v6666
    %6700 = vmatpush.bf16.msra.mxu0 %v6664
    %6701 = vmatpush.bf16.msra.mxu0 %v6662
    %6702 = vmatmul.bf16.gmra.mxu0 %v6603
    %v6703 = vpop.f32.mrf.mxu0
    %v6704 = vadd.f32 %v6610, %v6703
    %v6705 = vpop.f32.mrf.mxu0
    %v6706 = vadd.f32 %v6610, %v6705
    %6707 = vmatmul.bf16.gmra.mxu0 %v6604
    %v6708 = vpop.f32.mrf.mxu0
    %v6709 = vadd.f32 %v6610, %v6708
    %v6710 = vpop.f32.mrf.mxu0
    %v6711 = vadd.f32 %v6610, %v6710
    %6712 = vmatmul.bf16.gmra.mxu0 %v6605
    %v6713 = vpop.f32.mrf.mxu0
    %v6714 = vadd.f32 %v6610, %v6713
    %v6715 = vpop.f32.mrf.mxu0
    %v6716 = vadd.f32 %v6610, %v6715
    %6717 = vmatmul.bf16.gmra.mxu0 %v6606
    %v6718 = vpop.f32.mrf.mxu0
    %v6719 = vadd.f32 %v6610, %v6718
    %v6720 = vpop.f32.mrf.mxu0
    %v6721 = vadd.f32 %v6610, %v6720
    %6722 = vdwg.mxu0
    %6723 = vmatpush.bf16.msra.mxu0 %v6677
    %6724 = vmatpush.bf16.msra.mxu0 %v6675
    %6725 = vmatpush.bf16.msra.mxu0 %v6673
    %6726 = vmatpush.bf16.msra.mxu0 %v6671
    %6727 = vmatpush.bf16.msra.mxu0 %v6669
    %6728 = vmatpush.bf16.msra.mxu0 %v6667
    %6729 = vmatpush.bf16.msra.mxu0 %v6665
    %6730 = vmatpush.bf16.msra.mxu0 %v6663
    %6731 = vmatmul.bf16.gmra.mxu0 %v6603
    %v6732 = vpop.f32.mrf.mxu0
    %v6733 = vadd.f32 %v6611, %v6732
    %v6734 = vpop.f32.mrf.mxu0
    %v6735 = vadd.f32 %v6611, %v6734
    %6736 = vmatmul.bf16.gmra.mxu0 %v6604
    %v6737 = vpop.f32.mrf.mxu0
    %v6738 = vadd.f32 %v6611, %v6737
    %v6739 = vpop.f32.mrf.mxu0
    %v6740 = vadd.f32 %v6611, %v6739
    %6741 = vmatmul.bf16.gmra.mxu0 %v6605
    %v6742 = vpop.f32.mrf.mxu0
    %v6743 = vadd.f32 %v6611, %v6742
    %v6744 = vpop.f32.mrf.mxu0
    %v6745 = vadd.f32 %v6611, %v6744
    %6746 = vmatmul.bf16.gmra.mxu0 %v6606
    %v6747 = vpop.f32.mrf.mxu0
    %v6748 = vadd.f32 %v6611, %v6747
    %v6749 = vpop.f32.mrf.mxu0
    %v6750 = vadd.f32 %v6611, %v6749
    %6751 = vdwg.mxu0
    %v6752 = vmul.f32 %v6704, 0.5
    %v6753 = vmul.f32 %v6733, 0.5
    %v6754 = vmul.f32 %v6706, 0.5
    %v6755 = vmul.f32 %v6735, 0.5
    %v6756 = vmul.f32 %v6709, 0.5
    %v6757 = vmul.f32 %v6738, 0.5
    %v6758 = vmul.f32 %v6711, 0.5
    %v6759 = vmul.f32 %v6740, 0.5
    %v6760 = vmul.f32 %v6714, 0.5
    %v6761 = vmul.f32 %v6743, 0.5
    %v6762 = vmul.f32 %v6716, 0.5
    %v6763 = vmul.f32 %v6745, 0.5
    %v6764 = vmul.f32 %v6719, 0.5
    %v6765 = vmul.f32 %v6748, 0.5
    %v6766 = vmul.f32 %v6721, 0.5
    %v6767 = vmul.f32 %v6750, 0.5
    %v6768 = vmul.f32 %v6704, 0.044715
    %v6769 = vmul.f32 %v6733, 0.044715
    %v6770 = vmul.f32 %v6706, 0.044715
    %v6771 = vmul.f32 %v6735, 0.044715
    %v6772 = vmul.f32 %v6709, 0.044715
    %v6773 = vmul.f32 %v6738, 0.044715
    %v6774 = vmul.f32 %v6711, 0.044715
    %v6775 = vmul.f32 %v6740, 0.044715
    %v6776 = vmul.f32 %v6714, 0.044715
    %v6777 = vmul.f32 %v6743, 0.044715
    %v6778 = vmul.f32 %v6716, 0.044715
    %v6779 = vmul.f32 %v6745, 0.044715
    %v6780 = vmul.f32 %v6719, 0.044715
    %v6781 = vmul.f32 %v6748, 0.044715
    %v6782 = vmul.f32 %v6721, 0.044715
    %v6783 = vmul.f32 %v6750, 0.044715
    %v6784 = vmul.f32 %v6768, %v6704
    %v6785 = vmul.f32 %v6769, %v6733
    %v6786 = vmul.f32 %v6770, %v6706
    %v6787 = vmul.f32 %v6771, %v6735
    %v6788 = vmul.f32 %v6772, %v6709
    %v6789 = vmul.f32 %v6773, %v6738
    %v6790 = vmul.f32 %v6774, %v6711
    %v6791 = vmul.f32 %v6775, %v6740
    %v6792 = vmul.f32 %v6776, %v6714
    %v6793 = vmul.f32 %v6777, %v6743
    %v6794 = vmul.f32 %v6778, %v6716
    %v6795 = vmul.f32 %v6779, %v6745
    %v6796 = vmul.f32 %v6780, %v6719
    %v6797 = vmul.f32 %v6781, %v6748
    %v6798 = vmul.f32 %v6782, %v6721
    %v6799 = vmul.f32 %v6783, %v6750
    %v6800 = vmul.f32 %v6784, %v6704
    %v6801 = vmul.f32 %v6785, %v6733
    %v6802 = vmul.f32 %v6786, %v6706
    %v6803 = vmul.f32 %v6787, %v6735
    %v6804 = vmul.f32 %v6788, %v6709
    %v6805 = vmul.f32 %v6789, %v6738
    %v6806 = vmul.f32 %v6790, %v6711
    %v6807 = vmul.f32 %v6791, %v6740
    %v6808 = vmul.f32 %v6792, %v6714
    %v6809 = vmul.f32 %v6793, %v6743
    %v6810 = vmul.f32 %v6794, %v6716
    %v6811 = vmul.f32 %v6795, %v6745
    %v6812 = vmul.f32 %v6796, %v6719
    %v6813 = vmul.f32 %v6797, %v6748
    %v6814 = vmul.f32 %v6798, %v6721
    %v6815 = vmul.f32 %v6799, %v6750
    %v6816 = vadd.f32 %v6704, %v6800
    %v6817 = vadd.f32 %v6733, %v6801
    %v6818 = vadd.f32 %v6706, %v6802
    %v6819 = vadd.f32 %v6735, %v6803
    %v6820 = vadd.f32 %v6709, %v6804
    %v6821 = vadd.f32 %v6738, %v6805
    %v6822 = vadd.f32 %v6711, %v6806
    %v6823 = vadd.f32 %v6740, %v6807
    %v6824 = vadd.f32 %v6714, %v6808
    %v6825 = vadd.f32 %v6743, %v6809
    %v6826 = vadd.f32 %v6716, %v6810
    %v6827 = vadd.f32 %v6745, %v6811
    %v6828 = vadd.f32 %v6719, %v6812
    %v6829 = vadd.f32 %v6748, %v6813
    %v6830 = vadd.f32 %v6721, %v6814
    %v6831 = vadd.f32 %v6750, %v6815
    %v6832 = vmul.f32 %v6816, 0.7978846
    %v6833 = vmul.f32 %v6817, 0.7978846
    %v6834 = vmul.f32 %v6818, 0.7978846
    %v6835 = vmul.f32 %v6819, 0.7978846
    %v6836 = vmul.f32 %v6820, 0.7978846
    %v6837 = vmul.f32 %v6821, 0.7978846
    %v6838 = vmul.f32 %v6822, 0.7978846
    %v6839 = vmul.f32 %v6823, 0.7978846
    %v6840 = vmul.f32 %v6824, 0.7978846
    %v6841 = vmul.f32 %v6825, 0.7978846
    %v6842 = vmul.f32 %v6826, 0.7978846
    %v6843 = vmul.f32 %v6827, 0.7978846
    %v6844 = vmul.f32 %v6828, 0.7978846
    %v6845 = vmul.f32 %v6829, 0.7978846
    %v6846 = vmul.f32 %v6830, 0.7978846
    %v6847 = vmul.f32 %v6831, 0.7978846
    %v6848 = vtanh.pop %v6832
    %v6849 = vtanh.pop %v6833
    %v6850 = vtanh.pop %v6834
    %v6851 = vtanh.pop %v6835
    %v6852 = vtanh.pop %v6836
    %v6853 = vtanh.pop %v6837
    %v6854 = vtanh.pop %v6838
    %v6855 = vtanh.pop %v6839
    %v6856 = vtanh.pop %v6840
    %v6857 = vtanh.pop %v6841
    %v6858 = vtanh.pop %v6842
    %v6859 = vtanh.pop %v6843
    %v6860 = vtanh.pop %v6844
    %v6861 = vtanh.pop %v6845
    %v6862 = vtanh.pop %v6846
    %v6863 = vtanh.pop %v6847
    %v6864 = vadd.f32 %v6848, 1.0
    %v6865 = vadd.f32 %v6849, 1.0
    %v6866 = vadd.f32 %v6850, 1.0
    %v6867 = vadd.f32 %v6851, 1.0
    %v6868 = vadd.f32 %v6852, 1.0
    %v6869 = vadd.f32 %v6853, 1.0
    %v6870 = vadd.f32 %v6854, 1.0
    %v6871 = vadd.f32 %v6855, 1.0
    %v6872 = vadd.f32 %v6856, 1.0
    %v6873 = vadd.f32 %v6857, 1.0
    %v6874 = vadd.f32 %v6858, 1.0
    %v6875 = vadd.f32 %v6859, 1.0
    %v6876 = vadd.f32 %v6860, 1.0
    %v6877 = vadd.f32 %v6861, 1.0
    %v6878 = vadd.f32 %v6862, 1.0
    %v6879 = vadd.f32 %v6863, 1.0
    %v6880 = vmul.f32 %v6752, %v6864
    %v6881 = vmul.f32 %v6753, %v6865
    %v6882 = vmul.f32 %v6754, %v6866
    %v6883 = vmul.f32 %v6755, %v6867
    %v6884 = vmul.f32 %v6756, %v6868
    %v6885 = vmul.f32 %v6757, %v6869
    %v6886 = vmul.f32 %v6758, %v6870
    %v6887 = vmul.f32 %v6759, %v6871
    %v6888 = vmul.f32 %v6760, %v6872
    %v6889 = vmul.f32 %v6761, %v6873
    %v6890 = vmul.f32 %v6762, %v6874
    %v6891 = vmul.f32 %v6763, %v6875
    %v6892 = vmul.f32 %v6764, %v6876
    %v6893 = vmul.f32 %v6765, %v6877
    %v6894 = vmul.f32 %v6766, %v6878
    %v6895 = vmul.f32 %v6767, %v6879
    %s6896 = scalar_lea.vmem %s14, 128
    %v6897 = vld [vmem:[%s6896] sm:$0xf]
    %v6898 = vld [vmem:[%s6896 + $0x4] sm:$0xf]
    %v6899 = vld [vmem:[%s6896 + $0x8] sm:$0xf]
    %v6900 = vld [vmem:[%s6896 + $0xc] sm:$0xf]
    %v6901 = vld [vmem:[%s6896 + $0x10] sm:$0xf]
    %v6902 = vld [vmem:[%s6896 + $0x14] sm:$0xf]
    %v6903 = vld [vmem:[%s6896 + $0x18] sm:$0xf]
    %v6904 = vld [vmem:[%s6896 + $0x1c] sm:$0xf]
    %v6905 = vld [vmem:[%s6896 + $0x20] sm:$0xf]
    %v6906 = vld [vmem:[%s6896 + $0x24] sm:$0xf]
    %v6907 = vld [vmem:[%s6896 + $0x28] sm:$0xf]
    %v6908 = vld [vmem:[%s6896 + $0x2c] sm:$0xf]
    %v6909 = vld [vmem:[%s6896 + $0x30] sm:$0xf]
    %v6910 = vld [vmem:[%s6896 + $0x34] sm:$0xf]
    %v6911 = vld [vmem:[%s6896 + $0x38] sm:$0xf]
    %v6912 = vld [vmem:[%s6896 + $0x3c] sm:$0xf]
    %v6913 = vld [vmem:[%s6896 + $0x40] sm:$0xf]
    %v6914 = vld [vmem:[%s6896 + $0x44] sm:$0xf]
    %v6915 = vld [vmem:[%s6896 + $0x48] sm:$0xf]
    %v6916 = vld [vmem:[%s6896 + $0x4c] sm:$0xf]
    %v6917 = vld [vmem:[%s6896 + $0x50] sm:$0xf]
    %v6918 = vld [vmem:[%s6896 + $0x54] sm:$0xf]
    %v6919 = vld [vmem:[%s6896 + $0x58] sm:$0xf]
    %v6920 = vld [vmem:[%s6896 + $0x5c] sm:$0xf]
    %v6921 = vld [vmem:[%s6896 + $0x60] sm:$0xf]
    %v6922 = vld [vmem:[%s6896 + $0x64] sm:$0xf]
    %v6923 = vld [vmem:[%s6896 + $0x68] sm:$0xf]
    %v6924 = vld [vmem:[%s6896 + $0x6c] sm:$0xf]
    %v6925 = vld [vmem:[%s6896 + $0x70] sm:$0xf]
    %v6926 = vld [vmem:[%s6896 + $0x74] sm:$0xf]
    %v6927 = vld [vmem:[%s6896 + $0x78] sm:$0xf]
    %v6928 = vld [vmem:[%s6896 + $0x7c] sm:$0xf]
    %v6929 = vpack.c.bf16 %v6882, %v6880
    %v6930 = vpack.c.bf16 %v6883, %v6881
    %v6931 = vpack.c.bf16 %v6886, %v6884
    %v6932 = vpack.c.bf16 %v6887, %v6885
    %v6933 = vpack.c.bf16 %v6890, %v6888
    %v6934 = vpack.c.bf16 %v6891, %v6889
    %v6935 = vpack.c.bf16 %v6894, %v6892
    %v6936 = vpack.c.bf16 %v6895, %v6893
    %v6969 = vunpack.c.l.b16 %v6897
    %v6970 = vunpack.c.l.b16 %v6898
    %v6971 = vunpack.c.l.b16 %v6899
    %v6972 = vunpack.c.l.b16 %v6900
    %v6973 = vunpack.c.l.b16 %v6901
    %v6974 = vunpack.c.l.b16 %v6902
    %v6975 = vunpack.c.l.b16 %v6903
    %v6976 = vunpack.c.l.b16 %v6904
    %v6977 = vunpack.c.l.b16 %v6905
    %v6978 = vunpack.c.l.b16 %v6906
    %v6979 = vunpack.c.l.b16 %v6907
    %v6980 = vunpack.c.l.b16 %v6908
    %v6981 = vunpack.c.l.b16 %v6909
    %v6982 = vunpack.c.l.b16 %v6910
    %v6983 = vunpack.c.l.b16 %v6911
    %v6984 = vunpack.c.l.b16 %v6912
    %v6985 = vunpack.c.l.b16 %v6913
    %v6986 = vunpack.c.l.b16 %v6914
    %v6987 = vunpack.c.l.b16 %v6915
    %v6988 = vunpack.c.l.b16 %v6916
    %v6989 = vunpack.c.l.b16 %v6917
    %v6990 = vunpack.c.l.b16 %v6918
    %v6991 = vunpack.c.l.b16 %v6919
    %v6992 = vunpack.c.l.b16 %v6920
    %v6993 = vunpack.c.l.b16 %v6921
    %v6994 = vunpack.c.l.b16 %v6922
    %v6995 = vunpack.c.l.b16 %v6923
    %v6996 = vunpack.c.l.b16 %v6924
    %v6997 = vunpack.c.l.b16 %v6925
    %v6998 = vunpack.c.l.b16 %v6926
    %v6999 = vunpack.c.l.b16 %v6927
    %v7000 = vunpack.c.l.b16 %v6928
    %v7001 = vpack.c.b16 %v6970, %v6969
    %v7002 = vpack.c.b16 %v6972, %v6971
    %v7003 = vpack.c.b16 %v6974, %v6973
    %v7004 = vpack.c.b16 %v6976, %v6975
    %v7005 = vpack.c.b16 %v6978, %v6977
    %v7006 = vpack.c.b16 %v6980, %v6979
    %v7007 = vpack.c.b16 %v6982, %v6981
    %v7008 = vpack.c.b16 %v6984, %v6983
    %v7009 = vpack.c.b16 %v6986, %v6985
    %v7010 = vpack.c.b16 %v6988, %v6987
    %v7011 = vpack.c.b16 %v6990, %v6989
    %v7012 = vpack.c.b16 %v6992, %v6991
    %v7013 = vpack.c.b16 %v6994, %v6993
    %v7014 = vpack.c.b16 %v6996, %v6995
    %v7015 = vpack.c.b16 %v6998, %v6997
    %v7016 = vpack.c.b16 %v7000, %v6999
    %7033 = vmatpush.bf16.msra.mxu0 %v7008
    %7034 = vmatpush.bf16.msra.mxu0 %v7007
    %7035 = vmatpush.bf16.msra.mxu0 %v7006
    %7036 = vmatpush.bf16.msra.mxu0 %v7005
    %7037 = vmatpush.bf16.msra.mxu0 %v7004
    %7038 = vmatpush.bf16.msra.mxu0 %v7003
    %7039 = vmatpush.bf16.msra.mxu0 %v7002
    %7040 = vmatpush.bf16.msra.mxu0 %v7001
    %7041 = vmatmul.bf16.gmra.mxu0 %v6929
    %v7042 = vpop.f32.mrf.mxu0
    %v7043 = vadd.f32 0.0, %v7042
    %v7044 = vpop.f32.mrf.mxu0
    %v7045 = vadd.f32 0.0, %v7044
    %7046 = vmatmul.bf16.gmra.mxu0 %v6931
    %v7047 = vpop.f32.mrf.mxu0
    %v7048 = vadd.f32 0.0, %v7047
    %v7049 = vpop.f32.mrf.mxu0
    %v7050 = vadd.f32 0.0, %v7049
    %7051 = vmatmul.bf16.gmra.mxu0 %v6933
    %v7052 = vpop.f32.mrf.mxu0
    %v7053 = vadd.f32 0.0, %v7052
    %v7054 = vpop.f32.mrf.mxu0
    %v7055 = vadd.f32 0.0, %v7054
    %7056 = vmatmul.bf16.gmra.mxu0 %v6935
    %v7057 = vpop.f32.mrf.mxu0
    %v7058 = vadd.f32 0.0, %v7057
    %v7059 = vpop.f32.mrf.mxu0
    %v7060 = vadd.f32 0.0, %v7059
    %7061 = vdwg.mxu0
    %7062 = vmatpush.bf16.msra.mxu0 %v7016
    %7063 = vmatpush.bf16.msra.mxu0 %v7015
    %7064 = vmatpush.bf16.msra.mxu0 %v7014
    %7065 = vmatpush.bf16.msra.mxu0 %v7013
    %7066 = vmatpush.bf16.msra.mxu0 %v7012
    %7067 = vmatpush.bf16.msra.mxu0 %v7011
    %7068 = vmatpush.bf16.msra.mxu0 %v7010
    %7069 = vmatpush.bf16.msra.mxu0 %v7009
    %7070 = vmatmul.bf16.gmra.mxu0 %v6930
    %v7071 = vpop.f32.mrf.mxu0
    %v7072 = vadd.f32 %v7043, %v7071
    %v7073 = vpop.f32.mrf.mxu0
    %v7074 = vadd.f32 %v7045, %v7073
    %7075 = vmatmul.bf16.gmra.mxu0 %v6932
    %v7076 = vpop.f32.mrf.mxu0
    %v7077 = vadd.f32 %v7048, %v7076
    %v7078 = vpop.f32.mrf.mxu0
    %v7079 = vadd.f32 %v7050, %v7078
    %7080 = vmatmul.bf16.gmra.mxu0 %v6934
    %v7081 = vpop.f32.mrf.mxu0
    %v7082 = vadd.f32 %v7053, %v7081
    %v7083 = vpop.f32.mrf.mxu0
    %v7084 = vadd.f32 %v7055, %v7083
    %7085 = vmatmul.bf16.gmra.mxu0 %v6936
    %v7086 = vpop.f32.mrf.mxu0
    %v7087 = vadd.f32 %v7058, %v7086
    %v7088 = vpop.f32.mrf.mxu0
    %v7089 = vadd.f32 %v7060, %v7088
    %7090 = vdwg.mxu0
    %v7091 = vadd.f32 %v6392, %v7072
    %v7092 = vadd.f32 %v6393, %v7074
    %v7093 = vadd.f32 %v6394, %v7077
    %v7094 = vadd.f32 %v6395, %v7079
    %v7095 = vadd.f32 %v6396, %v7082
    %v7096 = vadd.f32 %v6397, %v7084
    %v7097 = vadd.f32 %v6398, %v7087
    %v7098 = vadd.f32 %v6399, %v7089
    %s7099 = scalar_lea.vmem [#allocation16], 1
    %v7100 = vld [vmem:[%s7099] sm:$0x1]
    %v7102 = vperm.slane %v7100, 0
    %v7104 = vadd.f32 %v7091, %v7102
    %v7105 = vadd.f32 %v7092, %v7102
    %v7106 = vadd.f32 %v7093, %v7102
    %v7107 = vadd.f32 %v7094, %v7102
    %v7108 = vadd.f32 %v7095, %v7102
    %v7109 = vadd.f32 %v7096, %v7102
    %v7110 = vadd.f32 %v7097, %v7102
    %v7111 = vadd.f32 %v7098, %v7102
    %v7112 = vld [vmem:[%s16] sm:$0x1]
    %v7113 = vld [vmem:[%s17] sm:$0x1]
    %v7122 = vrot.slane %v7105, 7
    %vm7123 = vcmask 1041409
    %v7124 = vsel %vm7123, %v7122, %v7104
    %v7125 = vrot.slane %v7106, 6
    %vm7126 = vcmask 1042434
    %v7127 = vsel %vm7126, %v7125, %v7124
    %v7128 = vrot.slane %v7107, 5
    %vm7129 = vcmask 1043459
    %v7130 = vsel %vm7129, %v7128, %v7127
    %v7131 = vrot.slane %v7108, 4
    %vm7132 = vcmask 1044484
    %v7133 = vsel %vm7132, %v7131, %v7130
    %v7134 = vrot.slane %v7109, 3
    %vm7135 = vcmask 1045509
    %v7136 = vsel %vm7135, %v7134, %v7133
    %v7137 = vrot.slane %v7110, 2
    %vm7138 = vcmask 1046534
    %v7139 = vsel %vm7138, %v7137, %v7136
    %v7140 = vrot.slane %v7111, 1
    %vm7141 = vcmask 1047559
    %v7142 = vsel %vm7141, %v7140, %v7139
    %7144 = vadd.xlane.f32.xlu0 %v7142
    %v7145 = vpop.xlane.xlu0 %7144
    %v7146 = vmul.f32 %v7145, %v554
    %v7148 = vrot.slane %v7146, 1
    %v7149 = vrot.slane %v7146, 2
    %v7150 = vrot.slane %v7146, 3
    %v7151 = vrot.slane %v7146, 4
    %v7152 = vrot.slane %v7146, 5
    %v7153 = vrot.slane %v7146, 6
    %v7154 = vrot.slane %v7146, 7
    %v7163 = vsub.f32 %v7104, %v7146
    %v7164 = vsub.f32 %v7105, %v7148
    %v7165 = vsub.f32 %v7106, %v7149
    %v7166 = vsub.f32 %v7107, %v7150
    %v7167 = vsub.f32 %v7108, %v7151
    %v7168 = vsub.f32 %v7109, %v7152
    %v7169 = vsub.f32 %v7110, %v7153
    %v7170 = vsub.f32 %v7111, %v7154
    %v7171 = vmul.f32 %v7163, %v7163
    %v7172 = vmul.f32 %v7164, %v7164
    %v7173 = vmul.f32 %v7165, %v7165
    %v7174 = vmul.f32 %v7166, %v7166
    %v7175 = vmul.f32 %v7167, %v7167
    %v7176 = vmul.f32 %v7168, %v7168
    %v7177 = vmul.f32 %v7169, %v7169
    %v7178 = vmul.f32 %v7170, %v7170
    %v7187 = vrot.slane %v7172, 7
    %v7188 = vsel %vm7123, %v7187, %v7171
    %v7189 = vrot.slane %v7173, 6
    %v7190 = vsel %vm7126, %v7189, %v7188
    %v7191 = vrot.slane %v7174, 5
    %v7192 = vsel %vm7129, %v7191, %v7190
    %v7193 = vrot.slane %v7175, 4
    %v7194 = vsel %vm7132, %v7193, %v7192
    %v7195 = vrot.slane %v7176, 3
    %v7196 = vsel %vm7135, %v7195, %v7194
    %v7197 = vrot.slane %v7177, 2
    %v7198 = vsel %vm7138, %v7197, %v7196
    %v7199 = vrot.slane %v7178, 1
    %v7200 = vsel %vm7141, %v7199, %v7198
    %7202 = vadd.xlane.f32.xlu0 %v7200
    %v7203 = vpop.xlane.xlu0 %7202
    %v7204 = vmul.f32 %v7203, %v554
    %v7205 = vadd.f32 %v7204, 1e-05
    %v7206 = vrsqrt.pop %v7205
    %v7207 = vmul.f32 %v7206, %v7205
    %v7208 = vmul.f32 %v7207, %v7206
    %v7209 = vmul.f32 0.5, %v7208
    %v7210 = vsub.f32 1.5, %v7209
    %v7211 = vmul.f32 %v7206, %v7210
    %vm7212 = vweird.f32 %v7205
    %vm7213 = vweird.f32 %v7206
    %vm7214 = vmor %vm7212, %vm7213
    %v7215 = vsel %vm7214, %v7206, %v7211
    %v7217 = vrot.slane %v7215, 1
    %v7218 = vrot.slane %v7215, 2
    %v7219 = vrot.slane %v7215, 3
    %v7220 = vrot.slane %v7215, 4
    %v7221 = vrot.slane %v7215, 5
    %v7222 = vrot.slane %v7215, 6
    %v7223 = vrot.slane %v7215, 7
    %v7232 = vmul.f32 %v7163, %v7215
    %v7233 = vmul.f32 %v7164, %v7217
    %v7234 = vmul.f32 %v7165, %v7218
    %v7235 = vmul.f32 %v7166, %v7219
    %v7236 = vmul.f32 %v7167, %v7220
    %v7237 = vmul.f32 %v7168, %v7221
    %v7238 = vmul.f32 %v7169, %v7222
    %v7239 = vmul.f32 %v7170, %v7223
    %v7241 = vperm.slane %v7112, 0
    %v7243 = vmul.f32 %v7232, %v7241
    %v7244 = vmul.f32 %v7233, %v7241
    %v7245 = vmul.f32 %v7234, %v7241
    %v7246 = vmul.f32 %v7235, %v7241
    %v7247 = vmul.f32 %v7236, %v7241
    %v7248 = vmul.f32 %v7237, %v7241
    %v7249 = vmul.f32 %v7238, %v7241
    %v7250 = vmul.f32 %v7239, %v7241
    %v7252 = vperm.slane %v7113, 0
    %v7254 = vadd.f32 %v7243, %v7252
    %v7255 = vadd.f32 %v7244, %v7252
    %v7256 = vadd.f32 %v7245, %v7252
    %v7257 = vadd.f32 %v7246, %v7252
    %v7258 = vadd.f32 %v7247, %v7252
    %v7259 = vadd.f32 %v7248, %v7252
    %v7260 = vadd.f32 %v7249, %v7252
    %v7261 = vadd.f32 %v7250, %v7252
    %v7262 = vld [vmem:[%s18] sm:$0xf]
    %v7263 = vld [vmem:[%s18 + $0x4] sm:$0xf]
    %v7264 = vld [vmem:[%s18 + $0x8] sm:$0xf]
    %v7265 = vld [vmem:[%s18 + $0xc] sm:$0xf]
    %v7266 = vld [vmem:[%s18 + $0x10] sm:$0xf]
    %v7267 = vld [vmem:[%s18 + $0x14] sm:$0xf]
    %v7268 = vld [vmem:[%s18 + $0x18] sm:$0xf]
    %v7269 = vld [vmem:[%s18 + $0x1c] sm:$0xf]
    %v7270 = vld [vmem:[%s18 + $0x20] sm:$0xf]
    %v7271 = vld [vmem:[%s18 + $0x24] sm:$0xf]
    %v7272 = vld [vmem:[%s18 + $0x28] sm:$0xf]
    %v7273 = vld [vmem:[%s18 + $0x2c] sm:$0xf]
    %v7274 = vld [vmem:[%s18 + $0x30] sm:$0xf]
    %v7275 = vld [vmem:[%s18 + $0x34] sm:$0xf]
    %v7276 = vld [vmem:[%s18 + $0x38] sm:$0xf]
    %v7277 = vld [vmem:[%s18 + $0x3c] sm:$0xf]
    %v7278 = vpack.c.bf16 %v7254, %v7254
    %v7279 = vpack.c.bf16 %v7255, %v7255
    %v7280 = vpack.c.bf16 %v7256, %v7256
    %v7281 = vpack.c.bf16 %v7257, %v7257
    %v7282 = vpack.c.bf16 %v7258, %v7258
    %v7283 = vpack.c.bf16 %v7259, %v7259
    %v7284 = vpack.c.bf16 %v7260, %v7260
    %v7285 = vpack.c.bf16 %v7261, %v7261
    %v7286 = vld [vmem:[#allocation18] sm:$0x1]
    %v7288 = vperm.slane %v7286, 0
    %v7298 = vunpack.c.l.b16 %v7278
    %v7299 = vunpack.c.l.b16 %v7279
    %v7300 = vunpack.c.l.b16 %v7280
    %v7301 = vunpack.c.l.b16 %v7281
    %v7302 = vunpack.c.l.b16 %v7282
    %v7303 = vunpack.c.l.b16 %v7283
    %v7304 = vunpack.c.l.b16 %v7284
    %v7305 = vunpack.c.l.b16 %v7285
    %v7306 = vrot.slane %v7299, 7
    %v7307 = vsel %vm7123, %v7306, %v7298
    %v7308 = vrot.slane %v7300, 6
    %v7309 = vsel %vm7126, %v7308, %v7307
    %v7310 = vrot.slane %v7301, 5
    %v7311 = vsel %vm7129, %v7310, %v7309
    %v7312 = vrot.slane %v7302, 4
    %v7313 = vsel %vm7132, %v7312, %v7311
    %v7314 = vrot.slane %v7303, 3
    %v7315 = vsel %vm7135, %v7314, %v7313
    %v7316 = vrot.slane %v7304, 2
    %v7317 = vsel %vm7138, %v7316, %v7315
    %v7318 = vrot.slane %v7305, 1
    %v7319 = vsel %vm7141, %v7318, %v7317
    %v7320 = vpack.c.b16 %v7319, %v7319
    %v7338 = vunpack.c.l.b16 %v7262
    %v7339 = vunpack.c.l.b16 %v7263
    %v7340 = vunpack.c.l.b16 %v7264
    %v7341 = vunpack.c.l.b16 %v7265
    %v7342 = vunpack.c.l.b16 %v7266
    %v7343 = vunpack.c.l.b16 %v7267
    %v7344 = vunpack.c.l.b16 %v7268
    %v7345 = vunpack.c.l.b16 %v7269
    %v7346 = vunpack.c.l.b16 %v7270
    %v7347 = vunpack.c.l.b16 %v7271
    %v7348 = vunpack.c.l.b16 %v7272
    %v7349 = vunpack.c.l.b16 %v7273
    %v7350 = vunpack.c.l.b16 %v7274
    %v7351 = vunpack.c.l.b16 %v7275
    %v7352 = vunpack.c.l.b16 %v7276
    %v7353 = vunpack.c.l.b16 %v7277
    %v7354 = vpack.c.b16 %v7339, %v7338
    %v7355 = vpack.c.b16 %v7341, %v7340
    %v7356 = vpack.c.b16 %v7343, %v7342
    %v7357 = vpack.c.b16 %v7345, %v7344
    %v7358 = vpack.c.b16 %v7347, %v7346
    %v7359 = vpack.c.b16 %v7349, %v7348
    %v7360 = vpack.c.b16 %v7351, %v7350
    %v7361 = vpack.c.b16 %v7353, %v7352
    %7370 = vmatpush.bf16.msra.mxu0 %v7361
    %7371 = vmatpush.bf16.msra.mxu0 %v7360
    %7372 = vmatpush.bf16.msra.mxu0 %v7359
    %7373 = vmatpush.bf16.msra.mxu0 %v7358
    %7374 = vmatpush.bf16.msra.mxu0 %v7357
    %7375 = vmatpush.bf16.msra.mxu0 %v7356
    %7376 = vmatpush.bf16.msra.mxu0 %v7355
    %7377 = vmatpush.bf16.msra.mxu0 %v7354
    %7378 = vmatmul.bf16.gmra.mxu0 %v7320
    %v7379 = vpop.f32.mrf.mxu0
    %v7380 = vadd.f32 %v7288, %v7379
    %v7381 = vpop.f32.mrf.mxu0
    %7382 = vdwg.mxu0
    %7383 = vst [vmem:[%s20] sm:$0xff] %v7380
    // Predicated region
    $region126: #{vit_forward.1} parent=1 // pred_check
      _
    $region127: #{vit_forward.1} parent=1 // pred_check_branch
      %7385 = sbr.rel (0) target = $region129
    $region128: #{vit_forward.1} parent=1 // pred_region
      _
    $region129: #{vit_forward.1} parent=1 // pred_fallthru
      _
    // Predicated region
    $region130: #{vit_forward.1} parent=1 // pred_check
      _
    $region131: #{vit_forward.1} parent=1 // pred_check_branch
      %7387 = sbr.rel (0) target = $region133
    $region132: #{vit_forward.1} parent=1 // pred_region
      _
    $region133: #{vit_forward.1} parent=1 // pred_fallthru
      _
    %7388 = vsyncpa [#allocation3], 1
    %7389 = vsyncpa [#allocation5], 1
    %7390 = vsyncpa [#allocation8], 1
    %7391 = vsyncpa [#allocation11], 1
    %7392 = vsyncpa [#allocation14], 1
    %7393 = vsyncpa [#allocation17], 1

</llo_original>
